<compile_context>
chip_gen: v5e
topology: v5e:2x2
jax: 0.10.0
libtpu: 0.0.40
codegen_flags: <defaults>
</compile_context>

<pallas_src>
import numpy as np
import jax
import jax.numpy as jnp
from jax import lax
from jax.experimental import pallas as pl
from jax.experimental.pallas import tpu as pltpu

C = 256        # fixed channel count in the module
HID = 512      # 1x1 conv hidden width
KW = 7         # temporal kernel width
PAD = 3        # temporal padding


def conv_layer_kernel(xcol_ref, wcol_ref, bc_ref, gamma_ref, beta_ref,
                      w1_ref, b1_ref, w2_ref, b2_ref, xid_ref, out_ref):
    s = out_ref.shape[0]
    c = out_ref.shape[2]

    # Fused conv for all s output speakers of this (batch, time-tile):
    # (TQ, 7*s*256) bf16 @ (7*s*256, s*256) bf16 -> f32 accumulation on the MXU.
    acc = jnp.dot(xcol_ref[0], wcol_ref[...],
                  preferred_element_type=jnp.float32) + bc_ref[...]

    gamma = gamma_ref[...]
    beta = beta_ref[...]

    for sp in range(s):                       # small static unroll over speakers
        y = acc[:, sp * c:(sp + 1) * c]       # (TQ, 256) f32, lane-aligned slice

        # LayerNorm(256): biased variance, eps=1e-5, stats in f32.
        mean = jnp.mean(y, axis=-1, keepdims=True)
        var = jnp.mean((y - mean) ** 2, axis=-1, keepdims=True)
        yn = (y - mean) * lax.rsqrt(var + 1e-5) * gamma + beta

        # 1x1 conv 256->512, tanh-GELU (EUP), 1x1 conv 512->256 (bf16 MXU inputs).
        h = jnp.dot(yn.astype(jnp.bfloat16), w1_ref[...],
                    preferred_element_type=jnp.float32) + b1_ref[...]
        h = jax.nn.gelu(h, approximate=True)
        o = jnp.dot(h.astype(jnp.bfloat16), w2_ref[...],
                    preferred_element_type=jnp.float32) + b2_ref[...]

        # residual add, write one speaker row-block of the output tile
        out_ref[sp] = (o + xid_ref[sp]).astype(out_ref.dtype)


def conv_layer_pallas(x, params, b, s):
    bs, t, c = x.shape
    assert bs == b * s and c == C

    # ---- time tiling ----
    if t <= 256:
        tq = ((t + 7) // 8) * 8          # single tile, sublane-aligned
    else:
        tq = 256
    t_pad = ((t + tq - 1) // tq) * tq
    n_t = t_pad // tq

    # ---- input glue: channels-last, speakers folded into features, im2col ----
    x4 = x.reshape(b, s, t, c)
    xflat = jnp.transpose(x4, (0, 2, 1, 3)).reshape(b, t, s * c)      # (b, t, s*256)
    # halo pad (3,3) for the 7 taps + tail pad up to t_pad for clean tiling
    xpadded = jnp.pad(xflat, ((0, 0), (PAD, t_pad - t + PAD), (0, 0)))
    # im2col: feature index k = kw*(s*c) + spin*c + cin
    xcol = jnp.concatenate([xpadded[:, kw:kw + t_pad, :] for kw in range(KW)],
                           axis=-1).astype(jnp.bfloat16)              # (b, t_pad, 7*s*c)

    # ---- parameter glue ----
    wconv, bconv = params["wconv"], params["bconv"]   # torch layouts
    # Wconv: (256*s, 256, s, 7) with output channel o = cout*s + sp
    wc = wconv.reshape(c, s, c, s, KW)                                # (cout, sp, cin, spin, kw)
    wcol = jnp.transpose(wc, (4, 3, 2, 1, 0)).reshape(KW * s * c, s * c)
    wcol = wcol.astype(jnp.bfloat16)                                  # K=(kw,spin,cin), N=(sp,cout)
    bc = bconv.reshape(c, s).T.reshape(1, s * c).astype(jnp.float32)  # n = sp*c + cout
    gamma = params["gamma"].reshape(1, c).astype(jnp.float32)
    beta = params["beta"].reshape(1, c).astype(jnp.float32)
    w1 = params["w1"][:, :, 0, 0].T.astype(jnp.bfloat16)              # (256, 512)
    b1 = params["b1"].reshape(1, HID).astype(jnp.float32)
    w2 = params["w2"][:, :, 0, 0].T.astype(jnp.bfloat16)              # (512, 256)
    b2 = params["b2"].reshape(1, c).astype(jnp.float32)
    xid = jnp.pad(x, ((0, 0), (0, t_pad - t), (0, 0)))                # residual, f32

    kcol = KW * s * c

    grid_spec = pltpu.PrefetchScalarGridSpec(
        num_scalar_prefetch=0,
        grid=(b, n_t),
        in_specs=[
            pl.BlockSpec((1, tq, kcol), lambda bi, ti: (bi, ti, 0)),   # im2col input
            pl.BlockSpec((kcol, s * c), lambda bi, ti: (0, 0)),        # fused conv W
            pl.BlockSpec((1, s * c), lambda bi, ti: (0, 0)),           # conv bias
            pl.BlockSpec((1, c), lambda bi, ti: (0, 0)),               # gamma
            pl.BlockSpec((1, c), lambda bi, ti: (0, 0)),               # beta
            pl.BlockSpec((c, HID), lambda bi, ti: (0, 0)),             # w1
            pl.BlockSpec((1, HID), lambda bi, ti: (0, 0)),             # b1
            pl.BlockSpec((HID, c), lambda bi, ti: (0, 0)),             # w2
            pl.BlockSpec((1, c), lambda bi, ti: (0, 0)),               # b2
            pl.BlockSpec((s, tq, c), lambda bi, ti: (bi, ti, 0)),      # identity
        ],
        out_specs=pl.BlockSpec((s, tq, c), lambda bi, ti: (bi, ti, 0)),
    )

    flops = (2 * b * t_pad * kcol * (s * c)               # fused conv matmul
             + 2 * b * s * t_pad * c * HID * 2)           # the two 1x1 convs
    transcendentals = b * s * t_pad * (HID + 1)           # tanh GELU + rsqrt
    bytes_accessed = int(xcol.size * 2 + wcol.size * 2 + w1.size * 2 + w2.size * 2
                         + xid.size * 4 + b * s * t_pad * c * 4)

    out = pl.pallas_call(
        conv_layer_kernel,
        out_shape=jax.ShapeDtypeStruct((b * s, t_pad, c), jnp.float32),
        grid_spec=grid_spec,
        compiler_params=pltpu.CompilerParams(
            dimension_semantics=("parallel", "parallel"),
            # sized so double-buffered blocks fit v7x's 64 MiB VMEM with headroom
            vmem_limit_bytes=48 * 1024 * 1024,
        ),
        cost_estimate=pl.CostEstimate(flops=int(flops),
                                      transcendentals=int(transcendentals),
                                      bytes_accessed=bytes_accessed),
    )(xcol, wcol, bc, gamma, beta, w1, b1, w2, b2, xid)

    return out[:, :t, :], b, s


def conv_layer_ref(x, params, b, s):
    """Pure-JAX mirror of the PyTorch forward (for verification)."""
    bs, t, c = x.shape
    x4 = x.reshape(b, s, t, c)
    nchw = jnp.transpose(x4, (0, 3, 1, 2))                         # (b, 256, s, t)
    out = lax.conv_general_dilated(
        nchw, params["wconv"], window_strides=(1, 1),
        padding=((0, 0), (PAD, PAD)),
        dimension_numbers=("NCHW", "OIHW", "NCHW"))
    out = out + params["bconv"][None, :, None, None]               # (b, 256*s, 1, t)
    out = out.reshape(b, c, s, t)
    out = jnp.transpose(out, (0, 2, 3, 1))                         # (b, s, t, 256)
    mean = out.mean(-1, keepdims=True)
    var = ((out - mean) ** 2).mean(-1, keepdims=True)
    out = (out - mean) / jnp.sqrt(var + 1e-5) * params["gamma"] + params["beta"]
    out = jnp.einsum("bstc,oc->bsto", out, params["w1"][:, :, 0, 0]) + params["b1"]
    out = jax.nn.gelu(out, approximate=False)
    out = jnp.einsum("bsto,co->bstc", out, params["w2"][:, :, 0, 0]) + params["b2"]
    out = out.reshape(b * s, t, c) + x
    return out


if __name__ == "__main__":
    b, s, t = 2, 2, 16
    key = jax.random.PRNGKey(0)
    keys = jax.random.split(key, 9)
    params = {
        "wconv": 0.02 * jax.random.normal(keys[0], (C * s, C, s, KW), jnp.float32),
        "bconv": 0.01 * jax.random.normal(keys[1], (C * s,), jnp.float32),
        "gamma": 1.0 + 0.01 * jax.random.normal(keys[2], (C,), jnp.float32),
        "beta": 0.01 * jax.random.normal(keys[3], (C,), jnp.float32),
        "w1": 0.02 * jax.random.normal(keys[4], (HID, C, 1, 1), jnp.float32),
        "b1": 0.01 * jax.random.normal(keys[5], (HID,), jnp.float32),
        "w2": 0.02 * jax.random.normal(keys[6], (C, HID, 1, 1), jnp.float32),
        "b2": 0.01 * jax.random.normal(keys[7], (C,), jnp.float32),
    }
    x = jax.random.normal(keys[8], (b * s, t, C), jnp.float32)

    out, _, _ = conv_layer_pallas(x, params, b, s)
    out = jax.block_until_ready(out)

    ref = conv_layer_ref(x, params, b, s)
    np.testing.assert_allclose(np.asarray(out), np.asarray(ref), rtol=2e-2, atol=2e-2)
    print("KERNEL_OK")
</pallas_src>

<mosaic_0001>
module attributes {stable_mosaic.version = 11 : i64} {
  func.func @conv_layer_kernel(%arg0: i32, %arg1: i32, %arg2: memref<1x16x3584xbf16, #tpu.memory_space<vmem>>, %arg3: memref<3584x512xbf16, #tpu.memory_space<vmem>>, %arg4: memref<1x512xf32, #tpu.memory_space<vmem>>, %arg5: memref<1x256xf32, #tpu.memory_space<vmem>>, %arg6: memref<1x256xf32, #tpu.memory_space<vmem>>, %arg7: memref<256x512xbf16, #tpu.memory_space<vmem>>, %arg8: memref<1x512xf32, #tpu.memory_space<vmem>>, %arg9: memref<512x256xbf16, #tpu.memory_space<vmem>>, %arg10: memref<1x256xf32, #tpu.memory_space<vmem>>, %arg11: memref<2x16x256xf32, #tpu.memory_space<vmem>>, %arg12: memref<2x16x256xf32, #tpu.memory_space<vmem>>) attributes {dimension_semantics = [#tpu.dimension_semantics<parallel>, #tpu.dimension_semantics<parallel>], iteration_bounds = array<i64: 2, 1>, scalar_prefetch = 0 : i64, scratch_operands = 0 : i64, tpu.core_type = #tpu.core_type<tc>, window_params = [{transform_indices = @transform_0, window_bounds = array<i64: 1, 16, 3584>}, {pipeline_mode = #tpu.pipeline_mode<synchronous>, transform_indices = @transform_1, window_bounds = array<i64: 3584, 512>}, {pipeline_mode = #tpu.pipeline_mode<synchronous>, transform_indices = @transform_2, window_bounds = array<i64: 1, 512>}, {pipeline_mode = #tpu.pipeline_mode<synchronous>, transform_indices = @transform_3, window_bounds = array<i64: 1, 256>}, {pipeline_mode = #tpu.pipeline_mode<synchronous>, transform_indices = @transform_4, window_bounds = array<i64: 1, 256>}, {pipeline_mode = #tpu.pipeline_mode<synchronous>, transform_indices = @transform_5, window_bounds = array<i64: 256, 512>}, {pipeline_mode = #tpu.pipeline_mode<synchronous>, transform_indices = @transform_6, window_bounds = array<i64: 1, 512>}, {pipeline_mode = #tpu.pipeline_mode<synchronous>, transform_indices = @transform_7, window_bounds = array<i64: 512, 256>}, {pipeline_mode = #tpu.pipeline_mode<synchronous>, transform_indices = @transform_8, window_bounds = array<i64: 1, 256>}, {transform_indices = @transform_9, window_bounds = array<i64: 2, 16, 256>}, {transform_indices = @transform_10, window_bounds = array<i64: 2, 16, 256>}]} {
    %c0 = arith.constant 0 : index
    %c0_0 = arith.constant 0 : index
    %c0_1 = arith.constant 0 : index
    %0 = vector.load %arg2[%c0, %c0_0, %c0_1] : memref<1x16x3584xbf16, #tpu.memory_space<vmem>>, vector<1x16x3584xbf16>
    %1 = vector.shape_cast %0 : vector<1x16x3584xbf16> to vector<16x3584xbf16>
    %c0_2 = arith.constant 0 : index
    %c0_3 = arith.constant 0 : index
    %2 = vector.load %arg3[%c0_2, %c0_3] : memref<3584x512xbf16, #tpu.memory_space<vmem>>, vector<3584x512xbf16>
    %cst = arith.constant dense<0.000000e+00> : vector<16x512xf32>
    %3 = tpu.matmul %1, %2, %cst {dimension_numbers = #tpu.dot_dimension_numbers<[1], [0], [0], [1], [0, 0, 1, 1], [], []>} : vector<16x3584xbf16>, vector<3584x512xbf16>, vector<16x512xf32> -> vector<16x512xf32>
    %c0_4 = arith.constant 0 : index
    %c0_5 = arith.constant 0 : index
    %4 = vector.load %arg4[%c0_4, %c0_5] : memref<1x512xf32, #tpu.memory_space<vmem>>, vector<1x512xf32>
    %5 = vector.broadcast %4 : vector<1x512xf32> to vector<16x512xf32>
    %6 = arith.addf %3, %5 : vector<16x512xf32>
    %c0_6 = arith.constant 0 : index
    %c0_7 = arith.constant 0 : index
    %7 = vector.load %arg5[%c0_6, %c0_7] : memref<1x256xf32, #tpu.memory_space<vmem>>, vector<1x256xf32>
    %c0_8 = arith.constant 0 : index
    %c0_9 = arith.constant 0 : index
    %8 = vector.load %arg6[%c0_8, %c0_9] : memref<1x256xf32, #tpu.memory_space<vmem>>, vector<1x256xf32>
    %9 = vector.extract_strided_slice %6 {offsets = [0, 0], sizes = [16, 256], strides = [1, 1]} : vector<16x512xf32> to vector<16x256xf32>
    %cst_10 = arith.constant dense<0.000000e+00> : vector<16xf32>
    %10 = vector.multi_reduction <add>, %9, %cst_10 [1] : vector<16x256xf32> to vector<16xf32>
    %11 = vector.shape_cast %10 : vector<16xf32> to vector<16x1xf32>
    %cst_11 = arith.constant 2.560000e+02 : f32
    %12 = vector.broadcast %cst_11 : f32 to vector<16x1xf32>
    %13 = arith.divf %11, %12 : vector<16x1xf32>
    %14 = vector.broadcast %13 : vector<16x1xf32> to vector<16x256xf32>
    %15 = arith.subf %9, %14 : vector<16x256xf32>
    %16 = arith.mulf %15, %15 : vector<16x256xf32>
    %cst_12 = arith.constant dense<0.000000e+00> : vector<16xf32>
    %17 = vector.multi_reduction <add>, %16, %cst_12 [1] : vector<16x256xf32> to vector<16xf32>
    %18 = vector.shape_cast %17 : vector<16xf32> to vector<16x1xf32>
    %cst_13 = arith.constant 2.560000e+02 : f32
    %19 = vector.broadcast %cst_13 : f32 to vector<16x1xf32>
    %20 = arith.divf %18, %19 : vector<16x1xf32>
    %21 = vector.broadcast %13 : vector<16x1xf32> to vector<16x256xf32>
    %22 = arith.subf %9, %21 : vector<16x256xf32>
    %cst_14 = arith.constant 9.99999974E-6 : f32
    %23 = vector.broadcast %cst_14 : f32 to vector<16x1xf32>
    %24 = arith.addf %20, %23 : vector<16x1xf32>
    %25 = math.rsqrt %24 : vector<16x1xf32>
    %26 = vector.broadcast %25 : vector<16x1xf32> to vector<16x256xf32>
    %27 = arith.mulf %22, %26 : vector<16x256xf32>
    %28 = vector.broadcast %7 : vector<1x256xf32> to vector<16x256xf32>
    %29 = arith.mulf %27, %28 : vector<16x256xf32>
    %30 = vector.broadcast %8 : vector<1x256xf32> to vector<16x256xf32>
    %31 = arith.addf %29, %30 : vector<16x256xf32>
    %32 = arith.truncf %31 : vector<16x256xf32> to vector<16x256xbf16>
    %c0_15 = arith.constant 0 : index
    %c0_16 = arith.constant 0 : index
    %33 = vector.load %arg7[%c0_15, %c0_16] : memref<256x512xbf16, #tpu.memory_space<vmem>>, vector<256x512xbf16>
    %cst_17 = arith.constant dense<0.000000e+00> : vector<16x512xf32>
    %34 = tpu.matmul %32, %33, %cst_17 {dimension_numbers = #tpu.dot_dimension_numbers<[1], [0], [0], [1], [0, 0, 1, 1], [], []>} : vector<16x256xbf16>, vector<256x512xbf16>, vector<16x512xf32> -> vector<16x512xf32>
    %c0_18 = arith.constant 0 : index
    %c0_19 = arith.constant 0 : index
    %35 = vector.load %arg8[%c0_18, %c0_19] : memref<1x512xf32, #tpu.memory_space<vmem>>, vector<1x512xf32>
    %36 = vector.broadcast %35 : vector<1x512xf32> to vector<16x512xf32>
    %37 = arith.addf %34, %36 : vector<16x512xf32>
    %38 = arith.mulf %37, %37 : vector<16x512xf32>
    %39 = arith.mulf %37, %38 : vector<16x512xf32>
    %cst_20 = arith.constant 4.471500e-02 : f32
    %40 = vector.broadcast %cst_20 : f32 to vector<16x512xf32>
    %41 = arith.mulf %40, %39 : vector<16x512xf32>
    %42 = arith.addf %37, %41 : vector<16x512xf32>
    %cst_21 = arith.constant 0.797884583 : f32
    %43 = vector.broadcast %cst_21 : f32 to vector<16x512xf32>
    %44 = arith.mulf %43, %42 : vector<16x512xf32>
    %45 = math.tanh %44 : vector<16x512xf32>
    %cst_22 = arith.constant 1.000000e+00 : f32
    %46 = vector.broadcast %cst_22 : f32 to vector<16x512xf32>
    %47 = arith.addf %46, %45 : vector<16x512xf32>
    %cst_23 = arith.constant 5.000000e-01 : f32
    %48 = vector.broadcast %cst_23 : f32 to vector<16x512xf32>
    %49 = arith.mulf %48, %47 : vector<16x512xf32>
    %50 = arith.mulf %37, %49 : vector<16x512xf32>
    %51 = arith.truncf %50 : vector<16x512xf32> to vector<16x512xbf16>
    %c0_24 = arith.constant 0 : index
    %c0_25 = arith.constant 0 : index
    %52 = vector.load %arg9[%c0_24, %c0_25] : memref<512x256xbf16, #tpu.memory_space<vmem>>, vector<512x256xbf16>
    %cst_26 = arith.constant dense<0.000000e+00> : vector<16x256xf32>
    %53 = tpu.matmul %51, %52, %cst_26 {dimension_numbers = #tpu.dot_dimension_numbers<[1], [0], [0], [1], [0, 0, 1, 1], [], []>} : vector<16x512xbf16>, vector<512x256xbf16>, vector<16x256xf32> -> vector<16x256xf32>
    %c0_27 = arith.constant 0 : index
    %c0_28 = arith.constant 0 : index
    %54 = vector.load %arg10[%c0_27, %c0_28] : memref<1x256xf32, #tpu.memory_space<vmem>>, vector<1x256xf32>
    %55 = vector.broadcast %54 : vector<1x256xf32> to vector<16x256xf32>
    %56 = arith.addf %53, %55 : vector<16x256xf32>
    %c0_29 = arith.constant 0 : index
    %c0_30 = arith.constant 0 : index
    %c0_31 = arith.constant 0 : index
    %57 = vector.load %arg11[%c0_29, %c0_30, %c0_31] : memref<2x16x256xf32, #tpu.memory_space<vmem>>, vector<1x16x256xf32>
    %58 = vector.shape_cast %57 : vector<1x16x256xf32> to vector<16x256xf32>
    %59 = arith.addf %56, %58 : vector<16x256xf32>
    %c0_32 = arith.constant 0 : index
    %c0_33 = arith.constant 0 : index
    %c0_34 = arith.constant 0 : index
    %60 = vector.load %arg12[%c0_32, %c0_33, %c0_34] : memref<2x16x256xf32, #tpu.memory_space<vmem>>, vector<1x16x256xf32>
    %61 = vector.shape_cast %60 : vector<1x16x256xf32> to vector<16x256xf32>
    %62 = vector.shape_cast %59 : vector<16x256xf32> to vector<1x16x256xf32>
    tpu.vector_store %arg12[%c0_32, %c0_33, %c0_34], %62 {strides = array<i32>} : memref<2x16x256xf32, #tpu.memory_space<vmem>>, vector<1x16x256xf32>,
    %63 = vector.extract_strided_slice %6 {offsets = [0, 256], sizes = [16, 256], strides = [1, 1]} : vector<16x512xf32> to vector<16x256xf32>
    %cst_35 = arith.constant dense<0.000000e+00> : vector<16xf32>
    %64 = vector.multi_reduction <add>, %63, %cst_35 [1] : vector<16x256xf32> to vector<16xf32>
    %65 = vector.shape_cast %64 : vector<16xf32> to vector<16x1xf32>
    %cst_36 = arith.constant 2.560000e+02 : f32
    %66 = vector.broadcast %cst_36 : f32 to vector<16x1xf32>
    %67 = arith.divf %65, %66 : vector<16x1xf32>
    %68 = vector.broadcast %67 : vector<16x1xf32> to vector<16x256xf32>
    %69 = arith.subf %63, %68 : vector<16x256xf32>
    %70 = arith.mulf %69, %69 : vector<16x256xf32>
    %cst_37 = arith.constant dense<0.000000e+00> : vector<16xf32>
    %71 = vector.multi_reduction <add>, %70, %cst_37 [1] : vector<16x256xf32> to vector<16xf32>
    %72 = vector.shape_cast %71 : vector<16xf32> to vector<16x1xf32>
    %cst_38 = arith.constant 2.560000e+02 : f32
    %73 = vector.broadcast %cst_38 : f32 to vector<16x1xf32>
    %74 = arith.divf %72, %73 : vector<16x1xf32>
    %75 = vector.broadcast %67 : vector<16x1xf32> to vector<16x256xf32>
    %76 = arith.subf %63, %75 : vector<16x256xf32>
    %cst_39 = arith.constant 9.99999974E-6 : f32
    %77 = vector.broadcast %cst_39 : f32 to vector<16x1xf32>
    %78 = arith.addf %74, %77 : vector<16x1xf32>
    %79 = math.rsqrt %78 : vector<16x1xf32>
    %80 = vector.broadcast %79 : vector<16x1xf32> to vector<16x256xf32>
    %81 = arith.mulf %76, %80 : vector<16x256xf32>
    %82 = vector.broadcast %7 : vector<1x256xf32> to vector<16x256xf32>
    %83 = arith.mulf %81, %82 : vector<16x256xf32>
    %84 = vector.broadcast %8 : vector<1x256xf32> to vector<16x256xf32>
    %85 = arith.addf %83, %84 : vector<16x256xf32>
    %86 = arith.truncf %85 : vector<16x256xf32> to vector<16x256xbf16>
    %c0_40 = arith.constant 0 : index
    %c0_41 = arith.constant 0 : index
    %87 = vector.load %arg7[%c0_40, %c0_41] : memref<256x512xbf16, #tpu.memory_space<vmem>>, vector<256x512xbf16>
    %cst_42 = arith.constant dense<0.000000e+00> : vector<16x512xf32>
    %88 = tpu.matmul %86, %87, %cst_42 {dimension_numbers = #tpu.dot_dimension_numbers<[1], [0], [0], [1], [0, 0, 1, 1], [], []>} : vector<16x256xbf16>, vector<256x512xbf16>, vector<16x512xf32> -> vector<16x512xf32>
    %c0_43 = arith.constant 0 : index
    %c0_44 = arith.constant 0 : index
    %89 = vector.load %arg8[%c0_43, %c0_44] : memref<1x512xf32, #tpu.memory_space<vmem>>, vector<1x512xf32>
    %90 = vector.broadcast %89 : vector<1x512xf32> to vector<16x512xf32>
    %91 = arith.addf %88, %90 : vector<16x512xf32>
    %92 = arith.mulf %91, %91 : vector<16x512xf32>
    %93 = arith.mulf %91, %92 : vector<16x512xf32>
    %cst_45 = arith.constant 4.471500e-02 : f32
    %94 = vector.broadcast %cst_45 : f32 to vector<16x512xf32>
    %95 = arith.mulf %94, %93 : vector<16x512xf32>
    %96 = arith.addf %91, %95 : vector<16x512xf32>
    %cst_46 = arith.constant 0.797884583 : f32
    %97 = vector.broadcast %cst_46 : f32 to vector<16x512xf32>
    %98 = arith.mulf %97, %96 : vector<16x512xf32>
    %99 = math.tanh %98 : vector<16x512xf32>
    %cst_47 = arith.constant 1.000000e+00 : f32
    %100 = vector.broadcast %cst_47 : f32 to vector<16x512xf32>
    %101 = arith.addf %100, %99 : vector<16x512xf32>
    %cst_48 = arith.constant 5.000000e-01 : f32
    %102 = vector.broadcast %cst_48 : f32 to vector<16x512xf32>
    %103 = arith.mulf %102, %101 : vector<16x512xf32>
    %104 = arith.mulf %91, %103 : vector<16x512xf32>
    %105 = arith.truncf %104 : vector<16x512xf32> to vector<16x512xbf16>
    %c0_49 = arith.constant 0 : index
    %c0_50 = arith.constant 0 : index
    %106 = vector.load %arg9[%c0_49, %c0_50] : memref<512x256xbf16, #tpu.memory_space<vmem>>, vector<512x256xbf16>
    %cst_51 = arith.constant dense<0.000000e+00> : vector<16x256xf32>
    %107 = tpu.matmul %105, %106, %cst_51 {dimension_numbers = #tpu.dot_dimension_numbers<[1], [0], [0], [1], [0, 0, 1, 1], [], []>} : vector<16x512xbf16>, vector<512x256xbf16>, vector<16x256xf32> -> vector<16x256xf32>
    %c0_52 = arith.constant 0 : index
    %c0_53 = arith.constant 0 : index
    %108 = vector.load %arg10[%c0_52, %c0_53] : memref<1x256xf32, #tpu.memory_space<vmem>>, vector<1x256xf32>
    %109 = vector.broadcast %108 : vector<1x256xf32> to vector<16x256xf32>
    %110 = arith.addf %107, %109 : vector<16x256xf32>
    %c1 = arith.constant 1 : index
    %c0_54 = arith.constant 0 : index
    %c0_55 = arith.constant 0 : index
    %111 = vector.load %arg11[%c1, %c0_54, %c0_55] : memref<2x16x256xf32, #tpu.memory_space<vmem>>, vector<1x16x256xf32>
    %112 = vector.shape_cast %111 : vector<1x16x256xf32> to vector<16x256xf32>
    %113 = arith.addf %110, %112 : vector<16x256xf32>
    %c1_56 = arith.constant 1 : index
    %c0_57 = arith.constant 0 : index
    %c0_58 = arith.constant 0 : index
    %114 = vector.load %arg12[%c1_56, %c0_57, %c0_58] : memref<2x16x256xf32, #tpu.memory_space<vmem>>, vector<1x16x256xf32>
    %115 = vector.shape_cast %114 : vector<1x16x256xf32> to vector<16x256xf32>
    %116 = vector.shape_cast %113 : vector<16x256xf32> to vector<1x16x256xf32>
    tpu.vector_store %arg12[%c1_56, %c0_57, %c0_58], %116 {strides = array<i32>} : memref<2x16x256xf32, #tpu.memory_space<vmem>>, vector<1x16x256xf32>,
    return
  }
  func.func @transform_0(%arg0: i32, %arg1: i32) -> (i32, i32, i32) {
    %c0_i32 = arith.constant 0 : i32
    %c0_i32_0 = arith.constant 0 : i32
    return %arg0, %arg1, %c0_i32 : i32, i32, i32
  }
  func.func @transform_1(%arg0: i32, %arg1: i32) -> (i32, i32) {
    %c0_i32 = arith.constant 0 : i32
    %c0_i32_0 = arith.constant 0 : i32
    %c0_i32_1 = arith.constant 0 : i32
    return %c0_i32, %c0_i32_0 : i32, i32
  }
  func.func @transform_2(%arg0: i32, %arg1: i32) -> (i32, i32) {
    %c0_i32 = arith.constant 0 : i32
    %c0_i32_0 = arith.constant 0 : i32
    %c0_i32_1 = arith.constant 0 : i32
    return %c0_i32, %c0_i32_0 : i32, i32
  }
  func.func @transform_3(%arg0: i32, %arg1: i32) -> (i32, i32) {
    %c0_i32 = arith.constant 0 : i32
    %c0_i32_0 = arith.constant 0 : i32
    %c0_i32_1 = arith.constant 0 : i32
    return %c0_i32, %c0_i32_0 : i32, i32
  }
  func.func @transform_4(%arg0: i32, %arg1: i32) -> (i32, i32) {
    %c0_i32 = arith.constant 0 : i32
    %c0_i32_0 = arith.constant 0 : i32
    %c0_i32_1 = arith.constant 0 : i32
    return %c0_i32, %c0_i32_0 : i32, i32
  }
  func.func @transform_5(%arg0: i32, %arg1: i32) -> (i32, i32) {
    %c0_i32 = arith.constant 0 : i32
    %c0_i32_0 = arith.constant 0 : i32
    %c0_i32_1 = arith.constant 0 : i32
    return %c0_i32, %c0_i32_0 : i32, i32
  }
  func.func @transform_6(%arg0: i32, %arg1: i32) -> (i32, i32) {
    %c0_i32 = arith.constant 0 : i32
    %c0_i32_0 = arith.constant 0 : i32
    %c0_i32_1 = arith.constant 0 : i32
    return %c0_i32, %c0_i32_0 : i32, i32
  }
  func.func @transform_7(%arg0: i32, %arg1: i32) -> (i32, i32) {
    %c0_i32 = arith.constant 0 : i32
    %c0_i32_0 = arith.constant 0 : i32
    %c0_i32_1 = arith.constant 0 : i32
    return %c0_i32, %c0_i32_0 : i32, i32
  }
  func.func @transform_8(%arg0: i32, %arg1: i32) -> (i32, i32) {
    %c0_i32 = arith.constant 0 : i32
    %c0_i32_0 = arith.constant 0 : i32
    %c0_i32_1 = arith.constant 0 : i32
    return %c0_i32, %c0_i32_0 : i32, i32
  }
  func.func @transform_9(%arg0: i32, %arg1: i32) -> (i32, i32, i32) {
    %c0_i32 = arith.constant 0 : i32
    %c0_i32_0 = arith.constant 0 : i32
    return %arg0, %arg1, %c0_i32 : i32, i32, i32
  }
  func.func @transform_10(%arg0: i32, %arg1: i32) -> (i32, i32, i32) {
    %c0_i32 = arith.constant 0 : i32
    %c0_i32_0 = arith.constant 0 : i32
    return %arg0, %arg1, %c0_i32 : i32, i32, i32
  }
}

</mosaic_0001>

<llo_original>
// kernel: tpu_custom_call.1
$region0: #{tpu_custom_call.1}
  #allocation0 [shape = 'u32[]', space=smem, size = 0x4, offset = 0x4, fixed_abs, tag = 'smem constant byte address 0x4 - core index']
  #allocation1 [shape = 'u32[72,128]{1,0:T(1,128)}', space=vmem, size = 0x9000, scoped, tag = 'internal scratch']
  %s0 = inlined_call_operand.hbm [shape: bf16[2,16,3584], index: 0, kind: input, shape index: {}]
  %s1 = inlined_call_operand.hbm [shape: bf16[3584,512], index: 1, kind: input, shape index: {}]
  %s2 = inlined_call_operand.hbm [shape: f32[1,512], index: 2, kind: input, shape index: {}]
  %s3 = inlined_call_operand.hbm [shape: f32[1,256], index: 3, kind: input, shape index: {}]
  %s4 = inlined_call_operand.hbm [shape: f32[1,256], index: 4, kind: input, shape index: {}]
  %s5 = inlined_call_operand.hbm [shape: bf16[256,512], index: 5, kind: input, shape index: {}]
  %s6 = inlined_call_operand.hbm [shape: f32[1,512], index: 6, kind: input, shape index: {}]
  %s7 = inlined_call_operand.hbm [shape: bf16[512,256], index: 7, kind: input, shape index: {}]
  %s8 = inlined_call_operand.hbm [shape: f32[1,256], index: 8, kind: input, shape index: {}]
  %s9 = inlined_call_operand.hbm [shape: f32[4,16,256], index: 9, kind: input, shape index: {}]
  %s10 = inlined_call_operand.hbm [shape: f32[4,16,256], index: 10, kind: output, shape index: {}]
  %s11 = sld [smem:[#allocation0]]
  $region113: #{tpu_custom_call.1} parent=0
    _
  %s13 = ssub.s32 1, %s11
  %s14 = scalar_select 0, %s13, %s11
  $region1: #{tpu_custom_call.1} parent=0
    #allocation2 [shape = 'u8[229376]{0}', space=vmem, size = 0x38000, scoped, tag = 'input window, operand 0']
    #allocation3 [shape = 's32[2]{0}', space=sflag, size = 0x8, scoped, tag = 'scoped memory for tpu_custom_call.1']
    #allocation4 [shape = 's32[2]{0}', space=sflag, size = 0x8, scoped, tag = 'scoped memory for tpu_custom_call.1']
    #allocation5 [shape = 'u8[3670016]{0}', space=vmem, size = 0x380000, scoped, tag = 'input window, operand 1, single buffered']
    #allocation6 [shape = 's32[1]{0}', space=sflag, size = 0x4, scoped, tag = 'scoped memory for tpu_custom_call.1']
    #allocation7 [shape = 'u8[2048]{0}', space=vmem, size = 0x800, scoped, tag = 'input window, operand 2, single buffered']
    #allocation8 [shape = 'u8[1024]{0}', space=vmem, size = 0x400, scoped, tag = 'input window, operand 3, single buffered']
    #allocation9 [shape = 's32[1]{0}', space=sflag, size = 0x4, scoped, tag = 'scoped memory for tpu_custom_call.1']
    #allocation10 [shape = 'u8[1024]{0}', space=vmem, size = 0x400, scoped, tag = 'input window, operand 4, single buffered']
    #allocation11 [shape = 'u8[262144]{0}', space=vmem, size = 0x40000, scoped, tag = 'input window, operand 5, single buffered']
    #allocation12 [shape = 's32[1]{0}', space=sflag, size = 0x4, scoped, tag = 'scoped memory for tpu_custom_call.1']
    #allocation13 [shape = 'u8[2048]{0}', space=vmem, size = 0x800, scoped, tag = 'input window, operand 6, single buffered']
    #allocation14 [shape = 'u8[262144]{0}', space=vmem, size = 0x40000, scoped, tag = 'input window, operand 7, single buffered']
    #allocation15 [shape = 's32[1]{0}', space=sflag, size = 0x4, scoped, tag = 'scoped memory for tpu_custom_call.1']
    #allocation16 [shape = 'u8[1024]{0}', space=vmem, size = 0x400, scoped, tag = 'input window, operand 8, single buffered']
    #allocation17 [shape = 'u8[65536]{0}', space=vmem, size = 0x10000, scoped, tag = 'input window, operand 9']
    #allocation18 [shape = 's32[2]{0}', space=sflag, size = 0x8, scoped, tag = 'scoped memory for tpu_custom_call.1']
    #allocation19 [shape = 'u8[65536]{0}', space=vmem, size = 0x10000, scoped, tag = 'output window, operand 0']
    %15 = vsyncpa [#allocation3], 0
    %s16 = scalar_lea.sflag [#allocation3], 1
    %17 = vsyncpa %s16, 0
    %18 = vsyncpa [#allocation6], 0
    %19 = vsyncpa [#allocation9], 0
    %20 = vsyncpa [#allocation12], 0
    %21 = vsyncpa [#allocation15], 0
    %22 = vsyncpa [#allocation18], 0
    %s23 = scalar_lea.sflag [#allocation18], 1
    %24 = vsyncpa %s23, 0
    %25 = vsyncpa [#allocation4], 0
    %s26 = scalar_lea.sflag [#allocation4], 1
    %27 = vsyncpa %s26, 0
    loop: start=0, step=1, limit=4
    $region2: #{tpu_custom_call.1} parent=1 // loop_pre_header
      _
    $region3: #{tpu_custom_call.1} parent=1 // loop_header
      %s29 = sphi 0, %s33
      %p30 = scmp.ge.s32.totalorder %s29, 4
      %s36 = sphi 0, %s48
      %s37 = sphi 0, %s44
      %s38 = sphi 0, %s36
      %s39 = sphi 0, %s37
      %s40 = sphi 0, %s38
      %s41 = sphi 0, %s39
      %s53 = sphi 0, %s55
      %s56 = sphi 0, %s53
      %s57 = sphi 0, %s56
      %s73 = sphi 0, %s57
      %s77 = sphi 0, %s77
      %s79 = sphi 0, %s77
      %s80 = sphi 0, %s79
      %s94 = sphi 0, %s80
      %s98 = sphi 0, %s98
      %s100 = sphi 0, %s98
      %s101 = sphi 0, %s100
      %s115 = sphi 0, %s101
      %s119 = sphi 0, %s119
      %s121 = sphi 0, %s119
      %s122 = sphi 0, %s121
      %s136 = sphi 0, %s122
      %s140 = sphi 0, %s140
      %s142 = sphi 0, %s140
      %s143 = sphi 0, %s142
      %s157 = sphi 0, %s143
      %s161 = sphi 0, %s161
      %s163 = sphi 0, %s161
      %s164 = sphi 0, %s163
      %s178 = sphi 0, %s164
      %s182 = sphi 0, %s182
      %s184 = sphi 0, %s182
      %s185 = sphi 0, %s184
      %s199 = sphi 0, %s185
      %s203 = sphi 0, %s203
      %s205 = sphi 0, %s203
      %s206 = sphi 0, %s205
      %s220 = sphi 0, %s206
      %s224 = sphi 0, %s224
      %s226 = sphi 0, %s224
      %s227 = sphi 0, %s226
      %s241 = sphi 0, %s227
      %s249 = sphi 0, %s251
      %s252 = sphi 0, %s249
      %s253 = sphi 0, %s252
      %s269 = sphi 0, %s253
      %s277 = sphi 0, %s279
      %s280 = sphi 0, %s277
      %s281 = sphi 0, %s280
      %s297 = sphi 0, %s281
    $region4: #{tpu_custom_call.1} parent=1 // loop_header_branch
      %32 = sbr.rel (%p30) target = $region8
    $region5: #{tpu_custom_call.1} parent=1 // loop_body
      %s34 = ssub.s32 %s29, 1
      %s35 = ssub.s32 %s29, 2
      %s42 = sadd.s32 1, %s37
      %p43 = scmp.ge.s32.totalorder %s42, 1
      %s44 = scalar_select %p43, 0, %s42
      %s45 = sadd.s32 1, %s36
      %s46 = scalar_select %p43, %s45, %s36
      %p47 = scmp.ge.s32.totalorder %s46, 2
      %s48 = scalar_select %p47, 0, %s46
      %s49 = ssub.s32 %s36, %s48
      %s50 = ssub.s32 %s37, %s44
      %s51 = sor.u32 %s49, %s50
      %p52 = scmp.eq.s32.totalorder %s51, 0
      %s54 = sadd.s32 %s53, 1
      %s55 = scalar_select %p52, %s53, %s54
      %p58 = pneg %p52
      %p59 = scmp.eq.s32.totalorder %s29, 1
      %p60 = por %p58, %p59
      %p61 = scmp.ne.s32.totalorder %s53, %s56
      %p62 = scmp.eq.s32.totalorder %s29, 0
      %p63 = por %p61, %p62
      %p64 = scmp.ne.s32.totalorder %s53, %s56
      %p65 = scmp.eq.s32.totalorder %s34, 1
      %p66 = por %p64, %p65
      %p67 = scmp.ne.s32.totalorder %s56, %s57
      %p68 = scmp.eq.s32.totalorder %s34, 0
      %p69 = por %p67, %p68
      %p70 = scmp.ne.s32.totalorder %s56, %s57
      %p71 = scmp.eq.s32.totalorder %s35, 1
      %p72 = por %p70, %p71
      %p74 = scmp.ne.s32.totalorder %s57, %s73
      %p75 = scmp.eq.s32.totalorder %s35, 0
      %p76 = por %p74, %p75
      %s78 = sadd.s32 %s77, 1
      %p81 = scmp.eq.s32.totalorder %s29, 1
      %p82 = scmp.ne.s32.totalorder %s77, %s79
      %p83 = scmp.eq.s32.totalorder %s29, 0
      %p84 = por %p82, %p83
      %p85 = scmp.ne.s32.totalorder %s77, %s79
      %p86 = scmp.eq.s32.totalorder %s34, 1
      %p87 = por %p85, %p86
      %p88 = scmp.ne.s32.totalorder %s79, %s80
      %p89 = scmp.eq.s32.totalorder %s34, 0
      %p90 = por %p88, %p89
      %p91 = scmp.ne.s32.totalorder %s79, %s80
      %p92 = scmp.eq.s32.totalorder %s35, 1
      %p93 = por %p91, %p92
      %p95 = scmp.ne.s32.totalorder %s80, %s94
      %p96 = scmp.eq.s32.totalorder %s35, 0
      %p97 = por %p95, %p96
      %s99 = sadd.s32 %s98, 1
      %p102 = scmp.eq.s32.totalorder %s29, 1
      %p103 = scmp.ne.s32.totalorder %s98, %s100
      %p104 = scmp.eq.s32.totalorder %s29, 0
      %p105 = por %p103, %p104
      %p106 = scmp.ne.s32.totalorder %s98, %s100
      %p107 = scmp.eq.s32.totalorder %s34, 1
      %p108 = por %p106, %p107
      %p109 = scmp.ne.s32.totalorder %s100, %s101
      %p110 = scmp.eq.s32.totalorder %s34, 0
      %p111 = por %p109, %p110
      %p112 = scmp.ne.s32.totalorder %s100, %s101
      %p113 = scmp.eq.s32.totalorder %s35, 1
      %p114 = por %p112, %p113
      %p116 = scmp.ne.s32.totalorder %s101, %s115
      %p117 = scmp.eq.s32.totalorder %s35, 0
      %p118 = por %p116, %p117
      %s120 = sadd.s32 %s119, 1
      %p123 = scmp.eq.s32.totalorder %s29, 1
      %p124 = scmp.ne.s32.totalorder %s119, %s121
      %p125 = scmp.eq.s32.totalorder %s29, 0
      %p126 = por %p124, %p125
      %p127 = scmp.ne.s32.totalorder %s119, %s121
      %p128 = scmp.eq.s32.totalorder %s34, 1
      %p129 = por %p127, %p128
      %p130 = scmp.ne.s32.totalorder %s121, %s122
      %p131 = scmp.eq.s32.totalorder %s34, 0
      %p132 = por %p130, %p131
      %p133 = scmp.ne.s32.totalorder %s121, %s122
      %p134 = scmp.eq.s32.totalorder %s35, 1
      %p135 = por %p133, %p134
      %p137 = scmp.ne.s32.totalorder %s122, %s136
      %p138 = scmp.eq.s32.totalorder %s35, 0
      %p139 = por %p137, %p138
      %s141 = sadd.s32 %s140, 1
      %p144 = scmp.eq.s32.totalorder %s29, 1
      %p145 = scmp.ne.s32.totalorder %s140, %s142
      %p146 = scmp.eq.s32.totalorder %s29, 0
      %p147 = por %p145, %p146
      %p148 = scmp.ne.s32.totalorder %s140, %s142
      %p149 = scmp.eq.s32.totalorder %s34, 1
      %p150 = por %p148, %p149
      %p151 = scmp.ne.s32.totalorder %s142, %s143
      %p152 = scmp.eq.s32.totalorder %s34, 0
      %p153 = por %p151, %p152
      %p154 = scmp.ne.s32.totalorder %s142, %s143
      %p155 = scmp.eq.s32.totalorder %s35, 1
      %p156 = por %p154, %p155
      %p158 = scmp.ne.s32.totalorder %s143, %s157
      %p159 = scmp.eq.s32.totalorder %s35, 0
      %p160 = por %p158, %p159
      %s162 = sadd.s32 %s161, 1
      %p165 = scmp.eq.s32.totalorder %s29, 1
      %p166 = scmp.ne.s32.totalorder %s161, %s163
      %p167 = scmp.eq.s32.totalorder %s29, 0
      %p168 = por %p166, %p167
      %p169 = scmp.ne.s32.totalorder %s161, %s163
      %p170 = scmp.eq.s32.totalorder %s34, 1
      %p171 = por %p169, %p170
      %p172 = scmp.ne.s32.totalorder %s163, %s164
      %p173 = scmp.eq.s32.totalorder %s34, 0
      %p174 = por %p172, %p173
      %p175 = scmp.ne.s32.totalorder %s163, %s164
      %p176 = scmp.eq.s32.totalorder %s35, 1
      %p177 = por %p175, %p176
      %p179 = scmp.ne.s32.totalorder %s164, %s178
      %p180 = scmp.eq.s32.totalorder %s35, 0
      %p181 = por %p179, %p180
      %s183 = sadd.s32 %s182, 1
      %p186 = scmp.eq.s32.totalorder %s29, 1
      %p187 = scmp.ne.s32.totalorder %s182, %s184
      %p188 = scmp.eq.s32.totalorder %s29, 0
      %p189 = por %p187, %p188
      %p190 = scmp.ne.s32.totalorder %s182, %s184
      %p191 = scmp.eq.s32.totalorder %s34, 1
      %p192 = por %p190, %p191
      %p193 = scmp.ne.s32.totalorder %s184, %s185
      %p194 = scmp.eq.s32.totalorder %s34, 0
      %p195 = por %p193, %p194
      %p196 = scmp.ne.s32.totalorder %s184, %s185
      %p197 = scmp.eq.s32.totalorder %s35, 1
      %p198 = por %p196, %p197
      %p200 = scmp.ne.s32.totalorder %s185, %s199
      %p201 = scmp.eq.s32.totalorder %s35, 0
      %p202 = por %p200, %p201
      %s204 = sadd.s32 %s203, 1
      %p207 = scmp.eq.s32.totalorder %s29, 1
      %p208 = scmp.ne.s32.totalorder %s203, %s205
      %p209 = scmp.eq.s32.totalorder %s29, 0
      %p210 = por %p208, %p209
      %p211 = scmp.ne.s32.totalorder %s203, %s205
      %p212 = scmp.eq.s32.totalorder %s34, 1
      %p213 = por %p211, %p212
      %p214 = scmp.ne.s32.totalorder %s205, %s206
      %p215 = scmp.eq.s32.totalorder %s34, 0
      %p216 = por %p214, %p215
      %p217 = scmp.ne.s32.totalorder %s205, %s206
      %p218 = scmp.eq.s32.totalorder %s35, 1
      %p219 = por %p217, %p218
      %p221 = scmp.ne.s32.totalorder %s206, %s220
      %p222 = scmp.eq.s32.totalorder %s35, 0
      %p223 = por %p221, %p222
      %s225 = sadd.s32 %s224, 1
      %p228 = scmp.eq.s32.totalorder %s29, 1
      %p229 = scmp.ne.s32.totalorder %s224, %s226
      %p230 = scmp.eq.s32.totalorder %s29, 0
      %p231 = por %p229, %p230
      %p232 = scmp.ne.s32.totalorder %s224, %s226
      %p233 = scmp.eq.s32.totalorder %s34, 1
      %p234 = por %p232, %p233
      %p235 = scmp.ne.s32.totalorder %s226, %s227
      %p236 = scmp.eq.s32.totalorder %s34, 0
      %p237 = por %p235, %p236
      %p238 = scmp.ne.s32.totalorder %s226, %s227
      %p239 = scmp.eq.s32.totalorder %s35, 1
      %p240 = por %p238, %p239
      %p242 = scmp.ne.s32.totalorder %s227, %s241
      %p243 = scmp.eq.s32.totalorder %s35, 0
      %p244 = por %p242, %p243
      %s245 = ssub.s32 %s36, %s48
      %s246 = ssub.s32 %s37, %s44
      %s247 = sor.u32 %s245, %s246
      %p248 = scmp.eq.s32.totalorder %s247, 0
      %s250 = sadd.s32 %s249, 1
      %s251 = scalar_select %p248, %s249, %s250
      %p254 = pneg %p248
      %p255 = scmp.eq.s32.totalorder %s29, 1
      %p256 = por %p254, %p255
      %p257 = scmp.ne.s32.totalorder %s249, %s252
      %p258 = scmp.eq.s32.totalorder %s29, 0
      %p259 = por %p257, %p258
      %p260 = scmp.ne.s32.totalorder %s249, %s252
      %p261 = scmp.eq.s32.totalorder %s34, 1
      %p262 = por %p260, %p261
      %p263 = scmp.ne.s32.totalorder %s252, %s253
      %p264 = scmp.eq.s32.totalorder %s34, 0
      %p265 = por %p263, %p264
      %p266 = scmp.ne.s32.totalorder %s252, %s253
      %p267 = scmp.eq.s32.totalorder %s35, 1
      %p268 = por %p266, %p267
      %p270 = scmp.ne.s32.totalorder %s253, %s269
      %p271 = scmp.eq.s32.totalorder %s35, 0
      %p272 = por %p270, %p271
      %s273 = ssub.s32 %s36, %s48
      %s274 = ssub.s32 %s37, %s44
      %s275 = sor.u32 %s273, %s274
      %p276 = scmp.eq.s32.totalorder %s275, 0
      %s278 = sadd.s32 %s277, 1
      %s279 = scalar_select %p276, %s277, %s278
      %p282 = pneg %p276
      %p283 = scmp.eq.s32.totalorder %s29, 1
      %p284 = por %p282, %p283
      %p285 = scmp.ne.s32.totalorder %s277, %s280
      %p286 = scmp.eq.s32.totalorder %s29, 0
      %p287 = por %p285, %p286
      %p288 = scmp.ne.s32.totalorder %s277, %s280
      %p289 = scmp.eq.s32.totalorder %s34, 1
      %p290 = por %p288, %p289
      %p291 = scmp.ne.s32.totalorder %s280, %s281
      %p292 = scmp.eq.s32.totalorder %s34, 0
      %p293 = por %p291, %p292
      %p294 = scmp.ne.s32.totalorder %s280, %s281
      %p295 = scmp.eq.s32.totalorder %s35, 1
      %p296 = por %p294, %p295
      %p298 = scmp.ne.s32.totalorder %s281, %s297
      %p299 = scmp.eq.s32.totalorder %s35, 0
      %p300 = por %p298, %p299
      %p301 = scmp.le.s32.totalorder 1, %s29
      %p302 = scmp.lt.s32.totalorder %s29, 3
      %p303 = pnand %p301, %p302
      %p304 = pneg %p303
      // Predicated region
      $region9: #{tpu_custom_call.1} parent=5 // pred_check
        _
      $region10: #{tpu_custom_call.1} parent=5 // pred_check_branch
        %306 = sbr.rel (%p303) target = $region12
      $region11: #{tpu_custom_call.1} parent=5 // pred_region
        %s307 = ssub.s32 %s29, 1
        // Predicated region
        $region13: #{tpu_custom_call.1} parent=11 // pred_check
          %p308 = pneg %p90
        $region14: #{tpu_custom_call.1} parent=11 // pred_check_branch
          %310 = sbr.rel (%p308) target = $region16
        $region15: #{tpu_custom_call.1} parent=11 // pred_region
          %312 = vsyncadd [#allocation6], 0
          %s313 = sshll.u32 %s1, 4
          %s314 = int_to_ptr.hbm [resolvable:$true] %s313
          %s315 = sshll.u32 [#allocation5], 4
          %s316 = int_to_ptr.vmem [resolvable:$true] %s315
          %321 = dma.hbm_to_vmem [thread:$0]  %s314, 114688, %s316, [#allocation6], 256, 256, 16
        $region16: #{tpu_custom_call.1} parent=11 // pred_fallthru
          _
        // Predicated region
        $region17: #{tpu_custom_call.1} parent=11 // pred_check
          %p322 = pneg %p111
        $region18: #{tpu_custom_call.1} parent=11 // pred_check_branch
          %324 = sbr.rel (%p322) target = $region20
        $region19: #{tpu_custom_call.1} parent=11 // pred_region
          %326 = vsyncadd [#allocation6], 0
          %s328 = sshll.u32 %s2, 4
          %s329 = int_to_ptr.hbm [resolvable:$true] %s328
          %s330 = sshll.u32 [#allocation7], 4
          %s331 = int_to_ptr.vmem [resolvable:$true] %s330
          %333 = dma.hbm_to_vmem [thread:$0]  %s329, 64, %s331, [#allocation6]
        $region20: #{tpu_custom_call.1} parent=11 // pred_fallthru
          _
        // Predicated region
        $region21: #{tpu_custom_call.1} parent=11 // pred_check
          %p334 = pneg %p132
        $region22: #{tpu_custom_call.1} parent=11 // pred_check_branch
          %336 = sbr.rel (%p334) target = $region24
        $region23: #{tpu_custom_call.1} parent=11 // pred_region
          %338 = vsyncadd [#allocation9], 0
          %s340 = sshll.u32 %s3, 4
          %s341 = int_to_ptr.hbm [resolvable:$true] %s340
          %s342 = sshll.u32 [#allocation8], 4
          %s343 = int_to_ptr.vmem [resolvable:$true] %s342
          %345 = dma.hbm_to_vmem [thread:$0]  %s341, 32, %s343, [#allocation9]
        $region24: #{tpu_custom_call.1} parent=11 // pred_fallthru
          _
        // Predicated region
        $region25: #{tpu_custom_call.1} parent=11 // pred_check
          %p346 = pneg %p153
        $region26: #{tpu_custom_call.1} parent=11 // pred_check_branch
          %348 = sbr.rel (%p346) target = $region28
        $region27: #{tpu_custom_call.1} parent=11 // pred_region
          %350 = vsyncadd [#allocation9], 0
          %s352 = sshll.u32 %s4, 4
          %s353 = int_to_ptr.hbm [resolvable:$true] %s352
          %s354 = sshll.u32 [#allocation10], 4
          %s355 = int_to_ptr.vmem [resolvable:$true] %s354
          %357 = dma.hbm_to_vmem [thread:$0]  %s353, 32, %s355, [#allocation9]
        $region28: #{tpu_custom_call.1} parent=11 // pred_fallthru
          _
        // Predicated region
        $region29: #{tpu_custom_call.1} parent=11 // pred_check
          %p358 = pneg %p174
        $region30: #{tpu_custom_call.1} parent=11 // pred_check_branch
          %360 = sbr.rel (%p358) target = $region32
        $region31: #{tpu_custom_call.1} parent=11 // pred_region
          %362 = vsyncadd [#allocation12], 0
          %s363 = sshll.u32 %s5, 4
          %s364 = int_to_ptr.hbm [resolvable:$true] %s363
          %s365 = sshll.u32 [#allocation11], 4
          %s366 = int_to_ptr.vmem [resolvable:$true] %s365
          %371 = dma.hbm_to_vmem [thread:$0]  %s364, 8192, %s366, [#allocation12], 256, 256, 16
        $region32: #{tpu_custom_call.1} parent=11 // pred_fallthru
          _
        // Predicated region
        $region33: #{tpu_custom_call.1} parent=11 // pred_check
          %p372 = pneg %p195
        $region34: #{tpu_custom_call.1} parent=11 // pred_check_branch
          %374 = sbr.rel (%p372) target = $region36
        $region35: #{tpu_custom_call.1} parent=11 // pred_region
          %376 = vsyncadd [#allocation12], 0
          %s378 = sshll.u32 %s6, 4
          %s379 = int_to_ptr.hbm [resolvable:$true] %s378
          %s380 = sshll.u32 [#allocation13], 4
          %s381 = int_to_ptr.vmem [resolvable:$true] %s380
          %383 = dma.hbm_to_vmem [thread:$0]  %s379, 64, %s381, [#allocation12]
        $region36: #{tpu_custom_call.1} parent=11 // pred_fallthru
          _
        // Predicated region
        $region37: #{tpu_custom_call.1} parent=11 // pred_check
          %p384 = pneg %p216
        $region38: #{tpu_custom_call.1} parent=11 // pred_check_branch
          %386 = sbr.rel (%p384) target = $region40
        $region39: #{tpu_custom_call.1} parent=11 // pred_region
          %388 = vsyncadd [#allocation15], 0
          %s389 = sshll.u32 %s7, 4
          %s390 = int_to_ptr.hbm [resolvable:$true] %s389
          %s391 = sshll.u32 [#allocation14], 4
          %s392 = int_to_ptr.vmem [resolvable:$true] %s391
          %397 = dma.hbm_to_vmem [thread:$0]  %s390, 8192, %s392, [#allocation15], 128, 128, 8
        $region40: #{tpu_custom_call.1} parent=11 // pred_fallthru
          _
        // Predicated region
        $region41: #{tpu_custom_call.1} parent=11 // pred_check
          %p398 = pneg %p237
        $region42: #{tpu_custom_call.1} parent=11 // pred_check_branch
          %400 = sbr.rel (%p398) target = $region44
        $region43: #{tpu_custom_call.1} parent=11 // pred_region
          %402 = vsyncadd [#allocation15], 0
          %s404 = sshll.u32 %s8, 4
          %s405 = int_to_ptr.hbm [resolvable:$true] %s404
          %s406 = sshll.u32 [#allocation16], 4
          %s407 = int_to_ptr.vmem [resolvable:$true] %s406
          %409 = dma.hbm_to_vmem [thread:$0]  %s405, 32, %s407, [#allocation15]
        $region44: #{tpu_custom_call.1} parent=11 // pred_fallthru
          _
      $region12: #{tpu_custom_call.1} parent=5 // pred_fallthru
        _
      %p410 = scmp.lt.s32.totalorder %s29, 2
      // Predicated region
      $region45: #{tpu_custom_call.1} parent=5 // pred_check
        %p411 = pneg %p410
      $region46: #{tpu_custom_call.1} parent=5 // pred_check_branch
        %413 = sbr.rel (%p411) target = $region48
      $region47: #{tpu_custom_call.1} parent=5 // pred_region
        // Predicated region
        $region49: #{tpu_custom_call.1} parent=47 // pred_check
          %p414 = pneg %p63
        $region50: #{tpu_custom_call.1} parent=47 // pred_check_branch
          %416 = sbr.rel (%p414) target = $region52
        $region51: #{tpu_custom_call.1} parent=47 // pred_region
          %s417 = sand.u32 %s53, 1
          %s418 = scalar_lea.sflag [#allocation3], %s417
          %s419 = sand.u32 %s53, 1
          %s420 = smul.addr %s419, 224
          %s421 = scalar_lea.vmem [#allocation2], %s420
          %s422 = smul.u32 2, %s37
          %424 = vsyncadd %s418, 0
          %s425 = smul.addr %s422, 28
          %s426 = smul.addr %s36, 56
          %s427 = sadd.s32 %s425, %s426
          %s428 = smul.addr %s427, 4
          %s429 = scalar_lea.hbm %s0, %s428
          %s430 = sshll.u32 %s429, 4
          %s431 = int_to_ptr.hbm [resolvable:$true] %s430
          %s432 = sshll.u32 %s421, 4
          %s433 = int_to_ptr.vmem [resolvable:$true] %s432
          %438 = dma.hbm_to_vmem [thread:$0]  %s431, 3584, %s433, %s418, 1792, 1792, 112
        $region52: #{tpu_custom_call.1} parent=47 // pred_fallthru
          _
        // Predicated region
        $region53: #{tpu_custom_call.1} parent=47 // pred_check
          %p439 = pneg %p259
        $region54: #{tpu_custom_call.1} parent=47 // pred_check_branch
          %441 = sbr.rel (%p439) target = $region56
        $region55: #{tpu_custom_call.1} parent=47 // pred_region
          %s442 = sand.u32 %s249, 1
          %s443 = scalar_lea.sflag [#allocation18], %s442
          %s444 = sand.u32 %s249, 1
          %s445 = smul.addr %s444, 64
          %s446 = scalar_lea.vmem [#allocation17], %s445
          %s447 = smul.u32 2, %s36
          %s448 = smul.u32 2, %s37
          %450 = vsyncadd %s443, 0
          %s451 = smul.addr %s448, 2
          %s452 = smul.addr %s447, 4
          %s453 = sadd.s32 %s451, %s452
          %s454 = smul.addr %s453, 8
          %s455 = scalar_lea.hbm %s9, %s454
          %s456 = sshll.u32 %s455, 4
          %s457 = int_to_ptr.hbm [resolvable:$true] %s456
          %s458 = sshll.u32 %s446, 4
          %s459 = int_to_ptr.vmem [resolvable:$true] %s458
          %464 = dma.hbm_to_vmem [thread:$0]  %s457, 1024, %s459, %s443, 256, 256, 16
        $region56: #{tpu_custom_call.1} parent=47 // pred_fallthru
          _
      $region48: #{tpu_custom_call.1} parent=5 // pred_fallthru
        _
      %p465 = scmp.le.s32.totalorder 1, %s29
      %p466 = scmp.lt.s32.totalorder %s29, 3
      %p467 = pnand %p465, %p466
      %p468 = pneg %p467
      // Predicated region
      $region57: #{tpu_custom_call.1} parent=5 // pred_check
        _
      $region58: #{tpu_custom_call.1} parent=5 // pred_check_branch
        %470 = sbr.rel (%p467) target = $region60
      $region59: #{tpu_custom_call.1} parent=5 // pred_region
        %s471 = ssub.s32 %s29, 1
        %s472 = sand.u32 %s56, 1
        %s473 = scalar_lea.sflag [#allocation3], %s472
        %s474 = sand.u32 %s56, 1
        %s475 = smul.addr %s474, 224
        %s476 = scalar_lea.vmem [#allocation2], %s475
        // Predicated region
        $region61: #{tpu_custom_call.1} parent=59 // pred_check
          %p477 = pneg %p69
        $region62: #{tpu_custom_call.1} parent=59 // pred_check_branch
          %479 = sbr.rel (%p477) target = $region64
        $region63: #{tpu_custom_call.1} parent=59 // pred_region
          %481 = dma.done %s473, 3584
        $region64: #{tpu_custom_call.1} parent=59 // pred_fallthru
          _
        // Predicated region
        $region65: #{tpu_custom_call.1} parent=59 // pred_check
          %p482 = pneg %p90
        $region66: #{tpu_custom_call.1} parent=59 // pred_check_branch
          %484 = sbr.rel (%p482) target = $region68
        $region67: #{tpu_custom_call.1} parent=59 // pred_region
          %486 = dma.done [#allocation6], 114688
        $region68: #{tpu_custom_call.1} parent=59 // pred_fallthru
          _
        // Predicated region
        $region69: #{tpu_custom_call.1} parent=59 // pred_check
          %p487 = pneg %p111
        $region70: #{tpu_custom_call.1} parent=59 // pred_check_branch
          %489 = sbr.rel (%p487) target = $region72
        $region71: #{tpu_custom_call.1} parent=59 // pred_region
          %491 = dma.done [#allocation6], 64
        $region72: #{tpu_custom_call.1} parent=59 // pred_fallthru
          _
        // Predicated region
        $region73: #{tpu_custom_call.1} parent=59 // pred_check
          %p492 = pneg %p132
        $region74: #{tpu_custom_call.1} parent=59 // pred_check_branch
          %494 = sbr.rel (%p492) target = $region76
        $region75: #{tpu_custom_call.1} parent=59 // pred_region
          %496 = dma.done [#allocation9], 32
        $region76: #{tpu_custom_call.1} parent=59 // pred_fallthru
          _
        // Predicated region
        $region77: #{tpu_custom_call.1} parent=59 // pred_check
          %p497 = pneg %p153
        $region78: #{tpu_custom_call.1} parent=59 // pred_check_branch
          %499 = sbr.rel (%p497) target = $region80
        $region79: #{tpu_custom_call.1} parent=59 // pred_region
          %501 = dma.done [#allocation9], 32
        $region80: #{tpu_custom_call.1} parent=59 // pred_fallthru
          _
        // Predicated region
        $region81: #{tpu_custom_call.1} parent=59 // pred_check
          %p502 = pneg %p174
        $region82: #{tpu_custom_call.1} parent=59 // pred_check_branch
          %504 = sbr.rel (%p502) target = $region84
        $region83: #{tpu_custom_call.1} parent=59 // pred_region
          %506 = dma.done [#allocation12], 8192
        $region84: #{tpu_custom_call.1} parent=59 // pred_fallthru
          _
        // Predicated region
        $region85: #{tpu_custom_call.1} parent=59 // pred_check
          %p507 = pneg %p195
        $region86: #{tpu_custom_call.1} parent=59 // pred_check_branch
          %509 = sbr.rel (%p507) target = $region88
        $region87: #{tpu_custom_call.1} parent=59 // pred_region
          %511 = dma.done [#allocation12], 64
        $region88: #{tpu_custom_call.1} parent=59 // pred_fallthru
          _
        // Predicated region
        $region89: #{tpu_custom_call.1} parent=59 // pred_check
          %p512 = pneg %p216
        $region90: #{tpu_custom_call.1} parent=59 // pred_check_branch
          %514 = sbr.rel (%p512) target = $region92
        $region91: #{tpu_custom_call.1} parent=59 // pred_region
          %516 = dma.done [#allocation15], 8192
        $region92: #{tpu_custom_call.1} parent=59 // pred_fallthru
          _
        // Predicated region
        $region93: #{tpu_custom_call.1} parent=59 // pred_check
          %p517 = pneg %p237
        $region94: #{tpu_custom_call.1} parent=59 // pred_check_branch
          %519 = sbr.rel (%p517) target = $region96
        $region95: #{tpu_custom_call.1} parent=59 // pred_region
          %521 = dma.done [#allocation15], 32
        $region96: #{tpu_custom_call.1} parent=59 // pred_fallthru
          _
        %s522 = sand.u32 %s252, 1
        %s523 = scalar_lea.sflag [#allocation18], %s522
        %s524 = sand.u32 %s252, 1
        %s525 = smul.addr %s524, 64
        %s526 = scalar_lea.vmem [#allocation17], %s525
        // Predicated region
        $region97: #{tpu_custom_call.1} parent=59 // pred_check
          %p527 = pneg %p265
        $region98: #{tpu_custom_call.1} parent=59 // pred_check_branch
          %529 = sbr.rel (%p527) target = $region100
        $region99: #{tpu_custom_call.1} parent=59 // pred_region
          %531 = dma.done %s523, 1024
        $region100: #{tpu_custom_call.1} parent=59 // pred_fallthru
          _
        %s532 = sand.u32 %s56, 1
        %s533 = scalar_lea.sflag [#allocation3], %s532
        %s534 = sand.u32 %s56, 1
        %s535 = smul.addr %s534, 224
        %s536 = scalar_lea.vmem [#allocation2], %s535
        %p537 = pneg %p69
        %p538 = pneg %p66
        %p539 = pneg %p90
        %p540 = pneg %p87
        %p541 = pneg %p111
        %p542 = pneg %p108
        %p543 = pneg %p132
        %p544 = pneg %p129
        %p545 = pneg %p153
        %p546 = pneg %p150
        %p547 = pneg %p174
        %p548 = pneg %p171
        %p549 = pneg %p195
        %p550 = pneg %p192
        %p551 = pneg %p216
        %p552 = pneg %p213
        %p553 = pneg %p237
        %p554 = pneg %p234
        %s555 = sand.u32 %s252, 1
        %s556 = scalar_lea.sflag [#allocation18], %s555
        %s557 = sand.u32 %s252, 1
        %s558 = smul.addr %s557, 64
        %s559 = scalar_lea.vmem [#allocation17], %s558
        %p560 = pneg %p265
        %p561 = pneg %p262
        %p562 = pneg %p293
        %p563 = pneg %p290
        %s564 = sand.u32 %s280, 1
        %s565 = scalar_lea.sflag [#allocation4], %s564
        %s566 = sand.u32 %s280, 1
        %s567 = smul.addr %s566, 64
        %s568 = scalar_lea.vmem [#allocation19], %s567
        %s569 = smul.u32 2, %s39
        %s570 = smul.u32 2, %s38
        %s571 = smul.u32 2, %s39
        %s572 = smul.u32 2, %s38
        %s573 = smul.u32 2, %s39
        %v574 = vld [vmem:[%s476] sm:$0xff]
        %v575 = vld [vmem:[%s476 + $0x8] sm:$0xff]
        %v576 = vld [vmem:[%s476 + $0x10] sm:$0xff]
        %v577 = vld [vmem:[%s476 + $0x18] sm:$0xff]
        %v578 = vld [vmem:[%s476 + $0x20] sm:$0xff]
        %v579 = vld [vmem:[%s476 + $0x28] sm:$0xff]
        %v580 = vld [vmem:[%s476 + $0x30] sm:$0xff]
        %v581 = vld [vmem:[%s476 + $0x38] sm:$0xff]
        %v582 = vld [vmem:[%s476 + $0x40] sm:$0xff]
        %v583 = vld [vmem:[%s476 + $0x48] sm:$0xff]
        %v584 = vld [vmem:[%s476 + $0x50] sm:$0xff]
        %v585 = vld [vmem:[%s476 + $0x58] sm:$0xff]
        %v586 = vld [vmem:[%s476 + $0x60] sm:$0xff]
        %v587 = vld [vmem:[%s476 + $0x68] sm:$0xff]
        %v588 = vld [vmem:[%s476 + $0x70] sm:$0xff]
        %v589 = vld [vmem:[%s476 + $0x78] sm:$0xff]
        %v590 = vld [vmem:[%s476 + $0x80] sm:$0xff]
        %v591 = vld [vmem:[%s476 + $0x88] sm:$0xff]
        %v592 = vld [vmem:[%s476 + $0x90] sm:$0xff]
        %v593 = vld [vmem:[%s476 + $0x98] sm:$0xff]
        %v594 = vld [vmem:[%s476 + $0xa0] sm:$0xff]
        %v595 = vld [vmem:[%s476 + $0xa8] sm:$0xff]
        %v596 = vld [vmem:[%s476 + $0xb0] sm:$0xff]
        %v597 = vld [vmem:[%s476 + $0xb8] sm:$0xff]
        %v598 = vld [vmem:[%s476 + $0xc0] sm:$0xff]
        %v599 = vld [vmem:[%s476 + $0xc8] sm:$0xff]
        %v600 = vld [vmem:[%s476 + $0xd0] sm:$0xff]
        %v601 = vld [vmem:[%s476 + $0xd8] sm:$0xff]
        %v602 = vld [vmem:[#allocation5] sm:$0xff]
        %v603 = vld [vmem:[#allocation5 + $0x8] sm:$0xff]
        %v604 = vld [vmem:[#allocation5 + $0x10] sm:$0xff]
        %v605 = vld [vmem:[#allocation5 + $0x18] sm:$0xff]
        %v606 = vld [vmem:[#allocation5 + $0x20] sm:$0xff]
        %v607 = vld [vmem:[#allocation5 + $0x28] sm:$0xff]
        %v608 = vld [vmem:[#allocation5 + $0x30] sm:$0xff]
        %v609 = vld [vmem:[#allocation5 + $0x38] sm:$0xff]
        %v610 = vld [vmem:[#allocation5 + $0x40] sm:$0xff]
        %v611 = vld [vmem:[#allocation5 + $0x48] sm:$0xff]
        %v612 = vld [vmem:[#allocation5 + $0x50] sm:$0xff]
        %v613 = vld [vmem:[#allocation5 + $0x58] sm:$0xff]
        %v614 = vld [vmem:[#allocation5 + $0x60] sm:$0xff]
        %v615 = vld [vmem:[#allocation5 + $0x68] sm:$0xff]
        %v616 = vld [vmem:[#allocation5 + $0x70] sm:$0xff]
        %v617 = vld [vmem:[#allocation5 + $0x78] sm:$0xff]
        %v618 = vld [vmem:[#allocation5 + $0x80] sm:$0xff]
        %v619 = vld [vmem:[#allocation5 + $0x88] sm:$0xff]
        %v620 = vld [vmem:[#allocation5 + $0x90] sm:$0xff]
        %v621 = vld [vmem:[#allocation5 + $0x98] sm:$0xff]
        %v622 = vld [vmem:[#allocation5 + $0xa0] sm:$0xff]
        %v623 = vld [vmem:[#allocation5 + $0xa8] sm:$0xff]
        %v624 = vld [vmem:[#allocation5 + $0xb0] sm:$0xff]
        %v625 = vld [vmem:[#allocation5 + $0xb8] sm:$0xff]
        %v626 = vld [vmem:[#allocation5 + $0xc0] sm:$0xff]
        %v627 = vld [vmem:[#allocation5 + $0xc8] sm:$0xff]
        %v628 = vld [vmem:[#allocation5 + $0xd0] sm:$0xff]
        %v629 = vld [vmem:[#allocation5 + $0xd8] sm:$0xff]
        %v630 = vld [vmem:[#allocation5 + $0xe0] sm:$0xff]
        %v631 = vld [vmem:[#allocation5 + $0xe8] sm:$0xff]
        %v632 = vld [vmem:[#allocation5 + $0xf0] sm:$0xff]
        %v633 = vld [vmem:[#allocation5 + $0xf8] sm:$0xff]
        %v634 = vld [vmem:[#allocation5 + $0x100] sm:$0xff]
        %v635 = vld [vmem:[#allocation5 + $0x108] sm:$0xff]
        %v636 = vld [vmem:[#allocation5 + $0x110] sm:$0xff]
        %v637 = vld [vmem:[#allocation5 + $0x118] sm:$0xff]
        %v638 = vld [vmem:[#allocation5 + $0x120] sm:$0xff]
        %v639 = vld [vmem:[#allocation5 + $0x128] sm:$0xff]
        %v640 = vld [vmem:[#allocation5 + $0x130] sm:$0xff]
        %v641 = vld [vmem:[#allocation5 + $0x138] sm:$0xff]
        %v642 = vld [vmem:[#allocation5 + $0x140] sm:$0xff]
        %v643 = vld [vmem:[#allocation5 + $0x148] sm:$0xff]
        %v644 = vld [vmem:[#allocation5 + $0x150] sm:$0xff]
        %v645 = vld [vmem:[#allocation5 + $0x158] sm:$0xff]
        %v646 = vld [vmem:[#allocation5 + $0x160] sm:$0xff]
        %v647 = vld [vmem:[#allocation5 + $0x168] sm:$0xff]
        %v648 = vld [vmem:[#allocation5 + $0x170] sm:$0xff]
        %v649 = vld [vmem:[#allocation5 + $0x178] sm:$0xff]
        %v650 = vld [vmem:[#allocation5 + $0x180] sm:$0xff]
        %v651 = vld [vmem:[#allocation5 + $0x188] sm:$0xff]
        %v652 = vld [vmem:[#allocation5 + $0x190] sm:$0xff]
        %v653 = vld [vmem:[#allocation5 + $0x198] sm:$0xff]
        %v654 = vld [vmem:[#allocation5 + $0x1a0] sm:$0xff]
        %v655 = vld [vmem:[#allocation5 + $0x1a8] sm:$0xff]
        %v656 = vld [vmem:[#allocation5 + $0x1b0] sm:$0xff]
        %v657 = vld [vmem:[#allocation5 + $0x1b8] sm:$0xff]
        %v658 = vld [vmem:[#allocation5 + $0x1c0] sm:$0xff]
        %v659 = vld [vmem:[#allocation5 + $0x1c8] sm:$0xff]
        %v660 = vld [vmem:[#allocation5 + $0x1d0] sm:$0xff]
        %v661 = vld [vmem:[#allocation5 + $0x1d8] sm:$0xff]
        %v662 = vld [vmem:[#allocation5 + $0x1e0] sm:$0xff]
        %v663 = vld [vmem:[#allocation5 + $0x1e8] sm:$0xff]
        %v664 = vld [vmem:[#allocation5 + $0x1f0] sm:$0xff]
        %v665 = vld [vmem:[#allocation5 + $0x1f8] sm:$0xff]
        %v666 = vld [vmem:[#allocation5 + $0x200] sm:$0xff]
        %v667 = vld [vmem:[#allocation5 + $0x208] sm:$0xff]
        %v668 = vld [vmem:[#allocation5 + $0x210] sm:$0xff]
        %v669 = vld [vmem:[#allocation5 + $0x218] sm:$0xff]
        %v670 = vld [vmem:[#allocation5 + $0x220] sm:$0xff]
        %v671 = vld [vmem:[#allocation5 + $0x228] sm:$0xff]
        %v672 = vld [vmem:[#allocation5 + $0x230] sm:$0xff]
        %v673 = vld [vmem:[#allocation5 + $0x238] sm:$0xff]
        %v674 = vld [vmem:[#allocation5 + $0x240] sm:$0xff]
        %v675 = vld [vmem:[#allocation5 + $0x248] sm:$0xff]
        %v676 = vld [vmem:[#allocation5 + $0x250] sm:$0xff]
        %v677 = vld [vmem:[#allocation5 + $0x258] sm:$0xff]
        %v678 = vld [vmem:[#allocation5 + $0x260] sm:$0xff]
        %v679 = vld [vmem:[#allocation5 + $0x268] sm:$0xff]
        %v680 = vld [vmem:[#allocation5 + $0x270] sm:$0xff]
        %v681 = vld [vmem:[#allocation5 + $0x278] sm:$0xff]
        %v682 = vld [vmem:[#allocation5 + $0x280] sm:$0xff]
        %v683 = vld [vmem:[#allocation5 + $0x288] sm:$0xff]
        %v684 = vld [vmem:[#allocation5 + $0x290] sm:$0xff]
        %v685 = vld [vmem:[#allocation5 + $0x298] sm:$0xff]
        %v686 = vld [vmem:[#allocation5 + $0x2a0] sm:$0xff]
        %v687 = vld [vmem:[#allocation5 + $0x2a8] sm:$0xff]
        %v688 = vld [vmem:[#allocation5 + $0x2b0] sm:$0xff]
        %v689 = vld [vmem:[#allocation5 + $0x2b8] sm:$0xff]
        %v690 = vld [vmem:[#allocation5 + $0x2c0] sm:$0xff]
        %v691 = vld [vmem:[#allocation5 + $0x2c8] sm:$0xff]
        %v692 = vld [vmem:[#allocation5 + $0x2d0] sm:$0xff]
        %v693 = vld [vmem:[#allocation5 + $0x2d8] sm:$0xff]
        %v694 = vld [vmem:[#allocation5 + $0x2e0] sm:$0xff]
        %v695 = vld [vmem:[#allocation5 + $0x2e8] sm:$0xff]
        %v696 = vld [vmem:[#allocation5 + $0x2f0] sm:$0xff]
        %v697 = vld [vmem:[#allocation5 + $0x2f8] sm:$0xff]
        %v698 = vld [vmem:[#allocation5 + $0x300] sm:$0xff]
        %v699 = vld [vmem:[#allocation5 + $0x308] sm:$0xff]
        %v700 = vld [vmem:[#allocation5 + $0x310] sm:$0xff]
        %v701 = vld [vmem:[#allocation5 + $0x318] sm:$0xff]
        %v702 = vld [vmem:[#allocation5 + $0x320] sm:$0xff]
        %v703 = vld [vmem:[#allocation5 + $0x328] sm:$0xff]
        %v704 = vld [vmem:[#allocation5 + $0x330] sm:$0xff]
        %v705 = vld [vmem:[#allocation5 + $0x338] sm:$0xff]
        %v706 = vld [vmem:[#allocation5 + $0x340] sm:$0xff]
        %v707 = vld [vmem:[#allocation5 + $0x348] sm:$0xff]
        %v708 = vld [vmem:[#allocation5 + $0x350] sm:$0xff]
        %v709 = vld [vmem:[#allocation5 + $0x358] sm:$0xff]
        %v710 = vld [vmem:[#allocation5 + $0x360] sm:$0xff]
        %v711 = vld [vmem:[#allocation5 + $0x368] sm:$0xff]
        %v712 = vld [vmem:[#allocation5 + $0x370] sm:$0xff]
        %v713 = vld [vmem:[#allocation5 + $0x378] sm:$0xff]
        %v714 = vld [vmem:[#allocation5 + $0x380] sm:$0xff]
        %v715 = vld [vmem:[#allocation5 + $0x388] sm:$0xff]
        %v716 = vld [vmem:[#allocation5 + $0x390] sm:$0xff]
        %v717 = vld [vmem:[#allocation5 + $0x398] sm:$0xff]
        %v718 = vld [vmem:[#allocation5 + $0x3a0] sm:$0xff]
        %v719 = vld [vmem:[#allocation5 + $0x3a8] sm:$0xff]
        %v720 = vld [vmem:[#allocation5 + $0x3b0] sm:$0xff]
        %v721 = vld [vmem:[#allocation5 + $0x3b8] sm:$0xff]
        %v722 = vld [vmem:[#allocation5 + $0x3c0] sm:$0xff]
        %v723 = vld [vmem:[#allocation5 + $0x3c8] sm:$0xff]
        %v724 = vld [vmem:[#allocation5 + $0x3d0] sm:$0xff]
        %v725 = vld [vmem:[#allocation5 + $0x3d8] sm:$0xff]
        %v726 = vld [vmem:[#allocation5 + $0x3e0] sm:$0xff]
        %v727 = vld [vmem:[#allocation5 + $0x3e8] sm:$0xff]
        %v728 = vld [vmem:[#allocation5 + $0x3f0] sm:$0xff]
        %v729 = vld [vmem:[#allocation5 + $0x3f8] sm:$0xff]
        %v730 = vld [vmem:[#allocation5 + $0x400] sm:$0xff]
        %v731 = vld [vmem:[#allocation5 + $0x408] sm:$0xff]
        %v732 = vld [vmem:[#allocation5 + $0x410] sm:$0xff]
        %v733 = vld [vmem:[#allocation5 + $0x418] sm:$0xff]
        %v734 = vld [vmem:[#allocation5 + $0x420] sm:$0xff]
        %v735 = vld [vmem:[#allocation5 + $0x428] sm:$0xff]
        %v736 = vld [vmem:[#allocation5 + $0x430] sm:$0xff]
        %v737 = vld [vmem:[#allocation5 + $0x438] sm:$0xff]
        %v738 = vld [vmem:[#allocation5 + $0x440] sm:$0xff]
        %v739 = vld [vmem:[#allocation5 + $0x448] sm:$0xff]
        %v740 = vld [vmem:[#allocation5 + $0x450] sm:$0xff]
        %v741 = vld [vmem:[#allocation5 + $0x458] sm:$0xff]
        %v742 = vld [vmem:[#allocation5 + $0x460] sm:$0xff]
        %v743 = vld [vmem:[#allocation5 + $0x468] sm:$0xff]
        %v744 = vld [vmem:[#allocation5 + $0x470] sm:$0xff]
        %v745 = vld [vmem:[#allocation5 + $0x478] sm:$0xff]
        %v746 = vld [vmem:[#allocation5 + $0x480] sm:$0xff]
        %v747 = vld [vmem:[#allocation5 + $0x488] sm:$0xff]
        %v748 = vld [vmem:[#allocation5 + $0x490] sm:$0xff]
        %v749 = vld [vmem:[#allocation5 + $0x498] sm:$0xff]
        %v750 = vld [vmem:[#allocation5 + $0x4a0] sm:$0xff]
        %v751 = vld [vmem:[#allocation5 + $0x4a8] sm:$0xff]
        %v752 = vld [vmem:[#allocation5 + $0x4b0] sm:$0xff]
        %v753 = vld [vmem:[#allocation5 + $0x4b8] sm:$0xff]
        %v754 = vld [vmem:[#allocation5 + $0x4c0] sm:$0xff]
        %v755 = vld [vmem:[#allocation5 + $0x4c8] sm:$0xff]
        %v756 = vld [vmem:[#allocation5 + $0x4d0] sm:$0xff]
        %v757 = vld [vmem:[#allocation5 + $0x4d8] sm:$0xff]
        %v758 = vld [vmem:[#allocation5 + $0x4e0] sm:$0xff]
        %v759 = vld [vmem:[#allocation5 + $0x4e8] sm:$0xff]
        %v760 = vld [vmem:[#allocation5 + $0x4f0] sm:$0xff]
        %v761 = vld [vmem:[#allocation5 + $0x4f8] sm:$0xff]
        %v762 = vld [vmem:[#allocation5 + $0x500] sm:$0xff]
        %v763 = vld [vmem:[#allocation5 + $0x508] sm:$0xff]
        %v764 = vld [vmem:[#allocation5 + $0x510] sm:$0xff]
        %v765 = vld [vmem:[#allocation5 + $0x518] sm:$0xff]
        %v766 = vld [vmem:[#allocation5 + $0x520] sm:$0xff]
        %v767 = vld [vmem:[#allocation5 + $0x528] sm:$0xff]
        %v768 = vld [vmem:[#allocation5 + $0x530] sm:$0xff]
        %v769 = vld [vmem:[#allocation5 + $0x538] sm:$0xff]
        %v770 = vld [vmem:[#allocation5 + $0x540] sm:$0xff]
        %v771 = vld [vmem:[#allocation5 + $0x548] sm:$0xff]
        %v772 = vld [vmem:[#allocation5 + $0x550] sm:$0xff]
        %v773 = vld [vmem:[#allocation5 + $0x558] sm:$0xff]
        %v774 = vld [vmem:[#allocation5 + $0x560] sm:$0xff]
        %v775 = vld [vmem:[#allocation5 + $0x568] sm:$0xff]
        %v776 = vld [vmem:[#allocation5 + $0x570] sm:$0xff]
        %v777 = vld [vmem:[#allocation5 + $0x578] sm:$0xff]
        %v778 = vld [vmem:[#allocation5 + $0x580] sm:$0xff]
        %v779 = vld [vmem:[#allocation5 + $0x588] sm:$0xff]
        %v780 = vld [vmem:[#allocation5 + $0x590] sm:$0xff]
        %v781 = vld [vmem:[#allocation5 + $0x598] sm:$0xff]
        %v782 = vld [vmem:[#allocation5 + $0x5a0] sm:$0xff]
        %v783 = vld [vmem:[#allocation5 + $0x5a8] sm:$0xff]
        %v784 = vld [vmem:[#allocation5 + $0x5b0] sm:$0xff]
        %v785 = vld [vmem:[#allocation5 + $0x5b8] sm:$0xff]
        %v786 = vld [vmem:[#allocation5 + $0x5c0] sm:$0xff]
        %v787 = vld [vmem:[#allocation5 + $0x5c8] sm:$0xff]
        %v788 = vld [vmem:[#allocation5 + $0x5d0] sm:$0xff]
        %v789 = vld [vmem:[#allocation5 + $0x5d8] sm:$0xff]
        %v790 = vld [vmem:[#allocation5 + $0x5e0] sm:$0xff]
        %v791 = vld [vmem:[#allocation5 + $0x5e8] sm:$0xff]
        %v792 = vld [vmem:[#allocation5 + $0x5f0] sm:$0xff]
        %v793 = vld [vmem:[#allocation5 + $0x5f8] sm:$0xff]
        %v794 = vld [vmem:[#allocation5 + $0x600] sm:$0xff]
        %v795 = vld [vmem:[#allocation5 + $0x608] sm:$0xff]
        %v796 = vld [vmem:[#allocation5 + $0x610] sm:$0xff]
        %v797 = vld [vmem:[#allocation5 + $0x618] sm:$0xff]
        %v798 = vld [vmem:[#allocation5 + $0x620] sm:$0xff]
        %v799 = vld [vmem:[#allocation5 + $0x628] sm:$0xff]
        %v800 = vld [vmem:[#allocation5 + $0x630] sm:$0xff]
        %v801 = vld [vmem:[#allocation5 + $0x638] sm:$0xff]
        %v802 = vld [vmem:[#allocation5 + $0x640] sm:$0xff]
        %v803 = vld [vmem:[#allocation5 + $0x648] sm:$0xff]
        %v804 = vld [vmem:[#allocation5 + $0x650] sm:$0xff]
        %v805 = vld [vmem:[#allocation5 + $0x658] sm:$0xff]
        %v806 = vld [vmem:[#allocation5 + $0x660] sm:$0xff]
        %v807 = vld [vmem:[#allocation5 + $0x668] sm:$0xff]
        %v808 = vld [vmem:[#allocation5 + $0x670] sm:$0xff]
        %v809 = vld [vmem:[#allocation5 + $0x678] sm:$0xff]
        %v810 = vld [vmem:[#allocation5 + $0x680] sm:$0xff]
        %v811 = vld [vmem:[#allocation5 + $0x688] sm:$0xff]
        %v812 = vld [vmem:[#allocation5 + $0x690] sm:$0xff]
        %v813 = vld [vmem:[#allocation5 + $0x698] sm:$0xff]
        %v814 = vld [vmem:[#allocation5 + $0x6a0] sm:$0xff]
        %v815 = vld [vmem:[#allocation5 + $0x6a8] sm:$0xff]
        %v816 = vld [vmem:[#allocation5 + $0x6b0] sm:$0xff]
        %v817 = vld [vmem:[#allocation5 + $0x6b8] sm:$0xff]
        %v818 = vld [vmem:[#allocation5 + $0x6c0] sm:$0xff]
        %v819 = vld [vmem:[#allocation5 + $0x6c8] sm:$0xff]
        %v820 = vld [vmem:[#allocation5 + $0x6d0] sm:$0xff]
        %v821 = vld [vmem:[#allocation5 + $0x6d8] sm:$0xff]
        %v822 = vld [vmem:[#allocation5 + $0x6e0] sm:$0xff]
        %v823 = vld [vmem:[#allocation5 + $0x6e8] sm:$0xff]
        %v824 = vld [vmem:[#allocation5 + $0x6f0] sm:$0xff]
        %v825 = vld [vmem:[#allocation5 + $0x6f8] sm:$0xff]
        %v826 = vld [vmem:[#allocation5 + $0x700] sm:$0xff]
        %v827 = vld [vmem:[#allocation5 + $0x708] sm:$0xff]
        %v828 = vld [vmem:[#allocation5 + $0x710] sm:$0xff]
        %v829 = vld [vmem:[#allocation5 + $0x718] sm:$0xff]
        %v830 = vld [vmem:[#allocation5 + $0x720] sm:$0xff]
        %v831 = vld [vmem:[#allocation5 + $0x728] sm:$0xff]
        %v832 = vld [vmem:[#allocation5 + $0x730] sm:$0xff]
        %v833 = vld [vmem:[#allocation5 + $0x738] sm:$0xff]
        %v834 = vld [vmem:[#allocation5 + $0x740] sm:$0xff]
        %v835 = vld [vmem:[#allocation5 + $0x748] sm:$0xff]
        %v836 = vld [vmem:[#allocation5 + $0x750] sm:$0xff]
        %v837 = vld [vmem:[#allocation5 + $0x758] sm:$0xff]
        %v838 = vld [vmem:[#allocation5 + $0x760] sm:$0xff]
        %v839 = vld [vmem:[#allocation5 + $0x768] sm:$0xff]
        %v840 = vld [vmem:[#allocation5 + $0x770] sm:$0xff]
        %v841 = vld [vmem:[#allocation5 + $0x778] sm:$0xff]
        %v842 = vld [vmem:[#allocation5 + $0x780] sm:$0xff]
        %v843 = vld [vmem:[#allocation5 + $0x788] sm:$0xff]
        %v844 = vld [vmem:[#allocation5 + $0x790] sm:$0xff]
        %v845 = vld [vmem:[#allocation5 + $0x798] sm:$0xff]
        %v846 = vld [vmem:[#allocation5 + $0x7a0] sm:$0xff]
        %v847 = vld [vmem:[#allocation5 + $0x7a8] sm:$0xff]
        %v848 = vld [vmem:[#allocation5 + $0x7b0] sm:$0xff]
        %v849 = vld [vmem:[#allocation5 + $0x7b8] sm:$0xff]
        %v850 = vld [vmem:[#allocation5 + $0x7c0] sm:$0xff]
        %v851 = vld [vmem:[#allocation5 + $0x7c8] sm:$0xff]
        %v852 = vld [vmem:[#allocation5 + $0x7d0] sm:$0xff]
        %v853 = vld [vmem:[#allocation5 + $0x7d8] sm:$0xff]
        %v854 = vld [vmem:[#allocation5 + $0x7e0] sm:$0xff]
        %v855 = vld [vmem:[#allocation5 + $0x7e8] sm:$0xff]
        %v856 = vld [vmem:[#allocation5 + $0x7f0] sm:$0xff]
        %v857 = vld [vmem:[#allocation5 + $0x7f8] sm:$0xff]
        %v858 = vld [vmem:[#allocation5 + $0x800] sm:$0xff]
        %v859 = vld [vmem:[#allocation5 + $0x808] sm:$0xff]
        %v860 = vld [vmem:[#allocation5 + $0x810] sm:$0xff]
        %v861 = vld [vmem:[#allocation5 + $0x818] sm:$0xff]
        %v862 = vld [vmem:[#allocation5 + $0x820] sm:$0xff]
        %v863 = vld [vmem:[#allocation5 + $0x828] sm:$0xff]
        %v864 = vld [vmem:[#allocation5 + $0x830] sm:$0xff]
        %v865 = vld [vmem:[#allocation5 + $0x838] sm:$0xff]
        %v866 = vld [vmem:[#allocation5 + $0x840] sm:$0xff]
        %v867 = vld [vmem:[#allocation5 + $0x848] sm:$0xff]
        %v868 = vld [vmem:[#allocation5 + $0x850] sm:$0xff]
        %v869 = vld [vmem:[#allocation5 + $0x858] sm:$0xff]
        %v870 = vld [vmem:[#allocation5 + $0x860] sm:$0xff]
        %v871 = vld [vmem:[#allocation5 + $0x868] sm:$0xff]
        %v872 = vld [vmem:[#allocation5 + $0x870] sm:$0xff]
        %v873 = vld [vmem:[#allocation5 + $0x878] sm:$0xff]
        %v874 = vld [vmem:[#allocation5 + $0x880] sm:$0xff]
        %v875 = vld [vmem:[#allocation5 + $0x888] sm:$0xff]
        %v876 = vld [vmem:[#allocation5 + $0x890] sm:$0xff]
        %v877 = vld [vmem:[#allocation5 + $0x898] sm:$0xff]
        %v878 = vld [vmem:[#allocation5 + $0x8a0] sm:$0xff]
        %v879 = vld [vmem:[#allocation5 + $0x8a8] sm:$0xff]
        %v880 = vld [vmem:[#allocation5 + $0x8b0] sm:$0xff]
        %v881 = vld [vmem:[#allocation5 + $0x8b8] sm:$0xff]
        %v882 = vld [vmem:[#allocation5 + $0x8c0] sm:$0xff]
        %v883 = vld [vmem:[#allocation5 + $0x8c8] sm:$0xff]
        %v884 = vld [vmem:[#allocation5 + $0x8d0] sm:$0xff]
        %v885 = vld [vmem:[#allocation5 + $0x8d8] sm:$0xff]
        %v886 = vld [vmem:[#allocation5 + $0x8e0] sm:$0xff]
        %v887 = vld [vmem:[#allocation5 + $0x8e8] sm:$0xff]
        %v888 = vld [vmem:[#allocation5 + $0x8f0] sm:$0xff]
        %v889 = vld [vmem:[#allocation5 + $0x8f8] sm:$0xff]
        %v890 = vld [vmem:[#allocation5 + $0x900] sm:$0xff]
        %v891 = vld [vmem:[#allocation5 + $0x908] sm:$0xff]
        %v892 = vld [vmem:[#allocation5 + $0x910] sm:$0xff]
        %v893 = vld [vmem:[#allocation5 + $0x918] sm:$0xff]
        %v894 = vld [vmem:[#allocation5 + $0x920] sm:$0xff]
        %v895 = vld [vmem:[#allocation5 + $0x928] sm:$0xff]
        %v896 = vld [vmem:[#allocation5 + $0x930] sm:$0xff]
        %v897 = vld [vmem:[#allocation5 + $0x938] sm:$0xff]
        %v898 = vld [vmem:[#allocation5 + $0x940] sm:$0xff]
        %v899 = vld [vmem:[#allocation5 + $0x948] sm:$0xff]
        %v900 = vld [vmem:[#allocation5 + $0x950] sm:$0xff]
        %v901 = vld [vmem:[#allocation5 + $0x958] sm:$0xff]
        %v902 = vld [vmem:[#allocation5 + $0x960] sm:$0xff]
        %v903 = vld [vmem:[#allocation5 + $0x968] sm:$0xff]
        %v904 = vld [vmem:[#allocation5 + $0x970] sm:$0xff]
        %v905 = vld [vmem:[#allocation5 + $0x978] sm:$0xff]
        %v906 = vld [vmem:[#allocation5 + $0x980] sm:$0xff]
        %v907 = vld [vmem:[#allocation5 + $0x988] sm:$0xff]
        %v908 = vld [vmem:[#allocation5 + $0x990] sm:$0xff]
        %v909 = vld [vmem:[#allocation5 + $0x998] sm:$0xff]
        %v910 = vld [vmem:[#allocation5 + $0x9a0] sm:$0xff]
        %v911 = vld [vmem:[#allocation5 + $0x9a8] sm:$0xff]
        %v912 = vld [vmem:[#allocation5 + $0x9b0] sm:$0xff]
        %v913 = vld [vmem:[#allocation5 + $0x9b8] sm:$0xff]
        %v914 = vld [vmem:[#allocation5 + $0x9c0] sm:$0xff]
        %v915 = vld [vmem:[#allocation5 + $0x9c8] sm:$0xff]
        %v916 = vld [vmem:[#allocation5 + $0x9d0] sm:$0xff]
        %v917 = vld [vmem:[#allocation5 + $0x9d8] sm:$0xff]
        %v918 = vld [vmem:[#allocation5 + $0x9e0] sm:$0xff]
        %v919 = vld [vmem:[#allocation5 + $0x9e8] sm:$0xff]
        %v920 = vld [vmem:[#allocation5 + $0x9f0] sm:$0xff]
        %v921 = vld [vmem:[#allocation5 + $0x9f8] sm:$0xff]
        %v922 = vld [vmem:[#allocation5 + $0xa00] sm:$0xff]
        %v923 = vld [vmem:[#allocation5 + $0xa08] sm:$0xff]
        %v924 = vld [vmem:[#allocation5 + $0xa10] sm:$0xff]
        %v925 = vld [vmem:[#allocation5 + $0xa18] sm:$0xff]
        %v926 = vld [vmem:[#allocation5 + $0xa20] sm:$0xff]
        %v927 = vld [vmem:[#allocation5 + $0xa28] sm:$0xff]
        %v928 = vld [vmem:[#allocation5 + $0xa30] sm:$0xff]
        %v929 = vld [vmem:[#allocation5 + $0xa38] sm:$0xff]
        %v930 = vld [vmem:[#allocation5 + $0xa40] sm:$0xff]
        %v931 = vld [vmem:[#allocation5 + $0xa48] sm:$0xff]
        %v932 = vld [vmem:[#allocation5 + $0xa50] sm:$0xff]
        %v933 = vld [vmem:[#allocation5 + $0xa58] sm:$0xff]
        %v934 = vld [vmem:[#allocation5 + $0xa60] sm:$0xff]
        %v935 = vld [vmem:[#allocation5 + $0xa68] sm:$0xff]
        %v936 = vld [vmem:[#allocation5 + $0xa70] sm:$0xff]
        %v937 = vld [vmem:[#allocation5 + $0xa78] sm:$0xff]
        %v938 = vld [vmem:[#allocation5 + $0xa80] sm:$0xff]
        %v939 = vld [vmem:[#allocation5 + $0xa88] sm:$0xff]
        %v940 = vld [vmem:[#allocation5 + $0xa90] sm:$0xff]
        %v941 = vld [vmem:[#allocation5 + $0xa98] sm:$0xff]
        %v942 = vld [vmem:[#allocation5 + $0xaa0] sm:$0xff]
        %v943 = vld [vmem:[#allocation5 + $0xaa8] sm:$0xff]
        %v944 = vld [vmem:[#allocation5 + $0xab0] sm:$0xff]
        %v945 = vld [vmem:[#allocation5 + $0xab8] sm:$0xff]
        %v946 = vld [vmem:[#allocation5 + $0xac0] sm:$0xff]
        %v947 = vld [vmem:[#allocation5 + $0xac8] sm:$0xff]
        %v948 = vld [vmem:[#allocation5 + $0xad0] sm:$0xff]
        %v949 = vld [vmem:[#allocation5 + $0xad8] sm:$0xff]
        %v950 = vld [vmem:[#allocation5 + $0xae0] sm:$0xff]
        %v951 = vld [vmem:[#allocation5 + $0xae8] sm:$0xff]
        %v952 = vld [vmem:[#allocation5 + $0xaf0] sm:$0xff]
        %v953 = vld [vmem:[#allocation5 + $0xaf8] sm:$0xff]
        %v954 = vld [vmem:[#allocation5 + $0xb00] sm:$0xff]
        %v955 = vld [vmem:[#allocation5 + $0xb08] sm:$0xff]
        %v956 = vld [vmem:[#allocation5 + $0xb10] sm:$0xff]
        %v957 = vld [vmem:[#allocation5 + $0xb18] sm:$0xff]
        %v958 = vld [vmem:[#allocation5 + $0xb20] sm:$0xff]
        %v959 = vld [vmem:[#allocation5 + $0xb28] sm:$0xff]
        %v960 = vld [vmem:[#allocation5 + $0xb30] sm:$0xff]
        %v961 = vld [vmem:[#allocation5 + $0xb38] sm:$0xff]
        %v962 = vld [vmem:[#allocation5 + $0xb40] sm:$0xff]
        %v963 = vld [vmem:[#allocation5 + $0xb48] sm:$0xff]
        %v964 = vld [vmem:[#allocation5 + $0xb50] sm:$0xff]
        %v965 = vld [vmem:[#allocation5 + $0xb58] sm:$0xff]
        %v966 = vld [vmem:[#allocation5 + $0xb60] sm:$0xff]
        %v967 = vld [vmem:[#allocation5 + $0xb68] sm:$0xff]
        %v968 = vld [vmem:[#allocation5 + $0xb70] sm:$0xff]
        %v969 = vld [vmem:[#allocation5 + $0xb78] sm:$0xff]
        %v970 = vld [vmem:[#allocation5 + $0xb80] sm:$0xff]
        %v971 = vld [vmem:[#allocation5 + $0xb88] sm:$0xff]
        %v972 = vld [vmem:[#allocation5 + $0xb90] sm:$0xff]
        %v973 = vld [vmem:[#allocation5 + $0xb98] sm:$0xff]
        %v974 = vld [vmem:[#allocation5 + $0xba0] sm:$0xff]
        %v975 = vld [vmem:[#allocation5 + $0xba8] sm:$0xff]
        %v976 = vld [vmem:[#allocation5 + $0xbb0] sm:$0xff]
        %v977 = vld [vmem:[#allocation5 + $0xbb8] sm:$0xff]
        %v978 = vld [vmem:[#allocation5 + $0xbc0] sm:$0xff]
        %v979 = vld [vmem:[#allocation5 + $0xbc8] sm:$0xff]
        %v980 = vld [vmem:[#allocation5 + $0xbd0] sm:$0xff]
        %v981 = vld [vmem:[#allocation5 + $0xbd8] sm:$0xff]
        %v982 = vld [vmem:[#allocation5 + $0xbe0] sm:$0xff]
        %v983 = vld [vmem:[#allocation5 + $0xbe8] sm:$0xff]
        %v984 = vld [vmem:[#allocation5 + $0xbf0] sm:$0xff]
        %v985 = vld [vmem:[#allocation5 + $0xbf8] sm:$0xff]
        %v986 = vld [vmem:[#allocation5 + $0xc00] sm:$0xff]
        %v987 = vld [vmem:[#allocation5 + $0xc08] sm:$0xff]
        %v988 = vld [vmem:[#allocation5 + $0xc10] sm:$0xff]
        %v989 = vld [vmem:[#allocation5 + $0xc18] sm:$0xff]
        %v990 = vld [vmem:[#allocation5 + $0xc20] sm:$0xff]
        %v991 = vld [vmem:[#allocation5 + $0xc28] sm:$0xff]
        %v992 = vld [vmem:[#allocation5 + $0xc30] sm:$0xff]
        %v993 = vld [vmem:[#allocation5 + $0xc38] sm:$0xff]
        %v994 = vld [vmem:[#allocation5 + $0xc40] sm:$0xff]
        %v995 = vld [vmem:[#allocation5 + $0xc48] sm:$0xff]
        %v996 = vld [vmem:[#allocation5 + $0xc50] sm:$0xff]
        %v997 = vld [vmem:[#allocation5 + $0xc58] sm:$0xff]
        %v998 = vld [vmem:[#allocation5 + $0xc60] sm:$0xff]
        %v999 = vld [vmem:[#allocation5 + $0xc68] sm:$0xff]
        %v1000 = vld [vmem:[#allocation5 + $0xc70] sm:$0xff]
        %v1001 = vld [vmem:[#allocation5 + $0xc78] sm:$0xff]
        %v1002 = vld [vmem:[#allocation5 + $0xc80] sm:$0xff]
        %v1003 = vld [vmem:[#allocation5 + $0xc88] sm:$0xff]
        %v1004 = vld [vmem:[#allocation5 + $0xc90] sm:$0xff]
        %v1005 = vld [vmem:[#allocation5 + $0xc98] sm:$0xff]
        %v1006 = vld [vmem:[#allocation5 + $0xca0] sm:$0xff]
        %v1007 = vld [vmem:[#allocation5 + $0xca8] sm:$0xff]
        %v1008 = vld [vmem:[#allocation5 + $0xcb0] sm:$0xff]
        %v1009 = vld [vmem:[#allocation5 + $0xcb8] sm:$0xff]
        %v1010 = vld [vmem:[#allocation5 + $0xcc0] sm:$0xff]
        %v1011 = vld [vmem:[#allocation5 + $0xcc8] sm:$0xff]
        %v1012 = vld [vmem:[#allocation5 + $0xcd0] sm:$0xff]
        %v1013 = vld [vmem:[#allocation5 + $0xcd8] sm:$0xff]
        %v1014 = vld [vmem:[#allocation5 + $0xce0] sm:$0xff]
        %v1015 = vld [vmem:[#allocation5 + $0xce8] sm:$0xff]
        %v1016 = vld [vmem:[#allocation5 + $0xcf0] sm:$0xff]
        %v1017 = vld [vmem:[#allocation5 + $0xcf8] sm:$0xff]
        %v1018 = vld [vmem:[#allocation5 + $0xd00] sm:$0xff]
        %v1019 = vld [vmem:[#allocation5 + $0xd08] sm:$0xff]
        %v1020 = vld [vmem:[#allocation5 + $0xd10] sm:$0xff]
        %v1021 = vld [vmem:[#allocation5 + $0xd18] sm:$0xff]
        %v1022 = vld [vmem:[#allocation5 + $0xd20] sm:$0xff]
        %v1023 = vld [vmem:[#allocation5 + $0xd28] sm:$0xff]
        %v1024 = vld [vmem:[#allocation5 + $0xd30] sm:$0xff]
        %v1025 = vld [vmem:[#allocation5 + $0xd38] sm:$0xff]
        %v1026 = vld [vmem:[#allocation5 + $0xd40] sm:$0xff]
        %v1027 = vld [vmem:[#allocation5 + $0xd48] sm:$0xff]
        %v1028 = vld [vmem:[#allocation5 + $0xd50] sm:$0xff]
        %v1029 = vld [vmem:[#allocation5 + $0xd58] sm:$0xff]
        %v1030 = vld [vmem:[#allocation5 + $0xd60] sm:$0xff]
        %v1031 = vld [vmem:[#allocation5 + $0xd68] sm:$0xff]
        %v1032 = vld [vmem:[#allocation5 + $0xd70] sm:$0xff]
        %v1033 = vld [vmem:[#allocation5 + $0xd78] sm:$0xff]
        %v1034 = vld [vmem:[#allocation5 + $0xd80] sm:$0xff]
        %v1035 = vld [vmem:[#allocation5 + $0xd88] sm:$0xff]
        %v1036 = vld [vmem:[#allocation5 + $0xd90] sm:$0xff]
        %v1037 = vld [vmem:[#allocation5 + $0xd98] sm:$0xff]
        %v1038 = vld [vmem:[#allocation5 + $0xda0] sm:$0xff]
        %v1039 = vld [vmem:[#allocation5 + $0xda8] sm:$0xff]
        %v1040 = vld [vmem:[#allocation5 + $0xdb0] sm:$0xff]
        %v1041 = vld [vmem:[#allocation5 + $0xdb8] sm:$0xff]
        %v1042 = vld [vmem:[#allocation5 + $0xdc0] sm:$0xff]
        %v1043 = vld [vmem:[#allocation5 + $0xdc8] sm:$0xff]
        %v1044 = vld [vmem:[#allocation5 + $0xdd0] sm:$0xff]
        %v1045 = vld [vmem:[#allocation5 + $0xdd8] sm:$0xff]
        %v1046 = vld [vmem:[#allocation5 + $0xde0] sm:$0xff]
        %v1047 = vld [vmem:[#allocation5 + $0xde8] sm:$0xff]
        %v1048 = vld [vmem:[#allocation5 + $0xdf0] sm:$0xff]
        %v1049 = vld [vmem:[#allocation5 + $0xdf8] sm:$0xff]
        %v1050 = vld [vmem:[#allocation5 + $0xe00] sm:$0xff]
        %v1051 = vld [vmem:[#allocation5 + $0xe08] sm:$0xff]
        %v1052 = vld [vmem:[#allocation5 + $0xe10] sm:$0xff]
        %v1053 = vld [vmem:[#allocation5 + $0xe18] sm:$0xff]
        %v1054 = vld [vmem:[#allocation5 + $0xe20] sm:$0xff]
        %v1055 = vld [vmem:[#allocation5 + $0xe28] sm:$0xff]
        %v1056 = vld [vmem:[#allocation5 + $0xe30] sm:$0xff]
        %v1057 = vld [vmem:[#allocation5 + $0xe38] sm:$0xff]
        %v1058 = vld [vmem:[#allocation5 + $0xe40] sm:$0xff]
        %v1059 = vld [vmem:[#allocation5 + $0xe48] sm:$0xff]
        %v1060 = vld [vmem:[#allocation5 + $0xe50] sm:$0xff]
        %v1061 = vld [vmem:[#allocation5 + $0xe58] sm:$0xff]
        %v1062 = vld [vmem:[#allocation5 + $0xe60] sm:$0xff]
        %v1063 = vld [vmem:[#allocation5 + $0xe68] sm:$0xff]
        %v1064 = vld [vmem:[#allocation5 + $0xe70] sm:$0xff]
        %v1065 = vld [vmem:[#allocation5 + $0xe78] sm:$0xff]
        %v1066 = vld [vmem:[#allocation5 + $0xe80] sm:$0xff]
        %v1067 = vld [vmem:[#allocation5 + $0xe88] sm:$0xff]
        %v1068 = vld [vmem:[#allocation5 + $0xe90] sm:$0xff]
        %v1069 = vld [vmem:[#allocation5 + $0xe98] sm:$0xff]
        %v1070 = vld [vmem:[#allocation5 + $0xea0] sm:$0xff]
        %v1071 = vld [vmem:[#allocation5 + $0xea8] sm:$0xff]
        %v1072 = vld [vmem:[#allocation5 + $0xeb0] sm:$0xff]
        %v1073 = vld [vmem:[#allocation5 + $0xeb8] sm:$0xff]
        %v1074 = vld [vmem:[#allocation5 + $0xec0] sm:$0xff]
        %v1075 = vld [vmem:[#allocation5 + $0xec8] sm:$0xff]
        %v1076 = vld [vmem:[#allocation5 + $0xed0] sm:$0xff]
        %v1077 = vld [vmem:[#allocation5 + $0xed8] sm:$0xff]
        %v1078 = vld [vmem:[#allocation5 + $0xee0] sm:$0xff]
        %v1079 = vld [vmem:[#allocation5 + $0xee8] sm:$0xff]
        %v1080 = vld [vmem:[#allocation5 + $0xef0] sm:$0xff]
        %v1081 = vld [vmem:[#allocation5 + $0xef8] sm:$0xff]
        %v1082 = vld [vmem:[#allocation5 + $0xf00] sm:$0xff]
        %v1083 = vld [vmem:[#allocation5 + $0xf08] sm:$0xff]
        %v1084 = vld [vmem:[#allocation5 + $0xf10] sm:$0xff]
        %v1085 = vld [vmem:[#allocation5 + $0xf18] sm:$0xff]
        %v1086 = vld [vmem:[#allocation5 + $0xf20] sm:$0xff]
        %v1087 = vld [vmem:[#allocation5 + $0xf28] sm:$0xff]
        %v1088 = vld [vmem:[#allocation5 + $0xf30] sm:$0xff]
        %v1089 = vld [vmem:[#allocation5 + $0xf38] sm:$0xff]
        %v1090 = vld [vmem:[#allocation5 + $0xf40] sm:$0xff]
        %v1091 = vld [vmem:[#allocation5 + $0xf48] sm:$0xff]
        %v1092 = vld [vmem:[#allocation5 + $0xf50] sm:$0xff]
        %v1093 = vld [vmem:[#allocation5 + $0xf58] sm:$0xff]
        %v1094 = vld [vmem:[#allocation5 + $0xf60] sm:$0xff]
        %v1095 = vld [vmem:[#allocation5 + $0xf68] sm:$0xff]
        %v1096 = vld [vmem:[#allocation5 + $0xf70] sm:$0xff]
        %v1097 = vld [vmem:[#allocation5 + $0xf78] sm:$0xff]
        %v1098 = vld [vmem:[#allocation5 + $0xf80] sm:$0xff]
        %v1099 = vld [vmem:[#allocation5 + $0xf88] sm:$0xff]
        %v1100 = vld [vmem:[#allocation5 + $0xf90] sm:$0xff]
        %v1101 = vld [vmem:[#allocation5 + $0xf98] sm:$0xff]
        %v1102 = vld [vmem:[#allocation5 + $0xfa0] sm:$0xff]
        %v1103 = vld [vmem:[#allocation5 + $0xfa8] sm:$0xff]
        %v1104 = vld [vmem:[#allocation5 + $0xfb0] sm:$0xff]
        %v1105 = vld [vmem:[#allocation5 + $0xfb8] sm:$0xff]
        %v1106 = vld [vmem:[#allocation5 + $0xfc0] sm:$0xff]
        %v1107 = vld [vmem:[#allocation5 + $0xfc8] sm:$0xff]
        %v1108 = vld [vmem:[#allocation5 + $0xfd0] sm:$0xff]
        %v1109 = vld [vmem:[#allocation5 + $0xfd8] sm:$0xff]
        %v1110 = vld [vmem:[#allocation5 + $0xfe0] sm:$0xff]
        %v1111 = vld [vmem:[#allocation5 + $0xfe8] sm:$0xff]
        %v1112 = vld [vmem:[#allocation5 + $0xff0] sm:$0xff]
        %v1113 = vld [vmem:[#allocation5 + $0xff8] sm:$0xff]
        %v1114 = vld [vmem:[#allocation5 + $0x1000] sm:$0xff]
        %v1115 = vld [vmem:[#allocation5 + $0x1008] sm:$0xff]
        %v1116 = vld [vmem:[#allocation5 + $0x1010] sm:$0xff]
        %v1117 = vld [vmem:[#allocation5 + $0x1018] sm:$0xff]
        %v1118 = vld [vmem:[#allocation5 + $0x1020] sm:$0xff]
        %v1119 = vld [vmem:[#allocation5 + $0x1028] sm:$0xff]
        %v1120 = vld [vmem:[#allocation5 + $0x1030] sm:$0xff]
        %v1121 = vld [vmem:[#allocation5 + $0x1038] sm:$0xff]
        %v1122 = vld [vmem:[#allocation5 + $0x1040] sm:$0xff]
        %v1123 = vld [vmem:[#allocation5 + $0x1048] sm:$0xff]
        %v1124 = vld [vmem:[#allocation5 + $0x1050] sm:$0xff]
        %v1125 = vld [vmem:[#allocation5 + $0x1058] sm:$0xff]
        %v1126 = vld [vmem:[#allocation5 + $0x1060] sm:$0xff]
        %v1127 = vld [vmem:[#allocation5 + $0x1068] sm:$0xff]
        %v1128 = vld [vmem:[#allocation5 + $0x1070] sm:$0xff]
        %v1129 = vld [vmem:[#allocation5 + $0x1078] sm:$0xff]
        %v1130 = vld [vmem:[#allocation5 + $0x1080] sm:$0xff]
        %v1131 = vld [vmem:[#allocation5 + $0x1088] sm:$0xff]
        %v1132 = vld [vmem:[#allocation5 + $0x1090] sm:$0xff]
        %v1133 = vld [vmem:[#allocation5 + $0x1098] sm:$0xff]
        %v1134 = vld [vmem:[#allocation5 + $0x10a0] sm:$0xff]
        %v1135 = vld [vmem:[#allocation5 + $0x10a8] sm:$0xff]
        %v1136 = vld [vmem:[#allocation5 + $0x10b0] sm:$0xff]
        %v1137 = vld [vmem:[#allocation5 + $0x10b8] sm:$0xff]
        %v1138 = vld [vmem:[#allocation5 + $0x10c0] sm:$0xff]
        %v1139 = vld [vmem:[#allocation5 + $0x10c8] sm:$0xff]
        %v1140 = vld [vmem:[#allocation5 + $0x10d0] sm:$0xff]
        %v1141 = vld [vmem:[#allocation5 + $0x10d8] sm:$0xff]
        %v1142 = vld [vmem:[#allocation5 + $0x10e0] sm:$0xff]
        %v1143 = vld [vmem:[#allocation5 + $0x10e8] sm:$0xff]
        %v1144 = vld [vmem:[#allocation5 + $0x10f0] sm:$0xff]
        %v1145 = vld [vmem:[#allocation5 + $0x10f8] sm:$0xff]
        %v1146 = vld [vmem:[#allocation5 + $0x1100] sm:$0xff]
        %v1147 = vld [vmem:[#allocation5 + $0x1108] sm:$0xff]
        %v1148 = vld [vmem:[#allocation5 + $0x1110] sm:$0xff]
        %v1149 = vld [vmem:[#allocation5 + $0x1118] sm:$0xff]
        %v1150 = vld [vmem:[#allocation5 + $0x1120] sm:$0xff]
        %v1151 = vld [vmem:[#allocation5 + $0x1128] sm:$0xff]
        %v1152 = vld [vmem:[#allocation5 + $0x1130] sm:$0xff]
        %v1153 = vld [vmem:[#allocation5 + $0x1138] sm:$0xff]
        %v1154 = vld [vmem:[#allocation5 + $0x1140] sm:$0xff]
        %v1155 = vld [vmem:[#allocation5 + $0x1148] sm:$0xff]
        %v1156 = vld [vmem:[#allocation5 + $0x1150] sm:$0xff]
        %v1157 = vld [vmem:[#allocation5 + $0x1158] sm:$0xff]
        %v1158 = vld [vmem:[#allocation5 + $0x1160] sm:$0xff]
        %v1159 = vld [vmem:[#allocation5 + $0x1168] sm:$0xff]
        %v1160 = vld [vmem:[#allocation5 + $0x1170] sm:$0xff]
        %v1161 = vld [vmem:[#allocation5 + $0x1178] sm:$0xff]
        %v1162 = vld [vmem:[#allocation5 + $0x1180] sm:$0xff]
        %v1163 = vld [vmem:[#allocation5 + $0x1188] sm:$0xff]
        %v1164 = vld [vmem:[#allocation5 + $0x1190] sm:$0xff]
        %v1165 = vld [vmem:[#allocation5 + $0x1198] sm:$0xff]
        %v1166 = vld [vmem:[#allocation5 + $0x11a0] sm:$0xff]
        %v1167 = vld [vmem:[#allocation5 + $0x11a8] sm:$0xff]
        %v1168 = vld [vmem:[#allocation5 + $0x11b0] sm:$0xff]
        %v1169 = vld [vmem:[#allocation5 + $0x11b8] sm:$0xff]
        %v1170 = vld [vmem:[#allocation5 + $0x11c0] sm:$0xff]
        %v1171 = vld [vmem:[#allocation5 + $0x11c8] sm:$0xff]
        %v1172 = vld [vmem:[#allocation5 + $0x11d0] sm:$0xff]
        %v1173 = vld [vmem:[#allocation5 + $0x11d8] sm:$0xff]
        %v1174 = vld [vmem:[#allocation5 + $0x11e0] sm:$0xff]
        %v1175 = vld [vmem:[#allocation5 + $0x11e8] sm:$0xff]
        %v1176 = vld [vmem:[#allocation5 + $0x11f0] sm:$0xff]
        %v1177 = vld [vmem:[#allocation5 + $0x11f8] sm:$0xff]
        %v1178 = vld [vmem:[#allocation5 + $0x1200] sm:$0xff]
        %v1179 = vld [vmem:[#allocation5 + $0x1208] sm:$0xff]
        %v1180 = vld [vmem:[#allocation5 + $0x1210] sm:$0xff]
        %v1181 = vld [vmem:[#allocation5 + $0x1218] sm:$0xff]
        %v1182 = vld [vmem:[#allocation5 + $0x1220] sm:$0xff]
        %v1183 = vld [vmem:[#allocation5 + $0x1228] sm:$0xff]
        %v1184 = vld [vmem:[#allocation5 + $0x1230] sm:$0xff]
        %v1185 = vld [vmem:[#allocation5 + $0x1238] sm:$0xff]
        %v1186 = vld [vmem:[#allocation5 + $0x1240] sm:$0xff]
        %v1187 = vld [vmem:[#allocation5 + $0x1248] sm:$0xff]
        %v1188 = vld [vmem:[#allocation5 + $0x1250] sm:$0xff]
        %v1189 = vld [vmem:[#allocation5 + $0x1258] sm:$0xff]
        %v1190 = vld [vmem:[#allocation5 + $0x1260] sm:$0xff]
        %v1191 = vld [vmem:[#allocation5 + $0x1268] sm:$0xff]
        %v1192 = vld [vmem:[#allocation5 + $0x1270] sm:$0xff]
        %v1193 = vld [vmem:[#allocation5 + $0x1278] sm:$0xff]
        %v1194 = vld [vmem:[#allocation5 + $0x1280] sm:$0xff]
        %v1195 = vld [vmem:[#allocation5 + $0x1288] sm:$0xff]
        %v1196 = vld [vmem:[#allocation5 + $0x1290] sm:$0xff]
        %v1197 = vld [vmem:[#allocation5 + $0x1298] sm:$0xff]
        %v1198 = vld [vmem:[#allocation5 + $0x12a0] sm:$0xff]
        %v1199 = vld [vmem:[#allocation5 + $0x12a8] sm:$0xff]
        %v1200 = vld [vmem:[#allocation5 + $0x12b0] sm:$0xff]
        %v1201 = vld [vmem:[#allocation5 + $0x12b8] sm:$0xff]
        %v1202 = vld [vmem:[#allocation5 + $0x12c0] sm:$0xff]
        %v1203 = vld [vmem:[#allocation5 + $0x12c8] sm:$0xff]
        %v1204 = vld [vmem:[#allocation5 + $0x12d0] sm:$0xff]
        %v1205 = vld [vmem:[#allocation5 + $0x12d8] sm:$0xff]
        %v1206 = vld [vmem:[#allocation5 + $0x12e0] sm:$0xff]
        %v1207 = vld [vmem:[#allocation5 + $0x12e8] sm:$0xff]
        %v1208 = vld [vmem:[#allocation5 + $0x12f0] sm:$0xff]
        %v1209 = vld [vmem:[#allocation5 + $0x12f8] sm:$0xff]
        %v1210 = vld [vmem:[#allocation5 + $0x1300] sm:$0xff]
        %v1211 = vld [vmem:[#allocation5 + $0x1308] sm:$0xff]
        %v1212 = vld [vmem:[#allocation5 + $0x1310] sm:$0xff]
        %v1213 = vld [vmem:[#allocation5 + $0x1318] sm:$0xff]
        %v1214 = vld [vmem:[#allocation5 + $0x1320] sm:$0xff]
        %v1215 = vld [vmem:[#allocation5 + $0x1328] sm:$0xff]
        %v1216 = vld [vmem:[#allocation5 + $0x1330] sm:$0xff]
        %v1217 = vld [vmem:[#allocation5 + $0x1338] sm:$0xff]
        %v1218 = vld [vmem:[#allocation5 + $0x1340] sm:$0xff]
        %v1219 = vld [vmem:[#allocation5 + $0x1348] sm:$0xff]
        %v1220 = vld [vmem:[#allocation5 + $0x1350] sm:$0xff]
        %v1221 = vld [vmem:[#allocation5 + $0x1358] sm:$0xff]
        %v1222 = vld [vmem:[#allocation5 + $0x1360] sm:$0xff]
        %v1223 = vld [vmem:[#allocation5 + $0x1368] sm:$0xff]
        %v1224 = vld [vmem:[#allocation5 + $0x1370] sm:$0xff]
        %v1225 = vld [vmem:[#allocation5 + $0x1378] sm:$0xff]
        %v1226 = vld [vmem:[#allocation5 + $0x1380] sm:$0xff]
        %v1227 = vld [vmem:[#allocation5 + $0x1388] sm:$0xff]
        %v1228 = vld [vmem:[#allocation5 + $0x1390] sm:$0xff]
        %v1229 = vld [vmem:[#allocation5 + $0x1398] sm:$0xff]
        %v1230 = vld [vmem:[#allocation5 + $0x13a0] sm:$0xff]
        %v1231 = vld [vmem:[#allocation5 + $0x13a8] sm:$0xff]
        %v1232 = vld [vmem:[#allocation5 + $0x13b0] sm:$0xff]
        %v1233 = vld [vmem:[#allocation5 + $0x13b8] sm:$0xff]
        %v1234 = vld [vmem:[#allocation5 + $0x13c0] sm:$0xff]
        %v1235 = vld [vmem:[#allocation5 + $0x13c8] sm:$0xff]
        %v1236 = vld [vmem:[#allocation5 + $0x13d0] sm:$0xff]
        %v1237 = vld [vmem:[#allocation5 + $0x13d8] sm:$0xff]
        %v1238 = vld [vmem:[#allocation5 + $0x13e0] sm:$0xff]
        %v1239 = vld [vmem:[#allocation5 + $0x13e8] sm:$0xff]
        %v1240 = vld [vmem:[#allocation5 + $0x13f0] sm:$0xff]
        %v1241 = vld [vmem:[#allocation5 + $0x13f8] sm:$0xff]
        %v1242 = vld [vmem:[#allocation5 + $0x1400] sm:$0xff]
        %v1243 = vld [vmem:[#allocation5 + $0x1408] sm:$0xff]
        %v1244 = vld [vmem:[#allocation5 + $0x1410] sm:$0xff]
        %v1245 = vld [vmem:[#allocation5 + $0x1418] sm:$0xff]
        %v1246 = vld [vmem:[#allocation5 + $0x1420] sm:$0xff]
        %v1247 = vld [vmem:[#allocation5 + $0x1428] sm:$0xff]
        %v1248 = vld [vmem:[#allocation5 + $0x1430] sm:$0xff]
        %v1249 = vld [vmem:[#allocation5 + $0x1438] sm:$0xff]
        %v1250 = vld [vmem:[#allocation5 + $0x1440] sm:$0xff]
        %v1251 = vld [vmem:[#allocation5 + $0x1448] sm:$0xff]
        %v1252 = vld [vmem:[#allocation5 + $0x1450] sm:$0xff]
        %v1253 = vld [vmem:[#allocation5 + $0x1458] sm:$0xff]
        %v1254 = vld [vmem:[#allocation5 + $0x1460] sm:$0xff]
        %v1255 = vld [vmem:[#allocation5 + $0x1468] sm:$0xff]
        %v1256 = vld [vmem:[#allocation5 + $0x1470] sm:$0xff]
        %v1257 = vld [vmem:[#allocation5 + $0x1478] sm:$0xff]
        %v1258 = vld [vmem:[#allocation5 + $0x1480] sm:$0xff]
        %v1259 = vld [vmem:[#allocation5 + $0x1488] sm:$0xff]
        %v1260 = vld [vmem:[#allocation5 + $0x1490] sm:$0xff]
        %v1261 = vld [vmem:[#allocation5 + $0x1498] sm:$0xff]
        %v1262 = vld [vmem:[#allocation5 + $0x14a0] sm:$0xff]
        %v1263 = vld [vmem:[#allocation5 + $0x14a8] sm:$0xff]
        %v1264 = vld [vmem:[#allocation5 + $0x14b0] sm:$0xff]
        %v1265 = vld [vmem:[#allocation5 + $0x14b8] sm:$0xff]
        %v1266 = vld [vmem:[#allocation5 + $0x14c0] sm:$0xff]
        %v1267 = vld [vmem:[#allocation5 + $0x14c8] sm:$0xff]
        %v1268 = vld [vmem:[#allocation5 + $0x14d0] sm:$0xff]
        %v1269 = vld [vmem:[#allocation5 + $0x14d8] sm:$0xff]
        %v1270 = vld [vmem:[#allocation5 + $0x14e0] sm:$0xff]
        %v1271 = vld [vmem:[#allocation5 + $0x14e8] sm:$0xff]
        %v1272 = vld [vmem:[#allocation5 + $0x14f0] sm:$0xff]
        %v1273 = vld [vmem:[#allocation5 + $0x14f8] sm:$0xff]
        %v1274 = vld [vmem:[#allocation5 + $0x1500] sm:$0xff]
        %v1275 = vld [vmem:[#allocation5 + $0x1508] sm:$0xff]
        %v1276 = vld [vmem:[#allocation5 + $0x1510] sm:$0xff]
        %v1277 = vld [vmem:[#allocation5 + $0x1518] sm:$0xff]
        %v1278 = vld [vmem:[#allocation5 + $0x1520] sm:$0xff]
        %v1279 = vld [vmem:[#allocation5 + $0x1528] sm:$0xff]
        %v1280 = vld [vmem:[#allocation5 + $0x1530] sm:$0xff]
        %v1281 = vld [vmem:[#allocation5 + $0x1538] sm:$0xff]
        %v1282 = vld [vmem:[#allocation5 + $0x1540] sm:$0xff]
        %v1283 = vld [vmem:[#allocation5 + $0x1548] sm:$0xff]
        %v1284 = vld [vmem:[#allocation5 + $0x1550] sm:$0xff]
        %v1285 = vld [vmem:[#allocation5 + $0x1558] sm:$0xff]
        %v1286 = vld [vmem:[#allocation5 + $0x1560] sm:$0xff]
        %v1287 = vld [vmem:[#allocation5 + $0x1568] sm:$0xff]
        %v1288 = vld [vmem:[#allocation5 + $0x1570] sm:$0xff]
        %v1289 = vld [vmem:[#allocation5 + $0x1578] sm:$0xff]
        %v1290 = vld [vmem:[#allocation5 + $0x1580] sm:$0xff]
        %v1291 = vld [vmem:[#allocation5 + $0x1588] sm:$0xff]
        %v1292 = vld [vmem:[#allocation5 + $0x1590] sm:$0xff]
        %v1293 = vld [vmem:[#allocation5 + $0x1598] sm:$0xff]
        %v1294 = vld [vmem:[#allocation5 + $0x15a0] sm:$0xff]
        %v1295 = vld [vmem:[#allocation5 + $0x15a8] sm:$0xff]
        %v1296 = vld [vmem:[#allocation5 + $0x15b0] sm:$0xff]
        %v1297 = vld [vmem:[#allocation5 + $0x15b8] sm:$0xff]
        %v1298 = vld [vmem:[#allocation5 + $0x15c0] sm:$0xff]
        %v1299 = vld [vmem:[#allocation5 + $0x15c8] sm:$0xff]
        %v1300 = vld [vmem:[#allocation5 + $0x15d0] sm:$0xff]
        %v1301 = vld [vmem:[#allocation5 + $0x15d8] sm:$0xff]
        %v1302 = vld [vmem:[#allocation5 + $0x15e0] sm:$0xff]
        %v1303 = vld [vmem:[#allocation5 + $0x15e8] sm:$0xff]
        %v1304 = vld [vmem:[#allocation5 + $0x15f0] sm:$0xff]
        %v1305 = vld [vmem:[#allocation5 + $0x15f8] sm:$0xff]
        %v1306 = vld [vmem:[#allocation5 + $0x1600] sm:$0xff]
        %v1307 = vld [vmem:[#allocation5 + $0x1608] sm:$0xff]
        %v1308 = vld [vmem:[#allocation5 + $0x1610] sm:$0xff]
        %v1309 = vld [vmem:[#allocation5 + $0x1618] sm:$0xff]
        %v1310 = vld [vmem:[#allocation5 + $0x1620] sm:$0xff]
        %v1311 = vld [vmem:[#allocation5 + $0x1628] sm:$0xff]
        %v1312 = vld [vmem:[#allocation5 + $0x1630] sm:$0xff]
        %v1313 = vld [vmem:[#allocation5 + $0x1638] sm:$0xff]
        %v1314 = vld [vmem:[#allocation5 + $0x1640] sm:$0xff]
        %v1315 = vld [vmem:[#allocation5 + $0x1648] sm:$0xff]
        %v1316 = vld [vmem:[#allocation5 + $0x1650] sm:$0xff]
        %v1317 = vld [vmem:[#allocation5 + $0x1658] sm:$0xff]
        %v1318 = vld [vmem:[#allocation5 + $0x1660] sm:$0xff]
        %v1319 = vld [vmem:[#allocation5 + $0x1668] sm:$0xff]
        %v1320 = vld [vmem:[#allocation5 + $0x1670] sm:$0xff]
        %v1321 = vld [vmem:[#allocation5 + $0x1678] sm:$0xff]
        %v1322 = vld [vmem:[#allocation5 + $0x1680] sm:$0xff]
        %v1323 = vld [vmem:[#allocation5 + $0x1688] sm:$0xff]
        %v1324 = vld [vmem:[#allocation5 + $0x1690] sm:$0xff]
        %v1325 = vld [vmem:[#allocation5 + $0x1698] sm:$0xff]
        %v1326 = vld [vmem:[#allocation5 + $0x16a0] sm:$0xff]
        %v1327 = vld [vmem:[#allocation5 + $0x16a8] sm:$0xff]
        %v1328 = vld [vmem:[#allocation5 + $0x16b0] sm:$0xff]
        %v1329 = vld [vmem:[#allocation5 + $0x16b8] sm:$0xff]
        %v1330 = vld [vmem:[#allocation5 + $0x16c0] sm:$0xff]
        %v1331 = vld [vmem:[#allocation5 + $0x16c8] sm:$0xff]
        %v1332 = vld [vmem:[#allocation5 + $0x16d0] sm:$0xff]
        %v1333 = vld [vmem:[#allocation5 + $0x16d8] sm:$0xff]
        %v1334 = vld [vmem:[#allocation5 + $0x16e0] sm:$0xff]
        %v1335 = vld [vmem:[#allocation5 + $0x16e8] sm:$0xff]
        %v1336 = vld [vmem:[#allocation5 + $0x16f0] sm:$0xff]
        %v1337 = vld [vmem:[#allocation5 + $0x16f8] sm:$0xff]
        %v1338 = vld [vmem:[#allocation5 + $0x1700] sm:$0xff]
        %v1339 = vld [vmem:[#allocation5 + $0x1708] sm:$0xff]
        %v1340 = vld [vmem:[#allocation5 + $0x1710] sm:$0xff]
        %v1341 = vld [vmem:[#allocation5 + $0x1718] sm:$0xff]
        %v1342 = vld [vmem:[#allocation5 + $0x1720] sm:$0xff]
        %v1343 = vld [vmem:[#allocation5 + $0x1728] sm:$0xff]
        %v1344 = vld [vmem:[#allocation5 + $0x1730] sm:$0xff]
        %v1345 = vld [vmem:[#allocation5 + $0x1738] sm:$0xff]
        %v1346 = vld [vmem:[#allocation5 + $0x1740] sm:$0xff]
        %v1347 = vld [vmem:[#allocation5 + $0x1748] sm:$0xff]
        %v1348 = vld [vmem:[#allocation5 + $0x1750] sm:$0xff]
        %v1349 = vld [vmem:[#allocation5 + $0x1758] sm:$0xff]
        %v1350 = vld [vmem:[#allocation5 + $0x1760] sm:$0xff]
        %v1351 = vld [vmem:[#allocation5 + $0x1768] sm:$0xff]
        %v1352 = vld [vmem:[#allocation5 + $0x1770] sm:$0xff]
        %v1353 = vld [vmem:[#allocation5 + $0x1778] sm:$0xff]
        %v1354 = vld [vmem:[#allocation5 + $0x1780] sm:$0xff]
        %v1355 = vld [vmem:[#allocation5 + $0x1788] sm:$0xff]
        %v1356 = vld [vmem:[#allocation5 + $0x1790] sm:$0xff]
        %v1357 = vld [vmem:[#allocation5 + $0x1798] sm:$0xff]
        %v1358 = vld [vmem:[#allocation5 + $0x17a0] sm:$0xff]
        %v1359 = vld [vmem:[#allocation5 + $0x17a8] sm:$0xff]
        %v1360 = vld [vmem:[#allocation5 + $0x17b0] sm:$0xff]
        %v1361 = vld [vmem:[#allocation5 + $0x17b8] sm:$0xff]
        %v1362 = vld [vmem:[#allocation5 + $0x17c0] sm:$0xff]
        %v1363 = vld [vmem:[#allocation5 + $0x17c8] sm:$0xff]
        %v1364 = vld [vmem:[#allocation5 + $0x17d0] sm:$0xff]
        %v1365 = vld [vmem:[#allocation5 + $0x17d8] sm:$0xff]
        %v1366 = vld [vmem:[#allocation5 + $0x17e0] sm:$0xff]
        %v1367 = vld [vmem:[#allocation5 + $0x17e8] sm:$0xff]
        %v1368 = vld [vmem:[#allocation5 + $0x17f0] sm:$0xff]
        %v1369 = vld [vmem:[#allocation5 + $0x17f8] sm:$0xff]
        %v1370 = vld [vmem:[#allocation5 + $0x1800] sm:$0xff]
        %v1371 = vld [vmem:[#allocation5 + $0x1808] sm:$0xff]
        %v1372 = vld [vmem:[#allocation5 + $0x1810] sm:$0xff]
        %v1373 = vld [vmem:[#allocation5 + $0x1818] sm:$0xff]
        %v1374 = vld [vmem:[#allocation5 + $0x1820] sm:$0xff]
        %v1375 = vld [vmem:[#allocation5 + $0x1828] sm:$0xff]
        %v1376 = vld [vmem:[#allocation5 + $0x1830] sm:$0xff]
        %v1377 = vld [vmem:[#allocation5 + $0x1838] sm:$0xff]
        %v1378 = vld [vmem:[#allocation5 + $0x1840] sm:$0xff]
        %v1379 = vld [vmem:[#allocation5 + $0x1848] sm:$0xff]
        %v1380 = vld [vmem:[#allocation5 + $0x1850] sm:$0xff]
        %v1381 = vld [vmem:[#allocation5 + $0x1858] sm:$0xff]
        %v1382 = vld [vmem:[#allocation5 + $0x1860] sm:$0xff]
        %v1383 = vld [vmem:[#allocation5 + $0x1868] sm:$0xff]
        %v1384 = vld [vmem:[#allocation5 + $0x1870] sm:$0xff]
        %v1385 = vld [vmem:[#allocation5 + $0x1878] sm:$0xff]
        %v1386 = vld [vmem:[#allocation5 + $0x1880] sm:$0xff]
        %v1387 = vld [vmem:[#allocation5 + $0x1888] sm:$0xff]
        %v1388 = vld [vmem:[#allocation5 + $0x1890] sm:$0xff]
        %v1389 = vld [vmem:[#allocation5 + $0x1898] sm:$0xff]
        %v1390 = vld [vmem:[#allocation5 + $0x18a0] sm:$0xff]
        %v1391 = vld [vmem:[#allocation5 + $0x18a8] sm:$0xff]
        %v1392 = vld [vmem:[#allocation5 + $0x18b0] sm:$0xff]
        %v1393 = vld [vmem:[#allocation5 + $0x18b8] sm:$0xff]
        %v1394 = vld [vmem:[#allocation5 + $0x18c0] sm:$0xff]
        %v1395 = vld [vmem:[#allocation5 + $0x18c8] sm:$0xff]
        %v1396 = vld [vmem:[#allocation5 + $0x18d0] sm:$0xff]
        %v1397 = vld [vmem:[#allocation5 + $0x18d8] sm:$0xff]
        %v1398 = vld [vmem:[#allocation5 + $0x18e0] sm:$0xff]
        %v1399 = vld [vmem:[#allocation5 + $0x18e8] sm:$0xff]
        %v1400 = vld [vmem:[#allocation5 + $0x18f0] sm:$0xff]
        %v1401 = vld [vmem:[#allocation5 + $0x18f8] sm:$0xff]
        %v1402 = vld [vmem:[#allocation5 + $0x1900] sm:$0xff]
        %v1403 = vld [vmem:[#allocation5 + $0x1908] sm:$0xff]
        %v1404 = vld [vmem:[#allocation5 + $0x1910] sm:$0xff]
        %v1405 = vld [vmem:[#allocation5 + $0x1918] sm:$0xff]
        %v1406 = vld [vmem:[#allocation5 + $0x1920] sm:$0xff]
        %v1407 = vld [vmem:[#allocation5 + $0x1928] sm:$0xff]
        %v1408 = vld [vmem:[#allocation5 + $0x1930] sm:$0xff]
        %v1409 = vld [vmem:[#allocation5 + $0x1938] sm:$0xff]
        %v1410 = vld [vmem:[#allocation5 + $0x1940] sm:$0xff]
        %v1411 = vld [vmem:[#allocation5 + $0x1948] sm:$0xff]
        %v1412 = vld [vmem:[#allocation5 + $0x1950] sm:$0xff]
        %v1413 = vld [vmem:[#allocation5 + $0x1958] sm:$0xff]
        %v1414 = vld [vmem:[#allocation5 + $0x1960] sm:$0xff]
        %v1415 = vld [vmem:[#allocation5 + $0x1968] sm:$0xff]
        %v1416 = vld [vmem:[#allocation5 + $0x1970] sm:$0xff]
        %v1417 = vld [vmem:[#allocation5 + $0x1978] sm:$0xff]
        %v1418 = vld [vmem:[#allocation5 + $0x1980] sm:$0xff]
        %v1419 = vld [vmem:[#allocation5 + $0x1988] sm:$0xff]
        %v1420 = vld [vmem:[#allocation5 + $0x1990] sm:$0xff]
        %v1421 = vld [vmem:[#allocation5 + $0x1998] sm:$0xff]
        %v1422 = vld [vmem:[#allocation5 + $0x19a0] sm:$0xff]
        %v1423 = vld [vmem:[#allocation5 + $0x19a8] sm:$0xff]
        %v1424 = vld [vmem:[#allocation5 + $0x19b0] sm:$0xff]
        %v1425 = vld [vmem:[#allocation5 + $0x19b8] sm:$0xff]
        %v1426 = vld [vmem:[#allocation5 + $0x19c0] sm:$0xff]
        %v1427 = vld [vmem:[#allocation5 + $0x19c8] sm:$0xff]
        %v1428 = vld [vmem:[#allocation5 + $0x19d0] sm:$0xff]
        %v1429 = vld [vmem:[#allocation5 + $0x19d8] sm:$0xff]
        %v1430 = vld [vmem:[#allocation5 + $0x19e0] sm:$0xff]
        %v1431 = vld [vmem:[#allocation5 + $0x19e8] sm:$0xff]
        %v1432 = vld [vmem:[#allocation5 + $0x19f0] sm:$0xff]
        %v1433 = vld [vmem:[#allocation5 + $0x19f8] sm:$0xff]
        %v1434 = vld [vmem:[#allocation5 + $0x1a00] sm:$0xff]
        %v1435 = vld [vmem:[#allocation5 + $0x1a08] sm:$0xff]
        %v1436 = vld [vmem:[#allocation5 + $0x1a10] sm:$0xff]
        %v1437 = vld [vmem:[#allocation5 + $0x1a18] sm:$0xff]
        %v1438 = vld [vmem:[#allocation5 + $0x1a20] sm:$0xff]
        %v1439 = vld [vmem:[#allocation5 + $0x1a28] sm:$0xff]
        %v1440 = vld [vmem:[#allocation5 + $0x1a30] sm:$0xff]
        %v1441 = vld [vmem:[#allocation5 + $0x1a38] sm:$0xff]
        %v1442 = vld [vmem:[#allocation5 + $0x1a40] sm:$0xff]
        %v1443 = vld [vmem:[#allocation5 + $0x1a48] sm:$0xff]
        %v1444 = vld [vmem:[#allocation5 + $0x1a50] sm:$0xff]
        %v1445 = vld [vmem:[#allocation5 + $0x1a58] sm:$0xff]
        %v1446 = vld [vmem:[#allocation5 + $0x1a60] sm:$0xff]
        %v1447 = vld [vmem:[#allocation5 + $0x1a68] sm:$0xff]
        %v1448 = vld [vmem:[#allocation5 + $0x1a70] sm:$0xff]
        %v1449 = vld [vmem:[#allocation5 + $0x1a78] sm:$0xff]
        %v1450 = vld [vmem:[#allocation5 + $0x1a80] sm:$0xff]
        %v1451 = vld [vmem:[#allocation5 + $0x1a88] sm:$0xff]
        %v1452 = vld [vmem:[#allocation5 + $0x1a90] sm:$0xff]
        %v1453 = vld [vmem:[#allocation5 + $0x1a98] sm:$0xff]
        %v1454 = vld [vmem:[#allocation5 + $0x1aa0] sm:$0xff]
        %v1455 = vld [vmem:[#allocation5 + $0x1aa8] sm:$0xff]
        %v1456 = vld [vmem:[#allocation5 + $0x1ab0] sm:$0xff]
        %v1457 = vld [vmem:[#allocation5 + $0x1ab8] sm:$0xff]
        %v1458 = vld [vmem:[#allocation5 + $0x1ac0] sm:$0xff]
        %v1459 = vld [vmem:[#allocation5 + $0x1ac8] sm:$0xff]
        %v1460 = vld [vmem:[#allocation5 + $0x1ad0] sm:$0xff]
        %v1461 = vld [vmem:[#allocation5 + $0x1ad8] sm:$0xff]
        %v1462 = vld [vmem:[#allocation5 + $0x1ae0] sm:$0xff]
        %v1463 = vld [vmem:[#allocation5 + $0x1ae8] sm:$0xff]
        %v1464 = vld [vmem:[#allocation5 + $0x1af0] sm:$0xff]
        %v1465 = vld [vmem:[#allocation5 + $0x1af8] sm:$0xff]
        %v1466 = vld [vmem:[#allocation5 + $0x1b00] sm:$0xff]
        %v1467 = vld [vmem:[#allocation5 + $0x1b08] sm:$0xff]
        %v1468 = vld [vmem:[#allocation5 + $0x1b10] sm:$0xff]
        %v1469 = vld [vmem:[#allocation5 + $0x1b18] sm:$0xff]
        %v1470 = vld [vmem:[#allocation5 + $0x1b20] sm:$0xff]
        %v1471 = vld [vmem:[#allocation5 + $0x1b28] sm:$0xff]
        %v1472 = vld [vmem:[#allocation5 + $0x1b30] sm:$0xff]
        %v1473 = vld [vmem:[#allocation5 + $0x1b38] sm:$0xff]
        %v1474 = vld [vmem:[#allocation5 + $0x1b40] sm:$0xff]
        %v1475 = vld [vmem:[#allocation5 + $0x1b48] sm:$0xff]
        %v1476 = vld [vmem:[#allocation5 + $0x1b50] sm:$0xff]
        %v1477 = vld [vmem:[#allocation5 + $0x1b58] sm:$0xff]
        %v1478 = vld [vmem:[#allocation5 + $0x1b60] sm:$0xff]
        %v1479 = vld [vmem:[#allocation5 + $0x1b68] sm:$0xff]
        %v1480 = vld [vmem:[#allocation5 + $0x1b70] sm:$0xff]
        %v1481 = vld [vmem:[#allocation5 + $0x1b78] sm:$0xff]
        %v1482 = vld [vmem:[#allocation5 + $0x1b80] sm:$0xff]
        %v1483 = vld [vmem:[#allocation5 + $0x1b88] sm:$0xff]
        %v1484 = vld [vmem:[#allocation5 + $0x1b90] sm:$0xff]
        %v1485 = vld [vmem:[#allocation5 + $0x1b98] sm:$0xff]
        %v1486 = vld [vmem:[#allocation5 + $0x1ba0] sm:$0xff]
        %v1487 = vld [vmem:[#allocation5 + $0x1ba8] sm:$0xff]
        %v1488 = vld [vmem:[#allocation5 + $0x1bb0] sm:$0xff]
        %v1489 = vld [vmem:[#allocation5 + $0x1bb8] sm:$0xff]
        %v1490 = vld [vmem:[#allocation5 + $0x1bc0] sm:$0xff]
        %v1491 = vld [vmem:[#allocation5 + $0x1bc8] sm:$0xff]
        %v1492 = vld [vmem:[#allocation5 + $0x1bd0] sm:$0xff]
        %v1493 = vld [vmem:[#allocation5 + $0x1bd8] sm:$0xff]
        %v1494 = vld [vmem:[#allocation5 + $0x1be0] sm:$0xff]
        %v1495 = vld [vmem:[#allocation5 + $0x1be8] sm:$0xff]
        %v1496 = vld [vmem:[#allocation5 + $0x1bf0] sm:$0xff]
        %v1497 = vld [vmem:[#allocation5 + $0x1bf8] sm:$0xff]
        %v1498 = vld [vmem:[#allocation7] sm:$0xf]
        %v1500 = vperm.slane %v1498, 0
        %v1501 = vperm.slane %v1498, 1
        %v1502 = vperm.slane %v1498, 2
        %v1503 = vperm.slane %v1498, 3
        %v1536 = vunpack.c.l.b16 %v574
        %v1537 = vunpack.c.h.b16 %v574
        %v1538 = vunpack.c.l.b16 %v575
        %v1539 = vunpack.c.h.b16 %v575
        %v1540 = vunpack.c.l.b16 %v576
        %v1541 = vunpack.c.h.b16 %v576
        %v1542 = vunpack.c.l.b16 %v577
        %v1543 = vunpack.c.h.b16 %v577
        %v1544 = vunpack.c.l.b16 %v578
        %v1545 = vunpack.c.h.b16 %v578
        %v1546 = vunpack.c.l.b16 %v579
        %v1547 = vunpack.c.h.b16 %v579
        %v1548 = vunpack.c.l.b16 %v580
        %v1549 = vunpack.c.h.b16 %v580
        %v1550 = vunpack.c.l.b16 %v581
        %v1551 = vunpack.c.h.b16 %v581
        %v1552 = vunpack.c.l.b16 %v582
        %v1553 = vunpack.c.h.b16 %v582
        %v1554 = vunpack.c.l.b16 %v583
        %v1555 = vunpack.c.h.b16 %v583
        %v1556 = vunpack.c.l.b16 %v584
        %v1557 = vunpack.c.h.b16 %v584
        %v1558 = vunpack.c.l.b16 %v585
        %v1559 = vunpack.c.h.b16 %v585
        %v1560 = vunpack.c.l.b16 %v586
        %v1561 = vunpack.c.h.b16 %v586
        %v1562 = vunpack.c.l.b16 %v587
        %v1563 = vunpack.c.h.b16 %v587
        %v1564 = vunpack.c.l.b16 %v588
        %v1565 = vunpack.c.h.b16 %v588
        %v1566 = vunpack.c.l.b16 %v589
        %v1567 = vunpack.c.h.b16 %v589
        %v1568 = vunpack.c.l.b16 %v590
        %v1569 = vunpack.c.h.b16 %v590
        %v1570 = vunpack.c.l.b16 %v591
        %v1571 = vunpack.c.h.b16 %v591
        %v1572 = vunpack.c.l.b16 %v592
        %v1573 = vunpack.c.h.b16 %v592
        %v1574 = vunpack.c.l.b16 %v593
        %v1575 = vunpack.c.h.b16 %v593
        %v1576 = vunpack.c.l.b16 %v594
        %v1577 = vunpack.c.h.b16 %v594
        %v1578 = vunpack.c.l.b16 %v595
        %v1579 = vunpack.c.h.b16 %v595
        %v1580 = vunpack.c.l.b16 %v596
        %v1581 = vunpack.c.h.b16 %v596
        %v1582 = vunpack.c.l.b16 %v597
        %v1583 = vunpack.c.h.b16 %v597
        %v1584 = vunpack.c.l.b16 %v598
        %v1585 = vunpack.c.h.b16 %v598
        %v1586 = vunpack.c.l.b16 %v599
        %v1587 = vunpack.c.h.b16 %v599
        %v1588 = vunpack.c.l.b16 %v600
        %v1589 = vunpack.c.h.b16 %v600
        %v1590 = vunpack.c.l.b16 %v601
        %v1591 = vunpack.c.h.b16 %v601
        %v1592 = vpack.c.b16 %v1564, %v1536
        %v1593 = vpack.c.b16 %v1565, %v1537
        %v1594 = vpack.c.b16 %v1566, %v1538
        %v1595 = vpack.c.b16 %v1567, %v1539
        %v1596 = vpack.c.b16 %v1568, %v1540
        %v1597 = vpack.c.b16 %v1569, %v1541
        %v1598 = vpack.c.b16 %v1570, %v1542
        %v1599 = vpack.c.b16 %v1571, %v1543
        %v1600 = vpack.c.b16 %v1572, %v1544
        %v1601 = vpack.c.b16 %v1573, %v1545
        %v1602 = vpack.c.b16 %v1574, %v1546
        %v1603 = vpack.c.b16 %v1575, %v1547
        %v1604 = vpack.c.b16 %v1576, %v1548
        %v1605 = vpack.c.b16 %v1577, %v1549
        %v1606 = vpack.c.b16 %v1578, %v1550
        %v1607 = vpack.c.b16 %v1579, %v1551
        %v1608 = vpack.c.b16 %v1580, %v1552
        %v1609 = vpack.c.b16 %v1581, %v1553
        %v1610 = vpack.c.b16 %v1582, %v1554
        %v1611 = vpack.c.b16 %v1583, %v1555
        %v1612 = vpack.c.b16 %v1584, %v1556
        %v1613 = vpack.c.b16 %v1585, %v1557
        %v1614 = vpack.c.b16 %v1586, %v1558
        %v1615 = vpack.c.b16 %v1587, %v1559
        %v1616 = vpack.c.b16 %v1588, %v1560
        %v1617 = vpack.c.b16 %v1589, %v1561
        %v1618 = vpack.c.b16 %v1590, %v1562
        %v1619 = vpack.c.b16 %v1591, %v1563
        %v2544 = vunpack.c.l.b16 %v602
        %v2545 = vunpack.c.h.b16 %v602
        %v2546 = vunpack.c.l.b16 %v603
        %v2547 = vunpack.c.h.b16 %v603
        %v2548 = vunpack.c.l.b16 %v604
        %v2549 = vunpack.c.h.b16 %v604
        %v2550 = vunpack.c.l.b16 %v605
        %v2551 = vunpack.c.h.b16 %v605
        %v2552 = vunpack.c.l.b16 %v606
        %v2553 = vunpack.c.h.b16 %v606
        %v2554 = vunpack.c.l.b16 %v607
        %v2555 = vunpack.c.h.b16 %v607
        %v2556 = vunpack.c.l.b16 %v608
        %v2557 = vunpack.c.h.b16 %v608
        %v2558 = vunpack.c.l.b16 %v609
        %v2559 = vunpack.c.h.b16 %v609
        %v2560 = vunpack.c.l.b16 %v610
        %v2561 = vunpack.c.h.b16 %v610
        %v2562 = vunpack.c.l.b16 %v611
        %v2563 = vunpack.c.h.b16 %v611
        %v2564 = vunpack.c.l.b16 %v612
        %v2565 = vunpack.c.h.b16 %v612
        %v2566 = vunpack.c.l.b16 %v613
        %v2567 = vunpack.c.h.b16 %v613
        %v2568 = vunpack.c.l.b16 %v614
        %v2569 = vunpack.c.h.b16 %v614
        %v2570 = vunpack.c.l.b16 %v615
        %v2571 = vunpack.c.h.b16 %v615
        %v2572 = vunpack.c.l.b16 %v616
        %v2573 = vunpack.c.h.b16 %v616
        %v2574 = vunpack.c.l.b16 %v617
        %v2575 = vunpack.c.h.b16 %v617
        %v2576 = vunpack.c.l.b16 %v618
        %v2577 = vunpack.c.h.b16 %v618
        %v2578 = vunpack.c.l.b16 %v619
        %v2579 = vunpack.c.h.b16 %v619
        %v2580 = vunpack.c.l.b16 %v620
        %v2581 = vunpack.c.h.b16 %v620
        %v2582 = vunpack.c.l.b16 %v621
        %v2583 = vunpack.c.h.b16 %v621
        %v2584 = vunpack.c.l.b16 %v622
        %v2585 = vunpack.c.h.b16 %v622
        %v2586 = vunpack.c.l.b16 %v623
        %v2587 = vunpack.c.h.b16 %v623
        %v2588 = vunpack.c.l.b16 %v624
        %v2589 = vunpack.c.h.b16 %v624
        %v2590 = vunpack.c.l.b16 %v625
        %v2591 = vunpack.c.h.b16 %v625
        %v2592 = vunpack.c.l.b16 %v626
        %v2593 = vunpack.c.h.b16 %v626
        %v2594 = vunpack.c.l.b16 %v627
        %v2595 = vunpack.c.h.b16 %v627
        %v2596 = vunpack.c.l.b16 %v628
        %v2597 = vunpack.c.h.b16 %v628
        %v2598 = vunpack.c.l.b16 %v629
        %v2599 = vunpack.c.h.b16 %v629
        %v2600 = vunpack.c.l.b16 %v630
        %v2601 = vunpack.c.h.b16 %v630
        %v2602 = vunpack.c.l.b16 %v631
        %v2603 = vunpack.c.h.b16 %v631
        %v2604 = vunpack.c.l.b16 %v632
        %v2605 = vunpack.c.h.b16 %v632
        %v2606 = vunpack.c.l.b16 %v633
        %v2607 = vunpack.c.h.b16 %v633
        %v2608 = vunpack.c.l.b16 %v634
        %v2609 = vunpack.c.h.b16 %v634
        %v2610 = vunpack.c.l.b16 %v635
        %v2611 = vunpack.c.h.b16 %v635
        %v2612 = vunpack.c.l.b16 %v636
        %v2613 = vunpack.c.h.b16 %v636
        %v2614 = vunpack.c.l.b16 %v637
        %v2615 = vunpack.c.h.b16 %v637
        %v2616 = vunpack.c.l.b16 %v638
        %v2617 = vunpack.c.h.b16 %v638
        %v2618 = vunpack.c.l.b16 %v639
        %v2619 = vunpack.c.h.b16 %v639
        %v2620 = vunpack.c.l.b16 %v640
        %v2621 = vunpack.c.h.b16 %v640
        %v2622 = vunpack.c.l.b16 %v641
        %v2623 = vunpack.c.h.b16 %v641
        %v2624 = vunpack.c.l.b16 %v642
        %v2625 = vunpack.c.h.b16 %v642
        %v2626 = vunpack.c.l.b16 %v643
        %v2627 = vunpack.c.h.b16 %v643
        %v2628 = vunpack.c.l.b16 %v644
        %v2629 = vunpack.c.h.b16 %v644
        %v2630 = vunpack.c.l.b16 %v645
        %v2631 = vunpack.c.h.b16 %v645
        %v2632 = vunpack.c.l.b16 %v646
        %v2633 = vunpack.c.h.b16 %v646
        %v2634 = vunpack.c.l.b16 %v647
        %v2635 = vunpack.c.h.b16 %v647
        %v2636 = vunpack.c.l.b16 %v648
        %v2637 = vunpack.c.h.b16 %v648
        %v2638 = vunpack.c.l.b16 %v649
        %v2639 = vunpack.c.h.b16 %v649
        %v2640 = vunpack.c.l.b16 %v650
        %v2641 = vunpack.c.h.b16 %v650
        %v2642 = vunpack.c.l.b16 %v651
        %v2643 = vunpack.c.h.b16 %v651
        %v2644 = vunpack.c.l.b16 %v652
        %v2645 = vunpack.c.h.b16 %v652
        %v2646 = vunpack.c.l.b16 %v653
        %v2647 = vunpack.c.h.b16 %v653
        %v2648 = vunpack.c.l.b16 %v654
        %v2649 = vunpack.c.h.b16 %v654
        %v2650 = vunpack.c.l.b16 %v655
        %v2651 = vunpack.c.h.b16 %v655
        %v2652 = vunpack.c.l.b16 %v656
        %v2653 = vunpack.c.h.b16 %v656
        %v2654 = vunpack.c.l.b16 %v657
        %v2655 = vunpack.c.h.b16 %v657
        %v2656 = vunpack.c.l.b16 %v658
        %v2657 = vunpack.c.h.b16 %v658
        %v2658 = vunpack.c.l.b16 %v659
        %v2659 = vunpack.c.h.b16 %v659
        %v2660 = vunpack.c.l.b16 %v660
        %v2661 = vunpack.c.h.b16 %v660
        %v2662 = vunpack.c.l.b16 %v661
        %v2663 = vunpack.c.h.b16 %v661
        %v2664 = vunpack.c.l.b16 %v662
        %v2665 = vunpack.c.h.b16 %v662
        %v2666 = vunpack.c.l.b16 %v663
        %v2667 = vunpack.c.h.b16 %v663
        %v2668 = vunpack.c.l.b16 %v664
        %v2669 = vunpack.c.h.b16 %v664
        %v2670 = vunpack.c.l.b16 %v665
        %v2671 = vunpack.c.h.b16 %v665
        %v2672 = vunpack.c.l.b16 %v666
        %v2673 = vunpack.c.h.b16 %v666
        %v2674 = vunpack.c.l.b16 %v667
        %v2675 = vunpack.c.h.b16 %v667
        %v2676 = vunpack.c.l.b16 %v668
        %v2677 = vunpack.c.h.b16 %v668
        %v2678 = vunpack.c.l.b16 %v669
        %v2679 = vunpack.c.h.b16 %v669
        %v2680 = vunpack.c.l.b16 %v670
        %v2681 = vunpack.c.h.b16 %v670
        %v2682 = vunpack.c.l.b16 %v671
        %v2683 = vunpack.c.h.b16 %v671
        %v2684 = vunpack.c.l.b16 %v672
        %v2685 = vunpack.c.h.b16 %v672
        %v2686 = vunpack.c.l.b16 %v673
        %v2687 = vunpack.c.h.b16 %v673
        %v2688 = vunpack.c.l.b16 %v674
        %v2689 = vunpack.c.h.b16 %v674
        %v2690 = vunpack.c.l.b16 %v675
        %v2691 = vunpack.c.h.b16 %v675
        %v2692 = vunpack.c.l.b16 %v676
        %v2693 = vunpack.c.h.b16 %v676
        %v2694 = vunpack.c.l.b16 %v677
        %v2695 = vunpack.c.h.b16 %v677
        %v2696 = vunpack.c.l.b16 %v678
        %v2697 = vunpack.c.h.b16 %v678
        %v2698 = vunpack.c.l.b16 %v679
        %v2699 = vunpack.c.h.b16 %v679
        %v2700 = vunpack.c.l.b16 %v680
        %v2701 = vunpack.c.h.b16 %v680
        %v2702 = vunpack.c.l.b16 %v681
        %v2703 = vunpack.c.h.b16 %v681
        %v2704 = vunpack.c.l.b16 %v682
        %v2705 = vunpack.c.h.b16 %v682
        %v2706 = vunpack.c.l.b16 %v683
        %v2707 = vunpack.c.h.b16 %v683
        %v2708 = vunpack.c.l.b16 %v684
        %v2709 = vunpack.c.h.b16 %v684
        %v2710 = vunpack.c.l.b16 %v685
        %v2711 = vunpack.c.h.b16 %v685
        %v2712 = vunpack.c.l.b16 %v686
        %v2713 = vunpack.c.h.b16 %v686
        %v2714 = vunpack.c.l.b16 %v687
        %v2715 = vunpack.c.h.b16 %v687
        %v2716 = vunpack.c.l.b16 %v688
        %v2717 = vunpack.c.h.b16 %v688
        %v2718 = vunpack.c.l.b16 %v689
        %v2719 = vunpack.c.h.b16 %v689
        %v2720 = vunpack.c.l.b16 %v690
        %v2721 = vunpack.c.h.b16 %v690
        %v2722 = vunpack.c.l.b16 %v691
        %v2723 = vunpack.c.h.b16 %v691
        %v2724 = vunpack.c.l.b16 %v692
        %v2725 = vunpack.c.h.b16 %v692
        %v2726 = vunpack.c.l.b16 %v693
        %v2727 = vunpack.c.h.b16 %v693
        %v2728 = vunpack.c.l.b16 %v694
        %v2729 = vunpack.c.h.b16 %v694
        %v2730 = vunpack.c.l.b16 %v695
        %v2731 = vunpack.c.h.b16 %v695
        %v2732 = vunpack.c.l.b16 %v696
        %v2733 = vunpack.c.h.b16 %v696
        %v2734 = vunpack.c.l.b16 %v697
        %v2735 = vunpack.c.h.b16 %v697
        %v2736 = vunpack.c.l.b16 %v698
        %v2737 = vunpack.c.h.b16 %v698
        %v2738 = vunpack.c.l.b16 %v699
        %v2739 = vunpack.c.h.b16 %v699
        %v2740 = vunpack.c.l.b16 %v700
        %v2741 = vunpack.c.h.b16 %v700
        %v2742 = vunpack.c.l.b16 %v701
        %v2743 = vunpack.c.h.b16 %v701
        %v2744 = vunpack.c.l.b16 %v702
        %v2745 = vunpack.c.h.b16 %v702
        %v2746 = vunpack.c.l.b16 %v703
        %v2747 = vunpack.c.h.b16 %v703
        %v2748 = vunpack.c.l.b16 %v704
        %v2749 = vunpack.c.h.b16 %v704
        %v2750 = vunpack.c.l.b16 %v705
        %v2751 = vunpack.c.h.b16 %v705
        %v2752 = vunpack.c.l.b16 %v706
        %v2753 = vunpack.c.h.b16 %v706
        %v2754 = vunpack.c.l.b16 %v707
        %v2755 = vunpack.c.h.b16 %v707
        %v2756 = vunpack.c.l.b16 %v708
        %v2757 = vunpack.c.h.b16 %v708
        %v2758 = vunpack.c.l.b16 %v709
        %v2759 = vunpack.c.h.b16 %v709
        %v2760 = vunpack.c.l.b16 %v710
        %v2761 = vunpack.c.h.b16 %v710
        %v2762 = vunpack.c.l.b16 %v711
        %v2763 = vunpack.c.h.b16 %v711
        %v2764 = vunpack.c.l.b16 %v712
        %v2765 = vunpack.c.h.b16 %v712
        %v2766 = vunpack.c.l.b16 %v713
        %v2767 = vunpack.c.h.b16 %v713
        %v2768 = vunpack.c.l.b16 %v714
        %v2769 = vunpack.c.h.b16 %v714
        %v2770 = vunpack.c.l.b16 %v715
        %v2771 = vunpack.c.h.b16 %v715
        %v2772 = vunpack.c.l.b16 %v716
        %v2773 = vunpack.c.h.b16 %v716
        %v2774 = vunpack.c.l.b16 %v717
        %v2775 = vunpack.c.h.b16 %v717
        %v2776 = vunpack.c.l.b16 %v718
        %v2777 = vunpack.c.h.b16 %v718
        %v2778 = vunpack.c.l.b16 %v719
        %v2779 = vunpack.c.h.b16 %v719
        %v2780 = vunpack.c.l.b16 %v720
        %v2781 = vunpack.c.h.b16 %v720
        %v2782 = vunpack.c.l.b16 %v721
        %v2783 = vunpack.c.h.b16 %v721
        %v2784 = vunpack.c.l.b16 %v722
        %v2785 = vunpack.c.h.b16 %v722
        %v2786 = vunpack.c.l.b16 %v723
        %v2787 = vunpack.c.h.b16 %v723
        %v2788 = vunpack.c.l.b16 %v724
        %v2789 = vunpack.c.h.b16 %v724
        %v2790 = vunpack.c.l.b16 %v725
        %v2791 = vunpack.c.h.b16 %v725
        %v2792 = vunpack.c.l.b16 %v726
        %v2793 = vunpack.c.h.b16 %v726
        %v2794 = vunpack.c.l.b16 %v727
        %v2795 = vunpack.c.h.b16 %v727
        %v2796 = vunpack.c.l.b16 %v728
        %v2797 = vunpack.c.h.b16 %v728
        %v2798 = vunpack.c.l.b16 %v729
        %v2799 = vunpack.c.h.b16 %v729
        %v2800 = vunpack.c.l.b16 %v730
        %v2801 = vunpack.c.h.b16 %v730
        %v2802 = vunpack.c.l.b16 %v731
        %v2803 = vunpack.c.h.b16 %v731
        %v2804 = vunpack.c.l.b16 %v732
        %v2805 = vunpack.c.h.b16 %v732
        %v2806 = vunpack.c.l.b16 %v733
        %v2807 = vunpack.c.h.b16 %v733
        %v2808 = vunpack.c.l.b16 %v734
        %v2809 = vunpack.c.h.b16 %v734
        %v2810 = vunpack.c.l.b16 %v735
        %v2811 = vunpack.c.h.b16 %v735
        %v2812 = vunpack.c.l.b16 %v736
        %v2813 = vunpack.c.h.b16 %v736
        %v2814 = vunpack.c.l.b16 %v737
        %v2815 = vunpack.c.h.b16 %v737
        %v2816 = vunpack.c.l.b16 %v738
        %v2817 = vunpack.c.h.b16 %v738
        %v2818 = vunpack.c.l.b16 %v739
        %v2819 = vunpack.c.h.b16 %v739
        %v2820 = vunpack.c.l.b16 %v740
        %v2821 = vunpack.c.h.b16 %v740
        %v2822 = vunpack.c.l.b16 %v741
        %v2823 = vunpack.c.h.b16 %v741
        %v2824 = vunpack.c.l.b16 %v742
        %v2825 = vunpack.c.h.b16 %v742
        %v2826 = vunpack.c.l.b16 %v743
        %v2827 = vunpack.c.h.b16 %v743
        %v2828 = vunpack.c.l.b16 %v744
        %v2829 = vunpack.c.h.b16 %v744
        %v2830 = vunpack.c.l.b16 %v745
        %v2831 = vunpack.c.h.b16 %v745
        %v2832 = vunpack.c.l.b16 %v746
        %v2833 = vunpack.c.h.b16 %v746
        %v2834 = vunpack.c.l.b16 %v747
        %v2835 = vunpack.c.h.b16 %v747
        %v2836 = vunpack.c.l.b16 %v748
        %v2837 = vunpack.c.h.b16 %v748
        %v2838 = vunpack.c.l.b16 %v749
        %v2839 = vunpack.c.h.b16 %v749
        %v2840 = vunpack.c.l.b16 %v750
        %v2841 = vunpack.c.h.b16 %v750
        %v2842 = vunpack.c.l.b16 %v751
        %v2843 = vunpack.c.h.b16 %v751
        %v2844 = vunpack.c.l.b16 %v752
        %v2845 = vunpack.c.h.b16 %v752
        %v2846 = vunpack.c.l.b16 %v753
        %v2847 = vunpack.c.h.b16 %v753
        %v2848 = vunpack.c.l.b16 %v754
        %v2849 = vunpack.c.h.b16 %v754
        %v2850 = vunpack.c.l.b16 %v755
        %v2851 = vunpack.c.h.b16 %v755
        %v2852 = vunpack.c.l.b16 %v756
        %v2853 = vunpack.c.h.b16 %v756
        %v2854 = vunpack.c.l.b16 %v757
        %v2855 = vunpack.c.h.b16 %v757
        %v2856 = vunpack.c.l.b16 %v758
        %v2857 = vunpack.c.h.b16 %v758
        %v2858 = vunpack.c.l.b16 %v759
        %v2859 = vunpack.c.h.b16 %v759
        %v2860 = vunpack.c.l.b16 %v760
        %v2861 = vunpack.c.h.b16 %v760
        %v2862 = vunpack.c.l.b16 %v761
        %v2863 = vunpack.c.h.b16 %v761
        %v2864 = vunpack.c.l.b16 %v762
        %v2865 = vunpack.c.h.b16 %v762
        %v2866 = vunpack.c.l.b16 %v763
        %v2867 = vunpack.c.h.b16 %v763
        %v2868 = vunpack.c.l.b16 %v764
        %v2869 = vunpack.c.h.b16 %v764
        %v2870 = vunpack.c.l.b16 %v765
        %v2871 = vunpack.c.h.b16 %v765
        %v2872 = vunpack.c.l.b16 %v766
        %v2873 = vunpack.c.h.b16 %v766
        %v2874 = vunpack.c.l.b16 %v767
        %v2875 = vunpack.c.h.b16 %v767
        %v2876 = vunpack.c.l.b16 %v768
        %v2877 = vunpack.c.h.b16 %v768
        %v2878 = vunpack.c.l.b16 %v769
        %v2879 = vunpack.c.h.b16 %v769
        %v2880 = vunpack.c.l.b16 %v770
        %v2881 = vunpack.c.h.b16 %v770
        %v2882 = vunpack.c.l.b16 %v771
        %v2883 = vunpack.c.h.b16 %v771
        %v2884 = vunpack.c.l.b16 %v772
        %v2885 = vunpack.c.h.b16 %v772
        %v2886 = vunpack.c.l.b16 %v773
        %v2887 = vunpack.c.h.b16 %v773
        %v2888 = vunpack.c.l.b16 %v774
        %v2889 = vunpack.c.h.b16 %v774
        %v2890 = vunpack.c.l.b16 %v775
        %v2891 = vunpack.c.h.b16 %v775
        %v2892 = vunpack.c.l.b16 %v776
        %v2893 = vunpack.c.h.b16 %v776
        %v2894 = vunpack.c.l.b16 %v777
        %v2895 = vunpack.c.h.b16 %v777
        %v2896 = vunpack.c.l.b16 %v778
        %v2897 = vunpack.c.h.b16 %v778
        %v2898 = vunpack.c.l.b16 %v779
        %v2899 = vunpack.c.h.b16 %v779
        %v2900 = vunpack.c.l.b16 %v780
        %v2901 = vunpack.c.h.b16 %v780
        %v2902 = vunpack.c.l.b16 %v781
        %v2903 = vunpack.c.h.b16 %v781
        %v2904 = vunpack.c.l.b16 %v782
        %v2905 = vunpack.c.h.b16 %v782
        %v2906 = vunpack.c.l.b16 %v783
        %v2907 = vunpack.c.h.b16 %v783
        %v2908 = vunpack.c.l.b16 %v784
        %v2909 = vunpack.c.h.b16 %v784
        %v2910 = vunpack.c.l.b16 %v785
        %v2911 = vunpack.c.h.b16 %v785
        %v2912 = vunpack.c.l.b16 %v786
        %v2913 = vunpack.c.h.b16 %v786
        %v2914 = vunpack.c.l.b16 %v787
        %v2915 = vunpack.c.h.b16 %v787
        %v2916 = vunpack.c.l.b16 %v788
        %v2917 = vunpack.c.h.b16 %v788
        %v2918 = vunpack.c.l.b16 %v789
        %v2919 = vunpack.c.h.b16 %v789
        %v2920 = vunpack.c.l.b16 %v790
        %v2921 = vunpack.c.h.b16 %v790
        %v2922 = vunpack.c.l.b16 %v791
        %v2923 = vunpack.c.h.b16 %v791
        %v2924 = vunpack.c.l.b16 %v792
        %v2925 = vunpack.c.h.b16 %v792
        %v2926 = vunpack.c.l.b16 %v793
        %v2927 = vunpack.c.h.b16 %v793
        %v2928 = vunpack.c.l.b16 %v794
        %v2929 = vunpack.c.h.b16 %v794
        %v2930 = vunpack.c.l.b16 %v795
        %v2931 = vunpack.c.h.b16 %v795
        %v2932 = vunpack.c.l.b16 %v796
        %v2933 = vunpack.c.h.b16 %v796
        %v2934 = vunpack.c.l.b16 %v797
        %v2935 = vunpack.c.h.b16 %v797
        %v2936 = vunpack.c.l.b16 %v798
        %v2937 = vunpack.c.h.b16 %v798
        %v2938 = vunpack.c.l.b16 %v799
        %v2939 = vunpack.c.h.b16 %v799
        %v2940 = vunpack.c.l.b16 %v800
        %v2941 = vunpack.c.h.b16 %v800
        %v2942 = vunpack.c.l.b16 %v801
        %v2943 = vunpack.c.h.b16 %v801
        %v2944 = vunpack.c.l.b16 %v802
        %v2945 = vunpack.c.h.b16 %v802
        %v2946 = vunpack.c.l.b16 %v803
        %v2947 = vunpack.c.h.b16 %v803
        %v2948 = vunpack.c.l.b16 %v804
        %v2949 = vunpack.c.h.b16 %v804
        %v2950 = vunpack.c.l.b16 %v805
        %v2951 = vunpack.c.h.b16 %v805
        %v2952 = vunpack.c.l.b16 %v806
        %v2953 = vunpack.c.h.b16 %v806
        %v2954 = vunpack.c.l.b16 %v807
        %v2955 = vunpack.c.h.b16 %v807
        %v2956 = vunpack.c.l.b16 %v808
        %v2957 = vunpack.c.h.b16 %v808
        %v2958 = vunpack.c.l.b16 %v809
        %v2959 = vunpack.c.h.b16 %v809
        %v2960 = vunpack.c.l.b16 %v810
        %v2961 = vunpack.c.h.b16 %v810
        %v2962 = vunpack.c.l.b16 %v811
        %v2963 = vunpack.c.h.b16 %v811
        %v2964 = vunpack.c.l.b16 %v812
        %v2965 = vunpack.c.h.b16 %v812
        %v2966 = vunpack.c.l.b16 %v813
        %v2967 = vunpack.c.h.b16 %v813
        %v2968 = vunpack.c.l.b16 %v814
        %v2969 = vunpack.c.h.b16 %v814
        %v2970 = vunpack.c.l.b16 %v815
        %v2971 = vunpack.c.h.b16 %v815
        %v2972 = vunpack.c.l.b16 %v816
        %v2973 = vunpack.c.h.b16 %v816
        %v2974 = vunpack.c.l.b16 %v817
        %v2975 = vunpack.c.h.b16 %v817
        %v2976 = vunpack.c.l.b16 %v818
        %v2977 = vunpack.c.h.b16 %v818
        %v2978 = vunpack.c.l.b16 %v819
        %v2979 = vunpack.c.h.b16 %v819
        %v2980 = vunpack.c.l.b16 %v820
        %v2981 = vunpack.c.h.b16 %v820
        %v2982 = vunpack.c.l.b16 %v821
        %v2983 = vunpack.c.h.b16 %v821
        %v2984 = vunpack.c.l.b16 %v822
        %v2985 = vunpack.c.h.b16 %v822
        %v2986 = vunpack.c.l.b16 %v823
        %v2987 = vunpack.c.h.b16 %v823
        %v2988 = vunpack.c.l.b16 %v824
        %v2989 = vunpack.c.h.b16 %v824
        %v2990 = vunpack.c.l.b16 %v825
        %v2991 = vunpack.c.h.b16 %v825
        %v2992 = vunpack.c.l.b16 %v826
        %v2993 = vunpack.c.h.b16 %v826
        %v2994 = vunpack.c.l.b16 %v827
        %v2995 = vunpack.c.h.b16 %v827
        %v2996 = vunpack.c.l.b16 %v828
        %v2997 = vunpack.c.h.b16 %v828
        %v2998 = vunpack.c.l.b16 %v829
        %v2999 = vunpack.c.h.b16 %v829
        %v3000 = vunpack.c.l.b16 %v830
        %v3001 = vunpack.c.h.b16 %v830
        %v3002 = vunpack.c.l.b16 %v831
        %v3003 = vunpack.c.h.b16 %v831
        %v3004 = vunpack.c.l.b16 %v832
        %v3005 = vunpack.c.h.b16 %v832
        %v3006 = vunpack.c.l.b16 %v833
        %v3007 = vunpack.c.h.b16 %v833
        %v3008 = vunpack.c.l.b16 %v834
        %v3009 = vunpack.c.h.b16 %v834
        %v3010 = vunpack.c.l.b16 %v835
        %v3011 = vunpack.c.h.b16 %v835
        %v3012 = vunpack.c.l.b16 %v836
        %v3013 = vunpack.c.h.b16 %v836
        %v3014 = vunpack.c.l.b16 %v837
        %v3015 = vunpack.c.h.b16 %v837
        %v3016 = vunpack.c.l.b16 %v838
        %v3017 = vunpack.c.h.b16 %v838
        %v3018 = vunpack.c.l.b16 %v839
        %v3019 = vunpack.c.h.b16 %v839
        %v3020 = vunpack.c.l.b16 %v840
        %v3021 = vunpack.c.h.b16 %v840
        %v3022 = vunpack.c.l.b16 %v841
        %v3023 = vunpack.c.h.b16 %v841
        %v3024 = vunpack.c.l.b16 %v842
        %v3025 = vunpack.c.h.b16 %v842
        %v3026 = vunpack.c.l.b16 %v843
        %v3027 = vunpack.c.h.b16 %v843
        %v3028 = vunpack.c.l.b16 %v844
        %v3029 = vunpack.c.h.b16 %v844
        %v3030 = vunpack.c.l.b16 %v845
        %v3031 = vunpack.c.h.b16 %v845
        %v3032 = vunpack.c.l.b16 %v846
        %v3033 = vunpack.c.h.b16 %v846
        %v3034 = vunpack.c.l.b16 %v847
        %v3035 = vunpack.c.h.b16 %v847
        %v3036 = vunpack.c.l.b16 %v848
        %v3037 = vunpack.c.h.b16 %v848
        %v3038 = vunpack.c.l.b16 %v849
        %v3039 = vunpack.c.h.b16 %v849
        %v3040 = vunpack.c.l.b16 %v850
        %v3041 = vunpack.c.h.b16 %v850
        %v3042 = vunpack.c.l.b16 %v851
        %v3043 = vunpack.c.h.b16 %v851
        %v3044 = vunpack.c.l.b16 %v852
        %v3045 = vunpack.c.h.b16 %v852
        %v3046 = vunpack.c.l.b16 %v853
        %v3047 = vunpack.c.h.b16 %v853
        %v3048 = vunpack.c.l.b16 %v854
        %v3049 = vunpack.c.h.b16 %v854
        %v3050 = vunpack.c.l.b16 %v855
        %v3051 = vunpack.c.h.b16 %v855
        %v3052 = vunpack.c.l.b16 %v856
        %v3053 = vunpack.c.h.b16 %v856
        %v3054 = vunpack.c.l.b16 %v857
        %v3055 = vunpack.c.h.b16 %v857
        %v3056 = vunpack.c.l.b16 %v858
        %v3057 = vunpack.c.h.b16 %v858
        %v3058 = vunpack.c.l.b16 %v859
        %v3059 = vunpack.c.h.b16 %v859
        %v3060 = vunpack.c.l.b16 %v860
        %v3061 = vunpack.c.h.b16 %v860
        %v3062 = vunpack.c.l.b16 %v861
        %v3063 = vunpack.c.h.b16 %v861
        %v3064 = vunpack.c.l.b16 %v862
        %v3065 = vunpack.c.h.b16 %v862
        %v3066 = vunpack.c.l.b16 %v863
        %v3067 = vunpack.c.h.b16 %v863
        %v3068 = vunpack.c.l.b16 %v864
        %v3069 = vunpack.c.h.b16 %v864
        %v3070 = vunpack.c.l.b16 %v865
        %v3071 = vunpack.c.h.b16 %v865
        %v3072 = vunpack.c.l.b16 %v866
        %v3073 = vunpack.c.h.b16 %v866
        %v3074 = vunpack.c.l.b16 %v867
        %v3075 = vunpack.c.h.b16 %v867
        %v3076 = vunpack.c.l.b16 %v868
        %v3077 = vunpack.c.h.b16 %v868
        %v3078 = vunpack.c.l.b16 %v869
        %v3079 = vunpack.c.h.b16 %v869
        %v3080 = vunpack.c.l.b16 %v870
        %v3081 = vunpack.c.h.b16 %v870
        %v3082 = vunpack.c.l.b16 %v871
        %v3083 = vunpack.c.h.b16 %v871
        %v3084 = vunpack.c.l.b16 %v872
        %v3085 = vunpack.c.h.b16 %v872
        %v3086 = vunpack.c.l.b16 %v873
        %v3087 = vunpack.c.h.b16 %v873
        %v3088 = vunpack.c.l.b16 %v874
        %v3089 = vunpack.c.h.b16 %v874
        %v3090 = vunpack.c.l.b16 %v875
        %v3091 = vunpack.c.h.b16 %v875
        %v3092 = vunpack.c.l.b16 %v876
        %v3093 = vunpack.c.h.b16 %v876
        %v3094 = vunpack.c.l.b16 %v877
        %v3095 = vunpack.c.h.b16 %v877
        %v3096 = vunpack.c.l.b16 %v878
        %v3097 = vunpack.c.h.b16 %v878
        %v3098 = vunpack.c.l.b16 %v879
        %v3099 = vunpack.c.h.b16 %v879
        %v3100 = vunpack.c.l.b16 %v880
        %v3101 = vunpack.c.h.b16 %v880
        %v3102 = vunpack.c.l.b16 %v881
        %v3103 = vunpack.c.h.b16 %v881
        %v3104 = vunpack.c.l.b16 %v882
        %v3105 = vunpack.c.h.b16 %v882
        %v3106 = vunpack.c.l.b16 %v883
        %v3107 = vunpack.c.h.b16 %v883
        %v3108 = vunpack.c.l.b16 %v884
        %v3109 = vunpack.c.h.b16 %v884
        %v3110 = vunpack.c.l.b16 %v885
        %v3111 = vunpack.c.h.b16 %v885
        %v3112 = vunpack.c.l.b16 %v886
        %v3113 = vunpack.c.h.b16 %v886
        %v3114 = vunpack.c.l.b16 %v887
        %v3115 = vunpack.c.h.b16 %v887
        %v3116 = vunpack.c.l.b16 %v888
        %v3117 = vunpack.c.h.b16 %v888
        %v3118 = vunpack.c.l.b16 %v889
        %v3119 = vunpack.c.h.b16 %v889
        %v3120 = vunpack.c.l.b16 %v890
        %v3121 = vunpack.c.h.b16 %v890
        %v3122 = vunpack.c.l.b16 %v891
        %v3123 = vunpack.c.h.b16 %v891
        %v3124 = vunpack.c.l.b16 %v892
        %v3125 = vunpack.c.h.b16 %v892
        %v3126 = vunpack.c.l.b16 %v893
        %v3127 = vunpack.c.h.b16 %v893
        %v3128 = vunpack.c.l.b16 %v894
        %v3129 = vunpack.c.h.b16 %v894
        %v3130 = vunpack.c.l.b16 %v895
        %v3131 = vunpack.c.h.b16 %v895
        %v3132 = vunpack.c.l.b16 %v896
        %v3133 = vunpack.c.h.b16 %v896
        %v3134 = vunpack.c.l.b16 %v897
        %v3135 = vunpack.c.h.b16 %v897
        %v3136 = vunpack.c.l.b16 %v898
        %v3137 = vunpack.c.h.b16 %v898
        %v3138 = vunpack.c.l.b16 %v899
        %v3139 = vunpack.c.h.b16 %v899
        %v3140 = vunpack.c.l.b16 %v900
        %v3141 = vunpack.c.h.b16 %v900
        %v3142 = vunpack.c.l.b16 %v901
        %v3143 = vunpack.c.h.b16 %v901
        %v3144 = vunpack.c.l.b16 %v902
        %v3145 = vunpack.c.h.b16 %v902
        %v3146 = vunpack.c.l.b16 %v903
        %v3147 = vunpack.c.h.b16 %v903
        %v3148 = vunpack.c.l.b16 %v904
        %v3149 = vunpack.c.h.b16 %v904
        %v3150 = vunpack.c.l.b16 %v905
        %v3151 = vunpack.c.h.b16 %v905
        %v3152 = vunpack.c.l.b16 %v906
        %v3153 = vunpack.c.h.b16 %v906
        %v3154 = vunpack.c.l.b16 %v907
        %v3155 = vunpack.c.h.b16 %v907
        %v3156 = vunpack.c.l.b16 %v908
        %v3157 = vunpack.c.h.b16 %v908
        %v3158 = vunpack.c.l.b16 %v909
        %v3159 = vunpack.c.h.b16 %v909
        %v3160 = vunpack.c.l.b16 %v910
        %v3161 = vunpack.c.h.b16 %v910
        %v3162 = vunpack.c.l.b16 %v911
        %v3163 = vunpack.c.h.b16 %v911
        %v3164 = vunpack.c.l.b16 %v912
        %v3165 = vunpack.c.h.b16 %v912
        %v3166 = vunpack.c.l.b16 %v913
        %v3167 = vunpack.c.h.b16 %v913
        %v3168 = vunpack.c.l.b16 %v914
        %v3169 = vunpack.c.h.b16 %v914
        %v3170 = vunpack.c.l.b16 %v915
        %v3171 = vunpack.c.h.b16 %v915
        %v3172 = vunpack.c.l.b16 %v916
        %v3173 = vunpack.c.h.b16 %v916
        %v3174 = vunpack.c.l.b16 %v917
        %v3175 = vunpack.c.h.b16 %v917
        %v3176 = vunpack.c.l.b16 %v918
        %v3177 = vunpack.c.h.b16 %v918
        %v3178 = vunpack.c.l.b16 %v919
        %v3179 = vunpack.c.h.b16 %v919
        %v3180 = vunpack.c.l.b16 %v920
        %v3181 = vunpack.c.h.b16 %v920
        %v3182 = vunpack.c.l.b16 %v921
        %v3183 = vunpack.c.h.b16 %v921
        %v3184 = vunpack.c.l.b16 %v922
        %v3185 = vunpack.c.h.b16 %v922
        %v3186 = vunpack.c.l.b16 %v923
        %v3187 = vunpack.c.h.b16 %v923
        %v3188 = vunpack.c.l.b16 %v924
        %v3189 = vunpack.c.h.b16 %v924
        %v3190 = vunpack.c.l.b16 %v925
        %v3191 = vunpack.c.h.b16 %v925
        %v3192 = vunpack.c.l.b16 %v926
        %v3193 = vunpack.c.h.b16 %v926
        %v3194 = vunpack.c.l.b16 %v927
        %v3195 = vunpack.c.h.b16 %v927
        %v3196 = vunpack.c.l.b16 %v928
        %v3197 = vunpack.c.h.b16 %v928
        %v3198 = vunpack.c.l.b16 %v929
        %v3199 = vunpack.c.h.b16 %v929
        %v3200 = vunpack.c.l.b16 %v930
        %v3201 = vunpack.c.h.b16 %v930
        %v3202 = vunpack.c.l.b16 %v931
        %v3203 = vunpack.c.h.b16 %v931
        %v3204 = vunpack.c.l.b16 %v932
        %v3205 = vunpack.c.h.b16 %v932
        %v3206 = vunpack.c.l.b16 %v933
        %v3207 = vunpack.c.h.b16 %v933
        %v3208 = vunpack.c.l.b16 %v934
        %v3209 = vunpack.c.h.b16 %v934
        %v3210 = vunpack.c.l.b16 %v935
        %v3211 = vunpack.c.h.b16 %v935
        %v3212 = vunpack.c.l.b16 %v936
        %v3213 = vunpack.c.h.b16 %v936
        %v3214 = vunpack.c.l.b16 %v937
        %v3215 = vunpack.c.h.b16 %v937
        %v3216 = vunpack.c.l.b16 %v938
        %v3217 = vunpack.c.h.b16 %v938
        %v3218 = vunpack.c.l.b16 %v939
        %v3219 = vunpack.c.h.b16 %v939
        %v3220 = vunpack.c.l.b16 %v940
        %v3221 = vunpack.c.h.b16 %v940
        %v3222 = vunpack.c.l.b16 %v941
        %v3223 = vunpack.c.h.b16 %v941
        %v3224 = vunpack.c.l.b16 %v942
        %v3225 = vunpack.c.h.b16 %v942
        %v3226 = vunpack.c.l.b16 %v943
        %v3227 = vunpack.c.h.b16 %v943
        %v3228 = vunpack.c.l.b16 %v944
        %v3229 = vunpack.c.h.b16 %v944
        %v3230 = vunpack.c.l.b16 %v945
        %v3231 = vunpack.c.h.b16 %v945
        %v3232 = vunpack.c.l.b16 %v946
        %v3233 = vunpack.c.h.b16 %v946
        %v3234 = vunpack.c.l.b16 %v947
        %v3235 = vunpack.c.h.b16 %v947
        %v3236 = vunpack.c.l.b16 %v948
        %v3237 = vunpack.c.h.b16 %v948
        %v3238 = vunpack.c.l.b16 %v949
        %v3239 = vunpack.c.h.b16 %v949
        %v3240 = vunpack.c.l.b16 %v950
        %v3241 = vunpack.c.h.b16 %v950
        %v3242 = vunpack.c.l.b16 %v951
        %v3243 = vunpack.c.h.b16 %v951
        %v3244 = vunpack.c.l.b16 %v952
        %v3245 = vunpack.c.h.b16 %v952
        %v3246 = vunpack.c.l.b16 %v953
        %v3247 = vunpack.c.h.b16 %v953
        %v3248 = vunpack.c.l.b16 %v954
        %v3249 = vunpack.c.h.b16 %v954
        %v3250 = vunpack.c.l.b16 %v955
        %v3251 = vunpack.c.h.b16 %v955
        %v3252 = vunpack.c.l.b16 %v956
        %v3253 = vunpack.c.h.b16 %v956
        %v3254 = vunpack.c.l.b16 %v957
        %v3255 = vunpack.c.h.b16 %v957
        %v3256 = vunpack.c.l.b16 %v958
        %v3257 = vunpack.c.h.b16 %v958
        %v3258 = vunpack.c.l.b16 %v959
        %v3259 = vunpack.c.h.b16 %v959
        %v3260 = vunpack.c.l.b16 %v960
        %v3261 = vunpack.c.h.b16 %v960
        %v3262 = vunpack.c.l.b16 %v961
        %v3263 = vunpack.c.h.b16 %v961
        %v3264 = vunpack.c.l.b16 %v962
        %v3265 = vunpack.c.h.b16 %v962
        %v3266 = vunpack.c.l.b16 %v963
        %v3267 = vunpack.c.h.b16 %v963
        %v3268 = vunpack.c.l.b16 %v964
        %v3269 = vunpack.c.h.b16 %v964
        %v3270 = vunpack.c.l.b16 %v965
        %v3271 = vunpack.c.h.b16 %v965
        %v3272 = vunpack.c.l.b16 %v966
        %v3273 = vunpack.c.h.b16 %v966
        %v3274 = vunpack.c.l.b16 %v967
        %v3275 = vunpack.c.h.b16 %v967
        %v3276 = vunpack.c.l.b16 %v968
        %v3277 = vunpack.c.h.b16 %v968
        %v3278 = vunpack.c.l.b16 %v969
        %v3279 = vunpack.c.h.b16 %v969
        %v3280 = vunpack.c.l.b16 %v970
        %v3281 = vunpack.c.h.b16 %v970
        %v3282 = vunpack.c.l.b16 %v971
        %v3283 = vunpack.c.h.b16 %v971
        %v3284 = vunpack.c.l.b16 %v972
        %v3285 = vunpack.c.h.b16 %v972
        %v3286 = vunpack.c.l.b16 %v973
        %v3287 = vunpack.c.h.b16 %v973
        %v3288 = vunpack.c.l.b16 %v974
        %v3289 = vunpack.c.h.b16 %v974
        %v3290 = vunpack.c.l.b16 %v975
        %v3291 = vunpack.c.h.b16 %v975
        %v3292 = vunpack.c.l.b16 %v976
        %v3293 = vunpack.c.h.b16 %v976
        %v3294 = vunpack.c.l.b16 %v977
        %v3295 = vunpack.c.h.b16 %v977
        %v3296 = vunpack.c.l.b16 %v978
        %v3297 = vunpack.c.h.b16 %v978
        %v3298 = vunpack.c.l.b16 %v979
        %v3299 = vunpack.c.h.b16 %v979
        %v3300 = vunpack.c.l.b16 %v980
        %v3301 = vunpack.c.h.b16 %v980
        %v3302 = vunpack.c.l.b16 %v981
        %v3303 = vunpack.c.h.b16 %v981
        %v3304 = vunpack.c.l.b16 %v982
        %v3305 = vunpack.c.h.b16 %v982
        %v3306 = vunpack.c.l.b16 %v983
        %v3307 = vunpack.c.h.b16 %v983
        %v3308 = vunpack.c.l.b16 %v984
        %v3309 = vunpack.c.h.b16 %v984
        %v3310 = vunpack.c.l.b16 %v985
        %v3311 = vunpack.c.h.b16 %v985
        %v3312 = vunpack.c.l.b16 %v986
        %v3313 = vunpack.c.h.b16 %v986
        %v3314 = vunpack.c.l.b16 %v987
        %v3315 = vunpack.c.h.b16 %v987
        %v3316 = vunpack.c.l.b16 %v988
        %v3317 = vunpack.c.h.b16 %v988
        %v3318 = vunpack.c.l.b16 %v989
        %v3319 = vunpack.c.h.b16 %v989
        %v3320 = vunpack.c.l.b16 %v990
        %v3321 = vunpack.c.h.b16 %v990
        %v3322 = vunpack.c.l.b16 %v991
        %v3323 = vunpack.c.h.b16 %v991
        %v3324 = vunpack.c.l.b16 %v992
        %v3325 = vunpack.c.h.b16 %v992
        %v3326 = vunpack.c.l.b16 %v993
        %v3327 = vunpack.c.h.b16 %v993
        %v3328 = vunpack.c.l.b16 %v994
        %v3329 = vunpack.c.h.b16 %v994
        %v3330 = vunpack.c.l.b16 %v995
        %v3331 = vunpack.c.h.b16 %v995
        %v3332 = vunpack.c.l.b16 %v996
        %v3333 = vunpack.c.h.b16 %v996
        %v3334 = vunpack.c.l.b16 %v997
        %v3335 = vunpack.c.h.b16 %v997
        %v3336 = vunpack.c.l.b16 %v998
        %v3337 = vunpack.c.h.b16 %v998
        %v3338 = vunpack.c.l.b16 %v999
        %v3339 = vunpack.c.h.b16 %v999
        %v3340 = vunpack.c.l.b16 %v1000
        %v3341 = vunpack.c.h.b16 %v1000
        %v3342 = vunpack.c.l.b16 %v1001
        %v3343 = vunpack.c.h.b16 %v1001
        %v3344 = vunpack.c.l.b16 %v1002
        %v3345 = vunpack.c.h.b16 %v1002
        %v3346 = vunpack.c.l.b16 %v1003
        %v3347 = vunpack.c.h.b16 %v1003
        %v3348 = vunpack.c.l.b16 %v1004
        %v3349 = vunpack.c.h.b16 %v1004
        %v3350 = vunpack.c.l.b16 %v1005
        %v3351 = vunpack.c.h.b16 %v1005
        %v3352 = vunpack.c.l.b16 %v1006
        %v3353 = vunpack.c.h.b16 %v1006
        %v3354 = vunpack.c.l.b16 %v1007
        %v3355 = vunpack.c.h.b16 %v1007
        %v3356 = vunpack.c.l.b16 %v1008
        %v3357 = vunpack.c.h.b16 %v1008
        %v3358 = vunpack.c.l.b16 %v1009
        %v3359 = vunpack.c.h.b16 %v1009
        %v3360 = vunpack.c.l.b16 %v1010
        %v3361 = vunpack.c.h.b16 %v1010
        %v3362 = vunpack.c.l.b16 %v1011
        %v3363 = vunpack.c.h.b16 %v1011
        %v3364 = vunpack.c.l.b16 %v1012
        %v3365 = vunpack.c.h.b16 %v1012
        %v3366 = vunpack.c.l.b16 %v1013
        %v3367 = vunpack.c.h.b16 %v1013
        %v3368 = vunpack.c.l.b16 %v1014
        %v3369 = vunpack.c.h.b16 %v1014
        %v3370 = vunpack.c.l.b16 %v1015
        %v3371 = vunpack.c.h.b16 %v1015
        %v3372 = vunpack.c.l.b16 %v1016
        %v3373 = vunpack.c.h.b16 %v1016
        %v3374 = vunpack.c.l.b16 %v1017
        %v3375 = vunpack.c.h.b16 %v1017
        %v3376 = vunpack.c.l.b16 %v1018
        %v3377 = vunpack.c.h.b16 %v1018
        %v3378 = vunpack.c.l.b16 %v1019
        %v3379 = vunpack.c.h.b16 %v1019
        %v3380 = vunpack.c.l.b16 %v1020
        %v3381 = vunpack.c.h.b16 %v1020
        %v3382 = vunpack.c.l.b16 %v1021
        %v3383 = vunpack.c.h.b16 %v1021
        %v3384 = vunpack.c.l.b16 %v1022
        %v3385 = vunpack.c.h.b16 %v1022
        %v3386 = vunpack.c.l.b16 %v1023
        %v3387 = vunpack.c.h.b16 %v1023
        %v3388 = vunpack.c.l.b16 %v1024
        %v3389 = vunpack.c.h.b16 %v1024
        %v3390 = vunpack.c.l.b16 %v1025
        %v3391 = vunpack.c.h.b16 %v1025
        %v3392 = vunpack.c.l.b16 %v1026
        %v3393 = vunpack.c.h.b16 %v1026
        %v3394 = vunpack.c.l.b16 %v1027
        %v3395 = vunpack.c.h.b16 %v1027
        %v3396 = vunpack.c.l.b16 %v1028
        %v3397 = vunpack.c.h.b16 %v1028
        %v3398 = vunpack.c.l.b16 %v1029
        %v3399 = vunpack.c.h.b16 %v1029
        %v3400 = vunpack.c.l.b16 %v1030
        %v3401 = vunpack.c.h.b16 %v1030
        %v3402 = vunpack.c.l.b16 %v1031
        %v3403 = vunpack.c.h.b16 %v1031
        %v3404 = vunpack.c.l.b16 %v1032
        %v3405 = vunpack.c.h.b16 %v1032
        %v3406 = vunpack.c.l.b16 %v1033
        %v3407 = vunpack.c.h.b16 %v1033
        %v3408 = vunpack.c.l.b16 %v1034
        %v3409 = vunpack.c.h.b16 %v1034
        %v3410 = vunpack.c.l.b16 %v1035
        %v3411 = vunpack.c.h.b16 %v1035
        %v3412 = vunpack.c.l.b16 %v1036
        %v3413 = vunpack.c.h.b16 %v1036
        %v3414 = vunpack.c.l.b16 %v1037
        %v3415 = vunpack.c.h.b16 %v1037
        %v3416 = vunpack.c.l.b16 %v1038
        %v3417 = vunpack.c.h.b16 %v1038
        %v3418 = vunpack.c.l.b16 %v1039
        %v3419 = vunpack.c.h.b16 %v1039
        %v3420 = vunpack.c.l.b16 %v1040
        %v3421 = vunpack.c.h.b16 %v1040
        %v3422 = vunpack.c.l.b16 %v1041
        %v3423 = vunpack.c.h.b16 %v1041
        %v3424 = vunpack.c.l.b16 %v1042
        %v3425 = vunpack.c.h.b16 %v1042
        %v3426 = vunpack.c.l.b16 %v1043
        %v3427 = vunpack.c.h.b16 %v1043
        %v3428 = vunpack.c.l.b16 %v1044
        %v3429 = vunpack.c.h.b16 %v1044
        %v3430 = vunpack.c.l.b16 %v1045
        %v3431 = vunpack.c.h.b16 %v1045
        %v3432 = vunpack.c.l.b16 %v1046
        %v3433 = vunpack.c.h.b16 %v1046
        %v3434 = vunpack.c.l.b16 %v1047
        %v3435 = vunpack.c.h.b16 %v1047
        %v3436 = vunpack.c.l.b16 %v1048
        %v3437 = vunpack.c.h.b16 %v1048
        %v3438 = vunpack.c.l.b16 %v1049
        %v3439 = vunpack.c.h.b16 %v1049
        %v3440 = vunpack.c.l.b16 %v1050
        %v3441 = vunpack.c.h.b16 %v1050
        %v3442 = vunpack.c.l.b16 %v1051
        %v3443 = vunpack.c.h.b16 %v1051
        %v3444 = vunpack.c.l.b16 %v1052
        %v3445 = vunpack.c.h.b16 %v1052
        %v3446 = vunpack.c.l.b16 %v1053
        %v3447 = vunpack.c.h.b16 %v1053
        %v3448 = vunpack.c.l.b16 %v1054
        %v3449 = vunpack.c.h.b16 %v1054
        %v3450 = vunpack.c.l.b16 %v1055
        %v3451 = vunpack.c.h.b16 %v1055
        %v3452 = vunpack.c.l.b16 %v1056
        %v3453 = vunpack.c.h.b16 %v1056
        %v3454 = vunpack.c.l.b16 %v1057
        %v3455 = vunpack.c.h.b16 %v1057
        %v3456 = vunpack.c.l.b16 %v1058
        %v3457 = vunpack.c.h.b16 %v1058
        %v3458 = vunpack.c.l.b16 %v1059
        %v3459 = vunpack.c.h.b16 %v1059
        %v3460 = vunpack.c.l.b16 %v1060
        %v3461 = vunpack.c.h.b16 %v1060
        %v3462 = vunpack.c.l.b16 %v1061
        %v3463 = vunpack.c.h.b16 %v1061
        %v3464 = vunpack.c.l.b16 %v1062
        %v3465 = vunpack.c.h.b16 %v1062
        %v3466 = vunpack.c.l.b16 %v1063
        %v3467 = vunpack.c.h.b16 %v1063
        %v3468 = vunpack.c.l.b16 %v1064
        %v3469 = vunpack.c.h.b16 %v1064
        %v3470 = vunpack.c.l.b16 %v1065
        %v3471 = vunpack.c.h.b16 %v1065
        %v3472 = vunpack.c.l.b16 %v1066
        %v3473 = vunpack.c.h.b16 %v1066
        %v3474 = vunpack.c.l.b16 %v1067
        %v3475 = vunpack.c.h.b16 %v1067
        %v3476 = vunpack.c.l.b16 %v1068
        %v3477 = vunpack.c.h.b16 %v1068
        %v3478 = vunpack.c.l.b16 %v1069
        %v3479 = vunpack.c.h.b16 %v1069
        %v3480 = vunpack.c.l.b16 %v1070
        %v3481 = vunpack.c.h.b16 %v1070
        %v3482 = vunpack.c.l.b16 %v1071
        %v3483 = vunpack.c.h.b16 %v1071
        %v3484 = vunpack.c.l.b16 %v1072
        %v3485 = vunpack.c.h.b16 %v1072
        %v3486 = vunpack.c.l.b16 %v1073
        %v3487 = vunpack.c.h.b16 %v1073
        %v3488 = vunpack.c.l.b16 %v1074
        %v3489 = vunpack.c.h.b16 %v1074
        %v3490 = vunpack.c.l.b16 %v1075
        %v3491 = vunpack.c.h.b16 %v1075
        %v3492 = vunpack.c.l.b16 %v1076
        %v3493 = vunpack.c.h.b16 %v1076
        %v3494 = vunpack.c.l.b16 %v1077
        %v3495 = vunpack.c.h.b16 %v1077
        %v3496 = vunpack.c.l.b16 %v1078
        %v3497 = vunpack.c.h.b16 %v1078
        %v3498 = vunpack.c.l.b16 %v1079
        %v3499 = vunpack.c.h.b16 %v1079
        %v3500 = vunpack.c.l.b16 %v1080
        %v3501 = vunpack.c.h.b16 %v1080
        %v3502 = vunpack.c.l.b16 %v1081
        %v3503 = vunpack.c.h.b16 %v1081
        %v3504 = vunpack.c.l.b16 %v1082
        %v3505 = vunpack.c.h.b16 %v1082
        %v3506 = vunpack.c.l.b16 %v1083
        %v3507 = vunpack.c.h.b16 %v1083
        %v3508 = vunpack.c.l.b16 %v1084
        %v3509 = vunpack.c.h.b16 %v1084
        %v3510 = vunpack.c.l.b16 %v1085
        %v3511 = vunpack.c.h.b16 %v1085
        %v3512 = vunpack.c.l.b16 %v1086
        %v3513 = vunpack.c.h.b16 %v1086
        %v3514 = vunpack.c.l.b16 %v1087
        %v3515 = vunpack.c.h.b16 %v1087
        %v3516 = vunpack.c.l.b16 %v1088
        %v3517 = vunpack.c.h.b16 %v1088
        %v3518 = vunpack.c.l.b16 %v1089
        %v3519 = vunpack.c.h.b16 %v1089
        %v3520 = vunpack.c.l.b16 %v1090
        %v3521 = vunpack.c.h.b16 %v1090
        %v3522 = vunpack.c.l.b16 %v1091
        %v3523 = vunpack.c.h.b16 %v1091
        %v3524 = vunpack.c.l.b16 %v1092
        %v3525 = vunpack.c.h.b16 %v1092
        %v3526 = vunpack.c.l.b16 %v1093
        %v3527 = vunpack.c.h.b16 %v1093
        %v3528 = vunpack.c.l.b16 %v1094
        %v3529 = vunpack.c.h.b16 %v1094
        %v3530 = vunpack.c.l.b16 %v1095
        %v3531 = vunpack.c.h.b16 %v1095
        %v3532 = vunpack.c.l.b16 %v1096
        %v3533 = vunpack.c.h.b16 %v1096
        %v3534 = vunpack.c.l.b16 %v1097
        %v3535 = vunpack.c.h.b16 %v1097
        %v3536 = vunpack.c.l.b16 %v1098
        %v3537 = vunpack.c.h.b16 %v1098
        %v3538 = vunpack.c.l.b16 %v1099
        %v3539 = vunpack.c.h.b16 %v1099
        %v3540 = vunpack.c.l.b16 %v1100
        %v3541 = vunpack.c.h.b16 %v1100
        %v3542 = vunpack.c.l.b16 %v1101
        %v3543 = vunpack.c.h.b16 %v1101
        %v3544 = vunpack.c.l.b16 %v1102
        %v3545 = vunpack.c.h.b16 %v1102
        %v3546 = vunpack.c.l.b16 %v1103
        %v3547 = vunpack.c.h.b16 %v1103
        %v3548 = vunpack.c.l.b16 %v1104
        %v3549 = vunpack.c.h.b16 %v1104
        %v3550 = vunpack.c.l.b16 %v1105
        %v3551 = vunpack.c.h.b16 %v1105
        %v3552 = vunpack.c.l.b16 %v1106
        %v3553 = vunpack.c.h.b16 %v1106
        %v3554 = vunpack.c.l.b16 %v1107
        %v3555 = vunpack.c.h.b16 %v1107
        %v3556 = vunpack.c.l.b16 %v1108
        %v3557 = vunpack.c.h.b16 %v1108
        %v3558 = vunpack.c.l.b16 %v1109
        %v3559 = vunpack.c.h.b16 %v1109
        %v3560 = vunpack.c.l.b16 %v1110
        %v3561 = vunpack.c.h.b16 %v1110
        %v3562 = vunpack.c.l.b16 %v1111
        %v3563 = vunpack.c.h.b16 %v1111
        %v3564 = vunpack.c.l.b16 %v1112
        %v3565 = vunpack.c.h.b16 %v1112
        %v3566 = vunpack.c.l.b16 %v1113
        %v3567 = vunpack.c.h.b16 %v1113
        %v3568 = vunpack.c.l.b16 %v1114
        %v3569 = vunpack.c.h.b16 %v1114
        %v3570 = vunpack.c.l.b16 %v1115
        %v3571 = vunpack.c.h.b16 %v1115
        %v3572 = vunpack.c.l.b16 %v1116
        %v3573 = vunpack.c.h.b16 %v1116
        %v3574 = vunpack.c.l.b16 %v1117
        %v3575 = vunpack.c.h.b16 %v1117
        %v3576 = vunpack.c.l.b16 %v1118
        %v3577 = vunpack.c.h.b16 %v1118
        %v3578 = vunpack.c.l.b16 %v1119
        %v3579 = vunpack.c.h.b16 %v1119
        %v3580 = vunpack.c.l.b16 %v1120
        %v3581 = vunpack.c.h.b16 %v1120
        %v3582 = vunpack.c.l.b16 %v1121
        %v3583 = vunpack.c.h.b16 %v1121
        %v3584 = vunpack.c.l.b16 %v1122
        %v3585 = vunpack.c.h.b16 %v1122
        %v3586 = vunpack.c.l.b16 %v1123
        %v3587 = vunpack.c.h.b16 %v1123
        %v3588 = vunpack.c.l.b16 %v1124
        %v3589 = vunpack.c.h.b16 %v1124
        %v3590 = vunpack.c.l.b16 %v1125
        %v3591 = vunpack.c.h.b16 %v1125
        %v3592 = vunpack.c.l.b16 %v1126
        %v3593 = vunpack.c.h.b16 %v1126
        %v3594 = vunpack.c.l.b16 %v1127
        %v3595 = vunpack.c.h.b16 %v1127
        %v3596 = vunpack.c.l.b16 %v1128
        %v3597 = vunpack.c.h.b16 %v1128
        %v3598 = vunpack.c.l.b16 %v1129
        %v3599 = vunpack.c.h.b16 %v1129
        %v3600 = vunpack.c.l.b16 %v1130
        %v3601 = vunpack.c.h.b16 %v1130
        %v3602 = vunpack.c.l.b16 %v1131
        %v3603 = vunpack.c.h.b16 %v1131
        %v3604 = vunpack.c.l.b16 %v1132
        %v3605 = vunpack.c.h.b16 %v1132
        %v3606 = vunpack.c.l.b16 %v1133
        %v3607 = vunpack.c.h.b16 %v1133
        %v3608 = vunpack.c.l.b16 %v1134
        %v3609 = vunpack.c.h.b16 %v1134
        %v3610 = vunpack.c.l.b16 %v1135
        %v3611 = vunpack.c.h.b16 %v1135
        %v3612 = vunpack.c.l.b16 %v1136
        %v3613 = vunpack.c.h.b16 %v1136
        %v3614 = vunpack.c.l.b16 %v1137
        %v3615 = vunpack.c.h.b16 %v1137
        %v3616 = vunpack.c.l.b16 %v1138
        %v3617 = vunpack.c.h.b16 %v1138
        %v3618 = vunpack.c.l.b16 %v1139
        %v3619 = vunpack.c.h.b16 %v1139
        %v3620 = vunpack.c.l.b16 %v1140
        %v3621 = vunpack.c.h.b16 %v1140
        %v3622 = vunpack.c.l.b16 %v1141
        %v3623 = vunpack.c.h.b16 %v1141
        %v3624 = vunpack.c.l.b16 %v1142
        %v3625 = vunpack.c.h.b16 %v1142
        %v3626 = vunpack.c.l.b16 %v1143
        %v3627 = vunpack.c.h.b16 %v1143
        %v3628 = vunpack.c.l.b16 %v1144
        %v3629 = vunpack.c.h.b16 %v1144
        %v3630 = vunpack.c.l.b16 %v1145
        %v3631 = vunpack.c.h.b16 %v1145
        %v3632 = vunpack.c.l.b16 %v1146
        %v3633 = vunpack.c.h.b16 %v1146
        %v3634 = vunpack.c.l.b16 %v1147
        %v3635 = vunpack.c.h.b16 %v1147
        %v3636 = vunpack.c.l.b16 %v1148
        %v3637 = vunpack.c.h.b16 %v1148
        %v3638 = vunpack.c.l.b16 %v1149
        %v3639 = vunpack.c.h.b16 %v1149
        %v3640 = vunpack.c.l.b16 %v1150
        %v3641 = vunpack.c.h.b16 %v1150
        %v3642 = vunpack.c.l.b16 %v1151
        %v3643 = vunpack.c.h.b16 %v1151
        %v3644 = vunpack.c.l.b16 %v1152
        %v3645 = vunpack.c.h.b16 %v1152
        %v3646 = vunpack.c.l.b16 %v1153
        %v3647 = vunpack.c.h.b16 %v1153
        %v3648 = vunpack.c.l.b16 %v1154
        %v3649 = vunpack.c.h.b16 %v1154
        %v3650 = vunpack.c.l.b16 %v1155
        %v3651 = vunpack.c.h.b16 %v1155
        %v3652 = vunpack.c.l.b16 %v1156
        %v3653 = vunpack.c.h.b16 %v1156
        %v3654 = vunpack.c.l.b16 %v1157
        %v3655 = vunpack.c.h.b16 %v1157
        %v3656 = vunpack.c.l.b16 %v1158
        %v3657 = vunpack.c.h.b16 %v1158
        %v3658 = vunpack.c.l.b16 %v1159
        %v3659 = vunpack.c.h.b16 %v1159
        %v3660 = vunpack.c.l.b16 %v1160
        %v3661 = vunpack.c.h.b16 %v1160
        %v3662 = vunpack.c.l.b16 %v1161
        %v3663 = vunpack.c.h.b16 %v1161
        %v3664 = vunpack.c.l.b16 %v1162
        %v3665 = vunpack.c.h.b16 %v1162
        %v3666 = vunpack.c.l.b16 %v1163
        %v3667 = vunpack.c.h.b16 %v1163
        %v3668 = vunpack.c.l.b16 %v1164
        %v3669 = vunpack.c.h.b16 %v1164
        %v3670 = vunpack.c.l.b16 %v1165
        %v3671 = vunpack.c.h.b16 %v1165
        %v3672 = vunpack.c.l.b16 %v1166
        %v3673 = vunpack.c.h.b16 %v1166
        %v3674 = vunpack.c.l.b16 %v1167
        %v3675 = vunpack.c.h.b16 %v1167
        %v3676 = vunpack.c.l.b16 %v1168
        %v3677 = vunpack.c.h.b16 %v1168
        %v3678 = vunpack.c.l.b16 %v1169
        %v3679 = vunpack.c.h.b16 %v1169
        %v3680 = vunpack.c.l.b16 %v1170
        %v3681 = vunpack.c.h.b16 %v1170
        %v3682 = vunpack.c.l.b16 %v1171
        %v3683 = vunpack.c.h.b16 %v1171
        %v3684 = vunpack.c.l.b16 %v1172
        %v3685 = vunpack.c.h.b16 %v1172
        %v3686 = vunpack.c.l.b16 %v1173
        %v3687 = vunpack.c.h.b16 %v1173
        %v3688 = vunpack.c.l.b16 %v1174
        %v3689 = vunpack.c.h.b16 %v1174
        %v3690 = vunpack.c.l.b16 %v1175
        %v3691 = vunpack.c.h.b16 %v1175
        %v3692 = vunpack.c.l.b16 %v1176
        %v3693 = vunpack.c.h.b16 %v1176
        %v3694 = vunpack.c.l.b16 %v1177
        %v3695 = vunpack.c.h.b16 %v1177
        %v3696 = vunpack.c.l.b16 %v1178
        %v3697 = vunpack.c.h.b16 %v1178
        %v3698 = vunpack.c.l.b16 %v1179
        %v3699 = vunpack.c.h.b16 %v1179
        %v3700 = vunpack.c.l.b16 %v1180
        %v3701 = vunpack.c.h.b16 %v1180
        %v3702 = vunpack.c.l.b16 %v1181
        %v3703 = vunpack.c.h.b16 %v1181
        %v3704 = vunpack.c.l.b16 %v1182
        %v3705 = vunpack.c.h.b16 %v1182
        %v3706 = vunpack.c.l.b16 %v1183
        %v3707 = vunpack.c.h.b16 %v1183
        %v3708 = vunpack.c.l.b16 %v1184
        %v3709 = vunpack.c.h.b16 %v1184
        %v3710 = vunpack.c.l.b16 %v1185
        %v3711 = vunpack.c.h.b16 %v1185
        %v3712 = vunpack.c.l.b16 %v1186
        %v3713 = vunpack.c.h.b16 %v1186
        %v3714 = vunpack.c.l.b16 %v1187
        %v3715 = vunpack.c.h.b16 %v1187
        %v3716 = vunpack.c.l.b16 %v1188
        %v3717 = vunpack.c.h.b16 %v1188
        %v3718 = vunpack.c.l.b16 %v1189
        %v3719 = vunpack.c.h.b16 %v1189
        %v3720 = vunpack.c.l.b16 %v1190
        %v3721 = vunpack.c.h.b16 %v1190
        %v3722 = vunpack.c.l.b16 %v1191
        %v3723 = vunpack.c.h.b16 %v1191
        %v3724 = vunpack.c.l.b16 %v1192
        %v3725 = vunpack.c.h.b16 %v1192
        %v3726 = vunpack.c.l.b16 %v1193
        %v3727 = vunpack.c.h.b16 %v1193
        %v3728 = vunpack.c.l.b16 %v1194
        %v3729 = vunpack.c.h.b16 %v1194
        %v3730 = vunpack.c.l.b16 %v1195
        %v3731 = vunpack.c.h.b16 %v1195
        %v3732 = vunpack.c.l.b16 %v1196
        %v3733 = vunpack.c.h.b16 %v1196
        %v3734 = vunpack.c.l.b16 %v1197
        %v3735 = vunpack.c.h.b16 %v1197
        %v3736 = vunpack.c.l.b16 %v1198
        %v3737 = vunpack.c.h.b16 %v1198
        %v3738 = vunpack.c.l.b16 %v1199
        %v3739 = vunpack.c.h.b16 %v1199
        %v3740 = vunpack.c.l.b16 %v1200
        %v3741 = vunpack.c.h.b16 %v1200
        %v3742 = vunpack.c.l.b16 %v1201
        %v3743 = vunpack.c.h.b16 %v1201
        %v3744 = vunpack.c.l.b16 %v1202
        %v3745 = vunpack.c.h.b16 %v1202
        %v3746 = vunpack.c.l.b16 %v1203
        %v3747 = vunpack.c.h.b16 %v1203
        %v3748 = vunpack.c.l.b16 %v1204
        %v3749 = vunpack.c.h.b16 %v1204
        %v3750 = vunpack.c.l.b16 %v1205
        %v3751 = vunpack.c.h.b16 %v1205
        %v3752 = vunpack.c.l.b16 %v1206
        %v3753 = vunpack.c.h.b16 %v1206
        %v3754 = vunpack.c.l.b16 %v1207
        %v3755 = vunpack.c.h.b16 %v1207
        %v3756 = vunpack.c.l.b16 %v1208
        %v3757 = vunpack.c.h.b16 %v1208
        %v3758 = vunpack.c.l.b16 %v1209
        %v3759 = vunpack.c.h.b16 %v1209
        %v3760 = vunpack.c.l.b16 %v1210
        %v3761 = vunpack.c.h.b16 %v1210
        %v3762 = vunpack.c.l.b16 %v1211
        %v3763 = vunpack.c.h.b16 %v1211
        %v3764 = vunpack.c.l.b16 %v1212
        %v3765 = vunpack.c.h.b16 %v1212
        %v3766 = vunpack.c.l.b16 %v1213
        %v3767 = vunpack.c.h.b16 %v1213
        %v3768 = vunpack.c.l.b16 %v1214
        %v3769 = vunpack.c.h.b16 %v1214
        %v3770 = vunpack.c.l.b16 %v1215
        %v3771 = vunpack.c.h.b16 %v1215
        %v3772 = vunpack.c.l.b16 %v1216
        %v3773 = vunpack.c.h.b16 %v1216
        %v3774 = vunpack.c.l.b16 %v1217
        %v3775 = vunpack.c.h.b16 %v1217
        %v3776 = vunpack.c.l.b16 %v1218
        %v3777 = vunpack.c.h.b16 %v1218
        %v3778 = vunpack.c.l.b16 %v1219
        %v3779 = vunpack.c.h.b16 %v1219
        %v3780 = vunpack.c.l.b16 %v1220
        %v3781 = vunpack.c.h.b16 %v1220
        %v3782 = vunpack.c.l.b16 %v1221
        %v3783 = vunpack.c.h.b16 %v1221
        %v3784 = vunpack.c.l.b16 %v1222
        %v3785 = vunpack.c.h.b16 %v1222
        %v3786 = vunpack.c.l.b16 %v1223
        %v3787 = vunpack.c.h.b16 %v1223
        %v3788 = vunpack.c.l.b16 %v1224
        %v3789 = vunpack.c.h.b16 %v1224
        %v3790 = vunpack.c.l.b16 %v1225
        %v3791 = vunpack.c.h.b16 %v1225
        %v3792 = vunpack.c.l.b16 %v1226
        %v3793 = vunpack.c.h.b16 %v1226
        %v3794 = vunpack.c.l.b16 %v1227
        %v3795 = vunpack.c.h.b16 %v1227
        %v3796 = vunpack.c.l.b16 %v1228
        %v3797 = vunpack.c.h.b16 %v1228
        %v3798 = vunpack.c.l.b16 %v1229
        %v3799 = vunpack.c.h.b16 %v1229
        %v3800 = vunpack.c.l.b16 %v1230
        %v3801 = vunpack.c.h.b16 %v1230
        %v3802 = vunpack.c.l.b16 %v1231
        %v3803 = vunpack.c.h.b16 %v1231
        %v3804 = vunpack.c.l.b16 %v1232
        %v3805 = vunpack.c.h.b16 %v1232
        %v3806 = vunpack.c.l.b16 %v1233
        %v3807 = vunpack.c.h.b16 %v1233
        %v3808 = vunpack.c.l.b16 %v1234
        %v3809 = vunpack.c.h.b16 %v1234
        %v3810 = vunpack.c.l.b16 %v1235
        %v3811 = vunpack.c.h.b16 %v1235
        %v3812 = vunpack.c.l.b16 %v1236
        %v3813 = vunpack.c.h.b16 %v1236
        %v3814 = vunpack.c.l.b16 %v1237
        %v3815 = vunpack.c.h.b16 %v1237
        %v3816 = vunpack.c.l.b16 %v1238
        %v3817 = vunpack.c.h.b16 %v1238
        %v3818 = vunpack.c.l.b16 %v1239
        %v3819 = vunpack.c.h.b16 %v1239
        %v3820 = vunpack.c.l.b16 %v1240
        %v3821 = vunpack.c.h.b16 %v1240
        %v3822 = vunpack.c.l.b16 %v1241
        %v3823 = vunpack.c.h.b16 %v1241
        %v3824 = vunpack.c.l.b16 %v1242
        %v3825 = vunpack.c.h.b16 %v1242
        %v3826 = vunpack.c.l.b16 %v1243
        %v3827 = vunpack.c.h.b16 %v1243
        %v3828 = vunpack.c.l.b16 %v1244
        %v3829 = vunpack.c.h.b16 %v1244
        %v3830 = vunpack.c.l.b16 %v1245
        %v3831 = vunpack.c.h.b16 %v1245
        %v3832 = vunpack.c.l.b16 %v1246
        %v3833 = vunpack.c.h.b16 %v1246
        %v3834 = vunpack.c.l.b16 %v1247
        %v3835 = vunpack.c.h.b16 %v1247
        %v3836 = vunpack.c.l.b16 %v1248
        %v3837 = vunpack.c.h.b16 %v1248
        %v3838 = vunpack.c.l.b16 %v1249
        %v3839 = vunpack.c.h.b16 %v1249
        %v3840 = vunpack.c.l.b16 %v1250
        %v3841 = vunpack.c.h.b16 %v1250
        %v3842 = vunpack.c.l.b16 %v1251
        %v3843 = vunpack.c.h.b16 %v1251
        %v3844 = vunpack.c.l.b16 %v1252
        %v3845 = vunpack.c.h.b16 %v1252
        %v3846 = vunpack.c.l.b16 %v1253
        %v3847 = vunpack.c.h.b16 %v1253
        %v3848 = vunpack.c.l.b16 %v1254
        %v3849 = vunpack.c.h.b16 %v1254
        %v3850 = vunpack.c.l.b16 %v1255
        %v3851 = vunpack.c.h.b16 %v1255
        %v3852 = vunpack.c.l.b16 %v1256
        %v3853 = vunpack.c.h.b16 %v1256
        %v3854 = vunpack.c.l.b16 %v1257
        %v3855 = vunpack.c.h.b16 %v1257
        %v3856 = vunpack.c.l.b16 %v1258
        %v3857 = vunpack.c.h.b16 %v1258
        %v3858 = vunpack.c.l.b16 %v1259
        %v3859 = vunpack.c.h.b16 %v1259
        %v3860 = vunpack.c.l.b16 %v1260
        %v3861 = vunpack.c.h.b16 %v1260
        %v3862 = vunpack.c.l.b16 %v1261
        %v3863 = vunpack.c.h.b16 %v1261
        %v3864 = vunpack.c.l.b16 %v1262
        %v3865 = vunpack.c.h.b16 %v1262
        %v3866 = vunpack.c.l.b16 %v1263
        %v3867 = vunpack.c.h.b16 %v1263
        %v3868 = vunpack.c.l.b16 %v1264
        %v3869 = vunpack.c.h.b16 %v1264
        %v3870 = vunpack.c.l.b16 %v1265
        %v3871 = vunpack.c.h.b16 %v1265
        %v3872 = vunpack.c.l.b16 %v1266
        %v3873 = vunpack.c.h.b16 %v1266
        %v3874 = vunpack.c.l.b16 %v1267
        %v3875 = vunpack.c.h.b16 %v1267
        %v3876 = vunpack.c.l.b16 %v1268
        %v3877 = vunpack.c.h.b16 %v1268
        %v3878 = vunpack.c.l.b16 %v1269
        %v3879 = vunpack.c.h.b16 %v1269
        %v3880 = vunpack.c.l.b16 %v1270
        %v3881 = vunpack.c.h.b16 %v1270
        %v3882 = vunpack.c.l.b16 %v1271
        %v3883 = vunpack.c.h.b16 %v1271
        %v3884 = vunpack.c.l.b16 %v1272
        %v3885 = vunpack.c.h.b16 %v1272
        %v3886 = vunpack.c.l.b16 %v1273
        %v3887 = vunpack.c.h.b16 %v1273
        %v3888 = vunpack.c.l.b16 %v1274
        %v3889 = vunpack.c.h.b16 %v1274
        %v3890 = vunpack.c.l.b16 %v1275
        %v3891 = vunpack.c.h.b16 %v1275
        %v3892 = vunpack.c.l.b16 %v1276
        %v3893 = vunpack.c.h.b16 %v1276
        %v3894 = vunpack.c.l.b16 %v1277
        %v3895 = vunpack.c.h.b16 %v1277
        %v3896 = vunpack.c.l.b16 %v1278
        %v3897 = vunpack.c.h.b16 %v1278
        %v3898 = vunpack.c.l.b16 %v1279
        %v3899 = vunpack.c.h.b16 %v1279
        %v3900 = vunpack.c.l.b16 %v1280
        %v3901 = vunpack.c.h.b16 %v1280
        %v3902 = vunpack.c.l.b16 %v1281
        %v3903 = vunpack.c.h.b16 %v1281
        %v3904 = vunpack.c.l.b16 %v1282
        %v3905 = vunpack.c.h.b16 %v1282
        %v3906 = vunpack.c.l.b16 %v1283
        %v3907 = vunpack.c.h.b16 %v1283
        %v3908 = vunpack.c.l.b16 %v1284
        %v3909 = vunpack.c.h.b16 %v1284
        %v3910 = vunpack.c.l.b16 %v1285
        %v3911 = vunpack.c.h.b16 %v1285
        %v3912 = vunpack.c.l.b16 %v1286
        %v3913 = vunpack.c.h.b16 %v1286
        %v3914 = vunpack.c.l.b16 %v1287
        %v3915 = vunpack.c.h.b16 %v1287
        %v3916 = vunpack.c.l.b16 %v1288
        %v3917 = vunpack.c.h.b16 %v1288
        %v3918 = vunpack.c.l.b16 %v1289
        %v3919 = vunpack.c.h.b16 %v1289
        %v3920 = vunpack.c.l.b16 %v1290
        %v3921 = vunpack.c.h.b16 %v1290
        %v3922 = vunpack.c.l.b16 %v1291
        %v3923 = vunpack.c.h.b16 %v1291
        %v3924 = vunpack.c.l.b16 %v1292
        %v3925 = vunpack.c.h.b16 %v1292
        %v3926 = vunpack.c.l.b16 %v1293
        %v3927 = vunpack.c.h.b16 %v1293
        %v3928 = vunpack.c.l.b16 %v1294
        %v3929 = vunpack.c.h.b16 %v1294
        %v3930 = vunpack.c.l.b16 %v1295
        %v3931 = vunpack.c.h.b16 %v1295
        %v3932 = vunpack.c.l.b16 %v1296
        %v3933 = vunpack.c.h.b16 %v1296
        %v3934 = vunpack.c.l.b16 %v1297
        %v3935 = vunpack.c.h.b16 %v1297
        %v3936 = vunpack.c.l.b16 %v1298
        %v3937 = vunpack.c.h.b16 %v1298
        %v3938 = vunpack.c.l.b16 %v1299
        %v3939 = vunpack.c.h.b16 %v1299
        %v3940 = vunpack.c.l.b16 %v1300
        %v3941 = vunpack.c.h.b16 %v1300
        %v3942 = vunpack.c.l.b16 %v1301
        %v3943 = vunpack.c.h.b16 %v1301
        %v3944 = vunpack.c.l.b16 %v1302
        %v3945 = vunpack.c.h.b16 %v1302
        %v3946 = vunpack.c.l.b16 %v1303
        %v3947 = vunpack.c.h.b16 %v1303
        %v3948 = vunpack.c.l.b16 %v1304
        %v3949 = vunpack.c.h.b16 %v1304
        %v3950 = vunpack.c.l.b16 %v1305
        %v3951 = vunpack.c.h.b16 %v1305
        %v3952 = vunpack.c.l.b16 %v1306
        %v3953 = vunpack.c.h.b16 %v1306
        %v3954 = vunpack.c.l.b16 %v1307
        %v3955 = vunpack.c.h.b16 %v1307
        %v3956 = vunpack.c.l.b16 %v1308
        %v3957 = vunpack.c.h.b16 %v1308
        %v3958 = vunpack.c.l.b16 %v1309
        %v3959 = vunpack.c.h.b16 %v1309
        %v3960 = vunpack.c.l.b16 %v1310
        %v3961 = vunpack.c.h.b16 %v1310
        %v3962 = vunpack.c.l.b16 %v1311
        %v3963 = vunpack.c.h.b16 %v1311
        %v3964 = vunpack.c.l.b16 %v1312
        %v3965 = vunpack.c.h.b16 %v1312
        %v3966 = vunpack.c.l.b16 %v1313
        %v3967 = vunpack.c.h.b16 %v1313
        %v3968 = vunpack.c.l.b16 %v1314
        %v3969 = vunpack.c.h.b16 %v1314
        %v3970 = vunpack.c.l.b16 %v1315
        %v3971 = vunpack.c.h.b16 %v1315
        %v3972 = vunpack.c.l.b16 %v1316
        %v3973 = vunpack.c.h.b16 %v1316
        %v3974 = vunpack.c.l.b16 %v1317
        %v3975 = vunpack.c.h.b16 %v1317
        %v3976 = vunpack.c.l.b16 %v1318
        %v3977 = vunpack.c.h.b16 %v1318
        %v3978 = vunpack.c.l.b16 %v1319
        %v3979 = vunpack.c.h.b16 %v1319
        %v3980 = vunpack.c.l.b16 %v1320
        %v3981 = vunpack.c.h.b16 %v1320
        %v3982 = vunpack.c.l.b16 %v1321
        %v3983 = vunpack.c.h.b16 %v1321
        %v3984 = vunpack.c.l.b16 %v1322
        %v3985 = vunpack.c.h.b16 %v1322
        %v3986 = vunpack.c.l.b16 %v1323
        %v3987 = vunpack.c.h.b16 %v1323
        %v3988 = vunpack.c.l.b16 %v1324
        %v3989 = vunpack.c.h.b16 %v1324
        %v3990 = vunpack.c.l.b16 %v1325
        %v3991 = vunpack.c.h.b16 %v1325
        %v3992 = vunpack.c.l.b16 %v1326
        %v3993 = vunpack.c.h.b16 %v1326
        %v3994 = vunpack.c.l.b16 %v1327
        %v3995 = vunpack.c.h.b16 %v1327
        %v3996 = vunpack.c.l.b16 %v1328
        %v3997 = vunpack.c.h.b16 %v1328
        %v3998 = vunpack.c.l.b16 %v1329
        %v3999 = vunpack.c.h.b16 %v1329
        %v4000 = vunpack.c.l.b16 %v1330
        %v4001 = vunpack.c.h.b16 %v1330
        %v4002 = vunpack.c.l.b16 %v1331
        %v4003 = vunpack.c.h.b16 %v1331
        %v4004 = vunpack.c.l.b16 %v1332
        %v4005 = vunpack.c.h.b16 %v1332
        %v4006 = vunpack.c.l.b16 %v1333
        %v4007 = vunpack.c.h.b16 %v1333
        %v4008 = vunpack.c.l.b16 %v1334
        %v4009 = vunpack.c.h.b16 %v1334
        %v4010 = vunpack.c.l.b16 %v1335
        %v4011 = vunpack.c.h.b16 %v1335
        %v4012 = vunpack.c.l.b16 %v1336
        %v4013 = vunpack.c.h.b16 %v1336
        %v4014 = vunpack.c.l.b16 %v1337
        %v4015 = vunpack.c.h.b16 %v1337
        %v4016 = vunpack.c.l.b16 %v1338
        %v4017 = vunpack.c.h.b16 %v1338
        %v4018 = vunpack.c.l.b16 %v1339
        %v4019 = vunpack.c.h.b16 %v1339
        %v4020 = vunpack.c.l.b16 %v1340
        %v4021 = vunpack.c.h.b16 %v1340
        %v4022 = vunpack.c.l.b16 %v1341
        %v4023 = vunpack.c.h.b16 %v1341
        %v4024 = vunpack.c.l.b16 %v1342
        %v4025 = vunpack.c.h.b16 %v1342
        %v4026 = vunpack.c.l.b16 %v1343
        %v4027 = vunpack.c.h.b16 %v1343
        %v4028 = vunpack.c.l.b16 %v1344
        %v4029 = vunpack.c.h.b16 %v1344
        %v4030 = vunpack.c.l.b16 %v1345
        %v4031 = vunpack.c.h.b16 %v1345
        %v4032 = vunpack.c.l.b16 %v1346
        %v4033 = vunpack.c.h.b16 %v1346
        %v4034 = vunpack.c.l.b16 %v1347
        %v4035 = vunpack.c.h.b16 %v1347
        %v4036 = vunpack.c.l.b16 %v1348
        %v4037 = vunpack.c.h.b16 %v1348
        %v4038 = vunpack.c.l.b16 %v1349
        %v4039 = vunpack.c.h.b16 %v1349
        %v4040 = vunpack.c.l.b16 %v1350
        %v4041 = vunpack.c.h.b16 %v1350
        %v4042 = vunpack.c.l.b16 %v1351
        %v4043 = vunpack.c.h.b16 %v1351
        %v4044 = vunpack.c.l.b16 %v1352
        %v4045 = vunpack.c.h.b16 %v1352
        %v4046 = vunpack.c.l.b16 %v1353
        %v4047 = vunpack.c.h.b16 %v1353
        %v4048 = vunpack.c.l.b16 %v1354
        %v4049 = vunpack.c.h.b16 %v1354
        %v4050 = vunpack.c.l.b16 %v1355
        %v4051 = vunpack.c.h.b16 %v1355
        %v4052 = vunpack.c.l.b16 %v1356
        %v4053 = vunpack.c.h.b16 %v1356
        %v4054 = vunpack.c.l.b16 %v1357
        %v4055 = vunpack.c.h.b16 %v1357
        %v4056 = vunpack.c.l.b16 %v1358
        %v4057 = vunpack.c.h.b16 %v1358
        %v4058 = vunpack.c.l.b16 %v1359
        %v4059 = vunpack.c.h.b16 %v1359
        %v4060 = vunpack.c.l.b16 %v1360
        %v4061 = vunpack.c.h.b16 %v1360
        %v4062 = vunpack.c.l.b16 %v1361
        %v4063 = vunpack.c.h.b16 %v1361
        %v4064 = vunpack.c.l.b16 %v1362
        %v4065 = vunpack.c.h.b16 %v1362
        %v4066 = vunpack.c.l.b16 %v1363
        %v4067 = vunpack.c.h.b16 %v1363
        %v4068 = vunpack.c.l.b16 %v1364
        %v4069 = vunpack.c.h.b16 %v1364
        %v4070 = vunpack.c.l.b16 %v1365
        %v4071 = vunpack.c.h.b16 %v1365
        %v4072 = vunpack.c.l.b16 %v1366
        %v4073 = vunpack.c.h.b16 %v1366
        %v4074 = vunpack.c.l.b16 %v1367
        %v4075 = vunpack.c.h.b16 %v1367
        %v4076 = vunpack.c.l.b16 %v1368
        %v4077 = vunpack.c.h.b16 %v1368
        %v4078 = vunpack.c.l.b16 %v1369
        %v4079 = vunpack.c.h.b16 %v1369
        %v4080 = vunpack.c.l.b16 %v1370
        %v4081 = vunpack.c.h.b16 %v1370
        %v4082 = vunpack.c.l.b16 %v1371
        %v4083 = vunpack.c.h.b16 %v1371
        %v4084 = vunpack.c.l.b16 %v1372
        %v4085 = vunpack.c.h.b16 %v1372
        %v4086 = vunpack.c.l.b16 %v1373
        %v4087 = vunpack.c.h.b16 %v1373
        %v4088 = vunpack.c.l.b16 %v1374
        %v4089 = vunpack.c.h.b16 %v1374
        %v4090 = vunpack.c.l.b16 %v1375
        %v4091 = vunpack.c.h.b16 %v1375
        %v4092 = vunpack.c.l.b16 %v1376
        %v4093 = vunpack.c.h.b16 %v1376
        %v4094 = vunpack.c.l.b16 %v1377
        %v4095 = vunpack.c.h.b16 %v1377
        %v4096 = vunpack.c.l.b16 %v1378
        %v4097 = vunpack.c.h.b16 %v1378
        %v4098 = vunpack.c.l.b16 %v1379
        %v4099 = vunpack.c.h.b16 %v1379
        %v4100 = vunpack.c.l.b16 %v1380
        %v4101 = vunpack.c.h.b16 %v1380
        %v4102 = vunpack.c.l.b16 %v1381
        %v4103 = vunpack.c.h.b16 %v1381
        %v4104 = vunpack.c.l.b16 %v1382
        %v4105 = vunpack.c.h.b16 %v1382
        %v4106 = vunpack.c.l.b16 %v1383
        %v4107 = vunpack.c.h.b16 %v1383
        %v4108 = vunpack.c.l.b16 %v1384
        %v4109 = vunpack.c.h.b16 %v1384
        %v4110 = vunpack.c.l.b16 %v1385
        %v4111 = vunpack.c.h.b16 %v1385
        %v4112 = vunpack.c.l.b16 %v1386
        %v4113 = vunpack.c.h.b16 %v1386
        %v4114 = vunpack.c.l.b16 %v1387
        %v4115 = vunpack.c.h.b16 %v1387
        %v4116 = vunpack.c.l.b16 %v1388
        %v4117 = vunpack.c.h.b16 %v1388
        %v4118 = vunpack.c.l.b16 %v1389
        %v4119 = vunpack.c.h.b16 %v1389
        %v4120 = vunpack.c.l.b16 %v1390
        %v4121 = vunpack.c.h.b16 %v1390
        %v4122 = vunpack.c.l.b16 %v1391
        %v4123 = vunpack.c.h.b16 %v1391
        %v4124 = vunpack.c.l.b16 %v1392
        %v4125 = vunpack.c.h.b16 %v1392
        %v4126 = vunpack.c.l.b16 %v1393
        %v4127 = vunpack.c.h.b16 %v1393
        %v4128 = vunpack.c.l.b16 %v1394
        %v4129 = vunpack.c.h.b16 %v1394
        %v4130 = vunpack.c.l.b16 %v1395
        %v4131 = vunpack.c.h.b16 %v1395
        %v4132 = vunpack.c.l.b16 %v1396
        %v4133 = vunpack.c.h.b16 %v1396
        %v4134 = vunpack.c.l.b16 %v1397
        %v4135 = vunpack.c.h.b16 %v1397
        %v4136 = vunpack.c.l.b16 %v1398
        %v4137 = vunpack.c.h.b16 %v1398
        %v4138 = vunpack.c.l.b16 %v1399
        %v4139 = vunpack.c.h.b16 %v1399
        %v4140 = vunpack.c.l.b16 %v1400
        %v4141 = vunpack.c.h.b16 %v1400
        %v4142 = vunpack.c.l.b16 %v1401
        %v4143 = vunpack.c.h.b16 %v1401
        %v4144 = vunpack.c.l.b16 %v1402
        %v4145 = vunpack.c.h.b16 %v1402
        %v4146 = vunpack.c.l.b16 %v1403
        %v4147 = vunpack.c.h.b16 %v1403
        %v4148 = vunpack.c.l.b16 %v1404
        %v4149 = vunpack.c.h.b16 %v1404
        %v4150 = vunpack.c.l.b16 %v1405
        %v4151 = vunpack.c.h.b16 %v1405
        %v4152 = vunpack.c.l.b16 %v1406
        %v4153 = vunpack.c.h.b16 %v1406
        %v4154 = vunpack.c.l.b16 %v1407
        %v4155 = vunpack.c.h.b16 %v1407
        %v4156 = vunpack.c.l.b16 %v1408
        %v4157 = vunpack.c.h.b16 %v1408
        %v4158 = vunpack.c.l.b16 %v1409
        %v4159 = vunpack.c.h.b16 %v1409
        %v4160 = vunpack.c.l.b16 %v1410
        %v4161 = vunpack.c.h.b16 %v1410
        %v4162 = vunpack.c.l.b16 %v1411
        %v4163 = vunpack.c.h.b16 %v1411
        %v4164 = vunpack.c.l.b16 %v1412
        %v4165 = vunpack.c.h.b16 %v1412
        %v4166 = vunpack.c.l.b16 %v1413
        %v4167 = vunpack.c.h.b16 %v1413
        %v4168 = vunpack.c.l.b16 %v1414
        %v4169 = vunpack.c.h.b16 %v1414
        %v4170 = vunpack.c.l.b16 %v1415
        %v4171 = vunpack.c.h.b16 %v1415
        %v4172 = vunpack.c.l.b16 %v1416
        %v4173 = vunpack.c.h.b16 %v1416
        %v4174 = vunpack.c.l.b16 %v1417
        %v4175 = vunpack.c.h.b16 %v1417
        %v4176 = vunpack.c.l.b16 %v1418
        %v4177 = vunpack.c.h.b16 %v1418
        %v4178 = vunpack.c.l.b16 %v1419
        %v4179 = vunpack.c.h.b16 %v1419
        %v4180 = vunpack.c.l.b16 %v1420
        %v4181 = vunpack.c.h.b16 %v1420
        %v4182 = vunpack.c.l.b16 %v1421
        %v4183 = vunpack.c.h.b16 %v1421
        %v4184 = vunpack.c.l.b16 %v1422
        %v4185 = vunpack.c.h.b16 %v1422
        %v4186 = vunpack.c.l.b16 %v1423
        %v4187 = vunpack.c.h.b16 %v1423
        %v4188 = vunpack.c.l.b16 %v1424
        %v4189 = vunpack.c.h.b16 %v1424
        %v4190 = vunpack.c.l.b16 %v1425
        %v4191 = vunpack.c.h.b16 %v1425
        %v4192 = vunpack.c.l.b16 %v1426
        %v4193 = vunpack.c.h.b16 %v1426
        %v4194 = vunpack.c.l.b16 %v1427
        %v4195 = vunpack.c.h.b16 %v1427
        %v4196 = vunpack.c.l.b16 %v1428
        %v4197 = vunpack.c.h.b16 %v1428
        %v4198 = vunpack.c.l.b16 %v1429
        %v4199 = vunpack.c.h.b16 %v1429
        %v4200 = vunpack.c.l.b16 %v1430
        %v4201 = vunpack.c.h.b16 %v1430
        %v4202 = vunpack.c.l.b16 %v1431
        %v4203 = vunpack.c.h.b16 %v1431
        %v4204 = vunpack.c.l.b16 %v1432
        %v4205 = vunpack.c.h.b16 %v1432
        %v4206 = vunpack.c.l.b16 %v1433
        %v4207 = vunpack.c.h.b16 %v1433
        %v4208 = vunpack.c.l.b16 %v1434
        %v4209 = vunpack.c.h.b16 %v1434
        %v4210 = vunpack.c.l.b16 %v1435
        %v4211 = vunpack.c.h.b16 %v1435
        %v4212 = vunpack.c.l.b16 %v1436
        %v4213 = vunpack.c.h.b16 %v1436
        %v4214 = vunpack.c.l.b16 %v1437
        %v4215 = vunpack.c.h.b16 %v1437
        %v4216 = vunpack.c.l.b16 %v1438
        %v4217 = vunpack.c.h.b16 %v1438
        %v4218 = vunpack.c.l.b16 %v1439
        %v4219 = vunpack.c.h.b16 %v1439
        %v4220 = vunpack.c.l.b16 %v1440
        %v4221 = vunpack.c.h.b16 %v1440
        %v4222 = vunpack.c.l.b16 %v1441
        %v4223 = vunpack.c.h.b16 %v1441
        %v4224 = vunpack.c.l.b16 %v1442
        %v4225 = vunpack.c.h.b16 %v1442
        %v4226 = vunpack.c.l.b16 %v1443
        %v4227 = vunpack.c.h.b16 %v1443
        %v4228 = vunpack.c.l.b16 %v1444
        %v4229 = vunpack.c.h.b16 %v1444
        %v4230 = vunpack.c.l.b16 %v1445
        %v4231 = vunpack.c.h.b16 %v1445
        %v4232 = vunpack.c.l.b16 %v1446
        %v4233 = vunpack.c.h.b16 %v1446
        %v4234 = vunpack.c.l.b16 %v1447
        %v4235 = vunpack.c.h.b16 %v1447
        %v4236 = vunpack.c.l.b16 %v1448
        %v4237 = vunpack.c.h.b16 %v1448
        %v4238 = vunpack.c.l.b16 %v1449
        %v4239 = vunpack.c.h.b16 %v1449
        %v4240 = vunpack.c.l.b16 %v1450
        %v4241 = vunpack.c.h.b16 %v1450
        %v4242 = vunpack.c.l.b16 %v1451
        %v4243 = vunpack.c.h.b16 %v1451
        %v4244 = vunpack.c.l.b16 %v1452
        %v4245 = vunpack.c.h.b16 %v1452
        %v4246 = vunpack.c.l.b16 %v1453
        %v4247 = vunpack.c.h.b16 %v1453
        %v4248 = vunpack.c.l.b16 %v1454
        %v4249 = vunpack.c.h.b16 %v1454
        %v4250 = vunpack.c.l.b16 %v1455
        %v4251 = vunpack.c.h.b16 %v1455
        %v4252 = vunpack.c.l.b16 %v1456
        %v4253 = vunpack.c.h.b16 %v1456
        %v4254 = vunpack.c.l.b16 %v1457
        %v4255 = vunpack.c.h.b16 %v1457
        %v4256 = vunpack.c.l.b16 %v1458
        %v4257 = vunpack.c.h.b16 %v1458
        %v4258 = vunpack.c.l.b16 %v1459
        %v4259 = vunpack.c.h.b16 %v1459
        %v4260 = vunpack.c.l.b16 %v1460
        %v4261 = vunpack.c.h.b16 %v1460
        %v4262 = vunpack.c.l.b16 %v1461
        %v4263 = vunpack.c.h.b16 %v1461
        %v4264 = vunpack.c.l.b16 %v1462
        %v4265 = vunpack.c.h.b16 %v1462
        %v4266 = vunpack.c.l.b16 %v1463
        %v4267 = vunpack.c.h.b16 %v1463
        %v4268 = vunpack.c.l.b16 %v1464
        %v4269 = vunpack.c.h.b16 %v1464
        %v4270 = vunpack.c.l.b16 %v1465
        %v4271 = vunpack.c.h.b16 %v1465
        %v4272 = vunpack.c.l.b16 %v1466
        %v4273 = vunpack.c.h.b16 %v1466
        %v4274 = vunpack.c.l.b16 %v1467
        %v4275 = vunpack.c.h.b16 %v1467
        %v4276 = vunpack.c.l.b16 %v1468
        %v4277 = vunpack.c.h.b16 %v1468
        %v4278 = vunpack.c.l.b16 %v1469
        %v4279 = vunpack.c.h.b16 %v1469
        %v4280 = vunpack.c.l.b16 %v1470
        %v4281 = vunpack.c.h.b16 %v1470
        %v4282 = vunpack.c.l.b16 %v1471
        %v4283 = vunpack.c.h.b16 %v1471
        %v4284 = vunpack.c.l.b16 %v1472
        %v4285 = vunpack.c.h.b16 %v1472
        %v4286 = vunpack.c.l.b16 %v1473
        %v4287 = vunpack.c.h.b16 %v1473
        %v4288 = vunpack.c.l.b16 %v1474
        %v4289 = vunpack.c.h.b16 %v1474
        %v4290 = vunpack.c.l.b16 %v1475
        %v4291 = vunpack.c.h.b16 %v1475
        %v4292 = vunpack.c.l.b16 %v1476
        %v4293 = vunpack.c.h.b16 %v1476
        %v4294 = vunpack.c.l.b16 %v1477
        %v4295 = vunpack.c.h.b16 %v1477
        %v4296 = vunpack.c.l.b16 %v1478
        %v4297 = vunpack.c.h.b16 %v1478
        %v4298 = vunpack.c.l.b16 %v1479
        %v4299 = vunpack.c.h.b16 %v1479
        %v4300 = vunpack.c.l.b16 %v1480
        %v4301 = vunpack.c.h.b16 %v1480
        %v4302 = vunpack.c.l.b16 %v1481
        %v4303 = vunpack.c.h.b16 %v1481
        %v4304 = vunpack.c.l.b16 %v1482
        %v4305 = vunpack.c.h.b16 %v1482
        %v4306 = vunpack.c.l.b16 %v1483
        %v4307 = vunpack.c.h.b16 %v1483
        %v4308 = vunpack.c.l.b16 %v1484
        %v4309 = vunpack.c.h.b16 %v1484
        %v4310 = vunpack.c.l.b16 %v1485
        %v4311 = vunpack.c.h.b16 %v1485
        %v4312 = vunpack.c.l.b16 %v1486
        %v4313 = vunpack.c.h.b16 %v1486
        %v4314 = vunpack.c.l.b16 %v1487
        %v4315 = vunpack.c.h.b16 %v1487
        %v4316 = vunpack.c.l.b16 %v1488
        %v4317 = vunpack.c.h.b16 %v1488
        %v4318 = vunpack.c.l.b16 %v1489
        %v4319 = vunpack.c.h.b16 %v1489
        %v4320 = vunpack.c.l.b16 %v1490
        %v4321 = vunpack.c.h.b16 %v1490
        %v4322 = vunpack.c.l.b16 %v1491
        %v4323 = vunpack.c.h.b16 %v1491
        %v4324 = vunpack.c.l.b16 %v1492
        %v4325 = vunpack.c.h.b16 %v1492
        %v4326 = vunpack.c.l.b16 %v1493
        %v4327 = vunpack.c.h.b16 %v1493
        %v4328 = vunpack.c.l.b16 %v1494
        %v4329 = vunpack.c.h.b16 %v1494
        %v4330 = vunpack.c.l.b16 %v1495
        %v4331 = vunpack.c.h.b16 %v1495
        %v4332 = vunpack.c.l.b16 %v1496
        %v4333 = vunpack.c.h.b16 %v1496
        %v4334 = vunpack.c.l.b16 %v1497
        %v4335 = vunpack.c.h.b16 %v1497
        %v4336 = vpack.c.b16 %v2548, %v2544
        %v4337 = vpack.c.b16 %v2549, %v2545
        %v4338 = vpack.c.b16 %v2550, %v2546
        %v4339 = vpack.c.b16 %v2551, %v2547
        %v4340 = vpack.c.b16 %v2556, %v2552
        %v4341 = vpack.c.b16 %v2557, %v2553
        %v4342 = vpack.c.b16 %v2558, %v2554
        %v4343 = vpack.c.b16 %v2559, %v2555
        %v4344 = vpack.c.b16 %v2564, %v2560
        %v4345 = vpack.c.b16 %v2565, %v2561
        %v4346 = vpack.c.b16 %v2566, %v2562
        %v4347 = vpack.c.b16 %v2567, %v2563
        %v4348 = vpack.c.b16 %v2572, %v2568
        %v4349 = vpack.c.b16 %v2573, %v2569
        %v4350 = vpack.c.b16 %v2574, %v2570
        %v4351 = vpack.c.b16 %v2575, %v2571
        %v4352 = vpack.c.b16 %v2580, %v2576
        %v4353 = vpack.c.b16 %v2581, %v2577
        %v4354 = vpack.c.b16 %v2582, %v2578
        %v4355 = vpack.c.b16 %v2583, %v2579
        %v4356 = vpack.c.b16 %v2588, %v2584
        %v4357 = vpack.c.b16 %v2589, %v2585
        %v4358 = vpack.c.b16 %v2590, %v2586
        %v4359 = vpack.c.b16 %v2591, %v2587
        %v4360 = vpack.c.b16 %v2596, %v2592
        %v4361 = vpack.c.b16 %v2597, %v2593
        %v4362 = vpack.c.b16 %v2598, %v2594
        %v4363 = vpack.c.b16 %v2599, %v2595
        %v4364 = vpack.c.b16 %v2604, %v2600
        %v4365 = vpack.c.b16 %v2605, %v2601
        %v4366 = vpack.c.b16 %v2606, %v2602
        %v4367 = vpack.c.b16 %v2607, %v2603
        %v4368 = vpack.c.b16 %v2612, %v2608
        %v4369 = vpack.c.b16 %v2613, %v2609
        %v4370 = vpack.c.b16 %v2614, %v2610
        %v4371 = vpack.c.b16 %v2615, %v2611
        %v4372 = vpack.c.b16 %v2620, %v2616
        %v4373 = vpack.c.b16 %v2621, %v2617
        %v4374 = vpack.c.b16 %v2622, %v2618
        %v4375 = vpack.c.b16 %v2623, %v2619
        %v4376 = vpack.c.b16 %v2628, %v2624
        %v4377 = vpack.c.b16 %v2629, %v2625
        %v4378 = vpack.c.b16 %v2630, %v2626
        %v4379 = vpack.c.b16 %v2631, %v2627
        %v4380 = vpack.c.b16 %v2636, %v2632
        %v4381 = vpack.c.b16 %v2637, %v2633
        %v4382 = vpack.c.b16 %v2638, %v2634
        %v4383 = vpack.c.b16 %v2639, %v2635
        %v4384 = vpack.c.b16 %v2644, %v2640
        %v4385 = vpack.c.b16 %v2645, %v2641
        %v4386 = vpack.c.b16 %v2646, %v2642
        %v4387 = vpack.c.b16 %v2647, %v2643
        %v4388 = vpack.c.b16 %v2652, %v2648
        %v4389 = vpack.c.b16 %v2653, %v2649
        %v4390 = vpack.c.b16 %v2654, %v2650
        %v4391 = vpack.c.b16 %v2655, %v2651
        %v4392 = vpack.c.b16 %v2660, %v2656
        %v4393 = vpack.c.b16 %v2661, %v2657
        %v4394 = vpack.c.b16 %v2662, %v2658
        %v4395 = vpack.c.b16 %v2663, %v2659
        %v4396 = vpack.c.b16 %v2668, %v2664
        %v4397 = vpack.c.b16 %v2669, %v2665
        %v4398 = vpack.c.b16 %v2670, %v2666
        %v4399 = vpack.c.b16 %v2671, %v2667
        %v4400 = vpack.c.b16 %v2676, %v2672
        %v4401 = vpack.c.b16 %v2677, %v2673
        %v4402 = vpack.c.b16 %v2678, %v2674
        %v4403 = vpack.c.b16 %v2679, %v2675
        %v4404 = vpack.c.b16 %v2684, %v2680
        %v4405 = vpack.c.b16 %v2685, %v2681
        %v4406 = vpack.c.b16 %v2686, %v2682
        %v4407 = vpack.c.b16 %v2687, %v2683
        %v4408 = vpack.c.b16 %v2692, %v2688
        %v4409 = vpack.c.b16 %v2693, %v2689
        %v4410 = vpack.c.b16 %v2694, %v2690
        %v4411 = vpack.c.b16 %v2695, %v2691
        %v4412 = vpack.c.b16 %v2700, %v2696
        %v4413 = vpack.c.b16 %v2701, %v2697
        %v4414 = vpack.c.b16 %v2702, %v2698
        %v4415 = vpack.c.b16 %v2703, %v2699
        %v4416 = vpack.c.b16 %v2708, %v2704
        %v4417 = vpack.c.b16 %v2709, %v2705
        %v4418 = vpack.c.b16 %v2710, %v2706
        %v4419 = vpack.c.b16 %v2711, %v2707
        %v4420 = vpack.c.b16 %v2716, %v2712
        %v4421 = vpack.c.b16 %v2717, %v2713
        %v4422 = vpack.c.b16 %v2718, %v2714
        %v4423 = vpack.c.b16 %v2719, %v2715
        %v4424 = vpack.c.b16 %v2724, %v2720
        %v4425 = vpack.c.b16 %v2725, %v2721
        %v4426 = vpack.c.b16 %v2726, %v2722
        %v4427 = vpack.c.b16 %v2727, %v2723
        %v4428 = vpack.c.b16 %v2732, %v2728
        %v4429 = vpack.c.b16 %v2733, %v2729
        %v4430 = vpack.c.b16 %v2734, %v2730
        %v4431 = vpack.c.b16 %v2735, %v2731
        %v4432 = vpack.c.b16 %v2740, %v2736
        %v4433 = vpack.c.b16 %v2741, %v2737
        %v4434 = vpack.c.b16 %v2742, %v2738
        %v4435 = vpack.c.b16 %v2743, %v2739
        %v4436 = vpack.c.b16 %v2748, %v2744
        %v4437 = vpack.c.b16 %v2749, %v2745
        %v4438 = vpack.c.b16 %v2750, %v2746
        %v4439 = vpack.c.b16 %v2751, %v2747
        %v4440 = vpack.c.b16 %v2756, %v2752
        %v4441 = vpack.c.b16 %v2757, %v2753
        %v4442 = vpack.c.b16 %v2758, %v2754
        %v4443 = vpack.c.b16 %v2759, %v2755
        %v4444 = vpack.c.b16 %v2764, %v2760
        %v4445 = vpack.c.b16 %v2765, %v2761
        %v4446 = vpack.c.b16 %v2766, %v2762
        %v4447 = vpack.c.b16 %v2767, %v2763
        %v4448 = vpack.c.b16 %v2772, %v2768
        %v4449 = vpack.c.b16 %v2773, %v2769
        %v4450 = vpack.c.b16 %v2774, %v2770
        %v4451 = vpack.c.b16 %v2775, %v2771
        %v4452 = vpack.c.b16 %v2780, %v2776
        %v4453 = vpack.c.b16 %v2781, %v2777
        %v4454 = vpack.c.b16 %v2782, %v2778
        %v4455 = vpack.c.b16 %v2783, %v2779
        %v4456 = vpack.c.b16 %v2788, %v2784
        %v4457 = vpack.c.b16 %v2789, %v2785
        %v4458 = vpack.c.b16 %v2790, %v2786
        %v4459 = vpack.c.b16 %v2791, %v2787
        %v4460 = vpack.c.b16 %v2796, %v2792
        %v4461 = vpack.c.b16 %v2797, %v2793
        %v4462 = vpack.c.b16 %v2798, %v2794
        %v4463 = vpack.c.b16 %v2799, %v2795
        %v4464 = vpack.c.b16 %v2804, %v2800
        %v4465 = vpack.c.b16 %v2805, %v2801
        %v4466 = vpack.c.b16 %v2806, %v2802
        %v4467 = vpack.c.b16 %v2807, %v2803
        %v4468 = vpack.c.b16 %v2812, %v2808
        %v4469 = vpack.c.b16 %v2813, %v2809
        %v4470 = vpack.c.b16 %v2814, %v2810
        %v4471 = vpack.c.b16 %v2815, %v2811
        %v4472 = vpack.c.b16 %v2820, %v2816
        %v4473 = vpack.c.b16 %v2821, %v2817
        %v4474 = vpack.c.b16 %v2822, %v2818
        %v4475 = vpack.c.b16 %v2823, %v2819
        %v4476 = vpack.c.b16 %v2828, %v2824
        %v4477 = vpack.c.b16 %v2829, %v2825
        %v4478 = vpack.c.b16 %v2830, %v2826
        %v4479 = vpack.c.b16 %v2831, %v2827
        %v4480 = vpack.c.b16 %v2836, %v2832
        %v4481 = vpack.c.b16 %v2837, %v2833
        %v4482 = vpack.c.b16 %v2838, %v2834
        %v4483 = vpack.c.b16 %v2839, %v2835
        %v4484 = vpack.c.b16 %v2844, %v2840
        %v4485 = vpack.c.b16 %v2845, %v2841
        %v4486 = vpack.c.b16 %v2846, %v2842
        %v4487 = vpack.c.b16 %v2847, %v2843
        %v4488 = vpack.c.b16 %v2852, %v2848
        %v4489 = vpack.c.b16 %v2853, %v2849
        %v4490 = vpack.c.b16 %v2854, %v2850
        %v4491 = vpack.c.b16 %v2855, %v2851
        %v4492 = vpack.c.b16 %v2860, %v2856
        %v4493 = vpack.c.b16 %v2861, %v2857
        %v4494 = vpack.c.b16 %v2862, %v2858
        %v4495 = vpack.c.b16 %v2863, %v2859
        %v4496 = vpack.c.b16 %v2868, %v2864
        %v4497 = vpack.c.b16 %v2869, %v2865
        %v4498 = vpack.c.b16 %v2870, %v2866
        %v4499 = vpack.c.b16 %v2871, %v2867
        %v4500 = vpack.c.b16 %v2876, %v2872
        %v4501 = vpack.c.b16 %v2877, %v2873
        %v4502 = vpack.c.b16 %v2878, %v2874
        %v4503 = vpack.c.b16 %v2879, %v2875
        %v4504 = vpack.c.b16 %v2884, %v2880
        %v4505 = vpack.c.b16 %v2885, %v2881
        %v4506 = vpack.c.b16 %v2886, %v2882
        %v4507 = vpack.c.b16 %v2887, %v2883
        %v4508 = vpack.c.b16 %v2892, %v2888
        %v4509 = vpack.c.b16 %v2893, %v2889
        %v4510 = vpack.c.b16 %v2894, %v2890
        %v4511 = vpack.c.b16 %v2895, %v2891
        %v4512 = vpack.c.b16 %v2900, %v2896
        %v4513 = vpack.c.b16 %v2901, %v2897
        %v4514 = vpack.c.b16 %v2902, %v2898
        %v4515 = vpack.c.b16 %v2903, %v2899
        %v4516 = vpack.c.b16 %v2908, %v2904
        %v4517 = vpack.c.b16 %v2909, %v2905
        %v4518 = vpack.c.b16 %v2910, %v2906
        %v4519 = vpack.c.b16 %v2911, %v2907
        %v4520 = vpack.c.b16 %v2916, %v2912
        %v4521 = vpack.c.b16 %v2917, %v2913
        %v4522 = vpack.c.b16 %v2918, %v2914
        %v4523 = vpack.c.b16 %v2919, %v2915
        %v4524 = vpack.c.b16 %v2924, %v2920
        %v4525 = vpack.c.b16 %v2925, %v2921
        %v4526 = vpack.c.b16 %v2926, %v2922
        %v4527 = vpack.c.b16 %v2927, %v2923
        %v4528 = vpack.c.b16 %v2932, %v2928
        %v4529 = vpack.c.b16 %v2933, %v2929
        %v4530 = vpack.c.b16 %v2934, %v2930
        %v4531 = vpack.c.b16 %v2935, %v2931
        %v4532 = vpack.c.b16 %v2940, %v2936
        %v4533 = vpack.c.b16 %v2941, %v2937
        %v4534 = vpack.c.b16 %v2942, %v2938
        %v4535 = vpack.c.b16 %v2943, %v2939
        %v4536 = vpack.c.b16 %v2948, %v2944
        %v4537 = vpack.c.b16 %v2949, %v2945
        %v4538 = vpack.c.b16 %v2950, %v2946
        %v4539 = vpack.c.b16 %v2951, %v2947
        %v4540 = vpack.c.b16 %v2956, %v2952
        %v4541 = vpack.c.b16 %v2957, %v2953
        %v4542 = vpack.c.b16 %v2958, %v2954
        %v4543 = vpack.c.b16 %v2959, %v2955
        %v4544 = vpack.c.b16 %v2964, %v2960
        %v4545 = vpack.c.b16 %v2965, %v2961
        %v4546 = vpack.c.b16 %v2966, %v2962
        %v4547 = vpack.c.b16 %v2967, %v2963
        %v4548 = vpack.c.b16 %v2972, %v2968
        %v4549 = vpack.c.b16 %v2973, %v2969
        %v4550 = vpack.c.b16 %v2974, %v2970
        %v4551 = vpack.c.b16 %v2975, %v2971
        %v4552 = vpack.c.b16 %v2980, %v2976
        %v4553 = vpack.c.b16 %v2981, %v2977
        %v4554 = vpack.c.b16 %v2982, %v2978
        %v4555 = vpack.c.b16 %v2983, %v2979
        %v4556 = vpack.c.b16 %v2988, %v2984
        %v4557 = vpack.c.b16 %v2989, %v2985
        %v4558 = vpack.c.b16 %v2990, %v2986
        %v4559 = vpack.c.b16 %v2991, %v2987
        %v4560 = vpack.c.b16 %v2996, %v2992
        %v4561 = vpack.c.b16 %v2997, %v2993
        %v4562 = vpack.c.b16 %v2998, %v2994
        %v4563 = vpack.c.b16 %v2999, %v2995
        %v4564 = vpack.c.b16 %v3004, %v3000
        %v4565 = vpack.c.b16 %v3005, %v3001
        %v4566 = vpack.c.b16 %v3006, %v3002
        %v4567 = vpack.c.b16 %v3007, %v3003
        %v4568 = vpack.c.b16 %v3012, %v3008
        %v4569 = vpack.c.b16 %v3013, %v3009
        %v4570 = vpack.c.b16 %v3014, %v3010
        %v4571 = vpack.c.b16 %v3015, %v3011
        %v4572 = vpack.c.b16 %v3020, %v3016
        %v4573 = vpack.c.b16 %v3021, %v3017
        %v4574 = vpack.c.b16 %v3022, %v3018
        %v4575 = vpack.c.b16 %v3023, %v3019
        %v4576 = vpack.c.b16 %v3028, %v3024
        %v4577 = vpack.c.b16 %v3029, %v3025
        %v4578 = vpack.c.b16 %v3030, %v3026
        %v4579 = vpack.c.b16 %v3031, %v3027
        %v4580 = vpack.c.b16 %v3036, %v3032
        %v4581 = vpack.c.b16 %v3037, %v3033
        %v4582 = vpack.c.b16 %v3038, %v3034
        %v4583 = vpack.c.b16 %v3039, %v3035
        %v4584 = vpack.c.b16 %v3044, %v3040
        %v4585 = vpack.c.b16 %v3045, %v3041
        %v4586 = vpack.c.b16 %v3046, %v3042
        %v4587 = vpack.c.b16 %v3047, %v3043
        %v4588 = vpack.c.b16 %v3052, %v3048
        %v4589 = vpack.c.b16 %v3053, %v3049
        %v4590 = vpack.c.b16 %v3054, %v3050
        %v4591 = vpack.c.b16 %v3055, %v3051
        %v4592 = vpack.c.b16 %v3060, %v3056
        %v4593 = vpack.c.b16 %v3061, %v3057
        %v4594 = vpack.c.b16 %v3062, %v3058
        %v4595 = vpack.c.b16 %v3063, %v3059
        %v4596 = vpack.c.b16 %v3068, %v3064
        %v4597 = vpack.c.b16 %v3069, %v3065
        %v4598 = vpack.c.b16 %v3070, %v3066
        %v4599 = vpack.c.b16 %v3071, %v3067
        %v4600 = vpack.c.b16 %v3076, %v3072
        %v4601 = vpack.c.b16 %v3077, %v3073
        %v4602 = vpack.c.b16 %v3078, %v3074
        %v4603 = vpack.c.b16 %v3079, %v3075
        %v4604 = vpack.c.b16 %v3084, %v3080
        %v4605 = vpack.c.b16 %v3085, %v3081
        %v4606 = vpack.c.b16 %v3086, %v3082
        %v4607 = vpack.c.b16 %v3087, %v3083
        %v4608 = vpack.c.b16 %v3092, %v3088
        %v4609 = vpack.c.b16 %v3093, %v3089
        %v4610 = vpack.c.b16 %v3094, %v3090
        %v4611 = vpack.c.b16 %v3095, %v3091
        %v4612 = vpack.c.b16 %v3100, %v3096
        %v4613 = vpack.c.b16 %v3101, %v3097
        %v4614 = vpack.c.b16 %v3102, %v3098
        %v4615 = vpack.c.b16 %v3103, %v3099
        %v4616 = vpack.c.b16 %v3108, %v3104
        %v4617 = vpack.c.b16 %v3109, %v3105
        %v4618 = vpack.c.b16 %v3110, %v3106
        %v4619 = vpack.c.b16 %v3111, %v3107
        %v4620 = vpack.c.b16 %v3116, %v3112
        %v4621 = vpack.c.b16 %v3117, %v3113
        %v4622 = vpack.c.b16 %v3118, %v3114
        %v4623 = vpack.c.b16 %v3119, %v3115
        %v4624 = vpack.c.b16 %v3124, %v3120
        %v4625 = vpack.c.b16 %v3125, %v3121
        %v4626 = vpack.c.b16 %v3126, %v3122
        %v4627 = vpack.c.b16 %v3127, %v3123
        %v4628 = vpack.c.b16 %v3132, %v3128
        %v4629 = vpack.c.b16 %v3133, %v3129
        %v4630 = vpack.c.b16 %v3134, %v3130
        %v4631 = vpack.c.b16 %v3135, %v3131
        %v4632 = vpack.c.b16 %v3140, %v3136
        %v4633 = vpack.c.b16 %v3141, %v3137
        %v4634 = vpack.c.b16 %v3142, %v3138
        %v4635 = vpack.c.b16 %v3143, %v3139
        %v4636 = vpack.c.b16 %v3148, %v3144
        %v4637 = vpack.c.b16 %v3149, %v3145
        %v4638 = vpack.c.b16 %v3150, %v3146
        %v4639 = vpack.c.b16 %v3151, %v3147
        %v4640 = vpack.c.b16 %v3156, %v3152
        %v4641 = vpack.c.b16 %v3157, %v3153
        %v4642 = vpack.c.b16 %v3158, %v3154
        %v4643 = vpack.c.b16 %v3159, %v3155
        %v4644 = vpack.c.b16 %v3164, %v3160
        %v4645 = vpack.c.b16 %v3165, %v3161
        %v4646 = vpack.c.b16 %v3166, %v3162
        %v4647 = vpack.c.b16 %v3167, %v3163
        %v4648 = vpack.c.b16 %v3172, %v3168
        %v4649 = vpack.c.b16 %v3173, %v3169
        %v4650 = vpack.c.b16 %v3174, %v3170
        %v4651 = vpack.c.b16 %v3175, %v3171
        %v4652 = vpack.c.b16 %v3180, %v3176
        %v4653 = vpack.c.b16 %v3181, %v3177
        %v4654 = vpack.c.b16 %v3182, %v3178
        %v4655 = vpack.c.b16 %v3183, %v3179
        %v4656 = vpack.c.b16 %v3188, %v3184
        %v4657 = vpack.c.b16 %v3189, %v3185
        %v4658 = vpack.c.b16 %v3190, %v3186
        %v4659 = vpack.c.b16 %v3191, %v3187
        %v4660 = vpack.c.b16 %v3196, %v3192
        %v4661 = vpack.c.b16 %v3197, %v3193
        %v4662 = vpack.c.b16 %v3198, %v3194
        %v4663 = vpack.c.b16 %v3199, %v3195
        %v4664 = vpack.c.b16 %v3204, %v3200
        %v4665 = vpack.c.b16 %v3205, %v3201
        %v4666 = vpack.c.b16 %v3206, %v3202
        %v4667 = vpack.c.b16 %v3207, %v3203
        %v4668 = vpack.c.b16 %v3212, %v3208
        %v4669 = vpack.c.b16 %v3213, %v3209
        %v4670 = vpack.c.b16 %v3214, %v3210
        %v4671 = vpack.c.b16 %v3215, %v3211
        %v4672 = vpack.c.b16 %v3220, %v3216
        %v4673 = vpack.c.b16 %v3221, %v3217
        %v4674 = vpack.c.b16 %v3222, %v3218
        %v4675 = vpack.c.b16 %v3223, %v3219
        %v4676 = vpack.c.b16 %v3228, %v3224
        %v4677 = vpack.c.b16 %v3229, %v3225
        %v4678 = vpack.c.b16 %v3230, %v3226
        %v4679 = vpack.c.b16 %v3231, %v3227
        %v4680 = vpack.c.b16 %v3236, %v3232
        %v4681 = vpack.c.b16 %v3237, %v3233
        %v4682 = vpack.c.b16 %v3238, %v3234
        %v4683 = vpack.c.b16 %v3239, %v3235
        %v4684 = vpack.c.b16 %v3244, %v3240
        %v4685 = vpack.c.b16 %v3245, %v3241
        %v4686 = vpack.c.b16 %v3246, %v3242
        %v4687 = vpack.c.b16 %v3247, %v3243
        %v4688 = vpack.c.b16 %v3252, %v3248
        %v4689 = vpack.c.b16 %v3253, %v3249
        %v4690 = vpack.c.b16 %v3254, %v3250
        %v4691 = vpack.c.b16 %v3255, %v3251
        %v4692 = vpack.c.b16 %v3260, %v3256
        %v4693 = vpack.c.b16 %v3261, %v3257
        %v4694 = vpack.c.b16 %v3262, %v3258
        %v4695 = vpack.c.b16 %v3263, %v3259
        %v4696 = vpack.c.b16 %v3268, %v3264
        %v4697 = vpack.c.b16 %v3269, %v3265
        %v4698 = vpack.c.b16 %v3270, %v3266
        %v4699 = vpack.c.b16 %v3271, %v3267
        %v4700 = vpack.c.b16 %v3276, %v3272
        %v4701 = vpack.c.b16 %v3277, %v3273
        %v4702 = vpack.c.b16 %v3278, %v3274
        %v4703 = vpack.c.b16 %v3279, %v3275
        %v4704 = vpack.c.b16 %v3284, %v3280
        %v4705 = vpack.c.b16 %v3285, %v3281
        %v4706 = vpack.c.b16 %v3286, %v3282
        %v4707 = vpack.c.b16 %v3287, %v3283
        %v4708 = vpack.c.b16 %v3292, %v3288
        %v4709 = vpack.c.b16 %v3293, %v3289
        %v4710 = vpack.c.b16 %v3294, %v3290
        %v4711 = vpack.c.b16 %v3295, %v3291
        %v4712 = vpack.c.b16 %v3300, %v3296
        %v4713 = vpack.c.b16 %v3301, %v3297
        %v4714 = vpack.c.b16 %v3302, %v3298
        %v4715 = vpack.c.b16 %v3303, %v3299
        %v4716 = vpack.c.b16 %v3308, %v3304
        %v4717 = vpack.c.b16 %v3309, %v3305
        %v4718 = vpack.c.b16 %v3310, %v3306
        %v4719 = vpack.c.b16 %v3311, %v3307
        %v4720 = vpack.c.b16 %v3316, %v3312
        %v4721 = vpack.c.b16 %v3317, %v3313
        %v4722 = vpack.c.b16 %v3318, %v3314
        %v4723 = vpack.c.b16 %v3319, %v3315
        %v4724 = vpack.c.b16 %v3324, %v3320
        %v4725 = vpack.c.b16 %v3325, %v3321
        %v4726 = vpack.c.b16 %v3326, %v3322
        %v4727 = vpack.c.b16 %v3327, %v3323
        %v4728 = vpack.c.b16 %v3332, %v3328
        %v4729 = vpack.c.b16 %v3333, %v3329
        %v4730 = vpack.c.b16 %v3334, %v3330
        %v4731 = vpack.c.b16 %v3335, %v3331
        %v4732 = vpack.c.b16 %v3340, %v3336
        %v4733 = vpack.c.b16 %v3341, %v3337
        %v4734 = vpack.c.b16 %v3342, %v3338
        %v4735 = vpack.c.b16 %v3343, %v3339
        %v4736 = vpack.c.b16 %v3348, %v3344
        %v4737 = vpack.c.b16 %v3349, %v3345
        %v4738 = vpack.c.b16 %v3350, %v3346
        %v4739 = vpack.c.b16 %v3351, %v3347
        %v4740 = vpack.c.b16 %v3356, %v3352
        %v4741 = vpack.c.b16 %v3357, %v3353
        %v4742 = vpack.c.b16 %v3358, %v3354
        %v4743 = vpack.c.b16 %v3359, %v3355
        %v4744 = vpack.c.b16 %v3364, %v3360
        %v4745 = vpack.c.b16 %v3365, %v3361
        %v4746 = vpack.c.b16 %v3366, %v3362
        %v4747 = vpack.c.b16 %v3367, %v3363
        %v4748 = vpack.c.b16 %v3372, %v3368
        %v4749 = vpack.c.b16 %v3373, %v3369
        %v4750 = vpack.c.b16 %v3374, %v3370
        %v4751 = vpack.c.b16 %v3375, %v3371
        %v4752 = vpack.c.b16 %v3380, %v3376
        %v4753 = vpack.c.b16 %v3381, %v3377
        %v4754 = vpack.c.b16 %v3382, %v3378
        %v4755 = vpack.c.b16 %v3383, %v3379
        %v4756 = vpack.c.b16 %v3388, %v3384
        %v4757 = vpack.c.b16 %v3389, %v3385
        %v4758 = vpack.c.b16 %v3390, %v3386
        %v4759 = vpack.c.b16 %v3391, %v3387
        %v4760 = vpack.c.b16 %v3396, %v3392
        %v4761 = vpack.c.b16 %v3397, %v3393
        %v4762 = vpack.c.b16 %v3398, %v3394
        %v4763 = vpack.c.b16 %v3399, %v3395
        %v4764 = vpack.c.b16 %v3404, %v3400
        %v4765 = vpack.c.b16 %v3405, %v3401
        %v4766 = vpack.c.b16 %v3406, %v3402
        %v4767 = vpack.c.b16 %v3407, %v3403
        %v4768 = vpack.c.b16 %v3412, %v3408
        %v4769 = vpack.c.b16 %v3413, %v3409
        %v4770 = vpack.c.b16 %v3414, %v3410
        %v4771 = vpack.c.b16 %v3415, %v3411
        %v4772 = vpack.c.b16 %v3420, %v3416
        %v4773 = vpack.c.b16 %v3421, %v3417
        %v4774 = vpack.c.b16 %v3422, %v3418
        %v4775 = vpack.c.b16 %v3423, %v3419
        %v4776 = vpack.c.b16 %v3428, %v3424
        %v4777 = vpack.c.b16 %v3429, %v3425
        %v4778 = vpack.c.b16 %v3430, %v3426
        %v4779 = vpack.c.b16 %v3431, %v3427
        %v4780 = vpack.c.b16 %v3436, %v3432
        %v4781 = vpack.c.b16 %v3437, %v3433
        %v4782 = vpack.c.b16 %v3438, %v3434
        %v4783 = vpack.c.b16 %v3439, %v3435
        %v4784 = vpack.c.b16 %v3444, %v3440
        %v4785 = vpack.c.b16 %v3445, %v3441
        %v4786 = vpack.c.b16 %v3446, %v3442
        %v4787 = vpack.c.b16 %v3447, %v3443
        %v4788 = vpack.c.b16 %v3452, %v3448
        %v4789 = vpack.c.b16 %v3453, %v3449
        %v4790 = vpack.c.b16 %v3454, %v3450
        %v4791 = vpack.c.b16 %v3455, %v3451
        %v4792 = vpack.c.b16 %v3460, %v3456
        %v4793 = vpack.c.b16 %v3461, %v3457
        %v4794 = vpack.c.b16 %v3462, %v3458
        %v4795 = vpack.c.b16 %v3463, %v3459
        %v4796 = vpack.c.b16 %v3468, %v3464
        %v4797 = vpack.c.b16 %v3469, %v3465
        %v4798 = vpack.c.b16 %v3470, %v3466
        %v4799 = vpack.c.b16 %v3471, %v3467
        %v4800 = vpack.c.b16 %v3476, %v3472
        %v4801 = vpack.c.b16 %v3477, %v3473
        %v4802 = vpack.c.b16 %v3478, %v3474
        %v4803 = vpack.c.b16 %v3479, %v3475
        %v4804 = vpack.c.b16 %v3484, %v3480
        %v4805 = vpack.c.b16 %v3485, %v3481
        %v4806 = vpack.c.b16 %v3486, %v3482
        %v4807 = vpack.c.b16 %v3487, %v3483
        %v4808 = vpack.c.b16 %v3492, %v3488
        %v4809 = vpack.c.b16 %v3493, %v3489
        %v4810 = vpack.c.b16 %v3494, %v3490
        %v4811 = vpack.c.b16 %v3495, %v3491
        %v4812 = vpack.c.b16 %v3500, %v3496
        %v4813 = vpack.c.b16 %v3501, %v3497
        %v4814 = vpack.c.b16 %v3502, %v3498
        %v4815 = vpack.c.b16 %v3503, %v3499
        %v4816 = vpack.c.b16 %v3508, %v3504
        %v4817 = vpack.c.b16 %v3509, %v3505
        %v4818 = vpack.c.b16 %v3510, %v3506
        %v4819 = vpack.c.b16 %v3511, %v3507
        %v4820 = vpack.c.b16 %v3516, %v3512
        %v4821 = vpack.c.b16 %v3517, %v3513
        %v4822 = vpack.c.b16 %v3518, %v3514
        %v4823 = vpack.c.b16 %v3519, %v3515
        %v4824 = vpack.c.b16 %v3524, %v3520
        %v4825 = vpack.c.b16 %v3525, %v3521
        %v4826 = vpack.c.b16 %v3526, %v3522
        %v4827 = vpack.c.b16 %v3527, %v3523
        %v4828 = vpack.c.b16 %v3532, %v3528
        %v4829 = vpack.c.b16 %v3533, %v3529
        %v4830 = vpack.c.b16 %v3534, %v3530
        %v4831 = vpack.c.b16 %v3535, %v3531
        %v4832 = vpack.c.b16 %v3540, %v3536
        %v4833 = vpack.c.b16 %v3541, %v3537
        %v4834 = vpack.c.b16 %v3542, %v3538
        %v4835 = vpack.c.b16 %v3543, %v3539
        %v4836 = vpack.c.b16 %v3548, %v3544
        %v4837 = vpack.c.b16 %v3549, %v3545
        %v4838 = vpack.c.b16 %v3550, %v3546
        %v4839 = vpack.c.b16 %v3551, %v3547
        %v4840 = vpack.c.b16 %v3556, %v3552
        %v4841 = vpack.c.b16 %v3557, %v3553
        %v4842 = vpack.c.b16 %v3558, %v3554
        %v4843 = vpack.c.b16 %v3559, %v3555
        %v4844 = vpack.c.b16 %v3564, %v3560
        %v4845 = vpack.c.b16 %v3565, %v3561
        %v4846 = vpack.c.b16 %v3566, %v3562
        %v4847 = vpack.c.b16 %v3567, %v3563
        %v4848 = vpack.c.b16 %v3572, %v3568
        %v4849 = vpack.c.b16 %v3573, %v3569
        %v4850 = vpack.c.b16 %v3574, %v3570
        %v4851 = vpack.c.b16 %v3575, %v3571
        %v4852 = vpack.c.b16 %v3580, %v3576
        %v4853 = vpack.c.b16 %v3581, %v3577
        %v4854 = vpack.c.b16 %v3582, %v3578
        %v4855 = vpack.c.b16 %v3583, %v3579
        %v4856 = vpack.c.b16 %v3588, %v3584
        %v4857 = vpack.c.b16 %v3589, %v3585
        %v4858 = vpack.c.b16 %v3590, %v3586
        %v4859 = vpack.c.b16 %v3591, %v3587
        %v4860 = vpack.c.b16 %v3596, %v3592
        %v4861 = vpack.c.b16 %v3597, %v3593
        %v4862 = vpack.c.b16 %v3598, %v3594
        %v4863 = vpack.c.b16 %v3599, %v3595
        %v4864 = vpack.c.b16 %v3604, %v3600
        %v4865 = vpack.c.b16 %v3605, %v3601
        %v4866 = vpack.c.b16 %v3606, %v3602
        %v4867 = vpack.c.b16 %v3607, %v3603
        %v4868 = vpack.c.b16 %v3612, %v3608
        %v4869 = vpack.c.b16 %v3613, %v3609
        %v4870 = vpack.c.b16 %v3614, %v3610
        %v4871 = vpack.c.b16 %v3615, %v3611
        %v4872 = vpack.c.b16 %v3620, %v3616
        %v4873 = vpack.c.b16 %v3621, %v3617
        %v4874 = vpack.c.b16 %v3622, %v3618
        %v4875 = vpack.c.b16 %v3623, %v3619
        %v4876 = vpack.c.b16 %v3628, %v3624
        %v4877 = vpack.c.b16 %v3629, %v3625
        %v4878 = vpack.c.b16 %v3630, %v3626
        %v4879 = vpack.c.b16 %v3631, %v3627
        %v4880 = vpack.c.b16 %v3636, %v3632
        %v4881 = vpack.c.b16 %v3637, %v3633
        %v4882 = vpack.c.b16 %v3638, %v3634
        %v4883 = vpack.c.b16 %v3639, %v3635
        %v4884 = vpack.c.b16 %v3644, %v3640
        %v4885 = vpack.c.b16 %v3645, %v3641
        %v4886 = vpack.c.b16 %v3646, %v3642
        %v4887 = vpack.c.b16 %v3647, %v3643
        %v4888 = vpack.c.b16 %v3652, %v3648
        %v4889 = vpack.c.b16 %v3653, %v3649
        %v4890 = vpack.c.b16 %v3654, %v3650
        %v4891 = vpack.c.b16 %v3655, %v3651
        %v4892 = vpack.c.b16 %v3660, %v3656
        %v4893 = vpack.c.b16 %v3661, %v3657
        %v4894 = vpack.c.b16 %v3662, %v3658
        %v4895 = vpack.c.b16 %v3663, %v3659
        %v4896 = vpack.c.b16 %v3668, %v3664
        %v4897 = vpack.c.b16 %v3669, %v3665
        %v4898 = vpack.c.b16 %v3670, %v3666
        %v4899 = vpack.c.b16 %v3671, %v3667
        %v4900 = vpack.c.b16 %v3676, %v3672
        %v4901 = vpack.c.b16 %v3677, %v3673
        %v4902 = vpack.c.b16 %v3678, %v3674
        %v4903 = vpack.c.b16 %v3679, %v3675
        %v4904 = vpack.c.b16 %v3684, %v3680
        %v4905 = vpack.c.b16 %v3685, %v3681
        %v4906 = vpack.c.b16 %v3686, %v3682
        %v4907 = vpack.c.b16 %v3687, %v3683
        %v4908 = vpack.c.b16 %v3692, %v3688
        %v4909 = vpack.c.b16 %v3693, %v3689
        %v4910 = vpack.c.b16 %v3694, %v3690
        %v4911 = vpack.c.b16 %v3695, %v3691
        %v4912 = vpack.c.b16 %v3700, %v3696
        %v4913 = vpack.c.b16 %v3701, %v3697
        %v4914 = vpack.c.b16 %v3702, %v3698
        %v4915 = vpack.c.b16 %v3703, %v3699
        %v4916 = vpack.c.b16 %v3708, %v3704
        %v4917 = vpack.c.b16 %v3709, %v3705
        %v4918 = vpack.c.b16 %v3710, %v3706
        %v4919 = vpack.c.b16 %v3711, %v3707
        %v4920 = vpack.c.b16 %v3716, %v3712
        %v4921 = vpack.c.b16 %v3717, %v3713
        %v4922 = vpack.c.b16 %v3718, %v3714
        %v4923 = vpack.c.b16 %v3719, %v3715
        %v4924 = vpack.c.b16 %v3724, %v3720
        %v4925 = vpack.c.b16 %v3725, %v3721
        %v4926 = vpack.c.b16 %v3726, %v3722
        %v4927 = vpack.c.b16 %v3727, %v3723
        %v4928 = vpack.c.b16 %v3732, %v3728
        %v4929 = vpack.c.b16 %v3733, %v3729
        %v4930 = vpack.c.b16 %v3734, %v3730
        %v4931 = vpack.c.b16 %v3735, %v3731
        %v4932 = vpack.c.b16 %v3740, %v3736
        %v4933 = vpack.c.b16 %v3741, %v3737
        %v4934 = vpack.c.b16 %v3742, %v3738
        %v4935 = vpack.c.b16 %v3743, %v3739
        %v4936 = vpack.c.b16 %v3748, %v3744
        %v4937 = vpack.c.b16 %v3749, %v3745
        %v4938 = vpack.c.b16 %v3750, %v3746
        %v4939 = vpack.c.b16 %v3751, %v3747
        %v4940 = vpack.c.b16 %v3756, %v3752
        %v4941 = vpack.c.b16 %v3757, %v3753
        %v4942 = vpack.c.b16 %v3758, %v3754
        %v4943 = vpack.c.b16 %v3759, %v3755
        %v4944 = vpack.c.b16 %v3764, %v3760
        %v4945 = vpack.c.b16 %v3765, %v3761
        %v4946 = vpack.c.b16 %v3766, %v3762
        %v4947 = vpack.c.b16 %v3767, %v3763
        %v4948 = vpack.c.b16 %v3772, %v3768
        %v4949 = vpack.c.b16 %v3773, %v3769
        %v4950 = vpack.c.b16 %v3774, %v3770
        %v4951 = vpack.c.b16 %v3775, %v3771
        %v4952 = vpack.c.b16 %v3780, %v3776
        %v4953 = vpack.c.b16 %v3781, %v3777
        %v4954 = vpack.c.b16 %v3782, %v3778
        %v4955 = vpack.c.b16 %v3783, %v3779
        %v4956 = vpack.c.b16 %v3788, %v3784
        %v4957 = vpack.c.b16 %v3789, %v3785
        %v4958 = vpack.c.b16 %v3790, %v3786
        %v4959 = vpack.c.b16 %v3791, %v3787
        %v4960 = vpack.c.b16 %v3796, %v3792
        %v4961 = vpack.c.b16 %v3797, %v3793
        %v4962 = vpack.c.b16 %v3798, %v3794
        %v4963 = vpack.c.b16 %v3799, %v3795
        %v4964 = vpack.c.b16 %v3804, %v3800
        %v4965 = vpack.c.b16 %v3805, %v3801
        %v4966 = vpack.c.b16 %v3806, %v3802
        %v4967 = vpack.c.b16 %v3807, %v3803
        %v4968 = vpack.c.b16 %v3812, %v3808
        %v4969 = vpack.c.b16 %v3813, %v3809
        %v4970 = vpack.c.b16 %v3814, %v3810
        %v4971 = vpack.c.b16 %v3815, %v3811
        %v4972 = vpack.c.b16 %v3820, %v3816
        %v4973 = vpack.c.b16 %v3821, %v3817
        %v4974 = vpack.c.b16 %v3822, %v3818
        %v4975 = vpack.c.b16 %v3823, %v3819
        %v4976 = vpack.c.b16 %v3828, %v3824
        %v4977 = vpack.c.b16 %v3829, %v3825
        %v4978 = vpack.c.b16 %v3830, %v3826
        %v4979 = vpack.c.b16 %v3831, %v3827
        %v4980 = vpack.c.b16 %v3836, %v3832
        %v4981 = vpack.c.b16 %v3837, %v3833
        %v4982 = vpack.c.b16 %v3838, %v3834
        %v4983 = vpack.c.b16 %v3839, %v3835
        %v4984 = vpack.c.b16 %v3844, %v3840
        %v4985 = vpack.c.b16 %v3845, %v3841
        %v4986 = vpack.c.b16 %v3846, %v3842
        %v4987 = vpack.c.b16 %v3847, %v3843
        %v4988 = vpack.c.b16 %v3852, %v3848
        %v4989 = vpack.c.b16 %v3853, %v3849
        %v4990 = vpack.c.b16 %v3854, %v3850
        %v4991 = vpack.c.b16 %v3855, %v3851
        %v4992 = vpack.c.b16 %v3860, %v3856
        %v4993 = vpack.c.b16 %v3861, %v3857
        %v4994 = vpack.c.b16 %v3862, %v3858
        %v4995 = vpack.c.b16 %v3863, %v3859
        %v4996 = vpack.c.b16 %v3868, %v3864
        %v4997 = vpack.c.b16 %v3869, %v3865
        %v4998 = vpack.c.b16 %v3870, %v3866
        %v4999 = vpack.c.b16 %v3871, %v3867
        %v5000 = vpack.c.b16 %v3876, %v3872
        %v5001 = vpack.c.b16 %v3877, %v3873
        %v5002 = vpack.c.b16 %v3878, %v3874
        %v5003 = vpack.c.b16 %v3879, %v3875
        %v5004 = vpack.c.b16 %v3884, %v3880
        %v5005 = vpack.c.b16 %v3885, %v3881
        %v5006 = vpack.c.b16 %v3886, %v3882
        %v5007 = vpack.c.b16 %v3887, %v3883
        %v5008 = vpack.c.b16 %v3892, %v3888
        %v5009 = vpack.c.b16 %v3893, %v3889
        %v5010 = vpack.c.b16 %v3894, %v3890
        %v5011 = vpack.c.b16 %v3895, %v3891
        %v5012 = vpack.c.b16 %v3900, %v3896
        %v5013 = vpack.c.b16 %v3901, %v3897
        %v5014 = vpack.c.b16 %v3902, %v3898
        %v5015 = vpack.c.b16 %v3903, %v3899
        %v5016 = vpack.c.b16 %v3908, %v3904
        %v5017 = vpack.c.b16 %v3909, %v3905
        %v5018 = vpack.c.b16 %v3910, %v3906
        %v5019 = vpack.c.b16 %v3911, %v3907
        %v5020 = vpack.c.b16 %v3916, %v3912
        %v5021 = vpack.c.b16 %v3917, %v3913
        %v5022 = vpack.c.b16 %v3918, %v3914
        %v5023 = vpack.c.b16 %v3919, %v3915
        %v5024 = vpack.c.b16 %v3924, %v3920
        %v5025 = vpack.c.b16 %v3925, %v3921
        %v5026 = vpack.c.b16 %v3926, %v3922
        %v5027 = vpack.c.b16 %v3927, %v3923
        %v5028 = vpack.c.b16 %v3932, %v3928
        %v5029 = vpack.c.b16 %v3933, %v3929
        %v5030 = vpack.c.b16 %v3934, %v3930
        %v5031 = vpack.c.b16 %v3935, %v3931
        %v5032 = vpack.c.b16 %v3940, %v3936
        %v5033 = vpack.c.b16 %v3941, %v3937
        %v5034 = vpack.c.b16 %v3942, %v3938
        %v5035 = vpack.c.b16 %v3943, %v3939
        %v5036 = vpack.c.b16 %v3948, %v3944
        %v5037 = vpack.c.b16 %v3949, %v3945
        %v5038 = vpack.c.b16 %v3950, %v3946
        %v5039 = vpack.c.b16 %v3951, %v3947
        %v5040 = vpack.c.b16 %v3956, %v3952
        %v5041 = vpack.c.b16 %v3957, %v3953
        %v5042 = vpack.c.b16 %v3958, %v3954
        %v5043 = vpack.c.b16 %v3959, %v3955
        %v5044 = vpack.c.b16 %v3964, %v3960
        %v5045 = vpack.c.b16 %v3965, %v3961
        %v5046 = vpack.c.b16 %v3966, %v3962
        %v5047 = vpack.c.b16 %v3967, %v3963
        %v5048 = vpack.c.b16 %v3972, %v3968
        %v5049 = vpack.c.b16 %v3973, %v3969
        %v5050 = vpack.c.b16 %v3974, %v3970
        %v5051 = vpack.c.b16 %v3975, %v3971
        %v5052 = vpack.c.b16 %v3980, %v3976
        %v5053 = vpack.c.b16 %v3981, %v3977
        %v5054 = vpack.c.b16 %v3982, %v3978
        %v5055 = vpack.c.b16 %v3983, %v3979
        %v5056 = vpack.c.b16 %v3988, %v3984
        %v5057 = vpack.c.b16 %v3989, %v3985
        %v5058 = vpack.c.b16 %v3990, %v3986
        %v5059 = vpack.c.b16 %v3991, %v3987
        %v5060 = vpack.c.b16 %v3996, %v3992
        %v5061 = vpack.c.b16 %v3997, %v3993
        %v5062 = vpack.c.b16 %v3998, %v3994
        %v5063 = vpack.c.b16 %v3999, %v3995
        %v5064 = vpack.c.b16 %v4004, %v4000
        %v5065 = vpack.c.b16 %v4005, %v4001
        %v5066 = vpack.c.b16 %v4006, %v4002
        %v5067 = vpack.c.b16 %v4007, %v4003
        %v5068 = vpack.c.b16 %v4012, %v4008
        %v5069 = vpack.c.b16 %v4013, %v4009
        %v5070 = vpack.c.b16 %v4014, %v4010
        %v5071 = vpack.c.b16 %v4015, %v4011
        %v5072 = vpack.c.b16 %v4020, %v4016
        %v5073 = vpack.c.b16 %v4021, %v4017
        %v5074 = vpack.c.b16 %v4022, %v4018
        %v5075 = vpack.c.b16 %v4023, %v4019
        %v5076 = vpack.c.b16 %v4028, %v4024
        %v5077 = vpack.c.b16 %v4029, %v4025
        %v5078 = vpack.c.b16 %v4030, %v4026
        %v5079 = vpack.c.b16 %v4031, %v4027
        %v5080 = vpack.c.b16 %v4036, %v4032
        %v5081 = vpack.c.b16 %v4037, %v4033
        %v5082 = vpack.c.b16 %v4038, %v4034
        %v5083 = vpack.c.b16 %v4039, %v4035
        %v5084 = vpack.c.b16 %v4044, %v4040
        %v5085 = vpack.c.b16 %v4045, %v4041
        %v5086 = vpack.c.b16 %v4046, %v4042
        %v5087 = vpack.c.b16 %v4047, %v4043
        %v5088 = vpack.c.b16 %v4052, %v4048
        %v5089 = vpack.c.b16 %v4053, %v4049
        %v5090 = vpack.c.b16 %v4054, %v4050
        %v5091 = vpack.c.b16 %v4055, %v4051
        %v5092 = vpack.c.b16 %v4060, %v4056
        %v5093 = vpack.c.b16 %v4061, %v4057
        %v5094 = vpack.c.b16 %v4062, %v4058
        %v5095 = vpack.c.b16 %v4063, %v4059
        %v5096 = vpack.c.b16 %v4068, %v4064
        %v5097 = vpack.c.b16 %v4069, %v4065
        %v5098 = vpack.c.b16 %v4070, %v4066
        %v5099 = vpack.c.b16 %v4071, %v4067
        %v5100 = vpack.c.b16 %v4076, %v4072
        %v5101 = vpack.c.b16 %v4077, %v4073
        %v5102 = vpack.c.b16 %v4078, %v4074
        %v5103 = vpack.c.b16 %v4079, %v4075
        %v5104 = vpack.c.b16 %v4084, %v4080
        %v5105 = vpack.c.b16 %v4085, %v4081
        %v5106 = vpack.c.b16 %v4086, %v4082
        %v5107 = vpack.c.b16 %v4087, %v4083
        %v5108 = vpack.c.b16 %v4092, %v4088
        %v5109 = vpack.c.b16 %v4093, %v4089
        %v5110 = vpack.c.b16 %v4094, %v4090
        %v5111 = vpack.c.b16 %v4095, %v4091
        %v5112 = vpack.c.b16 %v4100, %v4096
        %v5113 = vpack.c.b16 %v4101, %v4097
        %v5114 = vpack.c.b16 %v4102, %v4098
        %v5115 = vpack.c.b16 %v4103, %v4099
        %v5116 = vpack.c.b16 %v4108, %v4104
        %v5117 = vpack.c.b16 %v4109, %v4105
        %v5118 = vpack.c.b16 %v4110, %v4106
        %v5119 = vpack.c.b16 %v4111, %v4107
        %v5120 = vpack.c.b16 %v4116, %v4112
        %v5121 = vpack.c.b16 %v4117, %v4113
        %v5122 = vpack.c.b16 %v4118, %v4114
        %v5123 = vpack.c.b16 %v4119, %v4115
        %v5124 = vpack.c.b16 %v4124, %v4120
        %v5125 = vpack.c.b16 %v4125, %v4121
        %v5126 = vpack.c.b16 %v4126, %v4122
        %v5127 = vpack.c.b16 %v4127, %v4123
        %v5128 = vpack.c.b16 %v4132, %v4128
        %v5129 = vpack.c.b16 %v4133, %v4129
        %v5130 = vpack.c.b16 %v4134, %v4130
        %v5131 = vpack.c.b16 %v4135, %v4131
        %v5132 = vpack.c.b16 %v4140, %v4136
        %v5133 = vpack.c.b16 %v4141, %v4137
        %v5134 = vpack.c.b16 %v4142, %v4138
        %v5135 = vpack.c.b16 %v4143, %v4139
        %v5136 = vpack.c.b16 %v4148, %v4144
        %v5137 = vpack.c.b16 %v4149, %v4145
        %v5138 = vpack.c.b16 %v4150, %v4146
        %v5139 = vpack.c.b16 %v4151, %v4147
        %v5140 = vpack.c.b16 %v4156, %v4152
        %v5141 = vpack.c.b16 %v4157, %v4153
        %v5142 = vpack.c.b16 %v4158, %v4154
        %v5143 = vpack.c.b16 %v4159, %v4155
        %v5144 = vpack.c.b16 %v4164, %v4160
        %v5145 = vpack.c.b16 %v4165, %v4161
        %v5146 = vpack.c.b16 %v4166, %v4162
        %v5147 = vpack.c.b16 %v4167, %v4163
        %v5148 = vpack.c.b16 %v4172, %v4168
        %v5149 = vpack.c.b16 %v4173, %v4169
        %v5150 = vpack.c.b16 %v4174, %v4170
        %v5151 = vpack.c.b16 %v4175, %v4171
        %v5152 = vpack.c.b16 %v4180, %v4176
        %v5153 = vpack.c.b16 %v4181, %v4177
        %v5154 = vpack.c.b16 %v4182, %v4178
        %v5155 = vpack.c.b16 %v4183, %v4179
        %v5156 = vpack.c.b16 %v4188, %v4184
        %v5157 = vpack.c.b16 %v4189, %v4185
        %v5158 = vpack.c.b16 %v4190, %v4186
        %v5159 = vpack.c.b16 %v4191, %v4187
        %v5160 = vpack.c.b16 %v4196, %v4192
        %v5161 = vpack.c.b16 %v4197, %v4193
        %v5162 = vpack.c.b16 %v4198, %v4194
        %v5163 = vpack.c.b16 %v4199, %v4195
        %v5164 = vpack.c.b16 %v4204, %v4200
        %v5165 = vpack.c.b16 %v4205, %v4201
        %v5166 = vpack.c.b16 %v4206, %v4202
        %v5167 = vpack.c.b16 %v4207, %v4203
        %v5168 = vpack.c.b16 %v4212, %v4208
        %v5169 = vpack.c.b16 %v4213, %v4209
        %v5170 = vpack.c.b16 %v4214, %v4210
        %v5171 = vpack.c.b16 %v4215, %v4211
        %v5172 = vpack.c.b16 %v4220, %v4216
        %v5173 = vpack.c.b16 %v4221, %v4217
        %v5174 = vpack.c.b16 %v4222, %v4218
        %v5175 = vpack.c.b16 %v4223, %v4219
        %v5176 = vpack.c.b16 %v4228, %v4224
        %v5177 = vpack.c.b16 %v4229, %v4225
        %v5178 = vpack.c.b16 %v4230, %v4226
        %v5179 = vpack.c.b16 %v4231, %v4227
        %v5180 = vpack.c.b16 %v4236, %v4232
        %v5181 = vpack.c.b16 %v4237, %v4233
        %v5182 = vpack.c.b16 %v4238, %v4234
        %v5183 = vpack.c.b16 %v4239, %v4235
        %v5184 = vpack.c.b16 %v4244, %v4240
        %v5185 = vpack.c.b16 %v4245, %v4241
        %v5186 = vpack.c.b16 %v4246, %v4242
        %v5187 = vpack.c.b16 %v4247, %v4243
        %v5188 = vpack.c.b16 %v4252, %v4248
        %v5189 = vpack.c.b16 %v4253, %v4249
        %v5190 = vpack.c.b16 %v4254, %v4250
        %v5191 = vpack.c.b16 %v4255, %v4251
        %v5192 = vpack.c.b16 %v4260, %v4256
        %v5193 = vpack.c.b16 %v4261, %v4257
        %v5194 = vpack.c.b16 %v4262, %v4258
        %v5195 = vpack.c.b16 %v4263, %v4259
        %v5196 = vpack.c.b16 %v4268, %v4264
        %v5197 = vpack.c.b16 %v4269, %v4265
        %v5198 = vpack.c.b16 %v4270, %v4266
        %v5199 = vpack.c.b16 %v4271, %v4267
        %v5200 = vpack.c.b16 %v4276, %v4272
        %v5201 = vpack.c.b16 %v4277, %v4273
        %v5202 = vpack.c.b16 %v4278, %v4274
        %v5203 = vpack.c.b16 %v4279, %v4275
        %v5204 = vpack.c.b16 %v4284, %v4280
        %v5205 = vpack.c.b16 %v4285, %v4281
        %v5206 = vpack.c.b16 %v4286, %v4282
        %v5207 = vpack.c.b16 %v4287, %v4283
        %v5208 = vpack.c.b16 %v4292, %v4288
        %v5209 = vpack.c.b16 %v4293, %v4289
        %v5210 = vpack.c.b16 %v4294, %v4290
        %v5211 = vpack.c.b16 %v4295, %v4291
        %v5212 = vpack.c.b16 %v4300, %v4296
        %v5213 = vpack.c.b16 %v4301, %v4297
        %v5214 = vpack.c.b16 %v4302, %v4298
        %v5215 = vpack.c.b16 %v4303, %v4299
        %v5216 = vpack.c.b16 %v4308, %v4304
        %v5217 = vpack.c.b16 %v4309, %v4305
        %v5218 = vpack.c.b16 %v4310, %v4306
        %v5219 = vpack.c.b16 %v4311, %v4307
        %v5220 = vpack.c.b16 %v4316, %v4312
        %v5221 = vpack.c.b16 %v4317, %v4313
        %v5222 = vpack.c.b16 %v4318, %v4314
        %v5223 = vpack.c.b16 %v4319, %v4315
        %v5224 = vpack.c.b16 %v4324, %v4320
        %v5225 = vpack.c.b16 %v4325, %v4321
        %v5226 = vpack.c.b16 %v4326, %v4322
        %v5227 = vpack.c.b16 %v4327, %v4323
        %v5228 = vpack.c.b16 %v4332, %v4328
        %v5229 = vpack.c.b16 %v4333, %v4329
        %v5230 = vpack.c.b16 %v4334, %v4330
        %v5231 = vpack.c.b16 %v4335, %v4331
        %6128 = vmatpush.bf16.msra.mxu0 %v4364
        %6129 = vmatpush.bf16.msra.mxu0 %v4360
        %6130 = vmatpush.bf16.msra.mxu0 %v4356
        %6131 = vmatpush.bf16.msra.mxu0 %v4352
        %6132 = vmatpush.bf16.msra.mxu0 %v4348
        %6133 = vmatpush.bf16.msra.mxu0 %v4344
        %6134 = vmatpush.bf16.msra.mxu0 %v4340
        %6135 = vmatpush.bf16.msra.mxu0 %v4336
        %6136 = vmatmul.bf16.gmra.mxu0 %v1592
        %v6137 = vpop.f32.mrf.mxu0
        %v6138 = vadd.f32 %v1500, %v6137
        %v6139 = vpop.f32.mrf.mxu0
        %v6140 = vadd.f32 %v1500, %v6139
        %6141 = vdwg.mxu0
        %6142 = vmatpush.bf16.msra.mxu0 %v4396
        %6143 = vmatpush.bf16.msra.mxu0 %v4392
        %6144 = vmatpush.bf16.msra.mxu0 %v4388
        %6145 = vmatpush.bf16.msra.mxu0 %v4384
        %6146 = vmatpush.bf16.msra.mxu0 %v4380
        %6147 = vmatpush.bf16.msra.mxu0 %v4376
        %6148 = vmatpush.bf16.msra.mxu0 %v4372
        %6149 = vmatpush.bf16.msra.mxu0 %v4368
        %6150 = vmatmul.bf16.gmra.mxu0 %v1593
        %v6151 = vpop.f32.mrf.mxu0
        %v6152 = vadd.f32 %v6138, %v6151
        %v6153 = vpop.f32.mrf.mxu0
        %v6154 = vadd.f32 %v6140, %v6153
        %6155 = vdwg.mxu0
        %6156 = vmatpush.bf16.msra.mxu0 %v4428
        %6157 = vmatpush.bf16.msra.mxu0 %v4424
        %6158 = vmatpush.bf16.msra.mxu0 %v4420
        %6159 = vmatpush.bf16.msra.mxu0 %v4416
        %6160 = vmatpush.bf16.msra.mxu0 %v4412
        %6161 = vmatpush.bf16.msra.mxu0 %v4408
        %6162 = vmatpush.bf16.msra.mxu0 %v4404
        %6163 = vmatpush.bf16.msra.mxu0 %v4400
        %6164 = vmatmul.bf16.gmra.mxu0 %v1594
        %v6165 = vpop.f32.mrf.mxu0
        %v6166 = vadd.f32 %v6152, %v6165
        %v6167 = vpop.f32.mrf.mxu0
        %v6168 = vadd.f32 %v6154, %v6167
        %6169 = vdwg.mxu0
        %6170 = vmatpush.bf16.msra.mxu0 %v4460
        %6171 = vmatpush.bf16.msra.mxu0 %v4456
        %6172 = vmatpush.bf16.msra.mxu0 %v4452
        %6173 = vmatpush.bf16.msra.mxu0 %v4448
        %6174 = vmatpush.bf16.msra.mxu0 %v4444
        %6175 = vmatpush.bf16.msra.mxu0 %v4440
        %6176 = vmatpush.bf16.msra.mxu0 %v4436
        %6177 = vmatpush.bf16.msra.mxu0 %v4432
        %6178 = vmatmul.bf16.gmra.mxu0 %v1595
        %v6179 = vpop.f32.mrf.mxu0
        %v6180 = vadd.f32 %v6166, %v6179
        %v6181 = vpop.f32.mrf.mxu0
        %v6182 = vadd.f32 %v6168, %v6181
        %6183 = vdwg.mxu0
        %6184 = vmatpush.bf16.msra.mxu0 %v4492
        %6185 = vmatpush.bf16.msra.mxu0 %v4488
        %6186 = vmatpush.bf16.msra.mxu0 %v4484
        %6187 = vmatpush.bf16.msra.mxu0 %v4480
        %6188 = vmatpush.bf16.msra.mxu0 %v4476
        %6189 = vmatpush.bf16.msra.mxu0 %v4472
        %6190 = vmatpush.bf16.msra.mxu0 %v4468
        %6191 = vmatpush.bf16.msra.mxu0 %v4464
        %6192 = vmatmul.bf16.gmra.mxu0 %v1596
        %v6193 = vpop.f32.mrf.mxu0
        %v6194 = vadd.f32 %v6180, %v6193
        %v6195 = vpop.f32.mrf.mxu0
        %v6196 = vadd.f32 %v6182, %v6195
        %6197 = vdwg.mxu0
        %6198 = vmatpush.bf16.msra.mxu0 %v4524
        %6199 = vmatpush.bf16.msra.mxu0 %v4520
        %6200 = vmatpush.bf16.msra.mxu0 %v4516
        %6201 = vmatpush.bf16.msra.mxu0 %v4512
        %6202 = vmatpush.bf16.msra.mxu0 %v4508
        %6203 = vmatpush.bf16.msra.mxu0 %v4504
        %6204 = vmatpush.bf16.msra.mxu0 %v4500
        %6205 = vmatpush.bf16.msra.mxu0 %v4496
        %6206 = vmatmul.bf16.gmra.mxu0 %v1597
        %v6207 = vpop.f32.mrf.mxu0
        %v6208 = vadd.f32 %v6194, %v6207
        %v6209 = vpop.f32.mrf.mxu0
        %v6210 = vadd.f32 %v6196, %v6209
        %6211 = vdwg.mxu0
        %6212 = vmatpush.bf16.msra.mxu0 %v4556
        %6213 = vmatpush.bf16.msra.mxu0 %v4552
        %6214 = vmatpush.bf16.msra.mxu0 %v4548
        %6215 = vmatpush.bf16.msra.mxu0 %v4544
        %6216 = vmatpush.bf16.msra.mxu0 %v4540
        %6217 = vmatpush.bf16.msra.mxu0 %v4536
        %6218 = vmatpush.bf16.msra.mxu0 %v4532
        %6219 = vmatpush.bf16.msra.mxu0 %v4528
        %6220 = vmatmul.bf16.gmra.mxu0 %v1598
        %v6221 = vpop.f32.mrf.mxu0
        %v6222 = vadd.f32 %v6208, %v6221
        %v6223 = vpop.f32.mrf.mxu0
        %v6224 = vadd.f32 %v6210, %v6223
        %6225 = vdwg.mxu0
        %6226 = vmatpush.bf16.msra.mxu0 %v4588
        %6227 = vmatpush.bf16.msra.mxu0 %v4584
        %6228 = vmatpush.bf16.msra.mxu0 %v4580
        %6229 = vmatpush.bf16.msra.mxu0 %v4576
        %6230 = vmatpush.bf16.msra.mxu0 %v4572
        %6231 = vmatpush.bf16.msra.mxu0 %v4568
        %6232 = vmatpush.bf16.msra.mxu0 %v4564
        %6233 = vmatpush.bf16.msra.mxu0 %v4560
        %6234 = vmatmul.bf16.gmra.mxu0 %v1599
        %v6235 = vpop.f32.mrf.mxu0
        %v6236 = vadd.f32 %v6222, %v6235
        %v6237 = vpop.f32.mrf.mxu0
        %v6238 = vadd.f32 %v6224, %v6237
        %6239 = vdwg.mxu0
        %6240 = vmatpush.bf16.msra.mxu0 %v4620
        %6241 = vmatpush.bf16.msra.mxu0 %v4616
        %6242 = vmatpush.bf16.msra.mxu0 %v4612
        %6243 = vmatpush.bf16.msra.mxu0 %v4608
        %6244 = vmatpush.bf16.msra.mxu0 %v4604
        %6245 = vmatpush.bf16.msra.mxu0 %v4600
        %6246 = vmatpush.bf16.msra.mxu0 %v4596
        %6247 = vmatpush.bf16.msra.mxu0 %v4592
        %6248 = vmatmul.bf16.gmra.mxu0 %v1600
        %v6249 = vpop.f32.mrf.mxu0
        %v6250 = vadd.f32 %v6236, %v6249
        %v6251 = vpop.f32.mrf.mxu0
        %v6252 = vadd.f32 %v6238, %v6251
        %6253 = vdwg.mxu0
        %6254 = vmatpush.bf16.msra.mxu0 %v4652
        %6255 = vmatpush.bf16.msra.mxu0 %v4648
        %6256 = vmatpush.bf16.msra.mxu0 %v4644
        %6257 = vmatpush.bf16.msra.mxu0 %v4640
        %6258 = vmatpush.bf16.msra.mxu0 %v4636
        %6259 = vmatpush.bf16.msra.mxu0 %v4632
        %6260 = vmatpush.bf16.msra.mxu0 %v4628
        %6261 = vmatpush.bf16.msra.mxu0 %v4624
        %6262 = vmatmul.bf16.gmra.mxu0 %v1601
        %v6263 = vpop.f32.mrf.mxu0
        %v6264 = vadd.f32 %v6250, %v6263
        %v6265 = vpop.f32.mrf.mxu0
        %v6266 = vadd.f32 %v6252, %v6265
        %6267 = vdwg.mxu0
        %6268 = vmatpush.bf16.msra.mxu0 %v4684
        %6269 = vmatpush.bf16.msra.mxu0 %v4680
        %6270 = vmatpush.bf16.msra.mxu0 %v4676
        %6271 = vmatpush.bf16.msra.mxu0 %v4672
        %6272 = vmatpush.bf16.msra.mxu0 %v4668
        %6273 = vmatpush.bf16.msra.mxu0 %v4664
        %6274 = vmatpush.bf16.msra.mxu0 %v4660
        %6275 = vmatpush.bf16.msra.mxu0 %v4656
        %6276 = vmatmul.bf16.gmra.mxu0 %v1602
        %v6277 = vpop.f32.mrf.mxu0
        %v6278 = vadd.f32 %v6264, %v6277
        %v6279 = vpop.f32.mrf.mxu0
        %v6280 = vadd.f32 %v6266, %v6279
        %6281 = vdwg.mxu0
        %6282 = vmatpush.bf16.msra.mxu0 %v4716
        %6283 = vmatpush.bf16.msra.mxu0 %v4712
        %6284 = vmatpush.bf16.msra.mxu0 %v4708
        %6285 = vmatpush.bf16.msra.mxu0 %v4704
        %6286 = vmatpush.bf16.msra.mxu0 %v4700
        %6287 = vmatpush.bf16.msra.mxu0 %v4696
        %6288 = vmatpush.bf16.msra.mxu0 %v4692
        %6289 = vmatpush.bf16.msra.mxu0 %v4688
        %6290 = vmatmul.bf16.gmra.mxu0 %v1603
        %v6291 = vpop.f32.mrf.mxu0
        %v6292 = vadd.f32 %v6278, %v6291
        %v6293 = vpop.f32.mrf.mxu0
        %v6294 = vadd.f32 %v6280, %v6293
        %6295 = vdwg.mxu0
        %6296 = vmatpush.bf16.msra.mxu0 %v4748
        %6297 = vmatpush.bf16.msra.mxu0 %v4744
        %6298 = vmatpush.bf16.msra.mxu0 %v4740
        %6299 = vmatpush.bf16.msra.mxu0 %v4736
        %6300 = vmatpush.bf16.msra.mxu0 %v4732
        %6301 = vmatpush.bf16.msra.mxu0 %v4728
        %6302 = vmatpush.bf16.msra.mxu0 %v4724
        %6303 = vmatpush.bf16.msra.mxu0 %v4720
        %6304 = vmatmul.bf16.gmra.mxu0 %v1604
        %v6305 = vpop.f32.mrf.mxu0
        %v6306 = vadd.f32 %v6292, %v6305
        %v6307 = vpop.f32.mrf.mxu0
        %v6308 = vadd.f32 %v6294, %v6307
        %6309 = vdwg.mxu0
        %6310 = vmatpush.bf16.msra.mxu0 %v4780
        %6311 = vmatpush.bf16.msra.mxu0 %v4776
        %6312 = vmatpush.bf16.msra.mxu0 %v4772
        %6313 = vmatpush.bf16.msra.mxu0 %v4768
        %6314 = vmatpush.bf16.msra.mxu0 %v4764
        %6315 = vmatpush.bf16.msra.mxu0 %v4760
        %6316 = vmatpush.bf16.msra.mxu0 %v4756
        %6317 = vmatpush.bf16.msra.mxu0 %v4752
        %6318 = vmatmul.bf16.gmra.mxu0 %v1605
        %v6319 = vpop.f32.mrf.mxu0
        %v6320 = vadd.f32 %v6306, %v6319
        %v6321 = vpop.f32.mrf.mxu0
        %v6322 = vadd.f32 %v6308, %v6321
        %6323 = vdwg.mxu0
        %6324 = vmatpush.bf16.msra.mxu0 %v4812
        %6325 = vmatpush.bf16.msra.mxu0 %v4808
        %6326 = vmatpush.bf16.msra.mxu0 %v4804
        %6327 = vmatpush.bf16.msra.mxu0 %v4800
        %6328 = vmatpush.bf16.msra.mxu0 %v4796
        %6329 = vmatpush.bf16.msra.mxu0 %v4792
        %6330 = vmatpush.bf16.msra.mxu0 %v4788
        %6331 = vmatpush.bf16.msra.mxu0 %v4784
        %6332 = vmatmul.bf16.gmra.mxu0 %v1606
        %v6333 = vpop.f32.mrf.mxu0
        %v6334 = vadd.f32 %v6320, %v6333
        %v6335 = vpop.f32.mrf.mxu0
        %v6336 = vadd.f32 %v6322, %v6335
        %6337 = vdwg.mxu0
        %6338 = vmatpush.bf16.msra.mxu0 %v4844
        %6339 = vmatpush.bf16.msra.mxu0 %v4840
        %6340 = vmatpush.bf16.msra.mxu0 %v4836
        %6341 = vmatpush.bf16.msra.mxu0 %v4832
        %6342 = vmatpush.bf16.msra.mxu0 %v4828
        %6343 = vmatpush.bf16.msra.mxu0 %v4824
        %6344 = vmatpush.bf16.msra.mxu0 %v4820
        %6345 = vmatpush.bf16.msra.mxu0 %v4816
        %6346 = vmatmul.bf16.gmra.mxu0 %v1607
        %v6347 = vpop.f32.mrf.mxu0
        %v6348 = vadd.f32 %v6334, %v6347
        %v6349 = vpop.f32.mrf.mxu0
        %v6350 = vadd.f32 %v6336, %v6349
        %6351 = vdwg.mxu0
        %6352 = vmatpush.bf16.msra.mxu0 %v4876
        %6353 = vmatpush.bf16.msra.mxu0 %v4872
        %6354 = vmatpush.bf16.msra.mxu0 %v4868
        %6355 = vmatpush.bf16.msra.mxu0 %v4864
        %6356 = vmatpush.bf16.msra.mxu0 %v4860
        %6357 = vmatpush.bf16.msra.mxu0 %v4856
        %6358 = vmatpush.bf16.msra.mxu0 %v4852
        %6359 = vmatpush.bf16.msra.mxu0 %v4848
        %6360 = vmatmul.bf16.gmra.mxu0 %v1608
        %v6361 = vpop.f32.mrf.mxu0
        %v6362 = vadd.f32 %v6348, %v6361
        %v6363 = vpop.f32.mrf.mxu0
        %v6364 = vadd.f32 %v6350, %v6363
        %6365 = vdwg.mxu0
        %6366 = vmatpush.bf16.msra.mxu0 %v4908
        %6367 = vmatpush.bf16.msra.mxu0 %v4904
        %6368 = vmatpush.bf16.msra.mxu0 %v4900
        %6369 = vmatpush.bf16.msra.mxu0 %v4896
        %6370 = vmatpush.bf16.msra.mxu0 %v4892
        %6371 = vmatpush.bf16.msra.mxu0 %v4888
        %6372 = vmatpush.bf16.msra.mxu0 %v4884
        %6373 = vmatpush.bf16.msra.mxu0 %v4880
        %6374 = vmatmul.bf16.gmra.mxu0 %v1609
        %v6375 = vpop.f32.mrf.mxu0
        %v6376 = vadd.f32 %v6362, %v6375
        %v6377 = vpop.f32.mrf.mxu0
        %v6378 = vadd.f32 %v6364, %v6377
        %6379 = vdwg.mxu0
        %6380 = vmatpush.bf16.msra.mxu0 %v4940
        %6381 = vmatpush.bf16.msra.mxu0 %v4936
        %6382 = vmatpush.bf16.msra.mxu0 %v4932
        %6383 = vmatpush.bf16.msra.mxu0 %v4928
        %6384 = vmatpush.bf16.msra.mxu0 %v4924
        %6385 = vmatpush.bf16.msra.mxu0 %v4920
        %6386 = vmatpush.bf16.msra.mxu0 %v4916
        %6387 = vmatpush.bf16.msra.mxu0 %v4912
        %6388 = vmatmul.bf16.gmra.mxu0 %v1610
        %v6389 = vpop.f32.mrf.mxu0
        %v6390 = vadd.f32 %v6376, %v6389
        %v6391 = vpop.f32.mrf.mxu0
        %v6392 = vadd.f32 %v6378, %v6391
        %6393 = vdwg.mxu0
        %6394 = vmatpush.bf16.msra.mxu0 %v4972
        %6395 = vmatpush.bf16.msra.mxu0 %v4968
        %6396 = vmatpush.bf16.msra.mxu0 %v4964
        %6397 = vmatpush.bf16.msra.mxu0 %v4960
        %6398 = vmatpush.bf16.msra.mxu0 %v4956
        %6399 = vmatpush.bf16.msra.mxu0 %v4952
        %6400 = vmatpush.bf16.msra.mxu0 %v4948
        %6401 = vmatpush.bf16.msra.mxu0 %v4944
        %6402 = vmatmul.bf16.gmra.mxu0 %v1611
        %v6403 = vpop.f32.mrf.mxu0
        %v6404 = vadd.f32 %v6390, %v6403
        %v6405 = vpop.f32.mrf.mxu0
        %v6406 = vadd.f32 %v6392, %v6405
        %6407 = vdwg.mxu0
        %6408 = vmatpush.bf16.msra.mxu0 %v5004
        %6409 = vmatpush.bf16.msra.mxu0 %v5000
        %6410 = vmatpush.bf16.msra.mxu0 %v4996
        %6411 = vmatpush.bf16.msra.mxu0 %v4992
        %6412 = vmatpush.bf16.msra.mxu0 %v4988
        %6413 = vmatpush.bf16.msra.mxu0 %v4984
        %6414 = vmatpush.bf16.msra.mxu0 %v4980
        %6415 = vmatpush.bf16.msra.mxu0 %v4976
        %6416 = vmatmul.bf16.gmra.mxu0 %v1612
        %v6417 = vpop.f32.mrf.mxu0
        %v6418 = vadd.f32 %v6404, %v6417
        %v6419 = vpop.f32.mrf.mxu0
        %v6420 = vadd.f32 %v6406, %v6419
        %6421 = vdwg.mxu0
        %6422 = vmatpush.bf16.msra.mxu0 %v5036
        %6423 = vmatpush.bf16.msra.mxu0 %v5032
        %6424 = vmatpush.bf16.msra.mxu0 %v5028
        %6425 = vmatpush.bf16.msra.mxu0 %v5024
        %6426 = vmatpush.bf16.msra.mxu0 %v5020
        %6427 = vmatpush.bf16.msra.mxu0 %v5016
        %6428 = vmatpush.bf16.msra.mxu0 %v5012
        %6429 = vmatpush.bf16.msra.mxu0 %v5008
        %6430 = vmatmul.bf16.gmra.mxu0 %v1613
        %v6431 = vpop.f32.mrf.mxu0
        %v6432 = vadd.f32 %v6418, %v6431
        %v6433 = vpop.f32.mrf.mxu0
        %v6434 = vadd.f32 %v6420, %v6433
        %6435 = vdwg.mxu0
        %6436 = vmatpush.bf16.msra.mxu0 %v5068
        %6437 = vmatpush.bf16.msra.mxu0 %v5064
        %6438 = vmatpush.bf16.msra.mxu0 %v5060
        %6439 = vmatpush.bf16.msra.mxu0 %v5056
        %6440 = vmatpush.bf16.msra.mxu0 %v5052
        %6441 = vmatpush.bf16.msra.mxu0 %v5048
        %6442 = vmatpush.bf16.msra.mxu0 %v5044
        %6443 = vmatpush.bf16.msra.mxu0 %v5040
        %6444 = vmatmul.bf16.gmra.mxu0 %v1614
        %v6445 = vpop.f32.mrf.mxu0
        %v6446 = vadd.f32 %v6432, %v6445
        %v6447 = vpop.f32.mrf.mxu0
        %v6448 = vadd.f32 %v6434, %v6447
        %6449 = vdwg.mxu0
        %6450 = vmatpush.bf16.msra.mxu0 %v5100
        %6451 = vmatpush.bf16.msra.mxu0 %v5096
        %6452 = vmatpush.bf16.msra.mxu0 %v5092
        %6453 = vmatpush.bf16.msra.mxu0 %v5088
        %6454 = vmatpush.bf16.msra.mxu0 %v5084
        %6455 = vmatpush.bf16.msra.mxu0 %v5080
        %6456 = vmatpush.bf16.msra.mxu0 %v5076
        %6457 = vmatpush.bf16.msra.mxu0 %v5072
        %6458 = vmatmul.bf16.gmra.mxu0 %v1615
        %v6459 = vpop.f32.mrf.mxu0
        %v6460 = vadd.f32 %v6446, %v6459
        %v6461 = vpop.f32.mrf.mxu0
        %v6462 = vadd.f32 %v6448, %v6461
        %6463 = vdwg.mxu0
        %6464 = vmatpush.bf16.msra.mxu0 %v5132
        %6465 = vmatpush.bf16.msra.mxu0 %v5128
        %6466 = vmatpush.bf16.msra.mxu0 %v5124
        %6467 = vmatpush.bf16.msra.mxu0 %v5120
        %6468 = vmatpush.bf16.msra.mxu0 %v5116
        %6469 = vmatpush.bf16.msra.mxu0 %v5112
        %6470 = vmatpush.bf16.msra.mxu0 %v5108
        %6471 = vmatpush.bf16.msra.mxu0 %v5104
        %6472 = vmatmul.bf16.gmra.mxu0 %v1616
        %v6473 = vpop.f32.mrf.mxu0
        %v6474 = vadd.f32 %v6460, %v6473
        %v6475 = vpop.f32.mrf.mxu0
        %v6476 = vadd.f32 %v6462, %v6475
        %6477 = vdwg.mxu0
        %6478 = vmatpush.bf16.msra.mxu0 %v5164
        %6479 = vmatpush.bf16.msra.mxu0 %v5160
        %6480 = vmatpush.bf16.msra.mxu0 %v5156
        %6481 = vmatpush.bf16.msra.mxu0 %v5152
        %6482 = vmatpush.bf16.msra.mxu0 %v5148
        %6483 = vmatpush.bf16.msra.mxu0 %v5144
        %6484 = vmatpush.bf16.msra.mxu0 %v5140
        %6485 = vmatpush.bf16.msra.mxu0 %v5136
        %6486 = vmatmul.bf16.gmra.mxu0 %v1617
        %v6487 = vpop.f32.mrf.mxu0
        %v6488 = vadd.f32 %v6474, %v6487
        %v6489 = vpop.f32.mrf.mxu0
        %v6490 = vadd.f32 %v6476, %v6489
        %6491 = vdwg.mxu0
        %6492 = vmatpush.bf16.msra.mxu0 %v5196
        %6493 = vmatpush.bf16.msra.mxu0 %v5192
        %6494 = vmatpush.bf16.msra.mxu0 %v5188
        %6495 = vmatpush.bf16.msra.mxu0 %v5184
        %6496 = vmatpush.bf16.msra.mxu0 %v5180
        %6497 = vmatpush.bf16.msra.mxu0 %v5176
        %6498 = vmatpush.bf16.msra.mxu0 %v5172
        %6499 = vmatpush.bf16.msra.mxu0 %v5168
        %6500 = vmatmul.bf16.gmra.mxu0 %v1618
        %v6501 = vpop.f32.mrf.mxu0
        %v6502 = vadd.f32 %v6488, %v6501
        %v6503 = vpop.f32.mrf.mxu0
        %v6504 = vadd.f32 %v6490, %v6503
        %6505 = vdwg.mxu0
        %6506 = vmatpush.bf16.msra.mxu0 %v5228
        %6507 = vmatpush.bf16.msra.mxu0 %v5224
        %6508 = vmatpush.bf16.msra.mxu0 %v5220
        %6509 = vmatpush.bf16.msra.mxu0 %v5216
        %6510 = vmatpush.bf16.msra.mxu0 %v5212
        %6511 = vmatpush.bf16.msra.mxu0 %v5208
        %6512 = vmatpush.bf16.msra.mxu0 %v5204
        %6513 = vmatpush.bf16.msra.mxu0 %v5200
        %6514 = vmatmul.bf16.gmra.mxu0 %v1619
        %v6515 = vpop.f32.mrf.mxu0
        %v6516 = vadd.f32 %v6502, %v6515
        %v6517 = vpop.f32.mrf.mxu0
        %v6518 = vadd.f32 %v6504, %v6517
        %6519 = vdwg.mxu0
        %6520 = vmatpush.bf16.msra.mxu0 %v4365
        %6521 = vmatpush.bf16.msra.mxu0 %v4361
        %6522 = vmatpush.bf16.msra.mxu0 %v4357
        %6523 = vmatpush.bf16.msra.mxu0 %v4353
        %6524 = vmatpush.bf16.msra.mxu0 %v4349
        %6525 = vmatpush.bf16.msra.mxu0 %v4345
        %6526 = vmatpush.bf16.msra.mxu0 %v4341
        %6527 = vmatpush.bf16.msra.mxu0 %v4337
        %6528 = vmatmul.bf16.gmra.mxu0 %v1592
        %v6529 = vpop.f32.mrf.mxu0
        %v6530 = vadd.f32 %v1501, %v6529
        %v6531 = vpop.f32.mrf.mxu0
        %v6532 = vadd.f32 %v1501, %v6531
        %6533 = vdwg.mxu0
        %6534 = vmatpush.bf16.msra.mxu0 %v4397
        %6535 = vmatpush.bf16.msra.mxu0 %v4393
        %6536 = vmatpush.bf16.msra.mxu0 %v4389
        %6537 = vmatpush.bf16.msra.mxu0 %v4385
        %6538 = vmatpush.bf16.msra.mxu0 %v4381
        %6539 = vmatpush.bf16.msra.mxu0 %v4377
        %6540 = vmatpush.bf16.msra.mxu0 %v4373
        %6541 = vmatpush.bf16.msra.mxu0 %v4369
        %6542 = vmatmul.bf16.gmra.mxu0 %v1593
        %v6543 = vpop.f32.mrf.mxu0
        %v6544 = vadd.f32 %v6530, %v6543
        %v6545 = vpop.f32.mrf.mxu0
        %v6546 = vadd.f32 %v6532, %v6545
        %6547 = vdwg.mxu0
        %6548 = vmatpush.bf16.msra.mxu0 %v4429
        %6549 = vmatpush.bf16.msra.mxu0 %v4425
        %6550 = vmatpush.bf16.msra.mxu0 %v4421
        %6551 = vmatpush.bf16.msra.mxu0 %v4417
        %6552 = vmatpush.bf16.msra.mxu0 %v4413
        %6553 = vmatpush.bf16.msra.mxu0 %v4409
        %6554 = vmatpush.bf16.msra.mxu0 %v4405
        %6555 = vmatpush.bf16.msra.mxu0 %v4401
        %6556 = vmatmul.bf16.gmra.mxu0 %v1594
        %v6557 = vpop.f32.mrf.mxu0
        %v6558 = vadd.f32 %v6544, %v6557
        %v6559 = vpop.f32.mrf.mxu0
        %v6560 = vadd.f32 %v6546, %v6559
        %6561 = vdwg.mxu0
        %6562 = vmatpush.bf16.msra.mxu0 %v4461
        %6563 = vmatpush.bf16.msra.mxu0 %v4457
        %6564 = vmatpush.bf16.msra.mxu0 %v4453
        %6565 = vmatpush.bf16.msra.mxu0 %v4449
        %6566 = vmatpush.bf16.msra.mxu0 %v4445
        %6567 = vmatpush.bf16.msra.mxu0 %v4441
        %6568 = vmatpush.bf16.msra.mxu0 %v4437
        %6569 = vmatpush.bf16.msra.mxu0 %v4433
        %6570 = vmatmul.bf16.gmra.mxu0 %v1595
        %v6571 = vpop.f32.mrf.mxu0
        %v6572 = vadd.f32 %v6558, %v6571
        %v6573 = vpop.f32.mrf.mxu0
        %v6574 = vadd.f32 %v6560, %v6573
        %6575 = vdwg.mxu0
        %6576 = vmatpush.bf16.msra.mxu0 %v4493
        %6577 = vmatpush.bf16.msra.mxu0 %v4489
        %6578 = vmatpush.bf16.msra.mxu0 %v4485
        %6579 = vmatpush.bf16.msra.mxu0 %v4481
        %6580 = vmatpush.bf16.msra.mxu0 %v4477
        %6581 = vmatpush.bf16.msra.mxu0 %v4473
        %6582 = vmatpush.bf16.msra.mxu0 %v4469
        %6583 = vmatpush.bf16.msra.mxu0 %v4465
        %6584 = vmatmul.bf16.gmra.mxu0 %v1596
        %v6585 = vpop.f32.mrf.mxu0
        %v6586 = vadd.f32 %v6572, %v6585
        %v6587 = vpop.f32.mrf.mxu0
        %v6588 = vadd.f32 %v6574, %v6587
        %6589 = vdwg.mxu0
        %6590 = vmatpush.bf16.msra.mxu0 %v4525
        %6591 = vmatpush.bf16.msra.mxu0 %v4521
        %6592 = vmatpush.bf16.msra.mxu0 %v4517
        %6593 = vmatpush.bf16.msra.mxu0 %v4513
        %6594 = vmatpush.bf16.msra.mxu0 %v4509
        %6595 = vmatpush.bf16.msra.mxu0 %v4505
        %6596 = vmatpush.bf16.msra.mxu0 %v4501
        %6597 = vmatpush.bf16.msra.mxu0 %v4497
        %6598 = vmatmul.bf16.gmra.mxu0 %v1597
        %v6599 = vpop.f32.mrf.mxu0
        %v6600 = vadd.f32 %v6586, %v6599
        %v6601 = vpop.f32.mrf.mxu0
        %v6602 = vadd.f32 %v6588, %v6601
        %6603 = vdwg.mxu0
        %6604 = vmatpush.bf16.msra.mxu0 %v4557
        %6605 = vmatpush.bf16.msra.mxu0 %v4553
        %6606 = vmatpush.bf16.msra.mxu0 %v4549
        %6607 = vmatpush.bf16.msra.mxu0 %v4545
        %6608 = vmatpush.bf16.msra.mxu0 %v4541
        %6609 = vmatpush.bf16.msra.mxu0 %v4537
        %6610 = vmatpush.bf16.msra.mxu0 %v4533
        %6611 = vmatpush.bf16.msra.mxu0 %v4529
        %6612 = vmatmul.bf16.gmra.mxu0 %v1598
        %v6613 = vpop.f32.mrf.mxu0
        %v6614 = vadd.f32 %v6600, %v6613
        %v6615 = vpop.f32.mrf.mxu0
        %v6616 = vadd.f32 %v6602, %v6615
        %6617 = vdwg.mxu0
        %6618 = vmatpush.bf16.msra.mxu0 %v4589
        %6619 = vmatpush.bf16.msra.mxu0 %v4585
        %6620 = vmatpush.bf16.msra.mxu0 %v4581
        %6621 = vmatpush.bf16.msra.mxu0 %v4577
        %6622 = vmatpush.bf16.msra.mxu0 %v4573
        %6623 = vmatpush.bf16.msra.mxu0 %v4569
        %6624 = vmatpush.bf16.msra.mxu0 %v4565
        %6625 = vmatpush.bf16.msra.mxu0 %v4561
        %6626 = vmatmul.bf16.gmra.mxu0 %v1599
        %v6627 = vpop.f32.mrf.mxu0
        %v6628 = vadd.f32 %v6614, %v6627
        %v6629 = vpop.f32.mrf.mxu0
        %v6630 = vadd.f32 %v6616, %v6629
        %6631 = vdwg.mxu0
        %6632 = vmatpush.bf16.msra.mxu0 %v4621
        %6633 = vmatpush.bf16.msra.mxu0 %v4617
        %6634 = vmatpush.bf16.msra.mxu0 %v4613
        %6635 = vmatpush.bf16.msra.mxu0 %v4609
        %6636 = vmatpush.bf16.msra.mxu0 %v4605
        %6637 = vmatpush.bf16.msra.mxu0 %v4601
        %6638 = vmatpush.bf16.msra.mxu0 %v4597
        %6639 = vmatpush.bf16.msra.mxu0 %v4593
        %6640 = vmatmul.bf16.gmra.mxu0 %v1600
        %v6641 = vpop.f32.mrf.mxu0
        %v6642 = vadd.f32 %v6628, %v6641
        %v6643 = vpop.f32.mrf.mxu0
        %v6644 = vadd.f32 %v6630, %v6643
        %6645 = vdwg.mxu0
        %6646 = vmatpush.bf16.msra.mxu0 %v4653
        %6647 = vmatpush.bf16.msra.mxu0 %v4649
        %6648 = vmatpush.bf16.msra.mxu0 %v4645
        %6649 = vmatpush.bf16.msra.mxu0 %v4641
        %6650 = vmatpush.bf16.msra.mxu0 %v4637
        %6651 = vmatpush.bf16.msra.mxu0 %v4633
        %6652 = vmatpush.bf16.msra.mxu0 %v4629
        %6653 = vmatpush.bf16.msra.mxu0 %v4625
        %6654 = vmatmul.bf16.gmra.mxu0 %v1601
        %v6655 = vpop.f32.mrf.mxu0
        %v6656 = vadd.f32 %v6642, %v6655
        %v6657 = vpop.f32.mrf.mxu0
        %v6658 = vadd.f32 %v6644, %v6657
        %6659 = vdwg.mxu0
        %6660 = vmatpush.bf16.msra.mxu0 %v4685
        %6661 = vmatpush.bf16.msra.mxu0 %v4681
        %6662 = vmatpush.bf16.msra.mxu0 %v4677
        %6663 = vmatpush.bf16.msra.mxu0 %v4673
        %6664 = vmatpush.bf16.msra.mxu0 %v4669
        %6665 = vmatpush.bf16.msra.mxu0 %v4665
        %6666 = vmatpush.bf16.msra.mxu0 %v4661
        %6667 = vmatpush.bf16.msra.mxu0 %v4657
        %6668 = vmatmul.bf16.gmra.mxu0 %v1602
        %v6669 = vpop.f32.mrf.mxu0
        %v6670 = vadd.f32 %v6656, %v6669
        %v6671 = vpop.f32.mrf.mxu0
        %v6672 = vadd.f32 %v6658, %v6671
        %6673 = vdwg.mxu0
        %6674 = vmatpush.bf16.msra.mxu0 %v4717
        %6675 = vmatpush.bf16.msra.mxu0 %v4713
        %6676 = vmatpush.bf16.msra.mxu0 %v4709
        %6677 = vmatpush.bf16.msra.mxu0 %v4705
        %6678 = vmatpush.bf16.msra.mxu0 %v4701
        %6679 = vmatpush.bf16.msra.mxu0 %v4697
        %6680 = vmatpush.bf16.msra.mxu0 %v4693
        %6681 = vmatpush.bf16.msra.mxu0 %v4689
        %6682 = vmatmul.bf16.gmra.mxu0 %v1603
        %v6683 = vpop.f32.mrf.mxu0
        %v6684 = vadd.f32 %v6670, %v6683
        %v6685 = vpop.f32.mrf.mxu0
        %v6686 = vadd.f32 %v6672, %v6685
        %6687 = vdwg.mxu0
        %6688 = vmatpush.bf16.msra.mxu0 %v4749
        %6689 = vmatpush.bf16.msra.mxu0 %v4745
        %6690 = vmatpush.bf16.msra.mxu0 %v4741
        %6691 = vmatpush.bf16.msra.mxu0 %v4737
        %6692 = vmatpush.bf16.msra.mxu0 %v4733
        %6693 = vmatpush.bf16.msra.mxu0 %v4729
        %6694 = vmatpush.bf16.msra.mxu0 %v4725
        %6695 = vmatpush.bf16.msra.mxu0 %v4721
        %6696 = vmatmul.bf16.gmra.mxu0 %v1604
        %v6697 = vpop.f32.mrf.mxu0
        %v6698 = vadd.f32 %v6684, %v6697
        %v6699 = vpop.f32.mrf.mxu0
        %v6700 = vadd.f32 %v6686, %v6699
        %6701 = vdwg.mxu0
        %6702 = vmatpush.bf16.msra.mxu0 %v4781
        %6703 = vmatpush.bf16.msra.mxu0 %v4777
        %6704 = vmatpush.bf16.msra.mxu0 %v4773
        %6705 = vmatpush.bf16.msra.mxu0 %v4769
        %6706 = vmatpush.bf16.msra.mxu0 %v4765
        %6707 = vmatpush.bf16.msra.mxu0 %v4761
        %6708 = vmatpush.bf16.msra.mxu0 %v4757
        %6709 = vmatpush.bf16.msra.mxu0 %v4753
        %6710 = vmatmul.bf16.gmra.mxu0 %v1605
        %v6711 = vpop.f32.mrf.mxu0
        %v6712 = vadd.f32 %v6698, %v6711
        %v6713 = vpop.f32.mrf.mxu0
        %v6714 = vadd.f32 %v6700, %v6713
        %6715 = vdwg.mxu0
        %6716 = vmatpush.bf16.msra.mxu0 %v4813
        %6717 = vmatpush.bf16.msra.mxu0 %v4809
        %6718 = vmatpush.bf16.msra.mxu0 %v4805
        %6719 = vmatpush.bf16.msra.mxu0 %v4801
        %6720 = vmatpush.bf16.msra.mxu0 %v4797
        %6721 = vmatpush.bf16.msra.mxu0 %v4793
        %6722 = vmatpush.bf16.msra.mxu0 %v4789
        %6723 = vmatpush.bf16.msra.mxu0 %v4785
        %6724 = vmatmul.bf16.gmra.mxu0 %v1606
        %v6725 = vpop.f32.mrf.mxu0
        %v6726 = vadd.f32 %v6712, %v6725
        %v6727 = vpop.f32.mrf.mxu0
        %v6728 = vadd.f32 %v6714, %v6727
        %6729 = vdwg.mxu0
        %6730 = vmatpush.bf16.msra.mxu0 %v4845
        %6731 = vmatpush.bf16.msra.mxu0 %v4841
        %6732 = vmatpush.bf16.msra.mxu0 %v4837
        %6733 = vmatpush.bf16.msra.mxu0 %v4833
        %6734 = vmatpush.bf16.msra.mxu0 %v4829
        %6735 = vmatpush.bf16.msra.mxu0 %v4825
        %6736 = vmatpush.bf16.msra.mxu0 %v4821
        %6737 = vmatpush.bf16.msra.mxu0 %v4817
        %6738 = vmatmul.bf16.gmra.mxu0 %v1607
        %v6739 = vpop.f32.mrf.mxu0
        %v6740 = vadd.f32 %v6726, %v6739
        %v6741 = vpop.f32.mrf.mxu0
        %v6742 = vadd.f32 %v6728, %v6741
        %6743 = vdwg.mxu0
        %6744 = vmatpush.bf16.msra.mxu0 %v4877
        %6745 = vmatpush.bf16.msra.mxu0 %v4873
        %6746 = vmatpush.bf16.msra.mxu0 %v4869
        %6747 = vmatpush.bf16.msra.mxu0 %v4865
        %6748 = vmatpush.bf16.msra.mxu0 %v4861
        %6749 = vmatpush.bf16.msra.mxu0 %v4857
        %6750 = vmatpush.bf16.msra.mxu0 %v4853
        %6751 = vmatpush.bf16.msra.mxu0 %v4849
        %6752 = vmatmul.bf16.gmra.mxu0 %v1608
        %v6753 = vpop.f32.mrf.mxu0
        %v6754 = vadd.f32 %v6740, %v6753
        %v6755 = vpop.f32.mrf.mxu0
        %v6756 = vadd.f32 %v6742, %v6755
        %6757 = vdwg.mxu0
        %6758 = vmatpush.bf16.msra.mxu0 %v4909
        %6759 = vmatpush.bf16.msra.mxu0 %v4905
        %6760 = vmatpush.bf16.msra.mxu0 %v4901
        %6761 = vmatpush.bf16.msra.mxu0 %v4897
        %6762 = vmatpush.bf16.msra.mxu0 %v4893
        %6763 = vmatpush.bf16.msra.mxu0 %v4889
        %6764 = vmatpush.bf16.msra.mxu0 %v4885
        %6765 = vmatpush.bf16.msra.mxu0 %v4881
        %6766 = vmatmul.bf16.gmra.mxu0 %v1609
        %v6767 = vpop.f32.mrf.mxu0
        %v6768 = vadd.f32 %v6754, %v6767
        %v6769 = vpop.f32.mrf.mxu0
        %v6770 = vadd.f32 %v6756, %v6769
        %6771 = vdwg.mxu0
        %6772 = vmatpush.bf16.msra.mxu0 %v4941
        %6773 = vmatpush.bf16.msra.mxu0 %v4937
        %6774 = vmatpush.bf16.msra.mxu0 %v4933
        %6775 = vmatpush.bf16.msra.mxu0 %v4929
        %6776 = vmatpush.bf16.msra.mxu0 %v4925
        %6777 = vmatpush.bf16.msra.mxu0 %v4921
        %6778 = vmatpush.bf16.msra.mxu0 %v4917
        %6779 = vmatpush.bf16.msra.mxu0 %v4913
        %6780 = vmatmul.bf16.gmra.mxu0 %v1610
        %v6781 = vpop.f32.mrf.mxu0
        %v6782 = vadd.f32 %v6768, %v6781
        %v6783 = vpop.f32.mrf.mxu0
        %v6784 = vadd.f32 %v6770, %v6783
        %6785 = vdwg.mxu0
        %6786 = vmatpush.bf16.msra.mxu0 %v4973
        %6787 = vmatpush.bf16.msra.mxu0 %v4969
        %6788 = vmatpush.bf16.msra.mxu0 %v4965
        %6789 = vmatpush.bf16.msra.mxu0 %v4961
        %6790 = vmatpush.bf16.msra.mxu0 %v4957
        %6791 = vmatpush.bf16.msra.mxu0 %v4953
        %6792 = vmatpush.bf16.msra.mxu0 %v4949
        %6793 = vmatpush.bf16.msra.mxu0 %v4945
        %6794 = vmatmul.bf16.gmra.mxu0 %v1611
        %v6795 = vpop.f32.mrf.mxu0
        %v6796 = vadd.f32 %v6782, %v6795
        %v6797 = vpop.f32.mrf.mxu0
        %v6798 = vadd.f32 %v6784, %v6797
        %6799 = vdwg.mxu0
        %6800 = vmatpush.bf16.msra.mxu0 %v5005
        %6801 = vmatpush.bf16.msra.mxu0 %v5001
        %6802 = vmatpush.bf16.msra.mxu0 %v4997
        %6803 = vmatpush.bf16.msra.mxu0 %v4993
        %6804 = vmatpush.bf16.msra.mxu0 %v4989
        %6805 = vmatpush.bf16.msra.mxu0 %v4985
        %6806 = vmatpush.bf16.msra.mxu0 %v4981
        %6807 = vmatpush.bf16.msra.mxu0 %v4977
        %6808 = vmatmul.bf16.gmra.mxu0 %v1612
        %v6809 = vpop.f32.mrf.mxu0
        %v6810 = vadd.f32 %v6796, %v6809
        %v6811 = vpop.f32.mrf.mxu0
        %v6812 = vadd.f32 %v6798, %v6811
        %6813 = vdwg.mxu0
        %6814 = vmatpush.bf16.msra.mxu0 %v5037
        %6815 = vmatpush.bf16.msra.mxu0 %v5033
        %6816 = vmatpush.bf16.msra.mxu0 %v5029
        %6817 = vmatpush.bf16.msra.mxu0 %v5025
        %6818 = vmatpush.bf16.msra.mxu0 %v5021
        %6819 = vmatpush.bf16.msra.mxu0 %v5017
        %6820 = vmatpush.bf16.msra.mxu0 %v5013
        %6821 = vmatpush.bf16.msra.mxu0 %v5009
        %6822 = vmatmul.bf16.gmra.mxu0 %v1613
        %v6823 = vpop.f32.mrf.mxu0
        %v6824 = vadd.f32 %v6810, %v6823
        %v6825 = vpop.f32.mrf.mxu0
        %v6826 = vadd.f32 %v6812, %v6825
        %6827 = vdwg.mxu0
        %6828 = vmatpush.bf16.msra.mxu0 %v5069
        %6829 = vmatpush.bf16.msra.mxu0 %v5065
        %6830 = vmatpush.bf16.msra.mxu0 %v5061
        %6831 = vmatpush.bf16.msra.mxu0 %v5057
        %6832 = vmatpush.bf16.msra.mxu0 %v5053
        %6833 = vmatpush.bf16.msra.mxu0 %v5049
        %6834 = vmatpush.bf16.msra.mxu0 %v5045
        %6835 = vmatpush.bf16.msra.mxu0 %v5041
        %6836 = vmatmul.bf16.gmra.mxu0 %v1614
        %v6837 = vpop.f32.mrf.mxu0
        %v6838 = vadd.f32 %v6824, %v6837
        %v6839 = vpop.f32.mrf.mxu0
        %v6840 = vadd.f32 %v6826, %v6839
        %6841 = vdwg.mxu0
        %6842 = vmatpush.bf16.msra.mxu0 %v5101
        %6843 = vmatpush.bf16.msra.mxu0 %v5097
        %6844 = vmatpush.bf16.msra.mxu0 %v5093
        %6845 = vmatpush.bf16.msra.mxu0 %v5089
        %6846 = vmatpush.bf16.msra.mxu0 %v5085
        %6847 = vmatpush.bf16.msra.mxu0 %v5081
        %6848 = vmatpush.bf16.msra.mxu0 %v5077
        %6849 = vmatpush.bf16.msra.mxu0 %v5073
        %6850 = vmatmul.bf16.gmra.mxu0 %v1615
        %v6851 = vpop.f32.mrf.mxu0
        %v6852 = vadd.f32 %v6838, %v6851
        %v6853 = vpop.f32.mrf.mxu0
        %v6854 = vadd.f32 %v6840, %v6853
        %6855 = vdwg.mxu0
        %6856 = vmatpush.bf16.msra.mxu0 %v5133
        %6857 = vmatpush.bf16.msra.mxu0 %v5129
        %6858 = vmatpush.bf16.msra.mxu0 %v5125
        %6859 = vmatpush.bf16.msra.mxu0 %v5121
        %6860 = vmatpush.bf16.msra.mxu0 %v5117
        %6861 = vmatpush.bf16.msra.mxu0 %v5113
        %6862 = vmatpush.bf16.msra.mxu0 %v5109
        %6863 = vmatpush.bf16.msra.mxu0 %v5105
        %6864 = vmatmul.bf16.gmra.mxu0 %v1616
        %v6865 = vpop.f32.mrf.mxu0
        %v6866 = vadd.f32 %v6852, %v6865
        %v6867 = vpop.f32.mrf.mxu0
        %v6868 = vadd.f32 %v6854, %v6867
        %6869 = vdwg.mxu0
        %6870 = vmatpush.bf16.msra.mxu0 %v5165
        %6871 = vmatpush.bf16.msra.mxu0 %v5161
        %6872 = vmatpush.bf16.msra.mxu0 %v5157
        %6873 = vmatpush.bf16.msra.mxu0 %v5153
        %6874 = vmatpush.bf16.msra.mxu0 %v5149
        %6875 = vmatpush.bf16.msra.mxu0 %v5145
        %6876 = vmatpush.bf16.msra.mxu0 %v5141
        %6877 = vmatpush.bf16.msra.mxu0 %v5137
        %6878 = vmatmul.bf16.gmra.mxu0 %v1617
        %v6879 = vpop.f32.mrf.mxu0
        %v6880 = vadd.f32 %v6866, %v6879
        %v6881 = vpop.f32.mrf.mxu0
        %v6882 = vadd.f32 %v6868, %v6881
        %6883 = vdwg.mxu0
        %6884 = vmatpush.bf16.msra.mxu0 %v5197
        %6885 = vmatpush.bf16.msra.mxu0 %v5193
        %6886 = vmatpush.bf16.msra.mxu0 %v5189
        %6887 = vmatpush.bf16.msra.mxu0 %v5185
        %6888 = vmatpush.bf16.msra.mxu0 %v5181
        %6889 = vmatpush.bf16.msra.mxu0 %v5177
        %6890 = vmatpush.bf16.msra.mxu0 %v5173
        %6891 = vmatpush.bf16.msra.mxu0 %v5169
        %6892 = vmatmul.bf16.gmra.mxu0 %v1618
        %v6893 = vpop.f32.mrf.mxu0
        %v6894 = vadd.f32 %v6880, %v6893
        %v6895 = vpop.f32.mrf.mxu0
        %v6896 = vadd.f32 %v6882, %v6895
        %6897 = vdwg.mxu0
        %6898 = vmatpush.bf16.msra.mxu0 %v5229
        %6899 = vmatpush.bf16.msra.mxu0 %v5225
        %6900 = vmatpush.bf16.msra.mxu0 %v5221
        %6901 = vmatpush.bf16.msra.mxu0 %v5217
        %6902 = vmatpush.bf16.msra.mxu0 %v5213
        %6903 = vmatpush.bf16.msra.mxu0 %v5209
        %6904 = vmatpush.bf16.msra.mxu0 %v5205
        %6905 = vmatpush.bf16.msra.mxu0 %v5201
        %6906 = vmatmul.bf16.gmra.mxu0 %v1619
        %v6907 = vpop.f32.mrf.mxu0
        %v6908 = vadd.f32 %v6894, %v6907
        %v6909 = vpop.f32.mrf.mxu0
        %v6910 = vadd.f32 %v6896, %v6909
        %6911 = vdwg.mxu0
        %6912 = vmatpush.bf16.msra.mxu0 %v4366
        %6913 = vmatpush.bf16.msra.mxu0 %v4362
        %6914 = vmatpush.bf16.msra.mxu0 %v4358
        %6915 = vmatpush.bf16.msra.mxu0 %v4354
        %6916 = vmatpush.bf16.msra.mxu0 %v4350
        %6917 = vmatpush.bf16.msra.mxu0 %v4346
        %6918 = vmatpush.bf16.msra.mxu0 %v4342
        %6919 = vmatpush.bf16.msra.mxu0 %v4338
        %6920 = vmatmul.bf16.gmra.mxu0 %v1592
        %v6921 = vpop.f32.mrf.mxu0
        %v6922 = vadd.f32 %v1502, %v6921
        %v6923 = vpop.f32.mrf.mxu0
        %v6924 = vadd.f32 %v1502, %v6923
        %6925 = vdwg.mxu0
        %6926 = vmatpush.bf16.msra.mxu0 %v4398
        %6927 = vmatpush.bf16.msra.mxu0 %v4394
        %6928 = vmatpush.bf16.msra.mxu0 %v4390
        %6929 = vmatpush.bf16.msra.mxu0 %v4386
        %6930 = vmatpush.bf16.msra.mxu0 %v4382
        %6931 = vmatpush.bf16.msra.mxu0 %v4378
        %6932 = vmatpush.bf16.msra.mxu0 %v4374
        %6933 = vmatpush.bf16.msra.mxu0 %v4370
        %6934 = vmatmul.bf16.gmra.mxu0 %v1593
        %v6935 = vpop.f32.mrf.mxu0
        %v6936 = vadd.f32 %v6922, %v6935
        %v6937 = vpop.f32.mrf.mxu0
        %v6938 = vadd.f32 %v6924, %v6937
        %6939 = vdwg.mxu0
        %6940 = vmatpush.bf16.msra.mxu0 %v4430
        %6941 = vmatpush.bf16.msra.mxu0 %v4426
        %6942 = vmatpush.bf16.msra.mxu0 %v4422
        %6943 = vmatpush.bf16.msra.mxu0 %v4418
        %6944 = vmatpush.bf16.msra.mxu0 %v4414
        %6945 = vmatpush.bf16.msra.mxu0 %v4410
        %6946 = vmatpush.bf16.msra.mxu0 %v4406
        %6947 = vmatpush.bf16.msra.mxu0 %v4402
        %6948 = vmatmul.bf16.gmra.mxu0 %v1594
        %v6949 = vpop.f32.mrf.mxu0
        %v6950 = vadd.f32 %v6936, %v6949
        %v6951 = vpop.f32.mrf.mxu0
        %v6952 = vadd.f32 %v6938, %v6951
        %6953 = vdwg.mxu0
        %6954 = vmatpush.bf16.msra.mxu0 %v4462
        %6955 = vmatpush.bf16.msra.mxu0 %v4458
        %6956 = vmatpush.bf16.msra.mxu0 %v4454
        %6957 = vmatpush.bf16.msra.mxu0 %v4450
        %6958 = vmatpush.bf16.msra.mxu0 %v4446
        %6959 = vmatpush.bf16.msra.mxu0 %v4442
        %6960 = vmatpush.bf16.msra.mxu0 %v4438
        %6961 = vmatpush.bf16.msra.mxu0 %v4434
        %6962 = vmatmul.bf16.gmra.mxu0 %v1595
        %v6963 = vpop.f32.mrf.mxu0
        %v6964 = vadd.f32 %v6950, %v6963
        %v6965 = vpop.f32.mrf.mxu0
        %v6966 = vadd.f32 %v6952, %v6965
        %6967 = vdwg.mxu0
        %6968 = vmatpush.bf16.msra.mxu0 %v4494
        %6969 = vmatpush.bf16.msra.mxu0 %v4490
        %6970 = vmatpush.bf16.msra.mxu0 %v4486
        %6971 = vmatpush.bf16.msra.mxu0 %v4482
        %6972 = vmatpush.bf16.msra.mxu0 %v4478
        %6973 = vmatpush.bf16.msra.mxu0 %v4474
        %6974 = vmatpush.bf16.msra.mxu0 %v4470
        %6975 = vmatpush.bf16.msra.mxu0 %v4466
        %6976 = vmatmul.bf16.gmra.mxu0 %v1596
        %v6977 = vpop.f32.mrf.mxu0
        %v6978 = vadd.f32 %v6964, %v6977
        %v6979 = vpop.f32.mrf.mxu0
        %v6980 = vadd.f32 %v6966, %v6979
        %6981 = vdwg.mxu0
        %6982 = vmatpush.bf16.msra.mxu0 %v4526
        %6983 = vmatpush.bf16.msra.mxu0 %v4522
        %6984 = vmatpush.bf16.msra.mxu0 %v4518
        %6985 = vmatpush.bf16.msra.mxu0 %v4514
        %6986 = vmatpush.bf16.msra.mxu0 %v4510
        %6987 = vmatpush.bf16.msra.mxu0 %v4506
        %6988 = vmatpush.bf16.msra.mxu0 %v4502
        %6989 = vmatpush.bf16.msra.mxu0 %v4498
        %6990 = vmatmul.bf16.gmra.mxu0 %v1597
        %v6991 = vpop.f32.mrf.mxu0
        %v6992 = vadd.f32 %v6978, %v6991
        %v6993 = vpop.f32.mrf.mxu0
        %v6994 = vadd.f32 %v6980, %v6993
        %6995 = vdwg.mxu0
        %6996 = vmatpush.bf16.msra.mxu0 %v4558
        %6997 = vmatpush.bf16.msra.mxu0 %v4554
        %6998 = vmatpush.bf16.msra.mxu0 %v4550
        %6999 = vmatpush.bf16.msra.mxu0 %v4546
        %7000 = vmatpush.bf16.msra.mxu0 %v4542
        %7001 = vmatpush.bf16.msra.mxu0 %v4538
        %7002 = vmatpush.bf16.msra.mxu0 %v4534
        %7003 = vmatpush.bf16.msra.mxu0 %v4530
        %7004 = vmatmul.bf16.gmra.mxu0 %v1598
        %v7005 = vpop.f32.mrf.mxu0
        %v7006 = vadd.f32 %v6992, %v7005
        %v7007 = vpop.f32.mrf.mxu0
        %v7008 = vadd.f32 %v6994, %v7007
        %7009 = vdwg.mxu0
        %7010 = vmatpush.bf16.msra.mxu0 %v4590
        %7011 = vmatpush.bf16.msra.mxu0 %v4586
        %7012 = vmatpush.bf16.msra.mxu0 %v4582
        %7013 = vmatpush.bf16.msra.mxu0 %v4578
        %7014 = vmatpush.bf16.msra.mxu0 %v4574
        %7015 = vmatpush.bf16.msra.mxu0 %v4570
        %7016 = vmatpush.bf16.msra.mxu0 %v4566
        %7017 = vmatpush.bf16.msra.mxu0 %v4562
        %7018 = vmatmul.bf16.gmra.mxu0 %v1599
        %v7019 = vpop.f32.mrf.mxu0
        %v7020 = vadd.f32 %v7006, %v7019
        %v7021 = vpop.f32.mrf.mxu0
        %v7022 = vadd.f32 %v7008, %v7021
        %7023 = vdwg.mxu0
        %7024 = vmatpush.bf16.msra.mxu0 %v4622
        %7025 = vmatpush.bf16.msra.mxu0 %v4618
        %7026 = vmatpush.bf16.msra.mxu0 %v4614
        %7027 = vmatpush.bf16.msra.mxu0 %v4610
        %7028 = vmatpush.bf16.msra.mxu0 %v4606
        %7029 = vmatpush.bf16.msra.mxu0 %v4602
        %7030 = vmatpush.bf16.msra.mxu0 %v4598
        %7031 = vmatpush.bf16.msra.mxu0 %v4594
        %7032 = vmatmul.bf16.gmra.mxu0 %v1600
        %v7033 = vpop.f32.mrf.mxu0
        %v7034 = vadd.f32 %v7020, %v7033
        %v7035 = vpop.f32.mrf.mxu0
        %v7036 = vadd.f32 %v7022, %v7035
        %7037 = vdwg.mxu0
        %7038 = vmatpush.bf16.msra.mxu0 %v4654
        %7039 = vmatpush.bf16.msra.mxu0 %v4650
        %7040 = vmatpush.bf16.msra.mxu0 %v4646
        %7041 = vmatpush.bf16.msra.mxu0 %v4642
        %7042 = vmatpush.bf16.msra.mxu0 %v4638
        %7043 = vmatpush.bf16.msra.mxu0 %v4634
        %7044 = vmatpush.bf16.msra.mxu0 %v4630
        %7045 = vmatpush.bf16.msra.mxu0 %v4626
        %7046 = vmatmul.bf16.gmra.mxu0 %v1601
        %v7047 = vpop.f32.mrf.mxu0
        %v7048 = vadd.f32 %v7034, %v7047
        %v7049 = vpop.f32.mrf.mxu0
        %v7050 = vadd.f32 %v7036, %v7049
        %7051 = vdwg.mxu0
        %7052 = vmatpush.bf16.msra.mxu0 %v4686
        %7053 = vmatpush.bf16.msra.mxu0 %v4682
        %7054 = vmatpush.bf16.msra.mxu0 %v4678
        %7055 = vmatpush.bf16.msra.mxu0 %v4674
        %7056 = vmatpush.bf16.msra.mxu0 %v4670
        %7057 = vmatpush.bf16.msra.mxu0 %v4666
        %7058 = vmatpush.bf16.msra.mxu0 %v4662
        %7059 = vmatpush.bf16.msra.mxu0 %v4658
        %7060 = vmatmul.bf16.gmra.mxu0 %v1602
        %v7061 = vpop.f32.mrf.mxu0
        %v7062 = vadd.f32 %v7048, %v7061
        %v7063 = vpop.f32.mrf.mxu0
        %v7064 = vadd.f32 %v7050, %v7063
        %7065 = vdwg.mxu0
        %7066 = vmatpush.bf16.msra.mxu0 %v4718
        %7067 = vmatpush.bf16.msra.mxu0 %v4714
        %7068 = vmatpush.bf16.msra.mxu0 %v4710
        %7069 = vmatpush.bf16.msra.mxu0 %v4706
        %7070 = vmatpush.bf16.msra.mxu0 %v4702
        %7071 = vmatpush.bf16.msra.mxu0 %v4698
        %7072 = vmatpush.bf16.msra.mxu0 %v4694
        %7073 = vmatpush.bf16.msra.mxu0 %v4690
        %7074 = vmatmul.bf16.gmra.mxu0 %v1603
        %v7075 = vpop.f32.mrf.mxu0
        %v7076 = vadd.f32 %v7062, %v7075
        %v7077 = vpop.f32.mrf.mxu0
        %v7078 = vadd.f32 %v7064, %v7077
        %7079 = vdwg.mxu0
        %7080 = vmatpush.bf16.msra.mxu0 %v4750
        %7081 = vmatpush.bf16.msra.mxu0 %v4746
        %7082 = vmatpush.bf16.msra.mxu0 %v4742
        %7083 = vmatpush.bf16.msra.mxu0 %v4738
        %7084 = vmatpush.bf16.msra.mxu0 %v4734
        %7085 = vmatpush.bf16.msra.mxu0 %v4730
        %7086 = vmatpush.bf16.msra.mxu0 %v4726
        %7087 = vmatpush.bf16.msra.mxu0 %v4722
        %7088 = vmatmul.bf16.gmra.mxu0 %v1604
        %v7089 = vpop.f32.mrf.mxu0
        %v7090 = vadd.f32 %v7076, %v7089
        %v7091 = vpop.f32.mrf.mxu0
        %v7092 = vadd.f32 %v7078, %v7091
        %7093 = vdwg.mxu0
        %7094 = vmatpush.bf16.msra.mxu0 %v4782
        %7095 = vmatpush.bf16.msra.mxu0 %v4778
        %7096 = vmatpush.bf16.msra.mxu0 %v4774
        %7097 = vmatpush.bf16.msra.mxu0 %v4770
        %7098 = vmatpush.bf16.msra.mxu0 %v4766
        %7099 = vmatpush.bf16.msra.mxu0 %v4762
        %7100 = vmatpush.bf16.msra.mxu0 %v4758
        %7101 = vmatpush.bf16.msra.mxu0 %v4754
        %7102 = vmatmul.bf16.gmra.mxu0 %v1605
        %v7103 = vpop.f32.mrf.mxu0
        %v7104 = vadd.f32 %v7090, %v7103
        %v7105 = vpop.f32.mrf.mxu0
        %v7106 = vadd.f32 %v7092, %v7105
        %7107 = vdwg.mxu0
        %7108 = vmatpush.bf16.msra.mxu0 %v4814
        %7109 = vmatpush.bf16.msra.mxu0 %v4810
        %7110 = vmatpush.bf16.msra.mxu0 %v4806
        %7111 = vmatpush.bf16.msra.mxu0 %v4802
        %7112 = vmatpush.bf16.msra.mxu0 %v4798
        %7113 = vmatpush.bf16.msra.mxu0 %v4794
        %7114 = vmatpush.bf16.msra.mxu0 %v4790
        %7115 = vmatpush.bf16.msra.mxu0 %v4786
        %7116 = vmatmul.bf16.gmra.mxu0 %v1606
        %v7117 = vpop.f32.mrf.mxu0
        %v7118 = vadd.f32 %v7104, %v7117
        %v7119 = vpop.f32.mrf.mxu0
        %v7120 = vadd.f32 %v7106, %v7119
        %7121 = vdwg.mxu0
        %7122 = vmatpush.bf16.msra.mxu0 %v4846
        %7123 = vmatpush.bf16.msra.mxu0 %v4842
        %7124 = vmatpush.bf16.msra.mxu0 %v4838
        %7125 = vmatpush.bf16.msra.mxu0 %v4834
        %7126 = vmatpush.bf16.msra.mxu0 %v4830
        %7127 = vmatpush.bf16.msra.mxu0 %v4826
        %7128 = vmatpush.bf16.msra.mxu0 %v4822
        %7129 = vmatpush.bf16.msra.mxu0 %v4818
        %7130 = vmatmul.bf16.gmra.mxu0 %v1607
        %v7131 = vpop.f32.mrf.mxu0
        %v7132 = vadd.f32 %v7118, %v7131
        %v7133 = vpop.f32.mrf.mxu0
        %v7134 = vadd.f32 %v7120, %v7133
        %7135 = vdwg.mxu0
        %7136 = vmatpush.bf16.msra.mxu0 %v4878
        %7137 = vmatpush.bf16.msra.mxu0 %v4874
        %7138 = vmatpush.bf16.msra.mxu0 %v4870
        %7139 = vmatpush.bf16.msra.mxu0 %v4866
        %7140 = vmatpush.bf16.msra.mxu0 %v4862
        %7141 = vmatpush.bf16.msra.mxu0 %v4858
        %7142 = vmatpush.bf16.msra.mxu0 %v4854
        %7143 = vmatpush.bf16.msra.mxu0 %v4850
        %7144 = vmatmul.bf16.gmra.mxu0 %v1608
        %v7145 = vpop.f32.mrf.mxu0
        %v7146 = vadd.f32 %v7132, %v7145
        %v7147 = vpop.f32.mrf.mxu0
        %v7148 = vadd.f32 %v7134, %v7147
        %7149 = vdwg.mxu0
        %7150 = vmatpush.bf16.msra.mxu0 %v4910
        %7151 = vmatpush.bf16.msra.mxu0 %v4906
        %7152 = vmatpush.bf16.msra.mxu0 %v4902
        %7153 = vmatpush.bf16.msra.mxu0 %v4898
        %7154 = vmatpush.bf16.msra.mxu0 %v4894
        %7155 = vmatpush.bf16.msra.mxu0 %v4890
        %7156 = vmatpush.bf16.msra.mxu0 %v4886
        %7157 = vmatpush.bf16.msra.mxu0 %v4882
        %7158 = vmatmul.bf16.gmra.mxu0 %v1609
        %v7159 = vpop.f32.mrf.mxu0
        %v7160 = vadd.f32 %v7146, %v7159
        %v7161 = vpop.f32.mrf.mxu0
        %v7162 = vadd.f32 %v7148, %v7161
        %7163 = vdwg.mxu0
        %7164 = vmatpush.bf16.msra.mxu0 %v4942
        %7165 = vmatpush.bf16.msra.mxu0 %v4938
        %7166 = vmatpush.bf16.msra.mxu0 %v4934
        %7167 = vmatpush.bf16.msra.mxu0 %v4930
        %7168 = vmatpush.bf16.msra.mxu0 %v4926
        %7169 = vmatpush.bf16.msra.mxu0 %v4922
        %7170 = vmatpush.bf16.msra.mxu0 %v4918
        %7171 = vmatpush.bf16.msra.mxu0 %v4914
        %7172 = vmatmul.bf16.gmra.mxu0 %v1610
        %v7173 = vpop.f32.mrf.mxu0
        %v7174 = vadd.f32 %v7160, %v7173
        %v7175 = vpop.f32.mrf.mxu0
        %v7176 = vadd.f32 %v7162, %v7175
        %7177 = vdwg.mxu0
        %7178 = vmatpush.bf16.msra.mxu0 %v4974
        %7179 = vmatpush.bf16.msra.mxu0 %v4970
        %7180 = vmatpush.bf16.msra.mxu0 %v4966
        %7181 = vmatpush.bf16.msra.mxu0 %v4962
        %7182 = vmatpush.bf16.msra.mxu0 %v4958
        %7183 = vmatpush.bf16.msra.mxu0 %v4954
        %7184 = vmatpush.bf16.msra.mxu0 %v4950
        %7185 = vmatpush.bf16.msra.mxu0 %v4946
        %7186 = vmatmul.bf16.gmra.mxu0 %v1611
        %v7187 = vpop.f32.mrf.mxu0
        %v7188 = vadd.f32 %v7174, %v7187
        %v7189 = vpop.f32.mrf.mxu0
        %v7190 = vadd.f32 %v7176, %v7189
        %7191 = vdwg.mxu0
        %7192 = vmatpush.bf16.msra.mxu0 %v5006
        %7193 = vmatpush.bf16.msra.mxu0 %v5002
        %7194 = vmatpush.bf16.msra.mxu0 %v4998
        %7195 = vmatpush.bf16.msra.mxu0 %v4994
        %7196 = vmatpush.bf16.msra.mxu0 %v4990
        %7197 = vmatpush.bf16.msra.mxu0 %v4986
        %7198 = vmatpush.bf16.msra.mxu0 %v4982
        %7199 = vmatpush.bf16.msra.mxu0 %v4978
        %7200 = vmatmul.bf16.gmra.mxu0 %v1612
        %v7201 = vpop.f32.mrf.mxu0
        %v7202 = vadd.f32 %v7188, %v7201
        %v7203 = vpop.f32.mrf.mxu0
        %v7204 = vadd.f32 %v7190, %v7203
        %7205 = vdwg.mxu0
        %7206 = vmatpush.bf16.msra.mxu0 %v5038
        %7207 = vmatpush.bf16.msra.mxu0 %v5034
        %7208 = vmatpush.bf16.msra.mxu0 %v5030
        %7209 = vmatpush.bf16.msra.mxu0 %v5026
        %7210 = vmatpush.bf16.msra.mxu0 %v5022
        %7211 = vmatpush.bf16.msra.mxu0 %v5018
        %7212 = vmatpush.bf16.msra.mxu0 %v5014
        %7213 = vmatpush.bf16.msra.mxu0 %v5010
        %7214 = vmatmul.bf16.gmra.mxu0 %v1613
        %v7215 = vpop.f32.mrf.mxu0
        %v7216 = vadd.f32 %v7202, %v7215
        %v7217 = vpop.f32.mrf.mxu0
        %v7218 = vadd.f32 %v7204, %v7217
        %7219 = vdwg.mxu0
        %7220 = vmatpush.bf16.msra.mxu0 %v5070
        %7221 = vmatpush.bf16.msra.mxu0 %v5066
        %7222 = vmatpush.bf16.msra.mxu0 %v5062
        %7223 = vmatpush.bf16.msra.mxu0 %v5058
        %7224 = vmatpush.bf16.msra.mxu0 %v5054
        %7225 = vmatpush.bf16.msra.mxu0 %v5050
        %7226 = vmatpush.bf16.msra.mxu0 %v5046
        %7227 = vmatpush.bf16.msra.mxu0 %v5042
        %7228 = vmatmul.bf16.gmra.mxu0 %v1614
        %v7229 = vpop.f32.mrf.mxu0
        %v7230 = vadd.f32 %v7216, %v7229
        %v7231 = vpop.f32.mrf.mxu0
        %v7232 = vadd.f32 %v7218, %v7231
        %7233 = vdwg.mxu0
        %7234 = vmatpush.bf16.msra.mxu0 %v5102
        %7235 = vmatpush.bf16.msra.mxu0 %v5098
        %7236 = vmatpush.bf16.msra.mxu0 %v5094
        %7237 = vmatpush.bf16.msra.mxu0 %v5090
        %7238 = vmatpush.bf16.msra.mxu0 %v5086
        %7239 = vmatpush.bf16.msra.mxu0 %v5082
        %7240 = vmatpush.bf16.msra.mxu0 %v5078
        %7241 = vmatpush.bf16.msra.mxu0 %v5074
        %7242 = vmatmul.bf16.gmra.mxu0 %v1615
        %v7243 = vpop.f32.mrf.mxu0
        %v7244 = vadd.f32 %v7230, %v7243
        %v7245 = vpop.f32.mrf.mxu0
        %v7246 = vadd.f32 %v7232, %v7245
        %7247 = vdwg.mxu0
        %7248 = vmatpush.bf16.msra.mxu0 %v5134
        %7249 = vmatpush.bf16.msra.mxu0 %v5130
        %7250 = vmatpush.bf16.msra.mxu0 %v5126
        %7251 = vmatpush.bf16.msra.mxu0 %v5122
        %7252 = vmatpush.bf16.msra.mxu0 %v5118
        %7253 = vmatpush.bf16.msra.mxu0 %v5114
        %7254 = vmatpush.bf16.msra.mxu0 %v5110
        %7255 = vmatpush.bf16.msra.mxu0 %v5106
        %7256 = vmatmul.bf16.gmra.mxu0 %v1616
        %v7257 = vpop.f32.mrf.mxu0
        %v7258 = vadd.f32 %v7244, %v7257
        %v7259 = vpop.f32.mrf.mxu0
        %v7260 = vadd.f32 %v7246, %v7259
        %7261 = vdwg.mxu0
        %7262 = vmatpush.bf16.msra.mxu0 %v5166
        %7263 = vmatpush.bf16.msra.mxu0 %v5162
        %7264 = vmatpush.bf16.msra.mxu0 %v5158
        %7265 = vmatpush.bf16.msra.mxu0 %v5154
        %7266 = vmatpush.bf16.msra.mxu0 %v5150
        %7267 = vmatpush.bf16.msra.mxu0 %v5146
        %7268 = vmatpush.bf16.msra.mxu0 %v5142
        %7269 = vmatpush.bf16.msra.mxu0 %v5138
        %7270 = vmatmul.bf16.gmra.mxu0 %v1617
        %v7271 = vpop.f32.mrf.mxu0
        %v7272 = vadd.f32 %v7258, %v7271
        %v7273 = vpop.f32.mrf.mxu0
        %v7274 = vadd.f32 %v7260, %v7273
        %7275 = vdwg.mxu0
        %7276 = vmatpush.bf16.msra.mxu0 %v5198
        %7277 = vmatpush.bf16.msra.mxu0 %v5194
        %7278 = vmatpush.bf16.msra.mxu0 %v5190
        %7279 = vmatpush.bf16.msra.mxu0 %v5186
        %7280 = vmatpush.bf16.msra.mxu0 %v5182
        %7281 = vmatpush.bf16.msra.mxu0 %v5178
        %7282 = vmatpush.bf16.msra.mxu0 %v5174
        %7283 = vmatpush.bf16.msra.mxu0 %v5170
        %7284 = vmatmul.bf16.gmra.mxu0 %v1618
        %v7285 = vpop.f32.mrf.mxu0
        %v7286 = vadd.f32 %v7272, %v7285
        %v7287 = vpop.f32.mrf.mxu0
        %v7288 = vadd.f32 %v7274, %v7287
        %7289 = vdwg.mxu0
        %7290 = vmatpush.bf16.msra.mxu0 %v5230
        %7291 = vmatpush.bf16.msra.mxu0 %v5226
        %7292 = vmatpush.bf16.msra.mxu0 %v5222
        %7293 = vmatpush.bf16.msra.mxu0 %v5218
        %7294 = vmatpush.bf16.msra.mxu0 %v5214
        %7295 = vmatpush.bf16.msra.mxu0 %v5210
        %7296 = vmatpush.bf16.msra.mxu0 %v5206
        %7297 = vmatpush.bf16.msra.mxu0 %v5202
        %7298 = vmatmul.bf16.gmra.mxu0 %v1619
        %v7299 = vpop.f32.mrf.mxu0
        %v7300 = vadd.f32 %v7286, %v7299
        %v7301 = vpop.f32.mrf.mxu0
        %v7302 = vadd.f32 %v7288, %v7301
        %7303 = vdwg.mxu0
        %7304 = vmatpush.bf16.msra.mxu0 %v4367
        %7305 = vmatpush.bf16.msra.mxu0 %v4363
        %7306 = vmatpush.bf16.msra.mxu0 %v4359
        %7307 = vmatpush.bf16.msra.mxu0 %v4355
        %7308 = vmatpush.bf16.msra.mxu0 %v4351
        %7309 = vmatpush.bf16.msra.mxu0 %v4347
        %7310 = vmatpush.bf16.msra.mxu0 %v4343
        %7311 = vmatpush.bf16.msra.mxu0 %v4339
        %7312 = vmatmul.bf16.gmra.mxu0 %v1592
        %v7313 = vpop.f32.mrf.mxu0
        %v7314 = vadd.f32 %v1503, %v7313
        %v7315 = vpop.f32.mrf.mxu0
        %v7316 = vadd.f32 %v1503, %v7315
        %7317 = vdwg.mxu0
        %7318 = vmatpush.bf16.msra.mxu0 %v4399
        %7319 = vmatpush.bf16.msra.mxu0 %v4395
        %7320 = vmatpush.bf16.msra.mxu0 %v4391
        %7321 = vmatpush.bf16.msra.mxu0 %v4387
        %7322 = vmatpush.bf16.msra.mxu0 %v4383
        %7323 = vmatpush.bf16.msra.mxu0 %v4379
        %7324 = vmatpush.bf16.msra.mxu0 %v4375
        %7325 = vmatpush.bf16.msra.mxu0 %v4371
        %7326 = vmatmul.bf16.gmra.mxu0 %v1593
        %v7327 = vpop.f32.mrf.mxu0
        %v7328 = vadd.f32 %v7314, %v7327
        %v7329 = vpop.f32.mrf.mxu0
        %v7330 = vadd.f32 %v7316, %v7329
        %7331 = vdwg.mxu0
        %7332 = vmatpush.bf16.msra.mxu0 %v4431
        %7333 = vmatpush.bf16.msra.mxu0 %v4427
        %7334 = vmatpush.bf16.msra.mxu0 %v4423
        %7335 = vmatpush.bf16.msra.mxu0 %v4419
        %7336 = vmatpush.bf16.msra.mxu0 %v4415
        %7337 = vmatpush.bf16.msra.mxu0 %v4411
        %7338 = vmatpush.bf16.msra.mxu0 %v4407
        %7339 = vmatpush.bf16.msra.mxu0 %v4403
        %7340 = vmatmul.bf16.gmra.mxu0 %v1594
        %v7341 = vpop.f32.mrf.mxu0
        %v7342 = vadd.f32 %v7328, %v7341
        %v7343 = vpop.f32.mrf.mxu0
        %v7344 = vadd.f32 %v7330, %v7343
        %7345 = vdwg.mxu0
        %7346 = vmatpush.bf16.msra.mxu0 %v4463
        %7347 = vmatpush.bf16.msra.mxu0 %v4459
        %7348 = vmatpush.bf16.msra.mxu0 %v4455
        %7349 = vmatpush.bf16.msra.mxu0 %v4451
        %7350 = vmatpush.bf16.msra.mxu0 %v4447
        %7351 = vmatpush.bf16.msra.mxu0 %v4443
        %7352 = vmatpush.bf16.msra.mxu0 %v4439
        %7353 = vmatpush.bf16.msra.mxu0 %v4435
        %7354 = vmatmul.bf16.gmra.mxu0 %v1595
        %v7355 = vpop.f32.mrf.mxu0
        %v7356 = vadd.f32 %v7342, %v7355
        %v7357 = vpop.f32.mrf.mxu0
        %v7358 = vadd.f32 %v7344, %v7357
        %7359 = vdwg.mxu0
        %7360 = vmatpush.bf16.msra.mxu0 %v4495
        %7361 = vmatpush.bf16.msra.mxu0 %v4491
        %7362 = vmatpush.bf16.msra.mxu0 %v4487
        %7363 = vmatpush.bf16.msra.mxu0 %v4483
        %7364 = vmatpush.bf16.msra.mxu0 %v4479
        %7365 = vmatpush.bf16.msra.mxu0 %v4475
        %7366 = vmatpush.bf16.msra.mxu0 %v4471
        %7367 = vmatpush.bf16.msra.mxu0 %v4467
        %7368 = vmatmul.bf16.gmra.mxu0 %v1596
        %v7369 = vpop.f32.mrf.mxu0
        %v7370 = vadd.f32 %v7356, %v7369
        %v7371 = vpop.f32.mrf.mxu0
        %v7372 = vadd.f32 %v7358, %v7371
        %7373 = vdwg.mxu0
        %7374 = vmatpush.bf16.msra.mxu0 %v4527
        %7375 = vmatpush.bf16.msra.mxu0 %v4523
        %7376 = vmatpush.bf16.msra.mxu0 %v4519
        %7377 = vmatpush.bf16.msra.mxu0 %v4515
        %7378 = vmatpush.bf16.msra.mxu0 %v4511
        %7379 = vmatpush.bf16.msra.mxu0 %v4507
        %7380 = vmatpush.bf16.msra.mxu0 %v4503
        %7381 = vmatpush.bf16.msra.mxu0 %v4499
        %7382 = vmatmul.bf16.gmra.mxu0 %v1597
        %v7383 = vpop.f32.mrf.mxu0
        %v7384 = vadd.f32 %v7370, %v7383
        %v7385 = vpop.f32.mrf.mxu0
        %v7386 = vadd.f32 %v7372, %v7385
        %7387 = vdwg.mxu0
        %7388 = vmatpush.bf16.msra.mxu0 %v4559
        %7389 = vmatpush.bf16.msra.mxu0 %v4555
        %7390 = vmatpush.bf16.msra.mxu0 %v4551
        %7391 = vmatpush.bf16.msra.mxu0 %v4547
        %7392 = vmatpush.bf16.msra.mxu0 %v4543
        %7393 = vmatpush.bf16.msra.mxu0 %v4539
        %7394 = vmatpush.bf16.msra.mxu0 %v4535
        %7395 = vmatpush.bf16.msra.mxu0 %v4531
        %7396 = vmatmul.bf16.gmra.mxu0 %v1598
        %v7397 = vpop.f32.mrf.mxu0
        %v7398 = vadd.f32 %v7384, %v7397
        %v7399 = vpop.f32.mrf.mxu0
        %v7400 = vadd.f32 %v7386, %v7399
        %7401 = vdwg.mxu0
        %7402 = vmatpush.bf16.msra.mxu0 %v4591
        %7403 = vmatpush.bf16.msra.mxu0 %v4587
        %7404 = vmatpush.bf16.msra.mxu0 %v4583
        %7405 = vmatpush.bf16.msra.mxu0 %v4579
        %7406 = vmatpush.bf16.msra.mxu0 %v4575
        %7407 = vmatpush.bf16.msra.mxu0 %v4571
        %7408 = vmatpush.bf16.msra.mxu0 %v4567
        %7409 = vmatpush.bf16.msra.mxu0 %v4563
        %7410 = vmatmul.bf16.gmra.mxu0 %v1599
        %v7411 = vpop.f32.mrf.mxu0
        %v7412 = vadd.f32 %v7398, %v7411
        %v7413 = vpop.f32.mrf.mxu0
        %v7414 = vadd.f32 %v7400, %v7413
        %7415 = vdwg.mxu0
        %7416 = vmatpush.bf16.msra.mxu0 %v4623
        %7417 = vmatpush.bf16.msra.mxu0 %v4619
        %7418 = vmatpush.bf16.msra.mxu0 %v4615
        %7419 = vmatpush.bf16.msra.mxu0 %v4611
        %7420 = vmatpush.bf16.msra.mxu0 %v4607
        %7421 = vmatpush.bf16.msra.mxu0 %v4603
        %7422 = vmatpush.bf16.msra.mxu0 %v4599
        %7423 = vmatpush.bf16.msra.mxu0 %v4595
        %7424 = vmatmul.bf16.gmra.mxu0 %v1600
        %v7425 = vpop.f32.mrf.mxu0
        %v7426 = vadd.f32 %v7412, %v7425
        %v7427 = vpop.f32.mrf.mxu0
        %v7428 = vadd.f32 %v7414, %v7427
        %7429 = vdwg.mxu0
        %7430 = vmatpush.bf16.msra.mxu0 %v4655
        %7431 = vmatpush.bf16.msra.mxu0 %v4651
        %7432 = vmatpush.bf16.msra.mxu0 %v4647
        %7433 = vmatpush.bf16.msra.mxu0 %v4643
        %7434 = vmatpush.bf16.msra.mxu0 %v4639
        %7435 = vmatpush.bf16.msra.mxu0 %v4635
        %7436 = vmatpush.bf16.msra.mxu0 %v4631
        %7437 = vmatpush.bf16.msra.mxu0 %v4627
        %7438 = vmatmul.bf16.gmra.mxu0 %v1601
        %v7439 = vpop.f32.mrf.mxu0
        %v7440 = vadd.f32 %v7426, %v7439
        %v7441 = vpop.f32.mrf.mxu0
        %v7442 = vadd.f32 %v7428, %v7441
        %7443 = vdwg.mxu0
        %7444 = vmatpush.bf16.msra.mxu0 %v4687
        %7445 = vmatpush.bf16.msra.mxu0 %v4683
        %7446 = vmatpush.bf16.msra.mxu0 %v4679
        %7447 = vmatpush.bf16.msra.mxu0 %v4675
        %7448 = vmatpush.bf16.msra.mxu0 %v4671
        %7449 = vmatpush.bf16.msra.mxu0 %v4667
        %7450 = vmatpush.bf16.msra.mxu0 %v4663
        %7451 = vmatpush.bf16.msra.mxu0 %v4659
        %7452 = vmatmul.bf16.gmra.mxu0 %v1602
        %v7453 = vpop.f32.mrf.mxu0
        %v7454 = vadd.f32 %v7440, %v7453
        %v7455 = vpop.f32.mrf.mxu0
        %v7456 = vadd.f32 %v7442, %v7455
        %7457 = vdwg.mxu0
        %7458 = vmatpush.bf16.msra.mxu0 %v4719
        %7459 = vmatpush.bf16.msra.mxu0 %v4715
        %7460 = vmatpush.bf16.msra.mxu0 %v4711
        %7461 = vmatpush.bf16.msra.mxu0 %v4707
        %7462 = vmatpush.bf16.msra.mxu0 %v4703
        %7463 = vmatpush.bf16.msra.mxu0 %v4699
        %7464 = vmatpush.bf16.msra.mxu0 %v4695
        %7465 = vmatpush.bf16.msra.mxu0 %v4691
        %7466 = vmatmul.bf16.gmra.mxu0 %v1603
        %v7467 = vpop.f32.mrf.mxu0
        %v7468 = vadd.f32 %v7454, %v7467
        %v7469 = vpop.f32.mrf.mxu0
        %v7470 = vadd.f32 %v7456, %v7469
        %7471 = vdwg.mxu0
        %7472 = vmatpush.bf16.msra.mxu0 %v4751
        %7473 = vmatpush.bf16.msra.mxu0 %v4747
        %7474 = vmatpush.bf16.msra.mxu0 %v4743
        %7475 = vmatpush.bf16.msra.mxu0 %v4739
        %7476 = vmatpush.bf16.msra.mxu0 %v4735
        %7477 = vmatpush.bf16.msra.mxu0 %v4731
        %7478 = vmatpush.bf16.msra.mxu0 %v4727
        %7479 = vmatpush.bf16.msra.mxu0 %v4723
        %7480 = vmatmul.bf16.gmra.mxu0 %v1604
        %v7481 = vpop.f32.mrf.mxu0
        %v7482 = vadd.f32 %v7468, %v7481
        %v7483 = vpop.f32.mrf.mxu0
        %v7484 = vadd.f32 %v7470, %v7483
        %7485 = vdwg.mxu0
        %7486 = vmatpush.bf16.msra.mxu0 %v4783
        %7487 = vmatpush.bf16.msra.mxu0 %v4779
        %7488 = vmatpush.bf16.msra.mxu0 %v4775
        %7489 = vmatpush.bf16.msra.mxu0 %v4771
        %7490 = vmatpush.bf16.msra.mxu0 %v4767
        %7491 = vmatpush.bf16.msra.mxu0 %v4763
        %7492 = vmatpush.bf16.msra.mxu0 %v4759
        %7493 = vmatpush.bf16.msra.mxu0 %v4755
        %7494 = vmatmul.bf16.gmra.mxu0 %v1605
        %v7495 = vpop.f32.mrf.mxu0
        %v7496 = vadd.f32 %v7482, %v7495
        %v7497 = vpop.f32.mrf.mxu0
        %v7498 = vadd.f32 %v7484, %v7497
        %7499 = vdwg.mxu0
        %7500 = vmatpush.bf16.msra.mxu0 %v4815
        %7501 = vmatpush.bf16.msra.mxu0 %v4811
        %7502 = vmatpush.bf16.msra.mxu0 %v4807
        %7503 = vmatpush.bf16.msra.mxu0 %v4803
        %7504 = vmatpush.bf16.msra.mxu0 %v4799
        %7505 = vmatpush.bf16.msra.mxu0 %v4795
        %7506 = vmatpush.bf16.msra.mxu0 %v4791
        %7507 = vmatpush.bf16.msra.mxu0 %v4787
        %7508 = vmatmul.bf16.gmra.mxu0 %v1606
        %v7509 = vpop.f32.mrf.mxu0
        %v7510 = vadd.f32 %v7496, %v7509
        %v7511 = vpop.f32.mrf.mxu0
        %v7512 = vadd.f32 %v7498, %v7511
        %7513 = vdwg.mxu0
        %7514 = vmatpush.bf16.msra.mxu0 %v4847
        %7515 = vmatpush.bf16.msra.mxu0 %v4843
        %7516 = vmatpush.bf16.msra.mxu0 %v4839
        %7517 = vmatpush.bf16.msra.mxu0 %v4835
        %7518 = vmatpush.bf16.msra.mxu0 %v4831
        %7519 = vmatpush.bf16.msra.mxu0 %v4827
        %7520 = vmatpush.bf16.msra.mxu0 %v4823
        %7521 = vmatpush.bf16.msra.mxu0 %v4819
        %7522 = vmatmul.bf16.gmra.mxu0 %v1607
        %v7523 = vpop.f32.mrf.mxu0
        %v7524 = vadd.f32 %v7510, %v7523
        %v7525 = vpop.f32.mrf.mxu0
        %v7526 = vadd.f32 %v7512, %v7525
        %7527 = vdwg.mxu0
        %7528 = vmatpush.bf16.msra.mxu0 %v4879
        %7529 = vmatpush.bf16.msra.mxu0 %v4875
        %7530 = vmatpush.bf16.msra.mxu0 %v4871
        %7531 = vmatpush.bf16.msra.mxu0 %v4867
        %7532 = vmatpush.bf16.msra.mxu0 %v4863
        %7533 = vmatpush.bf16.msra.mxu0 %v4859
        %7534 = vmatpush.bf16.msra.mxu0 %v4855
        %7535 = vmatpush.bf16.msra.mxu0 %v4851
        %7536 = vmatmul.bf16.gmra.mxu0 %v1608
        %v7537 = vpop.f32.mrf.mxu0
        %v7538 = vadd.f32 %v7524, %v7537
        %v7539 = vpop.f32.mrf.mxu0
        %v7540 = vadd.f32 %v7526, %v7539
        %7541 = vdwg.mxu0
        %7542 = vmatpush.bf16.msra.mxu0 %v4911
        %7543 = vmatpush.bf16.msra.mxu0 %v4907
        %7544 = vmatpush.bf16.msra.mxu0 %v4903
        %7545 = vmatpush.bf16.msra.mxu0 %v4899
        %7546 = vmatpush.bf16.msra.mxu0 %v4895
        %7547 = vmatpush.bf16.msra.mxu0 %v4891
        %7548 = vmatpush.bf16.msra.mxu0 %v4887
        %7549 = vmatpush.bf16.msra.mxu0 %v4883
        %7550 = vmatmul.bf16.gmra.mxu0 %v1609
        %v7551 = vpop.f32.mrf.mxu0
        %v7552 = vadd.f32 %v7538, %v7551
        %v7553 = vpop.f32.mrf.mxu0
        %v7554 = vadd.f32 %v7540, %v7553
        %7555 = vdwg.mxu0
        %7556 = vmatpush.bf16.msra.mxu0 %v4943
        %7557 = vmatpush.bf16.msra.mxu0 %v4939
        %7558 = vmatpush.bf16.msra.mxu0 %v4935
        %7559 = vmatpush.bf16.msra.mxu0 %v4931
        %7560 = vmatpush.bf16.msra.mxu0 %v4927
        %7561 = vmatpush.bf16.msra.mxu0 %v4923
        %7562 = vmatpush.bf16.msra.mxu0 %v4919
        %7563 = vmatpush.bf16.msra.mxu0 %v4915
        %7564 = vmatmul.bf16.gmra.mxu0 %v1610
        %v7565 = vpop.f32.mrf.mxu0
        %v7566 = vadd.f32 %v7552, %v7565
        %v7567 = vpop.f32.mrf.mxu0
        %v7568 = vadd.f32 %v7554, %v7567
        %7569 = vdwg.mxu0
        %7570 = vmatpush.bf16.msra.mxu0 %v4975
        %7571 = vmatpush.bf16.msra.mxu0 %v4971
        %7572 = vmatpush.bf16.msra.mxu0 %v4967
        %7573 = vmatpush.bf16.msra.mxu0 %v4963
        %7574 = vmatpush.bf16.msra.mxu0 %v4959
        %7575 = vmatpush.bf16.msra.mxu0 %v4955
        %7576 = vmatpush.bf16.msra.mxu0 %v4951
        %7577 = vmatpush.bf16.msra.mxu0 %v4947
        %7578 = vmatmul.bf16.gmra.mxu0 %v1611
        %v7579 = vpop.f32.mrf.mxu0
        %v7580 = vadd.f32 %v7566, %v7579
        %v7581 = vpop.f32.mrf.mxu0
        %v7582 = vadd.f32 %v7568, %v7581
        %7583 = vdwg.mxu0
        %7584 = vmatpush.bf16.msra.mxu0 %v5007
        %7585 = vmatpush.bf16.msra.mxu0 %v5003
        %7586 = vmatpush.bf16.msra.mxu0 %v4999
        %7587 = vmatpush.bf16.msra.mxu0 %v4995
        %7588 = vmatpush.bf16.msra.mxu0 %v4991
        %7589 = vmatpush.bf16.msra.mxu0 %v4987
        %7590 = vmatpush.bf16.msra.mxu0 %v4983
        %7591 = vmatpush.bf16.msra.mxu0 %v4979
        %7592 = vmatmul.bf16.gmra.mxu0 %v1612
        %v7593 = vpop.f32.mrf.mxu0
        %v7594 = vadd.f32 %v7580, %v7593
        %v7595 = vpop.f32.mrf.mxu0
        %v7596 = vadd.f32 %v7582, %v7595
        %7597 = vdwg.mxu0
        %7598 = vmatpush.bf16.msra.mxu0 %v5039
        %7599 = vmatpush.bf16.msra.mxu0 %v5035
        %7600 = vmatpush.bf16.msra.mxu0 %v5031
        %7601 = vmatpush.bf16.msra.mxu0 %v5027
        %7602 = vmatpush.bf16.msra.mxu0 %v5023
        %7603 = vmatpush.bf16.msra.mxu0 %v5019
        %7604 = vmatpush.bf16.msra.mxu0 %v5015
        %7605 = vmatpush.bf16.msra.mxu0 %v5011
        %7606 = vmatmul.bf16.gmra.mxu0 %v1613
        %v7607 = vpop.f32.mrf.mxu0
        %v7608 = vadd.f32 %v7594, %v7607
        %v7609 = vpop.f32.mrf.mxu0
        %v7610 = vadd.f32 %v7596, %v7609
        %7611 = vdwg.mxu0
        %7612 = vmatpush.bf16.msra.mxu0 %v5071
        %7613 = vmatpush.bf16.msra.mxu0 %v5067
        %7614 = vmatpush.bf16.msra.mxu0 %v5063
        %7615 = vmatpush.bf16.msra.mxu0 %v5059
        %7616 = vmatpush.bf16.msra.mxu0 %v5055
        %7617 = vmatpush.bf16.msra.mxu0 %v5051
        %7618 = vmatpush.bf16.msra.mxu0 %v5047
        %7619 = vmatpush.bf16.msra.mxu0 %v5043
        %7620 = vmatmul.bf16.gmra.mxu0 %v1614
        %v7621 = vpop.f32.mrf.mxu0
        %v7622 = vadd.f32 %v7608, %v7621
        %v7623 = vpop.f32.mrf.mxu0
        %v7624 = vadd.f32 %v7610, %v7623
        %7625 = vdwg.mxu0
        %7626 = vmatpush.bf16.msra.mxu0 %v5103
        %7627 = vmatpush.bf16.msra.mxu0 %v5099
        %7628 = vmatpush.bf16.msra.mxu0 %v5095
        %7629 = vmatpush.bf16.msra.mxu0 %v5091
        %7630 = vmatpush.bf16.msra.mxu0 %v5087
        %7631 = vmatpush.bf16.msra.mxu0 %v5083
        %7632 = vmatpush.bf16.msra.mxu0 %v5079
        %7633 = vmatpush.bf16.msra.mxu0 %v5075
        %7634 = vmatmul.bf16.gmra.mxu0 %v1615
        %v7635 = vpop.f32.mrf.mxu0
        %v7636 = vadd.f32 %v7622, %v7635
        %v7637 = vpop.f32.mrf.mxu0
        %v7638 = vadd.f32 %v7624, %v7637
        %7639 = vdwg.mxu0
        %7640 = vmatpush.bf16.msra.mxu0 %v5135
        %7641 = vmatpush.bf16.msra.mxu0 %v5131
        %7642 = vmatpush.bf16.msra.mxu0 %v5127
        %7643 = vmatpush.bf16.msra.mxu0 %v5123
        %7644 = vmatpush.bf16.msra.mxu0 %v5119
        %7645 = vmatpush.bf16.msra.mxu0 %v5115
        %7646 = vmatpush.bf16.msra.mxu0 %v5111
        %7647 = vmatpush.bf16.msra.mxu0 %v5107
        %7648 = vmatmul.bf16.gmra.mxu0 %v1616
        %v7649 = vpop.f32.mrf.mxu0
        %v7650 = vadd.f32 %v7636, %v7649
        %v7651 = vpop.f32.mrf.mxu0
        %v7652 = vadd.f32 %v7638, %v7651
        %7653 = vdwg.mxu0
        %7654 = vmatpush.bf16.msra.mxu0 %v5167
        %7655 = vmatpush.bf16.msra.mxu0 %v5163
        %7656 = vmatpush.bf16.msra.mxu0 %v5159
        %7657 = vmatpush.bf16.msra.mxu0 %v5155
        %7658 = vmatpush.bf16.msra.mxu0 %v5151
        %7659 = vmatpush.bf16.msra.mxu0 %v5147
        %7660 = vmatpush.bf16.msra.mxu0 %v5143
        %7661 = vmatpush.bf16.msra.mxu0 %v5139
        %7662 = vmatmul.bf16.gmra.mxu0 %v1617
        %v7663 = vpop.f32.mrf.mxu0
        %v7664 = vadd.f32 %v7650, %v7663
        %v7665 = vpop.f32.mrf.mxu0
        %v7666 = vadd.f32 %v7652, %v7665
        %7667 = vdwg.mxu0
        %7668 = vmatpush.bf16.msra.mxu0 %v5199
        %7669 = vmatpush.bf16.msra.mxu0 %v5195
        %7670 = vmatpush.bf16.msra.mxu0 %v5191
        %7671 = vmatpush.bf16.msra.mxu0 %v5187
        %7672 = vmatpush.bf16.msra.mxu0 %v5183
        %7673 = vmatpush.bf16.msra.mxu0 %v5179
        %7674 = vmatpush.bf16.msra.mxu0 %v5175
        %7675 = vmatpush.bf16.msra.mxu0 %v5171
        %7676 = vmatmul.bf16.gmra.mxu0 %v1618
        %v7677 = vpop.f32.mrf.mxu0
        %v7678 = vadd.f32 %v7664, %v7677
        %v7679 = vpop.f32.mrf.mxu0
        %v7680 = vadd.f32 %v7666, %v7679
        %7681 = vdwg.mxu0
        %7682 = vmatpush.bf16.msra.mxu0 %v5231
        %7683 = vmatpush.bf16.msra.mxu0 %v5227
        %7684 = vmatpush.bf16.msra.mxu0 %v5223
        %7685 = vmatpush.bf16.msra.mxu0 %v5219
        %7686 = vmatpush.bf16.msra.mxu0 %v5215
        %7687 = vmatpush.bf16.msra.mxu0 %v5211
        %7688 = vmatpush.bf16.msra.mxu0 %v5207
        %7689 = vmatpush.bf16.msra.mxu0 %v5203
        %7690 = vmatmul.bf16.gmra.mxu0 %v1619
        %v7691 = vpop.f32.mrf.mxu0
        %v7692 = vadd.f32 %v7678, %v7691
        %v7693 = vpop.f32.mrf.mxu0
        %v7694 = vadd.f32 %v7680, %v7693
        %7695 = vdwg.mxu0
        %v7696 = vld [vmem:[#allocation8] sm:$0x3]
        %v7697 = vld [vmem:[#allocation10] sm:$0x3]
        %v7698 = vadd.f32 %v6516, %v6908
        %7699 = vadd.xlane.f32.xlu0 %v7698
        %v7700 = vpop.xlane.xlu0 %7699
        %v7701 = vadd.f32 %v6518, %v6910
        %7702 = vadd.xlane.f32.xlu0 %v7701
        %v7703 = vpop.xlane.xlu0 %7702
        %v7704 = vrcp.pop 256.0
        %v7705 = vmul.f32 256.0, %v7704
        %v7706 = vsub.f32 1.0, %v7705
        %v7707 = vmul.f32 %v7704, %v7706
        %v7708 = vadd.f32 %v7704, %v7707
        %vm7709 = vweird.f32 %v7704
        %v7710 = vsel %vm7709, %v7704, %v7708
        %v7711 = vmul.f32 %v7700, %v7710
        %v7712 = vmul.f32 %v7703, %v7710
        %v7713 = vsub.f32 %v6516, %v7711
        %v7714 = vsub.f32 %v6908, %v7711
        %v7715 = vsub.f32 %v6518, %v7712
        %v7716 = vsub.f32 %v6910, %v7712
        %v7717 = vmul.f32 %v7713, %v7713
        %v7718 = vmul.f32 %v7714, %v7714
        %v7719 = vmul.f32 %v7715, %v7715
        %v7720 = vmul.f32 %v7716, %v7716
        %v7721 = vadd.f32 %v7717, %v7718
        %7722 = vadd.xlane.f32.xlu0 %v7721
        %v7723 = vpop.xlane.xlu0 %7722
        %v7724 = vadd.f32 %v7719, %v7720
        %7725 = vadd.xlane.f32.xlu0 %v7724
        %v7726 = vpop.xlane.xlu0 %7725
        %v7727 = vmul.f32 %v7723, %v7710
        %v7728 = vmul.f32 %v7726, %v7710
        %v7729 = vadd.f32 %v7727, 1e-05
        %v7730 = vadd.f32 %v7728, 1e-05
        %v7731 = vrsqrt.pop %v7729
        %v7732 = vmul.f32 %v7731, %v7729
        %v7733 = vmul.f32 %v7732, %v7731
        %v7734 = vmul.f32 0.5, %v7733
        %v7735 = vsub.f32 1.5, %v7734
        %v7736 = vmul.f32 %v7731, %v7735
        %vm7737 = vweird.f32 %v7729
        %vm7738 = vweird.f32 %v7731
        %vm7739 = vmor %vm7737, %vm7738
        %v7740 = vsel %vm7739, %v7731, %v7736
        %v7741 = vrsqrt.pop %v7730
        %v7742 = vmul.f32 %v7741, %v7730
        %v7743 = vmul.f32 %v7742, %v7741
        %v7744 = vmul.f32 0.5, %v7743
        %v7745 = vsub.f32 1.5, %v7744
        %v7746 = vmul.f32 %v7741, %v7745
        %vm7747 = vweird.f32 %v7730
        %vm7748 = vweird.f32 %v7741
        %vm7749 = vmor %vm7747, %vm7748
        %v7750 = vsel %vm7749, %v7741, %v7746
        %v7751 = vmul.f32 %v7713, %v7740
        %v7752 = vmul.f32 %v7714, %v7740
        %v7753 = vmul.f32 %v7715, %v7750
        %v7754 = vmul.f32 %v7716, %v7750
        %v7756 = vperm.slane %v7696, 0
        %v7757 = vperm.slane %v7696, 1
        %v7760 = vmul.f32 %v7751, %v7756
        %v7761 = vmul.f32 %v7752, %v7757
        %v7762 = vmul.f32 %v7753, %v7756
        %v7763 = vmul.f32 %v7754, %v7757
        %v7765 = vperm.slane %v7697, 0
        %v7766 = vperm.slane %v7697, 1
        %v7769 = vadd.f32 %v7760, %v7765
        %v7770 = vadd.f32 %v7761, %v7766
        %v7771 = vadd.f32 %v7762, %v7765
        %v7772 = vadd.f32 %v7763, %v7766
        %v7773 = vpack.c.bf16 %v7771, %v7769
        %v7774 = vpack.c.bf16 %v7772, %v7770
        %v7775 = vld [vmem:[#allocation11] sm:$0xff]
        %v7776 = vld [vmem:[#allocation11 + $0x8] sm:$0xff]
        %v7777 = vld [vmem:[#allocation11 + $0x10] sm:$0xff]
        %v7778 = vld [vmem:[#allocation11 + $0x18] sm:$0xff]
        %v7779 = vld [vmem:[#allocation11 + $0x20] sm:$0xff]
        %v7780 = vld [vmem:[#allocation11 + $0x28] sm:$0xff]
        %v7781 = vld [vmem:[#allocation11 + $0x30] sm:$0xff]
        %v7782 = vld [vmem:[#allocation11 + $0x38] sm:$0xff]
        %v7783 = vld [vmem:[#allocation11 + $0x40] sm:$0xff]
        %v7784 = vld [vmem:[#allocation11 + $0x48] sm:$0xff]
        %v7785 = vld [vmem:[#allocation11 + $0x50] sm:$0xff]
        %v7786 = vld [vmem:[#allocation11 + $0x58] sm:$0xff]
        %v7787 = vld [vmem:[#allocation11 + $0x60] sm:$0xff]
        %v7788 = vld [vmem:[#allocation11 + $0x68] sm:$0xff]
        %v7789 = vld [vmem:[#allocation11 + $0x70] sm:$0xff]
        %v7790 = vld [vmem:[#allocation11 + $0x78] sm:$0xff]
        %v7791 = vld [vmem:[#allocation11 + $0x80] sm:$0xff]
        %v7792 = vld [vmem:[#allocation11 + $0x88] sm:$0xff]
        %v7793 = vld [vmem:[#allocation11 + $0x90] sm:$0xff]
        %v7794 = vld [vmem:[#allocation11 + $0x98] sm:$0xff]
        %v7795 = vld [vmem:[#allocation11 + $0xa0] sm:$0xff]
        %v7796 = vld [vmem:[#allocation11 + $0xa8] sm:$0xff]
        %v7797 = vld [vmem:[#allocation11 + $0xb0] sm:$0xff]
        %v7798 = vld [vmem:[#allocation11 + $0xb8] sm:$0xff]
        %v7799 = vld [vmem:[#allocation11 + $0xc0] sm:$0xff]
        %v7800 = vld [vmem:[#allocation11 + $0xc8] sm:$0xff]
        %v7801 = vld [vmem:[#allocation11 + $0xd0] sm:$0xff]
        %v7802 = vld [vmem:[#allocation11 + $0xd8] sm:$0xff]
        %v7803 = vld [vmem:[#allocation11 + $0xe0] sm:$0xff]
        %v7804 = vld [vmem:[#allocation11 + $0xe8] sm:$0xff]
        %v7805 = vld [vmem:[#allocation11 + $0xf0] sm:$0xff]
        %v7806 = vld [vmem:[#allocation11 + $0xf8] sm:$0xff]
        %v7807 = vld [vmem:[#allocation11 + $0x100] sm:$0xff]
        %v7808 = vld [vmem:[#allocation11 + $0x108] sm:$0xff]
        %v7809 = vld [vmem:[#allocation11 + $0x110] sm:$0xff]
        %v7810 = vld [vmem:[#allocation11 + $0x118] sm:$0xff]
        %v7811 = vld [vmem:[#allocation11 + $0x120] sm:$0xff]
        %v7812 = vld [vmem:[#allocation11 + $0x128] sm:$0xff]
        %v7813 = vld [vmem:[#allocation11 + $0x130] sm:$0xff]
        %v7814 = vld [vmem:[#allocation11 + $0x138] sm:$0xff]
        %v7815 = vld [vmem:[#allocation11 + $0x140] sm:$0xff]
        %v7816 = vld [vmem:[#allocation11 + $0x148] sm:$0xff]
        %v7817 = vld [vmem:[#allocation11 + $0x150] sm:$0xff]
        %v7818 = vld [vmem:[#allocation11 + $0x158] sm:$0xff]
        %v7819 = vld [vmem:[#allocation11 + $0x160] sm:$0xff]
        %v7820 = vld [vmem:[#allocation11 + $0x168] sm:$0xff]
        %v7821 = vld [vmem:[#allocation11 + $0x170] sm:$0xff]
        %v7822 = vld [vmem:[#allocation11 + $0x178] sm:$0xff]
        %v7823 = vld [vmem:[#allocation11 + $0x180] sm:$0xff]
        %v7824 = vld [vmem:[#allocation11 + $0x188] sm:$0xff]
        %v7825 = vld [vmem:[#allocation11 + $0x190] sm:$0xff]
        %v7826 = vld [vmem:[#allocation11 + $0x198] sm:$0xff]
        %v7827 = vld [vmem:[#allocation11 + $0x1a0] sm:$0xff]
        %v7828 = vld [vmem:[#allocation11 + $0x1a8] sm:$0xff]
        %v7829 = vld [vmem:[#allocation11 + $0x1b0] sm:$0xff]
        %v7830 = vld [vmem:[#allocation11 + $0x1b8] sm:$0xff]
        %v7831 = vld [vmem:[#allocation11 + $0x1c0] sm:$0xff]
        %v7832 = vld [vmem:[#allocation11 + $0x1c8] sm:$0xff]
        %v7833 = vld [vmem:[#allocation11 + $0x1d0] sm:$0xff]
        %v7834 = vld [vmem:[#allocation11 + $0x1d8] sm:$0xff]
        %v7835 = vld [vmem:[#allocation11 + $0x1e0] sm:$0xff]
        %v7836 = vld [vmem:[#allocation11 + $0x1e8] sm:$0xff]
        %v7837 = vld [vmem:[#allocation11 + $0x1f0] sm:$0xff]
        %v7838 = vld [vmem:[#allocation11 + $0x1f8] sm:$0xff]
        %v7839 = vld [vmem:[#allocation13] sm:$0xf]
        %v7841 = vperm.slane %v7839, 0
        %v7842 = vperm.slane %v7839, 1
        %v7843 = vperm.slane %v7839, 2
        %v7844 = vperm.slane %v7839, 3
        %v7913 = vunpack.c.l.b16 %v7775
        %v7914 = vunpack.c.h.b16 %v7775
        %v7915 = vunpack.c.l.b16 %v7776
        %v7916 = vunpack.c.h.b16 %v7776
        %v7917 = vunpack.c.l.b16 %v7777
        %v7918 = vunpack.c.h.b16 %v7777
        %v7919 = vunpack.c.l.b16 %v7778
        %v7920 = vunpack.c.h.b16 %v7778
        %v7921 = vunpack.c.l.b16 %v7779
        %v7922 = vunpack.c.h.b16 %v7779
        %v7923 = vunpack.c.l.b16 %v7780
        %v7924 = vunpack.c.h.b16 %v7780
        %v7925 = vunpack.c.l.b16 %v7781
        %v7926 = vunpack.c.h.b16 %v7781
        %v7927 = vunpack.c.l.b16 %v7782
        %v7928 = vunpack.c.h.b16 %v7782
        %v7929 = vunpack.c.l.b16 %v7783
        %v7930 = vunpack.c.h.b16 %v7783
        %v7931 = vunpack.c.l.b16 %v7784
        %v7932 = vunpack.c.h.b16 %v7784
        %v7933 = vunpack.c.l.b16 %v7785
        %v7934 = vunpack.c.h.b16 %v7785
        %v7935 = vunpack.c.l.b16 %v7786
        %v7936 = vunpack.c.h.b16 %v7786
        %v7937 = vunpack.c.l.b16 %v7787
        %v7938 = vunpack.c.h.b16 %v7787
        %v7939 = vunpack.c.l.b16 %v7788
        %v7940 = vunpack.c.h.b16 %v7788
        %v7941 = vunpack.c.l.b16 %v7789
        %v7942 = vunpack.c.h.b16 %v7789
        %v7943 = vunpack.c.l.b16 %v7790
        %v7944 = vunpack.c.h.b16 %v7790
        %v7945 = vunpack.c.l.b16 %v7791
        %v7946 = vunpack.c.h.b16 %v7791
        %v7947 = vunpack.c.l.b16 %v7792
        %v7948 = vunpack.c.h.b16 %v7792
        %v7949 = vunpack.c.l.b16 %v7793
        %v7950 = vunpack.c.h.b16 %v7793
        %v7951 = vunpack.c.l.b16 %v7794
        %v7952 = vunpack.c.h.b16 %v7794
        %v7953 = vunpack.c.l.b16 %v7795
        %v7954 = vunpack.c.h.b16 %v7795
        %v7955 = vunpack.c.l.b16 %v7796
        %v7956 = vunpack.c.h.b16 %v7796
        %v7957 = vunpack.c.l.b16 %v7797
        %v7958 = vunpack.c.h.b16 %v7797
        %v7959 = vunpack.c.l.b16 %v7798
        %v7960 = vunpack.c.h.b16 %v7798
        %v7961 = vunpack.c.l.b16 %v7799
        %v7962 = vunpack.c.h.b16 %v7799
        %v7963 = vunpack.c.l.b16 %v7800
        %v7964 = vunpack.c.h.b16 %v7800
        %v7965 = vunpack.c.l.b16 %v7801
        %v7966 = vunpack.c.h.b16 %v7801
        %v7967 = vunpack.c.l.b16 %v7802
        %v7968 = vunpack.c.h.b16 %v7802
        %v7969 = vunpack.c.l.b16 %v7803
        %v7970 = vunpack.c.h.b16 %v7803
        %v7971 = vunpack.c.l.b16 %v7804
        %v7972 = vunpack.c.h.b16 %v7804
        %v7973 = vunpack.c.l.b16 %v7805
        %v7974 = vunpack.c.h.b16 %v7805
        %v7975 = vunpack.c.l.b16 %v7806
        %v7976 = vunpack.c.h.b16 %v7806
        %v7977 = vunpack.c.l.b16 %v7807
        %v7978 = vunpack.c.h.b16 %v7807
        %v7979 = vunpack.c.l.b16 %v7808
        %v7980 = vunpack.c.h.b16 %v7808
        %v7981 = vunpack.c.l.b16 %v7809
        %v7982 = vunpack.c.h.b16 %v7809
        %v7983 = vunpack.c.l.b16 %v7810
        %v7984 = vunpack.c.h.b16 %v7810
        %v7985 = vunpack.c.l.b16 %v7811
        %v7986 = vunpack.c.h.b16 %v7811
        %v7987 = vunpack.c.l.b16 %v7812
        %v7988 = vunpack.c.h.b16 %v7812
        %v7989 = vunpack.c.l.b16 %v7813
        %v7990 = vunpack.c.h.b16 %v7813
        %v7991 = vunpack.c.l.b16 %v7814
        %v7992 = vunpack.c.h.b16 %v7814
        %v7993 = vunpack.c.l.b16 %v7815
        %v7994 = vunpack.c.h.b16 %v7815
        %v7995 = vunpack.c.l.b16 %v7816
        %v7996 = vunpack.c.h.b16 %v7816
        %v7997 = vunpack.c.l.b16 %v7817
        %v7998 = vunpack.c.h.b16 %v7817
        %v7999 = vunpack.c.l.b16 %v7818
        %v8000 = vunpack.c.h.b16 %v7818
        %v8001 = vunpack.c.l.b16 %v7819
        %v8002 = vunpack.c.h.b16 %v7819
        %v8003 = vunpack.c.l.b16 %v7820
        %v8004 = vunpack.c.h.b16 %v7820
        %v8005 = vunpack.c.l.b16 %v7821
        %v8006 = vunpack.c.h.b16 %v7821
        %v8007 = vunpack.c.l.b16 %v7822
        %v8008 = vunpack.c.h.b16 %v7822
        %v8009 = vunpack.c.l.b16 %v7823
        %v8010 = vunpack.c.h.b16 %v7823
        %v8011 = vunpack.c.l.b16 %v7824
        %v8012 = vunpack.c.h.b16 %v7824
        %v8013 = vunpack.c.l.b16 %v7825
        %v8014 = vunpack.c.h.b16 %v7825
        %v8015 = vunpack.c.l.b16 %v7826
        %v8016 = vunpack.c.h.b16 %v7826
        %v8017 = vunpack.c.l.b16 %v7827
        %v8018 = vunpack.c.h.b16 %v7827
        %v8019 = vunpack.c.l.b16 %v7828
        %v8020 = vunpack.c.h.b16 %v7828
        %v8021 = vunpack.c.l.b16 %v7829
        %v8022 = vunpack.c.h.b16 %v7829
        %v8023 = vunpack.c.l.b16 %v7830
        %v8024 = vunpack.c.h.b16 %v7830
        %v8025 = vunpack.c.l.b16 %v7831
        %v8026 = vunpack.c.h.b16 %v7831
        %v8027 = vunpack.c.l.b16 %v7832
        %v8028 = vunpack.c.h.b16 %v7832
        %v8029 = vunpack.c.l.b16 %v7833
        %v8030 = vunpack.c.h.b16 %v7833
        %v8031 = vunpack.c.l.b16 %v7834
        %v8032 = vunpack.c.h.b16 %v7834
        %v8033 = vunpack.c.l.b16 %v7835
        %v8034 = vunpack.c.h.b16 %v7835
        %v8035 = vunpack.c.l.b16 %v7836
        %v8036 = vunpack.c.h.b16 %v7836
        %v8037 = vunpack.c.l.b16 %v7837
        %v8038 = vunpack.c.h.b16 %v7837
        %v8039 = vunpack.c.l.b16 %v7838
        %v8040 = vunpack.c.h.b16 %v7838
        %v8041 = vpack.c.b16 %v7917, %v7913
        %v8042 = vpack.c.b16 %v7918, %v7914
        %v8043 = vpack.c.b16 %v7919, %v7915
        %v8044 = vpack.c.b16 %v7920, %v7916
        %v8045 = vpack.c.b16 %v7925, %v7921
        %v8046 = vpack.c.b16 %v7926, %v7922
        %v8047 = vpack.c.b16 %v7927, %v7923
        %v8048 = vpack.c.b16 %v7928, %v7924
        %v8049 = vpack.c.b16 %v7933, %v7929
        %v8050 = vpack.c.b16 %v7934, %v7930
        %v8051 = vpack.c.b16 %v7935, %v7931
        %v8052 = vpack.c.b16 %v7936, %v7932
        %v8053 = vpack.c.b16 %v7941, %v7937
        %v8054 = vpack.c.b16 %v7942, %v7938
        %v8055 = vpack.c.b16 %v7943, %v7939
        %v8056 = vpack.c.b16 %v7944, %v7940
        %v8057 = vpack.c.b16 %v7949, %v7945
        %v8058 = vpack.c.b16 %v7950, %v7946
        %v8059 = vpack.c.b16 %v7951, %v7947
        %v8060 = vpack.c.b16 %v7952, %v7948
        %v8061 = vpack.c.b16 %v7957, %v7953
        %v8062 = vpack.c.b16 %v7958, %v7954
        %v8063 = vpack.c.b16 %v7959, %v7955
        %v8064 = vpack.c.b16 %v7960, %v7956
        %v8065 = vpack.c.b16 %v7965, %v7961
        %v8066 = vpack.c.b16 %v7966, %v7962
        %v8067 = vpack.c.b16 %v7967, %v7963
        %v8068 = vpack.c.b16 %v7968, %v7964
        %v8069 = vpack.c.b16 %v7973, %v7969
        %v8070 = vpack.c.b16 %v7974, %v7970
        %v8071 = vpack.c.b16 %v7975, %v7971
        %v8072 = vpack.c.b16 %v7976, %v7972
        %v8073 = vpack.c.b16 %v7981, %v7977
        %v8074 = vpack.c.b16 %v7982, %v7978
        %v8075 = vpack.c.b16 %v7983, %v7979
        %v8076 = vpack.c.b16 %v7984, %v7980
        %v8077 = vpack.c.b16 %v7989, %v7985
        %v8078 = vpack.c.b16 %v7990, %v7986
        %v8079 = vpack.c.b16 %v7991, %v7987
        %v8080 = vpack.c.b16 %v7992, %v7988
        %v8081 = vpack.c.b16 %v7997, %v7993
        %v8082 = vpack.c.b16 %v7998, %v7994
        %v8083 = vpack.c.b16 %v7999, %v7995
        %v8084 = vpack.c.b16 %v8000, %v7996
        %v8085 = vpack.c.b16 %v8005, %v8001
        %v8086 = vpack.c.b16 %v8006, %v8002
        %v8087 = vpack.c.b16 %v8007, %v8003
        %v8088 = vpack.c.b16 %v8008, %v8004
        %v8089 = vpack.c.b16 %v8013, %v8009
        %v8090 = vpack.c.b16 %v8014, %v8010
        %v8091 = vpack.c.b16 %v8015, %v8011
        %v8092 = vpack.c.b16 %v8016, %v8012
        %v8093 = vpack.c.b16 %v8021, %v8017
        %v8094 = vpack.c.b16 %v8022, %v8018
        %v8095 = vpack.c.b16 %v8023, %v8019
        %v8096 = vpack.c.b16 %v8024, %v8020
        %v8097 = vpack.c.b16 %v8029, %v8025
        %v8098 = vpack.c.b16 %v8030, %v8026
        %v8099 = vpack.c.b16 %v8031, %v8027
        %v8100 = vpack.c.b16 %v8032, %v8028
        %v8101 = vpack.c.b16 %v8037, %v8033
        %v8102 = vpack.c.b16 %v8038, %v8034
        %v8103 = vpack.c.b16 %v8039, %v8035
        %v8104 = vpack.c.b16 %v8040, %v8036
        %8169 = vmatpush.bf16.msra.mxu0 %v8069
        %8170 = vmatpush.bf16.msra.mxu0 %v8065
        %8171 = vmatpush.bf16.msra.mxu0 %v8061
        %8172 = vmatpush.bf16.msra.mxu0 %v8057
        %8173 = vmatpush.bf16.msra.mxu0 %v8053
        %8174 = vmatpush.bf16.msra.mxu0 %v8049
        %8175 = vmatpush.bf16.msra.mxu0 %v8045
        %8176 = vmatpush.bf16.msra.mxu0 %v8041
        %8177 = vmatmul.bf16.gmra.mxu0 %v7773
        %v8178 = vpop.f32.mrf.mxu0
        %v8179 = vadd.f32 %v7841, %v8178
        %v8180 = vpop.f32.mrf.mxu0
        %v8181 = vadd.f32 %v7841, %v8180
        %8182 = vdwg.mxu0
        %8183 = vmatpush.bf16.msra.mxu0 %v8101
        %8184 = vmatpush.bf16.msra.mxu0 %v8097
        %8185 = vmatpush.bf16.msra.mxu0 %v8093
        %8186 = vmatpush.bf16.msra.mxu0 %v8089
        %8187 = vmatpush.bf16.msra.mxu0 %v8085
        %8188 = vmatpush.bf16.msra.mxu0 %v8081
        %8189 = vmatpush.bf16.msra.mxu0 %v8077
        %8190 = vmatpush.bf16.msra.mxu0 %v8073
        %8191 = vmatmul.bf16.gmra.mxu0 %v7774
        %v8192 = vpop.f32.mrf.mxu0
        %v8193 = vadd.f32 %v8179, %v8192
        %v8194 = vpop.f32.mrf.mxu0
        %v8195 = vadd.f32 %v8181, %v8194
        %8196 = vdwg.mxu0
        %8197 = vmatpush.bf16.msra.mxu0 %v8070
        %8198 = vmatpush.bf16.msra.mxu0 %v8066
        %8199 = vmatpush.bf16.msra.mxu0 %v8062
        %8200 = vmatpush.bf16.msra.mxu0 %v8058
        %8201 = vmatpush.bf16.msra.mxu0 %v8054
        %8202 = vmatpush.bf16.msra.mxu0 %v8050
        %8203 = vmatpush.bf16.msra.mxu0 %v8046
        %8204 = vmatpush.bf16.msra.mxu0 %v8042
        %8205 = vmatmul.bf16.gmra.mxu0 %v7773
        %v8206 = vpop.f32.mrf.mxu0
        %v8207 = vadd.f32 %v7842, %v8206
        %v8208 = vpop.f32.mrf.mxu0
        %v8209 = vadd.f32 %v7842, %v8208
        %8210 = vdwg.mxu0
        %8211 = vmatpush.bf16.msra.mxu0 %v8102
        %8212 = vmatpush.bf16.msra.mxu0 %v8098
        %8213 = vmatpush.bf16.msra.mxu0 %v8094
        %8214 = vmatpush.bf16.msra.mxu0 %v8090
        %8215 = vmatpush.bf16.msra.mxu0 %v8086
        %8216 = vmatpush.bf16.msra.mxu0 %v8082
        %8217 = vmatpush.bf16.msra.mxu0 %v8078
        %8218 = vmatpush.bf16.msra.mxu0 %v8074
        %8219 = vmatmul.bf16.gmra.mxu0 %v7774
        %v8220 = vpop.f32.mrf.mxu0
        %v8221 = vadd.f32 %v8207, %v8220
        %v8222 = vpop.f32.mrf.mxu0
        %v8223 = vadd.f32 %v8209, %v8222
        %8224 = vdwg.mxu0
        %8225 = vmatpush.bf16.msra.mxu0 %v8071
        %8226 = vmatpush.bf16.msra.mxu0 %v8067
        %8227 = vmatpush.bf16.msra.mxu0 %v8063
        %8228 = vmatpush.bf16.msra.mxu0 %v8059
        %8229 = vmatpush.bf16.msra.mxu0 %v8055
        %8230 = vmatpush.bf16.msra.mxu0 %v8051
        %8231 = vmatpush.bf16.msra.mxu0 %v8047
        %8232 = vmatpush.bf16.msra.mxu0 %v8043
        %8233 = vmatmul.bf16.gmra.mxu0 %v7773
        %v8234 = vpop.f32.mrf.mxu0
        %v8235 = vadd.f32 %v7843, %v8234
        %v8236 = vpop.f32.mrf.mxu0
        %v8237 = vadd.f32 %v7843, %v8236
        %8238 = vdwg.mxu0
        %8239 = vmatpush.bf16.msra.mxu0 %v8103
        %8240 = vmatpush.bf16.msra.mxu0 %v8099
        %8241 = vmatpush.bf16.msra.mxu0 %v8095
        %8242 = vmatpush.bf16.msra.mxu0 %v8091
        %8243 = vmatpush.bf16.msra.mxu0 %v8087
        %8244 = vmatpush.bf16.msra.mxu0 %v8083
        %8245 = vmatpush.bf16.msra.mxu0 %v8079
        %8246 = vmatpush.bf16.msra.mxu0 %v8075
        %8247 = vmatmul.bf16.gmra.mxu0 %v7774
        %v8248 = vpop.f32.mrf.mxu0
        %v8249 = vadd.f32 %v8235, %v8248
        %v8250 = vpop.f32.mrf.mxu0
        %v8251 = vadd.f32 %v8237, %v8250
        %8252 = vdwg.mxu0
        %8253 = vmatpush.bf16.msra.mxu0 %v8072
        %8254 = vmatpush.bf16.msra.mxu0 %v8068
        %8255 = vmatpush.bf16.msra.mxu0 %v8064
        %8256 = vmatpush.bf16.msra.mxu0 %v8060
        %8257 = vmatpush.bf16.msra.mxu0 %v8056
        %8258 = vmatpush.bf16.msra.mxu0 %v8052
        %8259 = vmatpush.bf16.msra.mxu0 %v8048
        %8260 = vmatpush.bf16.msra.mxu0 %v8044
        %8261 = vmatmul.bf16.gmra.mxu0 %v7773
        %v8262 = vpop.f32.mrf.mxu0
        %v8263 = vadd.f32 %v7844, %v8262
        %v8264 = vpop.f32.mrf.mxu0
        %v8265 = vadd.f32 %v7844, %v8264
        %8266 = vdwg.mxu0
        %8267 = vmatpush.bf16.msra.mxu0 %v8104
        %8268 = vmatpush.bf16.msra.mxu0 %v8100
        %8269 = vmatpush.bf16.msra.mxu0 %v8096
        %8270 = vmatpush.bf16.msra.mxu0 %v8092
        %8271 = vmatpush.bf16.msra.mxu0 %v8088
        %8272 = vmatpush.bf16.msra.mxu0 %v8084
        %8273 = vmatpush.bf16.msra.mxu0 %v8080
        %8274 = vmatpush.bf16.msra.mxu0 %v8076
        %8275 = vmatmul.bf16.gmra.mxu0 %v7774
        %v8276 = vpop.f32.mrf.mxu0
        %v8277 = vadd.f32 %v8263, %v8276
        %v8278 = vpop.f32.mrf.mxu0
        %v8279 = vadd.f32 %v8265, %v8278
        %8280 = vdwg.mxu0
        %v8281 = vmul.f32 %v8193, %v8193
        %v8282 = vmul.f32 %v8221, %v8221
        %v8283 = vmul.f32 %v8249, %v8249
        %v8284 = vmul.f32 %v8277, %v8277
        %v8285 = vmul.f32 %v8195, %v8195
        %v8286 = vmul.f32 %v8223, %v8223
        %v8287 = vmul.f32 %v8251, %v8251
        %v8288 = vmul.f32 %v8279, %v8279
        %v8289 = vmul.f32 %v8193, %v8281
        %v8290 = vmul.f32 %v8221, %v8282
        %v8291 = vmul.f32 %v8249, %v8283
        %v8292 = vmul.f32 %v8277, %v8284
        %v8293 = vmul.f32 %v8195, %v8285
        %v8294 = vmul.f32 %v8223, %v8286
        %v8295 = vmul.f32 %v8251, %v8287
        %v8296 = vmul.f32 %v8279, %v8288
        %v8297 = vmul.f32 %v8289, 0.044715
        %v8298 = vmul.f32 %v8290, 0.044715
        %v8299 = vmul.f32 %v8291, 0.044715
        %v8300 = vmul.f32 %v8292, 0.044715
        %v8301 = vmul.f32 %v8293, 0.044715
        %v8302 = vmul.f32 %v8294, 0.044715
        %v8303 = vmul.f32 %v8295, 0.044715
        %v8304 = vmul.f32 %v8296, 0.044715
        %v8305 = vadd.f32 %v8193, %v8297
        %v8306 = vadd.f32 %v8221, %v8298
        %v8307 = vadd.f32 %v8249, %v8299
        %v8308 = vadd.f32 %v8277, %v8300
        %v8309 = vadd.f32 %v8195, %v8301
        %v8310 = vadd.f32 %v8223, %v8302
        %v8311 = vadd.f32 %v8251, %v8303
        %v8312 = vadd.f32 %v8279, %v8304
        %v8313 = vmul.f32 %v8305, 0.7978846
        %v8314 = vmul.f32 %v8306, 0.7978846
        %v8315 = vmul.f32 %v8307, 0.7978846
        %v8316 = vmul.f32 %v8308, 0.7978846
        %v8317 = vmul.f32 %v8309, 0.7978846
        %v8318 = vmul.f32 %v8310, 0.7978846
        %v8319 = vmul.f32 %v8311, 0.7978846
        %v8320 = vmul.f32 %v8312, 0.7978846
        %v8321 = vtanh.pop %v8313
        %v8322 = vtanh.pop %v8314
        %v8323 = vtanh.pop %v8315
        %v8324 = vtanh.pop %v8316
        %v8325 = vtanh.pop %v8317
        %v8326 = vtanh.pop %v8318
        %v8327 = vtanh.pop %v8319
        %v8328 = vtanh.pop %v8320
        %v8329 = vadd.f32 %v8321, 1.0
        %v8330 = vadd.f32 %v8322, 1.0
        %v8331 = vadd.f32 %v8323, 1.0
        %v8332 = vadd.f32 %v8324, 1.0
        %v8333 = vadd.f32 %v8325, 1.0
        %v8334 = vadd.f32 %v8326, 1.0
        %v8335 = vadd.f32 %v8327, 1.0
        %v8336 = vadd.f32 %v8328, 1.0
        %v8337 = vmul.f32 %v8329, 0.5
        %v8338 = vmul.f32 %v8330, 0.5
        %v8339 = vmul.f32 %v8331, 0.5
        %v8340 = vmul.f32 %v8332, 0.5
        %v8341 = vmul.f32 %v8333, 0.5
        %v8342 = vmul.f32 %v8334, 0.5
        %v8343 = vmul.f32 %v8335, 0.5
        %v8344 = vmul.f32 %v8336, 0.5
        %v8345 = vmul.f32 %v8193, %v8337
        %v8346 = vmul.f32 %v8221, %v8338
        %v8347 = vmul.f32 %v8249, %v8339
        %v8348 = vmul.f32 %v8277, %v8340
        %v8349 = vmul.f32 %v8195, %v8341
        %v8350 = vmul.f32 %v8223, %v8342
        %v8351 = vmul.f32 %v8251, %v8343
        %v8352 = vmul.f32 %v8279, %v8344
        %v8353 = vpack.c.bf16 %v8349, %v8345
        %v8354 = vpack.c.bf16 %v8350, %v8346
        %v8355 = vpack.c.bf16 %v8351, %v8347
        %v8356 = vpack.c.bf16 %v8352, %v8348
        %v8357 = vld [vmem:[#allocation14] sm:$0xff]
        %v8358 = vld [vmem:[#allocation14 + $0x8] sm:$0xff]
        %v8359 = vld [vmem:[#allocation14 + $0x10] sm:$0xff]
        %v8360 = vld [vmem:[#allocation14 + $0x18] sm:$0xff]
        %v8361 = vld [vmem:[#allocation14 + $0x20] sm:$0xff]
        %v8362 = vld [vmem:[#allocation14 + $0x28] sm:$0xff]
        %v8363 = vld [vmem:[#allocation14 + $0x30] sm:$0xff]
        %v8364 = vld [vmem:[#allocation14 + $0x38] sm:$0xff]
        %v8365 = vld [vmem:[#allocation14 + $0x40] sm:$0xff]
        %v8366 = vld [vmem:[#allocation14 + $0x48] sm:$0xff]
        %v8367 = vld [vmem:[#allocation14 + $0x50] sm:$0xff]
        %v8368 = vld [vmem:[#allocation14 + $0x58] sm:$0xff]
        %v8369 = vld [vmem:[#allocation14 + $0x60] sm:$0xff]
        %v8370 = vld [vmem:[#allocation14 + $0x68] sm:$0xff]
        %v8371 = vld [vmem:[#allocation14 + $0x70] sm:$0xff]
        %v8372 = vld [vmem:[#allocation14 + $0x78] sm:$0xff]
        %v8373 = vld [vmem:[#allocation14 + $0x80] sm:$0xff]
        %v8374 = vld [vmem:[#allocation14 + $0x88] sm:$0xff]
        %v8375 = vld [vmem:[#allocation14 + $0x90] sm:$0xff]
        %v8376 = vld [vmem:[#allocation14 + $0x98] sm:$0xff]
        %v8377 = vld [vmem:[#allocation14 + $0xa0] sm:$0xff]
        %v8378 = vld [vmem:[#allocation14 + $0xa8] sm:$0xff]
        %v8379 = vld [vmem:[#allocation14 + $0xb0] sm:$0xff]
        %v8380 = vld [vmem:[#allocation14 + $0xb8] sm:$0xff]
        %v8381 = vld [vmem:[#allocation14 + $0xc0] sm:$0xff]
        %v8382 = vld [vmem:[#allocation14 + $0xc8] sm:$0xff]
        %v8383 = vld [vmem:[#allocation14 + $0xd0] sm:$0xff]
        %v8384 = vld [vmem:[#allocation14 + $0xd8] sm:$0xff]
        %v8385 = vld [vmem:[#allocation14 + $0xe0] sm:$0xff]
        %v8386 = vld [vmem:[#allocation14 + $0xe8] sm:$0xff]
        %v8387 = vld [vmem:[#allocation14 + $0xf0] sm:$0xff]
        %v8388 = vld [vmem:[#allocation14 + $0xf8] sm:$0xff]
        %v8389 = vld [vmem:[#allocation14 + $0x100] sm:$0xff]
        %v8390 = vld [vmem:[#allocation14 + $0x108] sm:$0xff]
        %v8391 = vld [vmem:[#allocation14 + $0x110] sm:$0xff]
        %v8392 = vld [vmem:[#allocation14 + $0x118] sm:$0xff]
        %v8393 = vld [vmem:[#allocation14 + $0x120] sm:$0xff]
        %v8394 = vld [vmem:[#allocation14 + $0x128] sm:$0xff]
        %v8395 = vld [vmem:[#allocation14 + $0x130] sm:$0xff]
        %v8396 = vld [vmem:[#allocation14 + $0x138] sm:$0xff]
        %v8397 = vld [vmem:[#allocation14 + $0x140] sm:$0xff]
        %v8398 = vld [vmem:[#allocation14 + $0x148] sm:$0xff]
        %v8399 = vld [vmem:[#allocation14 + $0x150] sm:$0xff]
        %v8400 = vld [vmem:[#allocation14 + $0x158] sm:$0xff]
        %v8401 = vld [vmem:[#allocation14 + $0x160] sm:$0xff]
        %v8402 = vld [vmem:[#allocation14 + $0x168] sm:$0xff]
        %v8403 = vld [vmem:[#allocation14 + $0x170] sm:$0xff]
        %v8404 = vld [vmem:[#allocation14 + $0x178] sm:$0xff]
        %v8405 = vld [vmem:[#allocation14 + $0x180] sm:$0xff]
        %v8406 = vld [vmem:[#allocation14 + $0x188] sm:$0xff]
        %v8407 = vld [vmem:[#allocation14 + $0x190] sm:$0xff]
        %v8408 = vld [vmem:[#allocation14 + $0x198] sm:$0xff]
        %v8409 = vld [vmem:[#allocation14 + $0x1a0] sm:$0xff]
        %v8410 = vld [vmem:[#allocation14 + $0x1a8] sm:$0xff]
        %v8411 = vld [vmem:[#allocation14 + $0x1b0] sm:$0xff]
        %v8412 = vld [vmem:[#allocation14 + $0x1b8] sm:$0xff]
        %v8413 = vld [vmem:[#allocation14 + $0x1c0] sm:$0xff]
        %v8414 = vld [vmem:[#allocation14 + $0x1c8] sm:$0xff]
        %v8415 = vld [vmem:[#allocation14 + $0x1d0] sm:$0xff]
        %v8416 = vld [vmem:[#allocation14 + $0x1d8] sm:$0xff]
        %v8417 = vld [vmem:[#allocation14 + $0x1e0] sm:$0xff]
        %v8418 = vld [vmem:[#allocation14 + $0x1e8] sm:$0xff]
        %v8419 = vld [vmem:[#allocation14 + $0x1f0] sm:$0xff]
        %v8420 = vld [vmem:[#allocation14 + $0x1f8] sm:$0xff]
        %v8421 = vld [vmem:[#allocation16] sm:$0x3]
        %v8423 = vperm.slane %v8421, 0
        %v8424 = vperm.slane %v8421, 1
        %v8491 = vunpack.c.l.b16 %v8357
        %v8492 = vunpack.c.h.b16 %v8357
        %v8493 = vunpack.c.l.b16 %v8358
        %v8494 = vunpack.c.h.b16 %v8358
        %v8495 = vunpack.c.l.b16 %v8359
        %v8496 = vunpack.c.h.b16 %v8359
        %v8497 = vunpack.c.l.b16 %v8360
        %v8498 = vunpack.c.h.b16 %v8360
        %v8499 = vunpack.c.l.b16 %v8361
        %v8500 = vunpack.c.h.b16 %v8361
        %v8501 = vunpack.c.l.b16 %v8362
        %v8502 = vunpack.c.h.b16 %v8362
        %v8503 = vunpack.c.l.b16 %v8363
        %v8504 = vunpack.c.h.b16 %v8363
        %v8505 = vunpack.c.l.b16 %v8364
        %v8506 = vunpack.c.h.b16 %v8364
        %v8507 = vunpack.c.l.b16 %v8365
        %v8508 = vunpack.c.h.b16 %v8365
        %v8509 = vunpack.c.l.b16 %v8366
        %v8510 = vunpack.c.h.b16 %v8366
        %v8511 = vunpack.c.l.b16 %v8367
        %v8512 = vunpack.c.h.b16 %v8367
        %v8513 = vunpack.c.l.b16 %v8368
        %v8514 = vunpack.c.h.b16 %v8368
        %v8515 = vunpack.c.l.b16 %v8369
        %v8516 = vunpack.c.h.b16 %v8369
        %v8517 = vunpack.c.l.b16 %v8370
        %v8518 = vunpack.c.h.b16 %v8370
        %v8519 = vunpack.c.l.b16 %v8371
        %v8520 = vunpack.c.h.b16 %v8371
        %v8521 = vunpack.c.l.b16 %v8372
        %v8522 = vunpack.c.h.b16 %v8372
        %v8523 = vunpack.c.l.b16 %v8373
        %v8524 = vunpack.c.h.b16 %v8373
        %v8525 = vunpack.c.l.b16 %v8374
        %v8526 = vunpack.c.h.b16 %v8374
        %v8527 = vunpack.c.l.b16 %v8375
        %v8528 = vunpack.c.h.b16 %v8375
        %v8529 = vunpack.c.l.b16 %v8376
        %v8530 = vunpack.c.h.b16 %v8376
        %v8531 = vunpack.c.l.b16 %v8377
        %v8532 = vunpack.c.h.b16 %v8377
        %v8533 = vunpack.c.l.b16 %v8378
        %v8534 = vunpack.c.h.b16 %v8378
        %v8535 = vunpack.c.l.b16 %v8379
        %v8536 = vunpack.c.h.b16 %v8379
        %v8537 = vunpack.c.l.b16 %v8380
        %v8538 = vunpack.c.h.b16 %v8380
        %v8539 = vunpack.c.l.b16 %v8381
        %v8540 = vunpack.c.h.b16 %v8381
        %v8541 = vunpack.c.l.b16 %v8382
        %v8542 = vunpack.c.h.b16 %v8382
        %v8543 = vunpack.c.l.b16 %v8383
        %v8544 = vunpack.c.h.b16 %v8383
        %v8545 = vunpack.c.l.b16 %v8384
        %v8546 = vunpack.c.h.b16 %v8384
        %v8547 = vunpack.c.l.b16 %v8385
        %v8548 = vunpack.c.h.b16 %v8385
        %v8549 = vunpack.c.l.b16 %v8386
        %v8550 = vunpack.c.h.b16 %v8386
        %v8551 = vunpack.c.l.b16 %v8387
        %v8552 = vunpack.c.h.b16 %v8387
        %v8553 = vunpack.c.l.b16 %v8388
        %v8554 = vunpack.c.h.b16 %v8388
        %v8555 = vunpack.c.l.b16 %v8389
        %v8556 = vunpack.c.h.b16 %v8389
        %v8557 = vunpack.c.l.b16 %v8390
        %v8558 = vunpack.c.h.b16 %v8390
        %v8559 = vunpack.c.l.b16 %v8391
        %v8560 = vunpack.c.h.b16 %v8391
        %v8561 = vunpack.c.l.b16 %v8392
        %v8562 = vunpack.c.h.b16 %v8392
        %v8563 = vunpack.c.l.b16 %v8393
        %v8564 = vunpack.c.h.b16 %v8393
        %v8565 = vunpack.c.l.b16 %v8394
        %v8566 = vunpack.c.h.b16 %v8394
        %v8567 = vunpack.c.l.b16 %v8395
        %v8568 = vunpack.c.h.b16 %v8395
        %v8569 = vunpack.c.l.b16 %v8396
        %v8570 = vunpack.c.h.b16 %v8396
        %v8571 = vunpack.c.l.b16 %v8397
        %v8572 = vunpack.c.h.b16 %v8397
        %v8573 = vunpack.c.l.b16 %v8398
        %v8574 = vunpack.c.h.b16 %v8398
        %v8575 = vunpack.c.l.b16 %v8399
        %v8576 = vunpack.c.h.b16 %v8399
        %v8577 = vunpack.c.l.b16 %v8400
        %v8578 = vunpack.c.h.b16 %v8400
        %v8579 = vunpack.c.l.b16 %v8401
        %v8580 = vunpack.c.h.b16 %v8401
        %v8581 = vunpack.c.l.b16 %v8402
        %v8582 = vunpack.c.h.b16 %v8402
        %v8583 = vunpack.c.l.b16 %v8403
        %v8584 = vunpack.c.h.b16 %v8403
        %v8585 = vunpack.c.l.b16 %v8404
        %v8586 = vunpack.c.h.b16 %v8404
        %v8587 = vunpack.c.l.b16 %v8405
        %v8588 = vunpack.c.h.b16 %v8405
        %v8589 = vunpack.c.l.b16 %v8406
        %v8590 = vunpack.c.h.b16 %v8406
        %v8591 = vunpack.c.l.b16 %v8407
        %v8592 = vunpack.c.h.b16 %v8407
        %v8593 = vunpack.c.l.b16 %v8408
        %v8594 = vunpack.c.h.b16 %v8408
        %v8595 = vunpack.c.l.b16 %v8409
        %v8596 = vunpack.c.h.b16 %v8409
        %v8597 = vunpack.c.l.b16 %v8410
        %v8598 = vunpack.c.h.b16 %v8410
        %v8599 = vunpack.c.l.b16 %v8411
        %v8600 = vunpack.c.h.b16 %v8411
        %v8601 = vunpack.c.l.b16 %v8412
        %v8602 = vunpack.c.h.b16 %v8412
        %v8603 = vunpack.c.l.b16 %v8413
        %v8604 = vunpack.c.h.b16 %v8413
        %v8605 = vunpack.c.l.b16 %v8414
        %v8606 = vunpack.c.h.b16 %v8414
        %v8607 = vunpack.c.l.b16 %v8415
        %v8608 = vunpack.c.h.b16 %v8415
        %v8609 = vunpack.c.l.b16 %v8416
        %v8610 = vunpack.c.h.b16 %v8416
        %v8611 = vunpack.c.l.b16 %v8417
        %v8612 = vunpack.c.h.b16 %v8417
        %v8613 = vunpack.c.l.b16 %v8418
        %v8614 = vunpack.c.h.b16 %v8418
        %v8615 = vunpack.c.l.b16 %v8419
        %v8616 = vunpack.c.h.b16 %v8419
        %v8617 = vunpack.c.l.b16 %v8420
        %v8618 = vunpack.c.h.b16 %v8420
        %v8619 = vpack.c.b16 %v8493, %v8491
        %v8620 = vpack.c.b16 %v8494, %v8492
        %v8621 = vpack.c.b16 %v8497, %v8495
        %v8622 = vpack.c.b16 %v8498, %v8496
        %v8623 = vpack.c.b16 %v8501, %v8499
        %v8624 = vpack.c.b16 %v8502, %v8500
        %v8625 = vpack.c.b16 %v8505, %v8503
        %v8626 = vpack.c.b16 %v8506, %v8504
        %v8627 = vpack.c.b16 %v8509, %v8507
        %v8628 = vpack.c.b16 %v8510, %v8508
        %v8629 = vpack.c.b16 %v8513, %v8511
        %v8630 = vpack.c.b16 %v8514, %v8512
        %v8631 = vpack.c.b16 %v8517, %v8515
        %v8632 = vpack.c.b16 %v8518, %v8516
        %v8633 = vpack.c.b16 %v8521, %v8519
        %v8634 = vpack.c.b16 %v8522, %v8520
        %v8635 = vpack.c.b16 %v8525, %v8523
        %v8636 = vpack.c.b16 %v8526, %v8524
        %v8637 = vpack.c.b16 %v8529, %v8527
        %v8638 = vpack.c.b16 %v8530, %v8528
        %v8639 = vpack.c.b16 %v8533, %v8531
        %v8640 = vpack.c.b16 %v8534, %v8532
        %v8641 = vpack.c.b16 %v8537, %v8535
        %v8642 = vpack.c.b16 %v8538, %v8536
        %v8643 = vpack.c.b16 %v8541, %v8539
        %v8644 = vpack.c.b16 %v8542, %v8540
        %v8645 = vpack.c.b16 %v8545, %v8543
        %v8646 = vpack.c.b16 %v8546, %v8544
        %v8647 = vpack.c.b16 %v8549, %v8547
        %v8648 = vpack.c.b16 %v8550, %v8548
        %v8649 = vpack.c.b16 %v8553, %v8551
        %v8650 = vpack.c.b16 %v8554, %v8552
        %v8651 = vpack.c.b16 %v8557, %v8555
        %v8652 = vpack.c.b16 %v8558, %v8556
        %v8653 = vpack.c.b16 %v8561, %v8559
        %v8654 = vpack.c.b16 %v8562, %v8560
        %v8655 = vpack.c.b16 %v8565, %v8563
        %v8656 = vpack.c.b16 %v8566, %v8564
        %v8657 = vpack.c.b16 %v8569, %v8567
        %v8658 = vpack.c.b16 %v8570, %v8568
        %v8659 = vpack.c.b16 %v8573, %v8571
        %v8660 = vpack.c.b16 %v8574, %v8572
        %v8661 = vpack.c.b16 %v8577, %v8575
        %v8662 = vpack.c.b16 %v8578, %v8576
        %v8663 = vpack.c.b16 %v8581, %v8579
        %v8664 = vpack.c.b16 %v8582, %v8580
        %v8665 = vpack.c.b16 %v8585, %v8583
        %v8666 = vpack.c.b16 %v8586, %v8584
        %v8667 = vpack.c.b16 %v8589, %v8587
        %v8668 = vpack.c.b16 %v8590, %v8588
        %v8669 = vpack.c.b16 %v8593, %v8591
        %v8670 = vpack.c.b16 %v8594, %v8592
        %v8671 = vpack.c.b16 %v8597, %v8595
        %v8672 = vpack.c.b16 %v8598, %v8596
        %v8673 = vpack.c.b16 %v8601, %v8599
        %v8674 = vpack.c.b16 %v8602, %v8600
        %v8675 = vpack.c.b16 %v8605, %v8603
        %v8676 = vpack.c.b16 %v8606, %v8604
        %v8677 = vpack.c.b16 %v8609, %v8607
        %v8678 = vpack.c.b16 %v8610, %v8608
        %v8679 = vpack.c.b16 %v8613, %v8611
        %v8680 = vpack.c.b16 %v8614, %v8612
        %v8681 = vpack.c.b16 %v8617, %v8615
        %v8682 = vpack.c.b16 %v8618, %v8616
        %8747 = vmatpush.bf16.msra.mxu0 %v8633
        %8748 = vmatpush.bf16.msra.mxu0 %v8631
        %8749 = vmatpush.bf16.msra.mxu0 %v8629
        %8750 = vmatpush.bf16.msra.mxu0 %v8627
        %8751 = vmatpush.bf16.msra.mxu0 %v8625
        %8752 = vmatpush.bf16.msra.mxu0 %v8623
        %8753 = vmatpush.bf16.msra.mxu0 %v8621
        %8754 = vmatpush.bf16.msra.mxu0 %v8619
        %8755 = vmatmul.bf16.gmra.mxu0 %v8353
        %v8756 = vpop.f32.mrf.mxu0
        %v8757 = vadd.f32 %v8423, %v8756
        %v8758 = vpop.f32.mrf.mxu0
        %v8759 = vadd.f32 %v8423, %v8758
        %8760 = vdwg.mxu0
        %8761 = vmatpush.bf16.msra.mxu0 %v8649
        %8762 = vmatpush.bf16.msra.mxu0 %v8647
        %8763 = vmatpush.bf16.msra.mxu0 %v8645
        %8764 = vmatpush.bf16.msra.mxu0 %v8643
        %8765 = vmatpush.bf16.msra.mxu0 %v8641
        %8766 = vmatpush.bf16.msra.mxu0 %v8639
        %8767 = vmatpush.bf16.msra.mxu0 %v8637
        %8768 = vmatpush.bf16.msra.mxu0 %v8635
        %8769 = vmatmul.bf16.gmra.mxu0 %v8354
        %v8770 = vpop.f32.mrf.mxu0
        %v8771 = vadd.f32 %v8757, %v8770
        %v8772 = vpop.f32.mrf.mxu0
        %v8773 = vadd.f32 %v8759, %v8772
        %8774 = vdwg.mxu0
        %8775 = vmatpush.bf16.msra.mxu0 %v8665
        %8776 = vmatpush.bf16.msra.mxu0 %v8663
        %8777 = vmatpush.bf16.msra.mxu0 %v8661
        %8778 = vmatpush.bf16.msra.mxu0 %v8659
        %8779 = vmatpush.bf16.msra.mxu0 %v8657
        %8780 = vmatpush.bf16.msra.mxu0 %v8655
        %8781 = vmatpush.bf16.msra.mxu0 %v8653
        %8782 = vmatpush.bf16.msra.mxu0 %v8651
        %8783 = vmatmul.bf16.gmra.mxu0 %v8355
        %v8784 = vpop.f32.mrf.mxu0
        %v8785 = vadd.f32 %v8771, %v8784
        %v8786 = vpop.f32.mrf.mxu0
        %v8787 = vadd.f32 %v8773, %v8786
        %8788 = vdwg.mxu0
        %8789 = vmatpush.bf16.msra.mxu0 %v8681
        %8790 = vmatpush.bf16.msra.mxu0 %v8679
        %8791 = vmatpush.bf16.msra.mxu0 %v8677
        %8792 = vmatpush.bf16.msra.mxu0 %v8675
        %8793 = vmatpush.bf16.msra.mxu0 %v8673
        %8794 = vmatpush.bf16.msra.mxu0 %v8671
        %8795 = vmatpush.bf16.msra.mxu0 %v8669
        %8796 = vmatpush.bf16.msra.mxu0 %v8667
        %8797 = vmatmul.bf16.gmra.mxu0 %v8356
        %v8798 = vpop.f32.mrf.mxu0
        %v8799 = vadd.f32 %v8785, %v8798
        %v8800 = vpop.f32.mrf.mxu0
        %v8801 = vadd.f32 %v8787, %v8800
        %8802 = vdwg.mxu0
        %8803 = vmatpush.bf16.msra.mxu0 %v8634
        %8804 = vmatpush.bf16.msra.mxu0 %v8632
        %8805 = vmatpush.bf16.msra.mxu0 %v8630
        %8806 = vmatpush.bf16.msra.mxu0 %v8628
        %8807 = vmatpush.bf16.msra.mxu0 %v8626
        %8808 = vmatpush.bf16.msra.mxu0 %v8624
        %8809 = vmatpush.bf16.msra.mxu0 %v8622
        %8810 = vmatpush.bf16.msra.mxu0 %v8620
        %8811 = vmatmul.bf16.gmra.mxu0 %v8353
        %v8812 = vpop.f32.mrf.mxu0
        %v8813 = vadd.f32 %v8424, %v8812
        %v8814 = vpop.f32.mrf.mxu0
        %v8815 = vadd.f32 %v8424, %v8814
        %8816 = vdwg.mxu0
        %8817 = vmatpush.bf16.msra.mxu0 %v8650
        %8818 = vmatpush.bf16.msra.mxu0 %v8648
        %8819 = vmatpush.bf16.msra.mxu0 %v8646
        %8820 = vmatpush.bf16.msra.mxu0 %v8644
        %8821 = vmatpush.bf16.msra.mxu0 %v8642
        %8822 = vmatpush.bf16.msra.mxu0 %v8640
        %8823 = vmatpush.bf16.msra.mxu0 %v8638
        %8824 = vmatpush.bf16.msra.mxu0 %v8636
        %8825 = vmatmul.bf16.gmra.mxu0 %v8354
        %v8826 = vpop.f32.mrf.mxu0
        %v8827 = vadd.f32 %v8813, %v8826
        %v8828 = vpop.f32.mrf.mxu0
        %v8829 = vadd.f32 %v8815, %v8828
        %8830 = vdwg.mxu0
        %8831 = vmatpush.bf16.msra.mxu0 %v8666
        %8832 = vmatpush.bf16.msra.mxu0 %v8664
        %8833 = vmatpush.bf16.msra.mxu0 %v8662
        %8834 = vmatpush.bf16.msra.mxu0 %v8660
        %8835 = vmatpush.bf16.msra.mxu0 %v8658
        %8836 = vmatpush.bf16.msra.mxu0 %v8656
        %8837 = vmatpush.bf16.msra.mxu0 %v8654
        %8838 = vmatpush.bf16.msra.mxu0 %v8652
        %8839 = vmatmul.bf16.gmra.mxu0 %v8355
        %v8840 = vpop.f32.mrf.mxu0
        %v8841 = vadd.f32 %v8827, %v8840
        %v8842 = vpop.f32.mrf.mxu0
        %v8843 = vadd.f32 %v8829, %v8842
        %8844 = vdwg.mxu0
        %8845 = vmatpush.bf16.msra.mxu0 %v8682
        %8846 = vmatpush.bf16.msra.mxu0 %v8680
        %8847 = vmatpush.bf16.msra.mxu0 %v8678
        %8848 = vmatpush.bf16.msra.mxu0 %v8676
        %8849 = vmatpush.bf16.msra.mxu0 %v8674
        %8850 = vmatpush.bf16.msra.mxu0 %v8672
        %8851 = vmatpush.bf16.msra.mxu0 %v8670
        %8852 = vmatpush.bf16.msra.mxu0 %v8668
        %8853 = vmatmul.bf16.gmra.mxu0 %v8356
        %v8854 = vpop.f32.mrf.mxu0
        %v8855 = vadd.f32 %v8841, %v8854
        %v8856 = vpop.f32.mrf.mxu0
        %v8857 = vadd.f32 %v8843, %v8856
        %8858 = vdwg.mxu0
        %v8859 = vld [vmem:[%s526] sm:$0xff]
        %v8860 = vld [vmem:[%s526 + $0x8] sm:$0xff]
        %v8861 = vld [vmem:[%s526 + $0x10] sm:$0xff]
        %v8862 = vld [vmem:[%s526 + $0x18] sm:$0xff]
        %v8863 = vadd.f32 %v8799, %v8859
        %v8864 = vadd.f32 %v8855, %v8860
        %v8865 = vadd.f32 %v8801, %v8861
        %v8866 = vadd.f32 %v8857, %v8862
        %8867 = vst [vmem:[%s568] sm:$0xff] %v8863
        %8868 = vst [vmem:[%s568 + $0x8] sm:$0xff] %v8864
        %8869 = vst [vmem:[%s568 + $0x10] sm:$0xff] %v8865
        %8870 = vst [vmem:[%s568 + $0x18] sm:$0xff] %v8866
        %v8871 = vadd.f32 %v7300, %v7692
        %8872 = vadd.xlane.f32.xlu0 %v8871
        %v8873 = vpop.xlane.xlu0 %8872
        %v8874 = vadd.f32 %v7302, %v7694
        %8875 = vadd.xlane.f32.xlu0 %v8874
        %v8876 = vpop.xlane.xlu0 %8875
        %v8877 = vmul.f32 %v8873, %v7710
        %v8878 = vmul.f32 %v8876, %v7710
        %v8879 = vsub.f32 %v7300, %v8877
        %v8880 = vsub.f32 %v7692, %v8877
        %v8881 = vsub.f32 %v7302, %v8878
        %v8882 = vsub.f32 %v7694, %v8878
        %v8883 = vmul.f32 %v8879, %v8879
        %v8884 = vmul.f32 %v8880, %v8880
        %v8885 = vmul.f32 %v8881, %v8881
        %v8886 = vmul.f32 %v8882, %v8882
        %v8887 = vadd.f32 %v8883, %v8884
        %8888 = vadd.xlane.f32.xlu0 %v8887
        %v8889 = vpop.xlane.xlu0 %8888
        %v8890 = vadd.f32 %v8885, %v8886
        %8891 = vadd.xlane.f32.xlu0 %v8890
        %v8892 = vpop.xlane.xlu0 %8891
        %v8893 = vmul.f32 %v8889, %v7710
        %v8894 = vmul.f32 %v8892, %v7710
        %v8895 = vadd.f32 %v8893, 1e-05
        %v8896 = vadd.f32 %v8894, 1e-05
        %v8897 = vrsqrt.pop %v8895
        %v8898 = vmul.f32 %v8897, %v8895
        %v8899 = vmul.f32 %v8898, %v8897
        %v8900 = vmul.f32 0.5, %v8899
        %v8901 = vsub.f32 1.5, %v8900
        %v8902 = vmul.f32 %v8897, %v8901
        %vm8903 = vweird.f32 %v8895
        %vm8904 = vweird.f32 %v8897
        %vm8905 = vmor %vm8903, %vm8904
        %v8906 = vsel %vm8905, %v8897, %v8902
        %v8907 = vrsqrt.pop %v8896
        %v8908 = vmul.f32 %v8907, %v8896
        %v8909 = vmul.f32 %v8908, %v8907
        %v8910 = vmul.f32 0.5, %v8909
        %v8911 = vsub.f32 1.5, %v8910
        %v8912 = vmul.f32 %v8907, %v8911
        %vm8913 = vweird.f32 %v8896
        %vm8914 = vweird.f32 %v8907
        %vm8915 = vmor %vm8913, %vm8914
        %v8916 = vsel %vm8915, %v8907, %v8912
        %v8917 = vmul.f32 %v8879, %v8906
        %v8918 = vmul.f32 %v8880, %v8906
        %v8919 = vmul.f32 %v8881, %v8916
        %v8920 = vmul.f32 %v8882, %v8916
        %v8921 = vmul.f32 %v8917, %v7756
        %v8922 = vmul.f32 %v8918, %v7757
        %v8923 = vmul.f32 %v8919, %v7756
        %v8924 = vmul.f32 %v8920, %v7757
        %v8925 = vadd.f32 %v8921, %v7765
        %v8926 = vadd.f32 %v8922, %v7766
        %v8927 = vadd.f32 %v8923, %v7765
        %v8928 = vadd.f32 %v8924, %v7766
        %v8929 = vpack.c.bf16 %v8927, %v8925
        %v8930 = vpack.c.bf16 %v8928, %v8926
        %v8931 = vld [vmem:[#allocation11] sm:$0xff]
        %v8932 = vld [vmem:[#allocation11 + $0x8] sm:$0xff]
        %v8933 = vld [vmem:[#allocation11 + $0x10] sm:$0xff]
        %v8934 = vld [vmem:[#allocation11 + $0x18] sm:$0xff]
        %v8935 = vld [vmem:[#allocation11 + $0x20] sm:$0xff]
        %v8936 = vld [vmem:[#allocation11 + $0x28] sm:$0xff]
        %v8937 = vld [vmem:[#allocation11 + $0x30] sm:$0xff]
        %v8938 = vld [vmem:[#allocation11 + $0x38] sm:$0xff]
        %v8939 = vld [vmem:[#allocation11 + $0x40] sm:$0xff]
        %v8940 = vld [vmem:[#allocation11 + $0x48] sm:$0xff]
        %v8941 = vld [vmem:[#allocation11 + $0x50] sm:$0xff]
        %v8942 = vld [vmem:[#allocation11 + $0x58] sm:$0xff]
        %v8943 = vld [vmem:[#allocation11 + $0x60] sm:$0xff]
        %v8944 = vld [vmem:[#allocation11 + $0x68] sm:$0xff]
        %v8945 = vld [vmem:[#allocation11 + $0x70] sm:$0xff]
        %v8946 = vld [vmem:[#allocation11 + $0x78] sm:$0xff]
        %v8947 = vld [vmem:[#allocation11 + $0x80] sm:$0xff]
        %v8948 = vld [vmem:[#allocation11 + $0x88] sm:$0xff]
        %v8949 = vld [vmem:[#allocation11 + $0x90] sm:$0xff]
        %v8950 = vld [vmem:[#allocation11 + $0x98] sm:$0xff]
        %v8951 = vld [vmem:[#allocation11 + $0xa0] sm:$0xff]
        %v8952 = vld [vmem:[#allocation11 + $0xa8] sm:$0xff]
        %v8953 = vld [vmem:[#allocation11 + $0xb0] sm:$0xff]
        %v8954 = vld [vmem:[#allocation11 + $0xb8] sm:$0xff]
        %v8955 = vld [vmem:[#allocation11 + $0xc0] sm:$0xff]
        %v8956 = vld [vmem:[#allocation11 + $0xc8] sm:$0xff]
        %v8957 = vld [vmem:[#allocation11 + $0xd0] sm:$0xff]
        %v8958 = vld [vmem:[#allocation11 + $0xd8] sm:$0xff]
        %v8959 = vld [vmem:[#allocation11 + $0xe0] sm:$0xff]
        %v8960 = vld [vmem:[#allocation11 + $0xe8] sm:$0xff]
        %v8961 = vld [vmem:[#allocation11 + $0xf0] sm:$0xff]
        %v8962 = vld [vmem:[#allocation11 + $0xf8] sm:$0xff]
        %v8963 = vld [vmem:[#allocation11 + $0x100] sm:$0xff]
        %v8964 = vld [vmem:[#allocation11 + $0x108] sm:$0xff]
        %v8965 = vld [vmem:[#allocation11 + $0x110] sm:$0xff]
        %v8966 = vld [vmem:[#allocation11 + $0x118] sm:$0xff]
        %v8967 = vld [vmem:[#allocation11 + $0x120] sm:$0xff]
        %v8968 = vld [vmem:[#allocation11 + $0x128] sm:$0xff]
        %v8969 = vld [vmem:[#allocation11 + $0x130] sm:$0xff]
        %v8970 = vld [vmem:[#allocation11 + $0x138] sm:$0xff]
        %v8971 = vld [vmem:[#allocation11 + $0x140] sm:$0xff]
        %v8972 = vld [vmem:[#allocation11 + $0x148] sm:$0xff]
        %v8973 = vld [vmem:[#allocation11 + $0x150] sm:$0xff]
        %v8974 = vld [vmem:[#allocation11 + $0x158] sm:$0xff]
        %v8975 = vld [vmem:[#allocation11 + $0x160] sm:$0xff]
        %v8976 = vld [vmem:[#allocation11 + $0x168] sm:$0xff]
        %v8977 = vld [vmem:[#allocation11 + $0x170] sm:$0xff]
        %v8978 = vld [vmem:[#allocation11 + $0x178] sm:$0xff]
        %v8979 = vld [vmem:[#allocation11 + $0x180] sm:$0xff]
        %v8980 = vld [vmem:[#allocation11 + $0x188] sm:$0xff]
        %v8981 = vld [vmem:[#allocation11 + $0x190] sm:$0xff]
        %v8982 = vld [vmem:[#allocation11 + $0x198] sm:$0xff]
        %v8983 = vld [vmem:[#allocation11 + $0x1a0] sm:$0xff]
        %v8984 = vld [vmem:[#allocation11 + $0x1a8] sm:$0xff]
        %v8985 = vld [vmem:[#allocation11 + $0x1b0] sm:$0xff]
        %v8986 = vld [vmem:[#allocation11 + $0x1b8] sm:$0xff]
        %v8987 = vld [vmem:[#allocation11 + $0x1c0] sm:$0xff]
        %v8988 = vld [vmem:[#allocation11 + $0x1c8] sm:$0xff]
        %v8989 = vld [vmem:[#allocation11 + $0x1d0] sm:$0xff]
        %v8990 = vld [vmem:[#allocation11 + $0x1d8] sm:$0xff]
        %v8991 = vld [vmem:[#allocation11 + $0x1e0] sm:$0xff]
        %v8992 = vld [vmem:[#allocation11 + $0x1e8] sm:$0xff]
        %v8993 = vld [vmem:[#allocation11 + $0x1f0] sm:$0xff]
        %v8994 = vld [vmem:[#allocation11 + $0x1f8] sm:$0xff]
        %v8995 = vld [vmem:[#allocation13] sm:$0xf]
        %v8997 = vperm.slane %v8995, 0
        %v8998 = vperm.slane %v8995, 1
        %v8999 = vperm.slane %v8995, 2
        %v9000 = vperm.slane %v8995, 3
        %v9069 = vunpack.c.l.b16 %v8931
        %v9070 = vunpack.c.h.b16 %v8931
        %v9071 = vunpack.c.l.b16 %v8932
        %v9072 = vunpack.c.h.b16 %v8932
        %v9073 = vunpack.c.l.b16 %v8933
        %v9074 = vunpack.c.h.b16 %v8933
        %v9075 = vunpack.c.l.b16 %v8934
        %v9076 = vunpack.c.h.b16 %v8934
        %v9077 = vunpack.c.l.b16 %v8935
        %v9078 = vunpack.c.h.b16 %v8935
        %v9079 = vunpack.c.l.b16 %v8936
        %v9080 = vunpack.c.h.b16 %v8936
        %v9081 = vunpack.c.l.b16 %v8937
        %v9082 = vunpack.c.h.b16 %v8937
        %v9083 = vunpack.c.l.b16 %v8938
        %v9084 = vunpack.c.h.b16 %v8938
        %v9085 = vunpack.c.l.b16 %v8939
        %v9086 = vunpack.c.h.b16 %v8939
        %v9087 = vunpack.c.l.b16 %v8940
        %v9088 = vunpack.c.h.b16 %v8940
        %v9089 = vunpack.c.l.b16 %v8941
        %v9090 = vunpack.c.h.b16 %v8941
        %v9091 = vunpack.c.l.b16 %v8942
        %v9092 = vunpack.c.h.b16 %v8942
        %v9093 = vunpack.c.l.b16 %v8943
        %v9094 = vunpack.c.h.b16 %v8943
        %v9095 = vunpack.c.l.b16 %v8944
        %v9096 = vunpack.c.h.b16 %v8944
        %v9097 = vunpack.c.l.b16 %v8945
        %v9098 = vunpack.c.h.b16 %v8945
        %v9099 = vunpack.c.l.b16 %v8946
        %v9100 = vunpack.c.h.b16 %v8946
        %v9101 = vunpack.c.l.b16 %v8947
        %v9102 = vunpack.c.h.b16 %v8947
        %v9103 = vunpack.c.l.b16 %v8948
        %v9104 = vunpack.c.h.b16 %v8948
        %v9105 = vunpack.c.l.b16 %v8949
        %v9106 = vunpack.c.h.b16 %v8949
        %v9107 = vunpack.c.l.b16 %v8950
        %v9108 = vunpack.c.h.b16 %v8950
        %v9109 = vunpack.c.l.b16 %v8951
        %v9110 = vunpack.c.h.b16 %v8951
        %v9111 = vunpack.c.l.b16 %v8952
        %v9112 = vunpack.c.h.b16 %v8952
        %v9113 = vunpack.c.l.b16 %v8953
        %v9114 = vunpack.c.h.b16 %v8953
        %v9115 = vunpack.c.l.b16 %v8954
        %v9116 = vunpack.c.h.b16 %v8954
        %v9117 = vunpack.c.l.b16 %v8955
        %v9118 = vunpack.c.h.b16 %v8955
        %v9119 = vunpack.c.l.b16 %v8956
        %v9120 = vunpack.c.h.b16 %v8956
        %v9121 = vunpack.c.l.b16 %v8957
        %v9122 = vunpack.c.h.b16 %v8957
        %v9123 = vunpack.c.l.b16 %v8958
        %v9124 = vunpack.c.h.b16 %v8958
        %v9125 = vunpack.c.l.b16 %v8959
        %v9126 = vunpack.c.h.b16 %v8959
        %v9127 = vunpack.c.l.b16 %v8960
        %v9128 = vunpack.c.h.b16 %v8960
        %v9129 = vunpack.c.l.b16 %v8961
        %v9130 = vunpack.c.h.b16 %v8961
        %v9131 = vunpack.c.l.b16 %v8962
        %v9132 = vunpack.c.h.b16 %v8962
        %v9133 = vunpack.c.l.b16 %v8963
        %v9134 = vunpack.c.h.b16 %v8963
        %v9135 = vunpack.c.l.b16 %v8964
        %v9136 = vunpack.c.h.b16 %v8964
        %v9137 = vunpack.c.l.b16 %v8965
        %v9138 = vunpack.c.h.b16 %v8965
        %v9139 = vunpack.c.l.b16 %v8966
        %v9140 = vunpack.c.h.b16 %v8966
        %v9141 = vunpack.c.l.b16 %v8967
        %v9142 = vunpack.c.h.b16 %v8967
        %v9143 = vunpack.c.l.b16 %v8968
        %v9144 = vunpack.c.h.b16 %v8968
        %v9145 = vunpack.c.l.b16 %v8969
        %v9146 = vunpack.c.h.b16 %v8969
        %v9147 = vunpack.c.l.b16 %v8970
        %v9148 = vunpack.c.h.b16 %v8970
        %v9149 = vunpack.c.l.b16 %v8971
        %v9150 = vunpack.c.h.b16 %v8971
        %v9151 = vunpack.c.l.b16 %v8972
        %v9152 = vunpack.c.h.b16 %v8972
        %v9153 = vunpack.c.l.b16 %v8973
        %v9154 = vunpack.c.h.b16 %v8973
        %v9155 = vunpack.c.l.b16 %v8974
        %v9156 = vunpack.c.h.b16 %v8974
        %v9157 = vunpack.c.l.b16 %v8975
        %v9158 = vunpack.c.h.b16 %v8975
        %v9159 = vunpack.c.l.b16 %v8976
        %v9160 = vunpack.c.h.b16 %v8976
        %v9161 = vunpack.c.l.b16 %v8977
        %v9162 = vunpack.c.h.b16 %v8977
        %v9163 = vunpack.c.l.b16 %v8978
        %v9164 = vunpack.c.h.b16 %v8978
        %v9165 = vunpack.c.l.b16 %v8979
        %v9166 = vunpack.c.h.b16 %v8979
        %v9167 = vunpack.c.l.b16 %v8980
        %v9168 = vunpack.c.h.b16 %v8980
        %v9169 = vunpack.c.l.b16 %v8981
        %v9170 = vunpack.c.h.b16 %v8981
        %v9171 = vunpack.c.l.b16 %v8982
        %v9172 = vunpack.c.h.b16 %v8982
        %v9173 = vunpack.c.l.b16 %v8983
        %v9174 = vunpack.c.h.b16 %v8983
        %v9175 = vunpack.c.l.b16 %v8984
        %v9176 = vunpack.c.h.b16 %v8984
        %v9177 = vunpack.c.l.b16 %v8985
        %v9178 = vunpack.c.h.b16 %v8985
        %v9179 = vunpack.c.l.b16 %v8986
        %v9180 = vunpack.c.h.b16 %v8986
        %v9181 = vunpack.c.l.b16 %v8987
        %v9182 = vunpack.c.h.b16 %v8987
        %v9183 = vunpack.c.l.b16 %v8988
        %v9184 = vunpack.c.h.b16 %v8988
        %v9185 = vunpack.c.l.b16 %v8989
        %v9186 = vunpack.c.h.b16 %v8989
        %v9187 = vunpack.c.l.b16 %v8990
        %v9188 = vunpack.c.h.b16 %v8990
        %v9189 = vunpack.c.l.b16 %v8991
        %v9190 = vunpack.c.h.b16 %v8991
        %v9191 = vunpack.c.l.b16 %v8992
        %v9192 = vunpack.c.h.b16 %v8992
        %v9193 = vunpack.c.l.b16 %v8993
        %v9194 = vunpack.c.h.b16 %v8993
        %v9195 = vunpack.c.l.b16 %v8994
        %v9196 = vunpack.c.h.b16 %v8994
        %v9197 = vpack.c.b16 %v9073, %v9069
        %v9198 = vpack.c.b16 %v9074, %v9070
        %v9199 = vpack.c.b16 %v9075, %v9071
        %v9200 = vpack.c.b16 %v9076, %v9072
        %v9201 = vpack.c.b16 %v9081, %v9077
        %v9202 = vpack.c.b16 %v9082, %v9078
        %v9203 = vpack.c.b16 %v9083, %v9079
        %v9204 = vpack.c.b16 %v9084, %v9080
        %v9205 = vpack.c.b16 %v9089, %v9085
        %v9206 = vpack.c.b16 %v9090, %v9086
        %v9207 = vpack.c.b16 %v9091, %v9087
        %v9208 = vpack.c.b16 %v9092, %v9088
        %v9209 = vpack.c.b16 %v9097, %v9093
        %v9210 = vpack.c.b16 %v9098, %v9094
        %v9211 = vpack.c.b16 %v9099, %v9095
        %v9212 = vpack.c.b16 %v9100, %v9096
        %v9213 = vpack.c.b16 %v9105, %v9101
        %v9214 = vpack.c.b16 %v9106, %v9102
        %v9215 = vpack.c.b16 %v9107, %v9103
        %v9216 = vpack.c.b16 %v9108, %v9104
        %v9217 = vpack.c.b16 %v9113, %v9109
        %v9218 = vpack.c.b16 %v9114, %v9110
        %v9219 = vpack.c.b16 %v9115, %v9111
        %v9220 = vpack.c.b16 %v9116, %v9112
        %v9221 = vpack.c.b16 %v9121, %v9117
        %v9222 = vpack.c.b16 %v9122, %v9118
        %v9223 = vpack.c.b16 %v9123, %v9119
        %v9224 = vpack.c.b16 %v9124, %v9120
        %v9225 = vpack.c.b16 %v9129, %v9125
        %v9226 = vpack.c.b16 %v9130, %v9126
        %v9227 = vpack.c.b16 %v9131, %v9127
        %v9228 = vpack.c.b16 %v9132, %v9128
        %v9229 = vpack.c.b16 %v9137, %v9133
        %v9230 = vpack.c.b16 %v9138, %v9134
        %v9231 = vpack.c.b16 %v9139, %v9135
        %v9232 = vpack.c.b16 %v9140, %v9136
        %v9233 = vpack.c.b16 %v9145, %v9141
        %v9234 = vpack.c.b16 %v9146, %v9142
        %v9235 = vpack.c.b16 %v9147, %v9143
        %v9236 = vpack.c.b16 %v9148, %v9144
        %v9237 = vpack.c.b16 %v9153, %v9149
        %v9238 = vpack.c.b16 %v9154, %v9150
        %v9239 = vpack.c.b16 %v9155, %v9151
        %v9240 = vpack.c.b16 %v9156, %v9152
        %v9241 = vpack.c.b16 %v9161, %v9157
        %v9242 = vpack.c.b16 %v9162, %v9158
        %v9243 = vpack.c.b16 %v9163, %v9159
        %v9244 = vpack.c.b16 %v9164, %v9160
        %v9245 = vpack.c.b16 %v9169, %v9165
        %v9246 = vpack.c.b16 %v9170, %v9166
        %v9247 = vpack.c.b16 %v9171, %v9167
        %v9248 = vpack.c.b16 %v9172, %v9168
        %v9249 = vpack.c.b16 %v9177, %v9173
        %v9250 = vpack.c.b16 %v9178, %v9174
        %v9251 = vpack.c.b16 %v9179, %v9175
        %v9252 = vpack.c.b16 %v9180, %v9176
        %v9253 = vpack.c.b16 %v9185, %v9181
        %v9254 = vpack.c.b16 %v9186, %v9182
        %v9255 = vpack.c.b16 %v9187, %v9183
        %v9256 = vpack.c.b16 %v9188, %v9184
        %v9257 = vpack.c.b16 %v9193, %v9189
        %v9258 = vpack.c.b16 %v9194, %v9190
        %v9259 = vpack.c.b16 %v9195, %v9191
        %v9260 = vpack.c.b16 %v9196, %v9192
        %9325 = vmatpush.bf16.msra.mxu0 %v9225
        %9326 = vmatpush.bf16.msra.mxu0 %v9221
        %9327 = vmatpush.bf16.msra.mxu0 %v9217
        %9328 = vmatpush.bf16.msra.mxu0 %v9213
        %9329 = vmatpush.bf16.msra.mxu0 %v9209
        %9330 = vmatpush.bf16.msra.mxu0 %v9205
        %9331 = vmatpush.bf16.msra.mxu0 %v9201
        %9332 = vmatpush.bf16.msra.mxu0 %v9197
        %9333 = vmatmul.bf16.gmra.mxu0 %v8929
        %v9334 = vpop.f32.mrf.mxu0
        %v9335 = vadd.f32 %v8997, %v9334
        %v9336 = vpop.f32.mrf.mxu0
        %v9337 = vadd.f32 %v8997, %v9336
        %9338 = vdwg.mxu0
        %9339 = vmatpush.bf16.msra.mxu0 %v9257
        %9340 = vmatpush.bf16.msra.mxu0 %v9253
        %9341 = vmatpush.bf16.msra.mxu0 %v9249
        %9342 = vmatpush.bf16.msra.mxu0 %v9245
        %9343 = vmatpush.bf16.msra.mxu0 %v9241
        %9344 = vmatpush.bf16.msra.mxu0 %v9237
        %9345 = vmatpush.bf16.msra.mxu0 %v9233
        %9346 = vmatpush.bf16.msra.mxu0 %v9229
        %9347 = vmatmul.bf16.gmra.mxu0 %v8930
        %v9348 = vpop.f32.mrf.mxu0
        %v9349 = vadd.f32 %v9335, %v9348
        %v9350 = vpop.f32.mrf.mxu0
        %v9351 = vadd.f32 %v9337, %v9350
        %9352 = vdwg.mxu0
        %9353 = vmatpush.bf16.msra.mxu0 %v9226
        %9354 = vmatpush.bf16.msra.mxu0 %v9222
        %9355 = vmatpush.bf16.msra.mxu0 %v9218
        %9356 = vmatpush.bf16.msra.mxu0 %v9214
        %9357 = vmatpush.bf16.msra.mxu0 %v9210
        %9358 = vmatpush.bf16.msra.mxu0 %v9206
        %9359 = vmatpush.bf16.msra.mxu0 %v9202
        %9360 = vmatpush.bf16.msra.mxu0 %v9198
        %9361 = vmatmul.bf16.gmra.mxu0 %v8929
        %v9362 = vpop.f32.mrf.mxu0
        %v9363 = vadd.f32 %v8998, %v9362
        %v9364 = vpop.f32.mrf.mxu0
        %v9365 = vadd.f32 %v8998, %v9364
        %9366 = vdwg.mxu0
        %9367 = vmatpush.bf16.msra.mxu0 %v9258
        %9368 = vmatpush.bf16.msra.mxu0 %v9254
        %9369 = vmatpush.bf16.msra.mxu0 %v9250
        %9370 = vmatpush.bf16.msra.mxu0 %v9246
        %9371 = vmatpush.bf16.msra.mxu0 %v9242
        %9372 = vmatpush.bf16.msra.mxu0 %v9238
        %9373 = vmatpush.bf16.msra.mxu0 %v9234
        %9374 = vmatpush.bf16.msra.mxu0 %v9230
        %9375 = vmatmul.bf16.gmra.mxu0 %v8930
        %v9376 = vpop.f32.mrf.mxu0
        %v9377 = vadd.f32 %v9363, %v9376
        %v9378 = vpop.f32.mrf.mxu0
        %v9379 = vadd.f32 %v9365, %v9378
        %9380 = vdwg.mxu0
        %9381 = vmatpush.bf16.msra.mxu0 %v9227
        %9382 = vmatpush.bf16.msra.mxu0 %v9223
        %9383 = vmatpush.bf16.msra.mxu0 %v9219
        %9384 = vmatpush.bf16.msra.mxu0 %v9215
        %9385 = vmatpush.bf16.msra.mxu0 %v9211
        %9386 = vmatpush.bf16.msra.mxu0 %v9207
        %9387 = vmatpush.bf16.msra.mxu0 %v9203
        %9388 = vmatpush.bf16.msra.mxu0 %v9199
        %9389 = vmatmul.bf16.gmra.mxu0 %v8929
        %v9390 = vpop.f32.mrf.mxu0
        %v9391 = vadd.f32 %v8999, %v9390
        %v9392 = vpop.f32.mrf.mxu0
        %v9393 = vadd.f32 %v8999, %v9392
        %9394 = vdwg.mxu0
        %9395 = vmatpush.bf16.msra.mxu0 %v9259
        %9396 = vmatpush.bf16.msra.mxu0 %v9255
        %9397 = vmatpush.bf16.msra.mxu0 %v9251
        %9398 = vmatpush.bf16.msra.mxu0 %v9247
        %9399 = vmatpush.bf16.msra.mxu0 %v9243
        %9400 = vmatpush.bf16.msra.mxu0 %v9239
        %9401 = vmatpush.bf16.msra.mxu0 %v9235
        %9402 = vmatpush.bf16.msra.mxu0 %v9231
        %9403 = vmatmul.bf16.gmra.mxu0 %v8930
        %v9404 = vpop.f32.mrf.mxu0
        %v9405 = vadd.f32 %v9391, %v9404
        %v9406 = vpop.f32.mrf.mxu0
        %v9407 = vadd.f32 %v9393, %v9406
        %9408 = vdwg.mxu0
        %9409 = vmatpush.bf16.msra.mxu0 %v9228
        %9410 = vmatpush.bf16.msra.mxu0 %v9224
        %9411 = vmatpush.bf16.msra.mxu0 %v9220
        %9412 = vmatpush.bf16.msra.mxu0 %v9216
        %9413 = vmatpush.bf16.msra.mxu0 %v9212
        %9414 = vmatpush.bf16.msra.mxu0 %v9208
        %9415 = vmatpush.bf16.msra.mxu0 %v9204
        %9416 = vmatpush.bf16.msra.mxu0 %v9200
        %9417 = vmatmul.bf16.gmra.mxu0 %v8929
        %v9418 = vpop.f32.mrf.mxu0
        %v9419 = vadd.f32 %v9000, %v9418
        %v9420 = vpop.f32.mrf.mxu0
        %v9421 = vadd.f32 %v9000, %v9420
        %9422 = vdwg.mxu0
        %9423 = vmatpush.bf16.msra.mxu0 %v9260
        %9424 = vmatpush.bf16.msra.mxu0 %v9256
        %9425 = vmatpush.bf16.msra.mxu0 %v9252
        %9426 = vmatpush.bf16.msra.mxu0 %v9248
        %9427 = vmatpush.bf16.msra.mxu0 %v9244
        %9428 = vmatpush.bf16.msra.mxu0 %v9240
        %9429 = vmatpush.bf16.msra.mxu0 %v9236
        %9430 = vmatpush.bf16.msra.mxu0 %v9232
        %9431 = vmatmul.bf16.gmra.mxu0 %v8930
        %v9432 = vpop.f32.mrf.mxu0
        %v9433 = vadd.f32 %v9419, %v9432
        %v9434 = vpop.f32.mrf.mxu0
        %v9435 = vadd.f32 %v9421, %v9434
        %9436 = vdwg.mxu0
        %v9437 = vmul.f32 %v9349, %v9349
        %v9438 = vmul.f32 %v9377, %v9377
        %v9439 = vmul.f32 %v9405, %v9405
        %v9440 = vmul.f32 %v9433, %v9433
        %v9441 = vmul.f32 %v9351, %v9351
        %v9442 = vmul.f32 %v9379, %v9379
        %v9443 = vmul.f32 %v9407, %v9407
        %v9444 = vmul.f32 %v9435, %v9435
        %v9445 = vmul.f32 %v9349, %v9437
        %v9446 = vmul.f32 %v9377, %v9438
        %v9447 = vmul.f32 %v9405, %v9439
        %v9448 = vmul.f32 %v9433, %v9440
        %v9449 = vmul.f32 %v9351, %v9441
        %v9450 = vmul.f32 %v9379, %v9442
        %v9451 = vmul.f32 %v9407, %v9443
        %v9452 = vmul.f32 %v9435, %v9444
        %v9453 = vmul.f32 %v9445, 0.044715
        %v9454 = vmul.f32 %v9446, 0.044715
        %v9455 = vmul.f32 %v9447, 0.044715
        %v9456 = vmul.f32 %v9448, 0.044715
        %v9457 = vmul.f32 %v9449, 0.044715
        %v9458 = vmul.f32 %v9450, 0.044715
        %v9459 = vmul.f32 %v9451, 0.044715
        %v9460 = vmul.f32 %v9452, 0.044715
        %v9461 = vadd.f32 %v9349, %v9453
        %v9462 = vadd.f32 %v9377, %v9454
        %v9463 = vadd.f32 %v9405, %v9455
        %v9464 = vadd.f32 %v9433, %v9456
        %v9465 = vadd.f32 %v9351, %v9457
        %v9466 = vadd.f32 %v9379, %v9458
        %v9467 = vadd.f32 %v9407, %v9459
        %v9468 = vadd.f32 %v9435, %v9460
        %v9469 = vmul.f32 %v9461, 0.7978846
        %v9470 = vmul.f32 %v9462, 0.7978846
        %v9471 = vmul.f32 %v9463, 0.7978846
        %v9472 = vmul.f32 %v9464, 0.7978846
        %v9473 = vmul.f32 %v9465, 0.7978846
        %v9474 = vmul.f32 %v9466, 0.7978846
        %v9475 = vmul.f32 %v9467, 0.7978846
        %v9476 = vmul.f32 %v9468, 0.7978846
        %v9477 = vtanh.pop %v9469
        %v9478 = vtanh.pop %v9470
        %v9479 = vtanh.pop %v9471
        %v9480 = vtanh.pop %v9472
        %v9481 = vtanh.pop %v9473
        %v9482 = vtanh.pop %v9474
        %v9483 = vtanh.pop %v9475
        %v9484 = vtanh.pop %v9476
        %v9485 = vadd.f32 %v9477, 1.0
        %v9486 = vadd.f32 %v9478, 1.0
        %v9487 = vadd.f32 %v9479, 1.0
        %v9488 = vadd.f32 %v9480, 1.0
        %v9489 = vadd.f32 %v9481, 1.0
        %v9490 = vadd.f32 %v9482, 1.0
        %v9491 = vadd.f32 %v9483, 1.0
        %v9492 = vadd.f32 %v9484, 1.0
        %v9493 = vmul.f32 %v9485, 0.5
        %v9494 = vmul.f32 %v9486, 0.5
        %v9495 = vmul.f32 %v9487, 0.5
        %v9496 = vmul.f32 %v9488, 0.5
        %v9497 = vmul.f32 %v9489, 0.5
        %v9498 = vmul.f32 %v9490, 0.5
        %v9499 = vmul.f32 %v9491, 0.5
        %v9500 = vmul.f32 %v9492, 0.5
        %v9501 = vmul.f32 %v9349, %v9493
        %v9502 = vmul.f32 %v9377, %v9494
        %v9503 = vmul.f32 %v9405, %v9495
        %v9504 = vmul.f32 %v9433, %v9496
        %v9505 = vmul.f32 %v9351, %v9497
        %v9506 = vmul.f32 %v9379, %v9498
        %v9507 = vmul.f32 %v9407, %v9499
        %v9508 = vmul.f32 %v9435, %v9500
        %v9509 = vpack.c.bf16 %v9505, %v9501
        %v9510 = vpack.c.bf16 %v9506, %v9502
        %v9511 = vpack.c.bf16 %v9507, %v9503
        %v9512 = vpack.c.bf16 %v9508, %v9504
        %v9513 = vld [vmem:[#allocation14] sm:$0xff]
        %v9514 = vld [vmem:[#allocation14 + $0x8] sm:$0xff]
        %v9515 = vld [vmem:[#allocation14 + $0x10] sm:$0xff]
        %v9516 = vld [vmem:[#allocation14 + $0x18] sm:$0xff]
        %v9517 = vld [vmem:[#allocation14 + $0x20] sm:$0xff]
        %v9518 = vld [vmem:[#allocation14 + $0x28] sm:$0xff]
        %v9519 = vld [vmem:[#allocation14 + $0x30] sm:$0xff]
        %v9520 = vld [vmem:[#allocation14 + $0x38] sm:$0xff]
        %v9521 = vld [vmem:[#allocation14 + $0x40] sm:$0xff]
        %v9522 = vld [vmem:[#allocation14 + $0x48] sm:$0xff]
        %v9523 = vld [vmem:[#allocation14 + $0x50] sm:$0xff]
        %v9524 = vld [vmem:[#allocation14 + $0x58] sm:$0xff]
        %v9525 = vld [vmem:[#allocation14 + $0x60] sm:$0xff]
        %v9526 = vld [vmem:[#allocation14 + $0x68] sm:$0xff]
        %v9527 = vld [vmem:[#allocation14 + $0x70] sm:$0xff]
        %v9528 = vld [vmem:[#allocation14 + $0x78] sm:$0xff]
        %v9529 = vld [vmem:[#allocation14 + $0x80] sm:$0xff]
        %v9530 = vld [vmem:[#allocation14 + $0x88] sm:$0xff]
        %v9531 = vld [vmem:[#allocation14 + $0x90] sm:$0xff]
        %v9532 = vld [vmem:[#allocation14 + $0x98] sm:$0xff]
        %v9533 = vld [vmem:[#allocation14 + $0xa0] sm:$0xff]
        %v9534 = vld [vmem:[#allocation14 + $0xa8] sm:$0xff]
        %v9535 = vld [vmem:[#allocation14 + $0xb0] sm:$0xff]
        %v9536 = vld [vmem:[#allocation14 + $0xb8] sm:$0xff]
        %v9537 = vld [vmem:[#allocation14 + $0xc0] sm:$0xff]
        %v9538 = vld [vmem:[#allocation14 + $0xc8] sm:$0xff]
        %v9539 = vld [vmem:[#allocation14 + $0xd0] sm:$0xff]
        %v9540 = vld [vmem:[#allocation14 + $0xd8] sm:$0xff]
        %v9541 = vld [vmem:[#allocation14 + $0xe0] sm:$0xff]
        %v9542 = vld [vmem:[#allocation14 + $0xe8] sm:$0xff]
        %v9543 = vld [vmem:[#allocation14 + $0xf0] sm:$0xff]
        %v9544 = vld [vmem:[#allocation14 + $0xf8] sm:$0xff]
        %v9545 = vld [vmem:[#allocation14 + $0x100] sm:$0xff]
        %v9546 = vld [vmem:[#allocation14 + $0x108] sm:$0xff]
        %v9547 = vld [vmem:[#allocation14 + $0x110] sm:$0xff]
        %v9548 = vld [vmem:[#allocation14 + $0x118] sm:$0xff]
        %v9549 = vld [vmem:[#allocation14 + $0x120] sm:$0xff]
        %v9550 = vld [vmem:[#allocation14 + $0x128] sm:$0xff]
        %v9551 = vld [vmem:[#allocation14 + $0x130] sm:$0xff]
        %v9552 = vld [vmem:[#allocation14 + $0x138] sm:$0xff]
        %v9553 = vld [vmem:[#allocation14 + $0x140] sm:$0xff]
        %v9554 = vld [vmem:[#allocation14 + $0x148] sm:$0xff]
        %v9555 = vld [vmem:[#allocation14 + $0x150] sm:$0xff]
        %v9556 = vld [vmem:[#allocation14 + $0x158] sm:$0xff]
        %v9557 = vld [vmem:[#allocation14 + $0x160] sm:$0xff]
        %v9558 = vld [vmem:[#allocation14 + $0x168] sm:$0xff]
        %v9559 = vld [vmem:[#allocation14 + $0x170] sm:$0xff]
        %v9560 = vld [vmem:[#allocation14 + $0x178] sm:$0xff]
        %v9561 = vld [vmem:[#allocation14 + $0x180] sm:$0xff]
        %v9562 = vld [vmem:[#allocation14 + $0x188] sm:$0xff]
        %v9563 = vld [vmem:[#allocation14 + $0x190] sm:$0xff]
        %v9564 = vld [vmem:[#allocation14 + $0x198] sm:$0xff]
        %v9565 = vld [vmem:[#allocation14 + $0x1a0] sm:$0xff]
        %v9566 = vld [vmem:[#allocation14 + $0x1a8] sm:$0xff]
        %v9567 = vld [vmem:[#allocation14 + $0x1b0] sm:$0xff]
        %v9568 = vld [vmem:[#allocation14 + $0x1b8] sm:$0xff]
        %v9569 = vld [vmem:[#allocation14 + $0x1c0] sm:$0xff]
        %v9570 = vld [vmem:[#allocation14 + $0x1c8] sm:$0xff]
        %v9571 = vld [vmem:[#allocation14 + $0x1d0] sm:$0xff]
        %v9572 = vld [vmem:[#allocation14 + $0x1d8] sm:$0xff]
        %v9573 = vld [vmem:[#allocation14 + $0x1e0] sm:$0xff]
        %v9574 = vld [vmem:[#allocation14 + $0x1e8] sm:$0xff]
        %v9575 = vld [vmem:[#allocation14 + $0x1f0] sm:$0xff]
        %v9576 = vld [vmem:[#allocation14 + $0x1f8] sm:$0xff]
        %v9577 = vld [vmem:[#allocation16] sm:$0x3]
        %v9579 = vperm.slane %v9577, 0
        %v9580 = vperm.slane %v9577, 1
        %v9647 = vunpack.c.l.b16 %v9513
        %v9648 = vunpack.c.h.b16 %v9513
        %v9649 = vunpack.c.l.b16 %v9514
        %v9650 = vunpack.c.h.b16 %v9514
        %v9651 = vunpack.c.l.b16 %v9515
        %v9652 = vunpack.c.h.b16 %v9515
        %v9653 = vunpack.c.l.b16 %v9516
        %v9654 = vunpack.c.h.b16 %v9516
        %v9655 = vunpack.c.l.b16 %v9517
        %v9656 = vunpack.c.h.b16 %v9517
        %v9657 = vunpack.c.l.b16 %v9518
        %v9658 = vunpack.c.h.b16 %v9518
        %v9659 = vunpack.c.l.b16 %v9519
        %v9660 = vunpack.c.h.b16 %v9519
        %v9661 = vunpack.c.l.b16 %v9520
        %v9662 = vunpack.c.h.b16 %v9520
        %v9663 = vunpack.c.l.b16 %v9521
        %v9664 = vunpack.c.h.b16 %v9521
        %v9665 = vunpack.c.l.b16 %v9522
        %v9666 = vunpack.c.h.b16 %v9522
        %v9667 = vunpack.c.l.b16 %v9523
        %v9668 = vunpack.c.h.b16 %v9523
        %v9669 = vunpack.c.l.b16 %v9524
        %v9670 = vunpack.c.h.b16 %v9524
        %v9671 = vunpack.c.l.b16 %v9525
        %v9672 = vunpack.c.h.b16 %v9525
        %v9673 = vunpack.c.l.b16 %v9526
        %v9674 = vunpack.c.h.b16 %v9526
        %v9675 = vunpack.c.l.b16 %v9527
        %v9676 = vunpack.c.h.b16 %v9527
        %v9677 = vunpack.c.l.b16 %v9528
        %v9678 = vunpack.c.h.b16 %v9528
        %v9679 = vunpack.c.l.b16 %v9529
        %v9680 = vunpack.c.h.b16 %v9529
        %v9681 = vunpack.c.l.b16 %v9530
        %v9682 = vunpack.c.h.b16 %v9530
        %v9683 = vunpack.c.l.b16 %v9531
        %v9684 = vunpack.c.h.b16 %v9531
        %v9685 = vunpack.c.l.b16 %v9532
        %v9686 = vunpack.c.h.b16 %v9532
        %v9687 = vunpack.c.l.b16 %v9533
        %v9688 = vunpack.c.h.b16 %v9533
        %v9689 = vunpack.c.l.b16 %v9534
        %v9690 = vunpack.c.h.b16 %v9534
        %v9691 = vunpack.c.l.b16 %v9535
        %v9692 = vunpack.c.h.b16 %v9535
        %v9693 = vunpack.c.l.b16 %v9536
        %v9694 = vunpack.c.h.b16 %v9536
        %v9695 = vunpack.c.l.b16 %v9537
        %v9696 = vunpack.c.h.b16 %v9537
        %v9697 = vunpack.c.l.b16 %v9538
        %v9698 = vunpack.c.h.b16 %v9538
        %v9699 = vunpack.c.l.b16 %v9539
        %v9700 = vunpack.c.h.b16 %v9539
        %v9701 = vunpack.c.l.b16 %v9540
        %v9702 = vunpack.c.h.b16 %v9540
        %v9703 = vunpack.c.l.b16 %v9541
        %v9704 = vunpack.c.h.b16 %v9541
        %v9705 = vunpack.c.l.b16 %v9542
        %v9706 = vunpack.c.h.b16 %v9542
        %v9707 = vunpack.c.l.b16 %v9543
        %v9708 = vunpack.c.h.b16 %v9543
        %v9709 = vunpack.c.l.b16 %v9544
        %v9710 = vunpack.c.h.b16 %v9544
        %v9711 = vunpack.c.l.b16 %v9545
        %v9712 = vunpack.c.h.b16 %v9545
        %v9713 = vunpack.c.l.b16 %v9546
        %v9714 = vunpack.c.h.b16 %v9546
        %v9715 = vunpack.c.l.b16 %v9547
        %v9716 = vunpack.c.h.b16 %v9547
        %v9717 = vunpack.c.l.b16 %v9548
        %v9718 = vunpack.c.h.b16 %v9548
        %v9719 = vunpack.c.l.b16 %v9549
        %v9720 = vunpack.c.h.b16 %v9549
        %v9721 = vunpack.c.l.b16 %v9550
        %v9722 = vunpack.c.h.b16 %v9550
        %v9723 = vunpack.c.l.b16 %v9551
        %v9724 = vunpack.c.h.b16 %v9551
        %v9725 = vunpack.c.l.b16 %v9552
        %v9726 = vunpack.c.h.b16 %v9552
        %v9727 = vunpack.c.l.b16 %v9553
        %v9728 = vunpack.c.h.b16 %v9553
        %v9729 = vunpack.c.l.b16 %v9554
        %v9730 = vunpack.c.h.b16 %v9554
        %v9731 = vunpack.c.l.b16 %v9555
        %v9732 = vunpack.c.h.b16 %v9555
        %v9733 = vunpack.c.l.b16 %v9556
        %v9734 = vunpack.c.h.b16 %v9556
        %v9735 = vunpack.c.l.b16 %v9557
        %v9736 = vunpack.c.h.b16 %v9557
        %v9737 = vunpack.c.l.b16 %v9558
        %v9738 = vunpack.c.h.b16 %v9558
        %v9739 = vunpack.c.l.b16 %v9559
        %v9740 = vunpack.c.h.b16 %v9559
        %v9741 = vunpack.c.l.b16 %v9560
        %v9742 = vunpack.c.h.b16 %v9560
        %v9743 = vunpack.c.l.b16 %v9561
        %v9744 = vunpack.c.h.b16 %v9561
        %v9745 = vunpack.c.l.b16 %v9562
        %v9746 = vunpack.c.h.b16 %v9562
        %v9747 = vunpack.c.l.b16 %v9563
        %v9748 = vunpack.c.h.b16 %v9563
        %v9749 = vunpack.c.l.b16 %v9564
        %v9750 = vunpack.c.h.b16 %v9564
        %v9751 = vunpack.c.l.b16 %v9565
        %v9752 = vunpack.c.h.b16 %v9565
        %v9753 = vunpack.c.l.b16 %v9566
        %v9754 = vunpack.c.h.b16 %v9566
        %v9755 = vunpack.c.l.b16 %v9567
        %v9756 = vunpack.c.h.b16 %v9567
        %v9757 = vunpack.c.l.b16 %v9568
        %v9758 = vunpack.c.h.b16 %v9568
        %v9759 = vunpack.c.l.b16 %v9569
        %v9760 = vunpack.c.h.b16 %v9569
        %v9761 = vunpack.c.l.b16 %v9570
        %v9762 = vunpack.c.h.b16 %v9570
        %v9763 = vunpack.c.l.b16 %v9571
        %v9764 = vunpack.c.h.b16 %v9571
        %v9765 = vunpack.c.l.b16 %v9572
        %v9766 = vunpack.c.h.b16 %v9572
        %v9767 = vunpack.c.l.b16 %v9573
        %v9768 = vunpack.c.h.b16 %v9573
        %v9769 = vunpack.c.l.b16 %v9574
        %v9770 = vunpack.c.h.b16 %v9574
        %v9771 = vunpack.c.l.b16 %v9575
        %v9772 = vunpack.c.h.b16 %v9575
        %v9773 = vunpack.c.l.b16 %v9576
        %v9774 = vunpack.c.h.b16 %v9576
        %v9775 = vpack.c.b16 %v9649, %v9647
        %v9776 = vpack.c.b16 %v9650, %v9648
        %v9777 = vpack.c.b16 %v9653, %v9651
        %v9778 = vpack.c.b16 %v9654, %v9652
        %v9779 = vpack.c.b16 %v9657, %v9655
        %v9780 = vpack.c.b16 %v9658, %v9656
        %v9781 = vpack.c.b16 %v9661, %v9659
        %v9782 = vpack.c.b16 %v9662, %v9660
        %v9783 = vpack.c.b16 %v9665, %v9663
        %v9784 = vpack.c.b16 %v9666, %v9664
        %v9785 = vpack.c.b16 %v9669, %v9667
        %v9786 = vpack.c.b16 %v9670, %v9668
        %v9787 = vpack.c.b16 %v9673, %v9671
        %v9788 = vpack.c.b16 %v9674, %v9672
        %v9789 = vpack.c.b16 %v9677, %v9675
        %v9790 = vpack.c.b16 %v9678, %v9676
        %v9791 = vpack.c.b16 %v9681, %v9679
        %v9792 = vpack.c.b16 %v9682, %v9680
        %v9793 = vpack.c.b16 %v9685, %v9683
        %v9794 = vpack.c.b16 %v9686, %v9684
        %v9795 = vpack.c.b16 %v9689, %v9687
        %v9796 = vpack.c.b16 %v9690, %v9688
        %v9797 = vpack.c.b16 %v9693, %v9691
        %v9798 = vpack.c.b16 %v9694, %v9692
        %v9799 = vpack.c.b16 %v9697, %v9695
        %v9800 = vpack.c.b16 %v9698, %v9696
        %v9801 = vpack.c.b16 %v9701, %v9699
        %v9802 = vpack.c.b16 %v9702, %v9700
        %v9803 = vpack.c.b16 %v9705, %v9703
        %v9804 = vpack.c.b16 %v9706, %v9704
        %v9805 = vpack.c.b16 %v9709, %v9707
        %v9806 = vpack.c.b16 %v9710, %v9708
        %v9807 = vpack.c.b16 %v9713, %v9711
        %v9808 = vpack.c.b16 %v9714, %v9712
        %v9809 = vpack.c.b16 %v9717, %v9715
        %v9810 = vpack.c.b16 %v9718, %v9716
        %v9811 = vpack.c.b16 %v9721, %v9719
        %v9812 = vpack.c.b16 %v9722, %v9720
        %v9813 = vpack.c.b16 %v9725, %v9723
        %v9814 = vpack.c.b16 %v9726, %v9724
        %v9815 = vpack.c.b16 %v9729, %v9727
        %v9816 = vpack.c.b16 %v9730, %v9728
        %v9817 = vpack.c.b16 %v9733, %v9731
        %v9818 = vpack.c.b16 %v9734, %v9732
        %v9819 = vpack.c.b16 %v9737, %v9735
        %v9820 = vpack.c.b16 %v9738, %v9736
        %v9821 = vpack.c.b16 %v9741, %v9739
        %v9822 = vpack.c.b16 %v9742, %v9740
        %v9823 = vpack.c.b16 %v9745, %v9743
        %v9824 = vpack.c.b16 %v9746, %v9744
        %v9825 = vpack.c.b16 %v9749, %v9747
        %v9826 = vpack.c.b16 %v9750, %v9748
        %v9827 = vpack.c.b16 %v9753, %v9751
        %v9828 = vpack.c.b16 %v9754, %v9752
        %v9829 = vpack.c.b16 %v9757, %v9755
        %v9830 = vpack.c.b16 %v9758, %v9756
        %v9831 = vpack.c.b16 %v9761, %v9759
        %v9832 = vpack.c.b16 %v9762, %v9760
        %v9833 = vpack.c.b16 %v9765, %v9763
        %v9834 = vpack.c.b16 %v9766, %v9764
        %v9835 = vpack.c.b16 %v9769, %v9767
        %v9836 = vpack.c.b16 %v9770, %v9768
        %v9837 = vpack.c.b16 %v9773, %v9771
        %v9838 = vpack.c.b16 %v9774, %v9772
        %9903 = vmatpush.bf16.msra.mxu0 %v9789
        %9904 = vmatpush.bf16.msra.mxu0 %v9787
        %9905 = vmatpush.bf16.msra.mxu0 %v9785
        %9906 = vmatpush.bf16.msra.mxu0 %v9783
        %9907 = vmatpush.bf16.msra.mxu0 %v9781
        %9908 = vmatpush.bf16.msra.mxu0 %v9779
        %9909 = vmatpush.bf16.msra.mxu0 %v9777
        %9910 = vmatpush.bf16.msra.mxu0 %v9775
        %9911 = vmatmul.bf16.gmra.mxu0 %v9509
        %v9912 = vpop.f32.mrf.mxu0
        %v9913 = vadd.f32 %v9579, %v9912
        %v9914 = vpop.f32.mrf.mxu0
        %v9915 = vadd.f32 %v9579, %v9914
        %9916 = vdwg.mxu0
        %9917 = vmatpush.bf16.msra.mxu0 %v9805
        %9918 = vmatpush.bf16.msra.mxu0 %v9803
        %9919 = vmatpush.bf16.msra.mxu0 %v9801
        %9920 = vmatpush.bf16.msra.mxu0 %v9799
        %9921 = vmatpush.bf16.msra.mxu0 %v9797
        %9922 = vmatpush.bf16.msra.mxu0 %v9795
        %9923 = vmatpush.bf16.msra.mxu0 %v9793
        %9924 = vmatpush.bf16.msra.mxu0 %v9791
        %9925 = vmatmul.bf16.gmra.mxu0 %v9510
        %v9926 = vpop.f32.mrf.mxu0
        %v9927 = vadd.f32 %v9913, %v9926
        %v9928 = vpop.f32.mrf.mxu0
        %v9929 = vadd.f32 %v9915, %v9928
        %9930 = vdwg.mxu0
        %9931 = vmatpush.bf16.msra.mxu0 %v9821
        %9932 = vmatpush.bf16.msra.mxu0 %v9819
        %9933 = vmatpush.bf16.msra.mxu0 %v9817
        %9934 = vmatpush.bf16.msra.mxu0 %v9815
        %9935 = vmatpush.bf16.msra.mxu0 %v9813
        %9936 = vmatpush.bf16.msra.mxu0 %v9811
        %9937 = vmatpush.bf16.msra.mxu0 %v9809
        %9938 = vmatpush.bf16.msra.mxu0 %v9807
        %9939 = vmatmul.bf16.gmra.mxu0 %v9511
        %v9940 = vpop.f32.mrf.mxu0
        %v9941 = vadd.f32 %v9927, %v9940
        %v9942 = vpop.f32.mrf.mxu0
        %v9943 = vadd.f32 %v9929, %v9942
        %9944 = vdwg.mxu0
        %9945 = vmatpush.bf16.msra.mxu0 %v9837
        %9946 = vmatpush.bf16.msra.mxu0 %v9835
        %9947 = vmatpush.bf16.msra.mxu0 %v9833
        %9948 = vmatpush.bf16.msra.mxu0 %v9831
        %9949 = vmatpush.bf16.msra.mxu0 %v9829
        %9950 = vmatpush.bf16.msra.mxu0 %v9827
        %9951 = vmatpush.bf16.msra.mxu0 %v9825
        %9952 = vmatpush.bf16.msra.mxu0 %v9823
        %9953 = vmatmul.bf16.gmra.mxu0 %v9512
        %v9954 = vpop.f32.mrf.mxu0
        %v9955 = vadd.f32 %v9941, %v9954
        %v9956 = vpop.f32.mrf.mxu0
        %v9957 = vadd.f32 %v9943, %v9956
        %9958 = vdwg.mxu0
        %9959 = vmatpush.bf16.msra.mxu0 %v9790
        %9960 = vmatpush.bf16.msra.mxu0 %v9788
        %9961 = vmatpush.bf16.msra.mxu0 %v9786
        %9962 = vmatpush.bf16.msra.mxu0 %v9784
        %9963 = vmatpush.bf16.msra.mxu0 %v9782
        %9964 = vmatpush.bf16.msra.mxu0 %v9780
        %9965 = vmatpush.bf16.msra.mxu0 %v9778
        %9966 = vmatpush.bf16.msra.mxu0 %v9776
        %9967 = vmatmul.bf16.gmra.mxu0 %v9509
        %v9968 = vpop.f32.mrf.mxu0
        %v9969 = vadd.f32 %v9580, %v9968
        %v9970 = vpop.f32.mrf.mxu0
        %v9971 = vadd.f32 %v9580, %v9970
        %9972 = vdwg.mxu0
        %9973 = vmatpush.bf16.msra.mxu0 %v9806
        %9974 = vmatpush.bf16.msra.mxu0 %v9804
        %9975 = vmatpush.bf16.msra.mxu0 %v9802
        %9976 = vmatpush.bf16.msra.mxu0 %v9800
        %9977 = vmatpush.bf16.msra.mxu0 %v9798
        %9978 = vmatpush.bf16.msra.mxu0 %v9796
        %9979 = vmatpush.bf16.msra.mxu0 %v9794
        %9980 = vmatpush.bf16.msra.mxu0 %v9792
        %9981 = vmatmul.bf16.gmra.mxu0 %v9510
        %v9982 = vpop.f32.mrf.mxu0
        %v9983 = vadd.f32 %v9969, %v9982
        %v9984 = vpop.f32.mrf.mxu0
        %v9985 = vadd.f32 %v9971, %v9984
        %9986 = vdwg.mxu0
        %9987 = vmatpush.bf16.msra.mxu0 %v9822
        %9988 = vmatpush.bf16.msra.mxu0 %v9820
        %9989 = vmatpush.bf16.msra.mxu0 %v9818
        %9990 = vmatpush.bf16.msra.mxu0 %v9816
        %9991 = vmatpush.bf16.msra.mxu0 %v9814
        %9992 = vmatpush.bf16.msra.mxu0 %v9812
        %9993 = vmatpush.bf16.msra.mxu0 %v9810
        %9994 = vmatpush.bf16.msra.mxu0 %v9808
        %9995 = vmatmul.bf16.gmra.mxu0 %v9511
        %v9996 = vpop.f32.mrf.mxu0
        %v9997 = vadd.f32 %v9983, %v9996
        %v9998 = vpop.f32.mrf.mxu0
        %v9999 = vadd.f32 %v9985, %v9998
        %10000 = vdwg.mxu0
        %10001 = vmatpush.bf16.msra.mxu0 %v9838
        %10002 = vmatpush.bf16.msra.mxu0 %v9836
        %10003 = vmatpush.bf16.msra.mxu0 %v9834
        %10004 = vmatpush.bf16.msra.mxu0 %v9832
        %10005 = vmatpush.bf16.msra.mxu0 %v9830
        %10006 = vmatpush.bf16.msra.mxu0 %v9828
        %10007 = vmatpush.bf16.msra.mxu0 %v9826
        %10008 = vmatpush.bf16.msra.mxu0 %v9824
        %10009 = vmatmul.bf16.gmra.mxu0 %v9512
        %v10010 = vpop.f32.mrf.mxu0
        %v10011 = vadd.f32 %v9997, %v10010
        %v10012 = vpop.f32.mrf.mxu0
        %v10013 = vadd.f32 %v9999, %v10012
        %10014 = vdwg.mxu0
        %s10015 = scalar_lea.vmem %s526, 32 [#allocation17]
        %v10016 = vld [vmem:[%s10015] sm:$0xff]
        %v10017 = vld [vmem:[%s10015 + $0x8] sm:$0xff]
        %v10018 = vld [vmem:[%s10015 + $0x10] sm:$0xff]
        %v10019 = vld [vmem:[%s10015 + $0x18] sm:$0xff]
        %v10020 = vadd.f32 %v9955, %v10016
        %v10021 = vadd.f32 %v10011, %v10017
        %v10022 = vadd.f32 %v9957, %v10018
        %v10023 = vadd.f32 %v10013, %v10019
        %s10024 = scalar_lea.vmem %s568, 32 [#allocation19]
        %10025 = vst [vmem:[%s10024] sm:$0xff] %v10020
        %10026 = vst [vmem:[%s10024 + $0x8] sm:$0xff] %v10021
        %10027 = vst [vmem:[%s10024 + $0x10] sm:$0xff] %v10022
        %10028 = vst [vmem:[%s10024 + $0x18] sm:$0xff] %v10023
        %s10029 = sand.u32 %s280, 1
        %s10030 = scalar_lea.sflag [#allocation4], %s10029
        %s10031 = sand.u32 %s280, 1
        %s10032 = smul.addr %s10031, 64
        %s10033 = scalar_lea.vmem [#allocation19], %s10032
        // Predicated region
        $region101: #{tpu_custom_call.1} parent=59 // pred_check
          %p10034 = pneg %p290
        $region102: #{tpu_custom_call.1} parent=59 // pred_check_branch
          %10036 = sbr.rel (%p10034) target = $region104
        $region103: #{tpu_custom_call.1} parent=59 // pred_region
          %s10037 = smul.u32 2, %s38
          %s10038 = smul.u32 2, %s39
          %10040 = vsyncadd %s10030, 0
          %s10041 = smul.addr %s10038, 2
          %s10042 = smul.addr %s10037, 4
          %s10043 = sadd.s32 %s10041, %s10042
          %s10044 = smul.addr %s10043, 8
          %s10045 = scalar_lea.hbm %s10, %s10044
          %s10046 = sshll.u32 %s10033, 4
          %s10047 = int_to_ptr.vmem [resolvable:$true] %s10046
          %s10048 = sshll.u32 %s10045, 4
          %s10049 = int_to_ptr.hbm [resolvable:$true] %s10048
          %10054 = dma.vmem_to_hbm [thread:$0]  %s10047, 1024, %s10049, %s10030, 256, 256, 16
        $region104: #{tpu_custom_call.1} parent=59 // pred_fallthru
          _
      $region60: #{tpu_custom_call.1} parent=5 // pred_fallthru
        _
      %p10055 = scmp.le.s32.totalorder 2, %s29
      // Predicated region
      $region105: #{tpu_custom_call.1} parent=5 // pred_check
        %p10056 = pneg %p10055
      $region106: #{tpu_custom_call.1} parent=5 // pred_check_branch
        %10058 = sbr.rel (%p10056) target = $region108
      $region107: #{tpu_custom_call.1} parent=5 // pred_region
        %s10059 = ssub.s32 %s29, 2
        // Predicated region
        $region109: #{tpu_custom_call.1} parent=107 // pred_check
          %p10060 = pneg %p296
        $region110: #{tpu_custom_call.1} parent=107 // pred_check_branch
          %10062 = sbr.rel (%p10060) target = $region112
        $region111: #{tpu_custom_call.1} parent=107 // pred_region
          %s10063 = sand.u32 %s281, 1
          %s10064 = scalar_lea.sflag [#allocation4], %s10063
          %s10065 = sand.u32 %s281, 1
          %s10066 = smul.addr %s10065, 64
          %s10067 = scalar_lea.vmem [#allocation19], %s10066
          %10069 = dma.done %s10064, 1024
        $region112: #{tpu_custom_call.1} parent=107 // pred_fallthru
          _
      $region108: #{tpu_custom_call.1} parent=5 // pred_fallthru
        _
    $region6: #{tpu_custom_call.1} parent=1 // loop_footer
      %s33 = sadd.s32 1, %s29
    $region7: #{tpu_custom_call.1} parent=1 // loop_footer_branch
      %28 = sbr.rel target = $region3
    $region8: #{tpu_custom_call.1} parent=1 // loop_exit
      _
    %10070 = vsyncpa [#allocation3], 1
    %s10071 = scalar_lea.sflag [#allocation3], 1
    %10072 = vsyncpa %s10071, 1
    %10073 = vsyncpa [#allocation6], 1
    %10074 = vsyncpa [#allocation9], 1
    %10075 = vsyncpa [#allocation12], 1
    %10076 = vsyncpa [#allocation15], 1
    %10077 = vsyncpa [#allocation18], 1
    %s10078 = scalar_lea.sflag [#allocation18], 1
    %10079 = vsyncpa %s10078, 1
    %10080 = vsyncpa [#allocation4], 1
    %s10081 = scalar_lea.sflag [#allocation4], 1
    %10082 = vsyncpa %s10081, 1

</llo_original>
